<compile_context>
chip_gen: v7x
topology: tpu7x:2x2x1
jax: 0.10.0
libtpu: 0.0.40
codegen_flags: <defaults>
</compile_context>

<pallas_src>
import functools

import jax
import jax.numpy as jnp
import numpy as np
from jax.experimental import pallas as pl
from jax.experimental.pallas import tpu as pltpu


# ---------------------------------------------------------------------------
# Host-side helper tables
# ---------------------------------------------------------------------------
def rotary_tables(seq_len, d, base=10000.0):
    theta = 1.0 / (base ** (jnp.arange(0, d, 2, dtype=jnp.float32) / d))    # (d/2,)
    idx = jnp.arange(seq_len, dtype=jnp.float32)[:, None] * theta[None, :]  # (S, d/2)
    idx2 = jnp.concatenate([idx, idx], axis=1)                              # (S, d)
    return jnp.cos(idx2), jnp.sin(idx2)


def rotate_half_matrix(num_head, head_dim):
    """Signed permutation R with (q @ R)[:, h*d + j] == rotate_half(q_head_h)[:, j]."""
    hidden = num_head * head_dim
    d2 = head_dim // 2
    m = np.zeros((hidden, hidden), np.float32)
    for h in range(num_head):
        b = h * head_dim
        for j in range(d2):
            m[b + j + d2, b + j] = -1.0   # out[:, j]       = -q[:, j + d/2]
            m[b + j, b + j + d2] = 1.0    # out[:, j + d/2] =  q[:, j]
    return jnp.asarray(m)


def init_block_params(key, inp, hidden):
    ks = jax.random.split(key, 6)
    w = 0.1
    return {
        "wq": w * jax.random.normal(ks[0], (inp, hidden), jnp.float32),
        "bq": w * jax.random.normal(ks[1], (1, hidden), jnp.float32),
        "wv": w * jax.random.normal(ks[2], (inp, hidden), jnp.float32),
        "bv": w * jax.random.normal(ks[3], (1, hidden), jnp.float32),
        "wo": w * jax.random.normal(ks[4], (hidden, inp), jnp.float32),
        "bo": w * jax.random.normal(ks[5], (1, inp), jnp.float32),
        "gamma": jnp.ones((1, inp), jnp.float32),   # nn.LayerNorm default init
        "beta": jnp.zeros((1, inp), jnp.float32),
    }


# ---------------------------------------------------------------------------
# Fused kernel: one grid step = one batch element, all 5 blocks chained in VMEM
# ---------------------------------------------------------------------------
def _fused_attention_chain_kernel(x_ref, c_ref, cos_ref, sin_ref, rot_ref,
                                  wq_ref, bq_ref, wv_ref, bv_ref,
                                  wo_ref, bo_ref, gamma_ref, beta_ref,
                                  out_ref, *, num_blocks, num_head, head_dim,
                                  scale, eps):
    x = x_ref[0]            # (S, INP)   residual stream (updated block to block)
    c = c_ref[0]            # (S, INP)   condition, fixed for all 5 blocks
    cos = cos_ref[...]      # (S, hidden)  rotary cos, pre-tiled over heads
    sin = sin_ref[...]      # (S, hidden)  rotary sin, pre-tiled over heads
    rot = rot_ref[...]      # (hidden, hidden) signed rotate-half permutation

    d = head_dim
    for blk in range(num_blocks):              # static unroll over the 5 fused blocks
        wq = wq_ref[blk]                       # (INP, hidden)
        wv = wv_ref[blk]                       # (INP, hidden)
        wo = wo_ref[blk]                       # (hidden, INP)
        bq = bq_ref[blk]                       # (1, hidden)
        bv = bv_ref[blk]                       # (1, hidden)
        bo = bo_ref[blk]                       # (1, INP)
        gamma = gamma_ref[blk]                 # (1, INP)
        beta = beta_ref[blk]                   # (1, INP)

        # Linear projections (PyTorch Linear: y = x @ W^T + b; W passed pre-transposed).
        q = jnp.dot(c, wq, preferred_element_type=jnp.float32) + bq     # (S, hidden)
        v = jnp.dot(x, wv, preferred_element_type=jnp.float32) + bv     # (S, hidden)
        # NOTE: the reference also computes K = self.K(x) (and rotates it), but K is
        # never used in the attention math (att_map = einsum(q, v)), so it is omitted
        # -- the forward output is identical.

        # Rotary on Q, all heads at once: rotate_half(q) == q @ rot (MXU, no relayouts).
        q = q * cos + jnp.dot(q, rot, preferred_element_type=jnp.float32) * sin

        # Multi-head attention: scores contract q with v (matching the reference),
        # softmax over keys, then weighted sum of v.
        head_outs = []
        for h in range(num_head):                            # H = 4, static
            qh = q[:, h * d:(h + 1) * d]                     # (S, d)
            vh = v[:, h * d:(h + 1) * d]                     # (S, d)
            s = jnp.dot(qh, vh.T, preferred_element_type=jnp.float32) * scale
            s = s - jnp.max(s, axis=-1, keepdims=True)
            p = jnp.exp(s)
            p = p * pl.reciprocal(jnp.sum(p, axis=-1, keepdims=True), approx=True)
            head_outs.append(jnp.dot(p, vh, preferred_element_type=jnp.float32))
        attn = jnp.concatenate(head_outs, axis=-1)           # (S, hidden)

        # Output projection + residual + LayerNorm(inp) (biased var, eps=1e-5) + ReLU.
        res = jnp.dot(attn, wo, preferred_element_type=jnp.float32) + bo + x
        mean = jnp.mean(res, axis=-1, keepdims=True)
        var = jnp.mean((res - mean) ** 2, axis=-1, keepdims=True)
        y = (res - mean) * jax.lax.rsqrt(var + eps) * gamma + beta
        x = jnp.maximum(y, 0.0)

    out_ref[0] = x.astype(out_ref.dtype)


# ---------------------------------------------------------------------------
# Wrapper: one pallas_call for the whole Attention_block
# ---------------------------------------------------------------------------
def attention_block_forward(x, c, block_params, *, num_head):
    B, S, INP = x.shape
    num_blocks = len(block_params)
    hidden = block_params[0]["wq"].shape[1]
    head_d = hidden // num_head
    scale = float(head_d) ** (-0.5)

    # Stack the 5 blocks' parameters on a leading axis (stays resident in VMEM).
    stacked = {k: jnp.stack([p[k] for p in block_params]) for k in block_params[0]}

    # Rotary tables tiled over heads -> (S, hidden); signed rotate-half permutation.
    cos, sin = rotary_tables(S, head_d)
    cos_full = jnp.tile(cos, (1, num_head))
    sin_full = jnp.tile(sin, (1, num_head))
    rot = rotate_half_matrix(num_head, head_d)

    kernel = functools.partial(
        _fused_attention_chain_kernel,
        num_blocks=num_blocks, num_head=num_head, head_dim=head_d,
        scale=scale, eps=1e-5)

    seq_spec = pl.BlockSpec((1, S, INP), lambda b: (b, 0, 0))

    def whole(arr):
        nd = arr.ndim
        return pl.BlockSpec(arr.shape, lambda b, _nd=nd: (0,) * _nd)

    operands = [x, c, cos_full, sin_full, rot,
                stacked["wq"], stacked["bq"], stacked["wv"], stacked["bv"],
                stacked["wo"], stacked["bo"], stacked["gamma"], stacked["beta"]]
    in_specs = [seq_spec, seq_spec] + [whole(a) for a in operands[2:]]

    return pl.pallas_call(
        kernel,
        out_shape=jax.ShapeDtypeStruct((B, S, INP), x.dtype),
        grid=(B,),
        in_specs=in_specs,
        out_specs=seq_spec,
        compiler_params=pltpu.CompilerParams(dimension_semantics=("parallel",)),
    )(*operands)


# ---------------------------------------------------------------------------
# Pure-JAX (XLA) mirror of the PyTorch forward, for validation
# ---------------------------------------------------------------------------
def _reference_forward(x, c, block_params, *, num_head):
    B, S, INP = x.shape
    hidden = block_params[0]["wq"].shape[1]
    d = hidden // num_head
    cos, sin = rotary_tables(S, d)
    cos4 = cos[None, :, None, :]
    sin4 = sin[None, :, None, :]
    scale = float(d) ** (-0.5)
    d2 = d // 2

    def rope(t):  # (B, S, H, d)
        neg_half = jnp.concatenate([-t[..., d2:], t[..., :d2]], axis=-1)
        return t * cos4 + neg_half * sin4

    for p in block_params:
        q = c @ p["wq"] + p["bq"]
        v = x @ p["wv"] + p["bv"]
        q4 = rope(q.reshape(B, S, num_head, d))
        v4 = v.reshape(B, S, num_head, d)
        s = jnp.einsum('bihd,bjhd->bhij', q4, v4) * scale
        a = jax.nn.softmax(s, axis=-1)
        h = jnp.einsum('bhij,bjhd->bihd', a, v4).reshape(B, S, hidden)
        h = h @ p["wo"] + p["bo"] + x
        mean = jnp.mean(h, axis=-1, keepdims=True)
        var = jnp.mean((h - mean) ** 2, axis=-1, keepdims=True)
        h = (h - mean) / jnp.sqrt(var + 1e-5) * p["gamma"] + p["beta"]
        x = jnp.maximum(h, 0.0)
    return x


if __name__ == "__main__":
    B, S, INP = 2, 8, 32
    HIDDEN, NUM_HEAD = 32, 4

    key = jax.random.PRNGKey(0)
    kx, kc, kp = jax.random.split(key, 3)
    x = jax.random.normal(kx, (B, S, INP), jnp.float32)
    c = jax.random.normal(kc, (B, S, INP), jnp.float32)

    block_keys = jax.random.split(kp, 5)
    block_params = [init_block_params(k, INP, HIDDEN) for k in block_keys]

    out = attention_block_forward(x, c, block_params, num_head=NUM_HEAD)
    jax.block_until_ready(out)
    assert out.shape == (B, S, INP)

    ref = _reference_forward(x, c, block_params, num_head=NUM_HEAD)
    max_err = float(jnp.max(jnp.abs(out - ref)))
    assert jnp.allclose(out, ref, rtol=1e-2, atol=1e-2), max_err

    print("KERNEL_OK")
</pallas_src>

<mosaic_0001>
module attributes {stable_mosaic.version = 11 : i64} {
  func.func @_fused_attention_chain_kernel(%arg0: i32, %arg1: memref<1x8x32xf32, #tpu.memory_space<vmem>>, %arg2: memref<1x8x32xf32, #tpu.memory_space<vmem>>, %arg3: memref<8x32xf32, #tpu.memory_space<vmem>>, %arg4: memref<8x32xf32, #tpu.memory_space<vmem>>, %arg5: memref<32x32xf32, #tpu.memory_space<vmem>>, %arg6: memref<5x32x32xf32, #tpu.memory_space<vmem>>, %arg7: memref<5x1x32xf32, #tpu.memory_space<vmem>>, %arg8: memref<5x32x32xf32, #tpu.memory_space<vmem>>, %arg9: memref<5x1x32xf32, #tpu.memory_space<vmem>>, %arg10: memref<5x32x32xf32, #tpu.memory_space<vmem>>, %arg11: memref<5x1x32xf32, #tpu.memory_space<vmem>>, %arg12: memref<5x1x32xf32, #tpu.memory_space<vmem>>, %arg13: memref<5x1x32xf32, #tpu.memory_space<vmem>>, %arg14: memref<1x8x32xf32, #tpu.memory_space<vmem>>) attributes {dimension_semantics = [#tpu.dimension_semantics<parallel>], iteration_bounds = array<i64: 2>, scalar_prefetch = 0 : i64, scratch_operands = 0 : i64, tpu.core_type = #tpu.core_type<tc>, window_params = [{transform_indices = @transform_0, window_bounds = array<i64: 1, 8, 32>}, {transform_indices = @transform_1, window_bounds = array<i64: 1, 8, 32>}, {pipeline_mode = #tpu.pipeline_mode<synchronous>, transform_indices = @transform_2, window_bounds = array<i64: 8, 32>}, {pipeline_mode = #tpu.pipeline_mode<synchronous>, transform_indices = @transform_3, window_bounds = array<i64: 8, 32>}, {pipeline_mode = #tpu.pipeline_mode<synchronous>, transform_indices = @transform_4, window_bounds = array<i64: 32, 32>}, {pipeline_mode = #tpu.pipeline_mode<synchronous>, transform_indices = @transform_5, window_bounds = array<i64: 5, 32, 32>}, {pipeline_mode = #tpu.pipeline_mode<synchronous>, transform_indices = @transform_6, window_bounds = array<i64: 5, 1, 32>}, {pipeline_mode = #tpu.pipeline_mode<synchronous>, transform_indices = @transform_7, window_bounds = array<i64: 5, 32, 32>}, {pipeline_mode = #tpu.pipeline_mode<synchronous>, transform_indices = @transform_8, window_bounds = array<i64: 5, 1, 32>}, {pipeline_mode = #tpu.pipeline_mode<synchronous>, transform_indices = @transform_9, window_bounds = array<i64: 5, 32, 32>}, {pipeline_mode = #tpu.pipeline_mode<synchronous>, transform_indices = @transform_10, window_bounds = array<i64: 5, 1, 32>}, {pipeline_mode = #tpu.pipeline_mode<synchronous>, transform_indices = @transform_11, window_bounds = array<i64: 5, 1, 32>}, {pipeline_mode = #tpu.pipeline_mode<synchronous>, transform_indices = @transform_12, window_bounds = array<i64: 5, 1, 32>}, {transform_indices = @transform_13, window_bounds = array<i64: 1, 8, 32>}]} {
    %c0 = arith.constant 0 : index
    %c0_0 = arith.constant 0 : index
    %c0_1 = arith.constant 0 : index
    %0 = vector.load %arg1[%c0, %c0_0, %c0_1] : memref<1x8x32xf32, #tpu.memory_space<vmem>>, vector<1x8x32xf32>
    %1 = vector.shape_cast %0 : vector<1x8x32xf32> to vector<8x32xf32>
    %c0_2 = arith.constant 0 : index
    %c0_3 = arith.constant 0 : index
    %c0_4 = arith.constant 0 : index
    %2 = vector.load %arg2[%c0_2, %c0_3, %c0_4] : memref<1x8x32xf32, #tpu.memory_space<vmem>>, vector<1x8x32xf32>
    %3 = vector.shape_cast %2 : vector<1x8x32xf32> to vector<8x32xf32>
    %c0_5 = arith.constant 0 : index
    %c0_6 = arith.constant 0 : index
    %4 = vector.load %arg3[%c0_5, %c0_6] : memref<8x32xf32, #tpu.memory_space<vmem>>, vector<8x32xf32>
    %c0_7 = arith.constant 0 : index
    %c0_8 = arith.constant 0 : index
    %5 = vector.load %arg4[%c0_7, %c0_8] : memref<8x32xf32, #tpu.memory_space<vmem>>, vector<8x32xf32>
    %c0_9 = arith.constant 0 : index
    %c0_10 = arith.constant 0 : index
    %6 = vector.load %arg5[%c0_9, %c0_10] : memref<32x32xf32, #tpu.memory_space<vmem>>, vector<32x32xf32>
    %c0_11 = arith.constant 0 : index
    %c0_12 = arith.constant 0 : index
    %c0_13 = arith.constant 0 : index
    %7 = vector.load %arg6[%c0_11, %c0_12, %c0_13] : memref<5x32x32xf32, #tpu.memory_space<vmem>>, vector<1x32x32xf32>
    %8 = vector.shape_cast %7 : vector<1x32x32xf32> to vector<32x32xf32>
    %c0_14 = arith.constant 0 : index
    %c0_15 = arith.constant 0 : index
    %c0_16 = arith.constant 0 : index
    %9 = vector.load %arg8[%c0_14, %c0_15, %c0_16] : memref<5x32x32xf32, #tpu.memory_space<vmem>>, vector<1x32x32xf32>
    %10 = vector.shape_cast %9 : vector<1x32x32xf32> to vector<32x32xf32>
    %c0_17 = arith.constant 0 : index
    %c0_18 = arith.constant 0 : index
    %c0_19 = arith.constant 0 : index
    %11 = vector.load %arg10[%c0_17, %c0_18, %c0_19] : memref<5x32x32xf32, #tpu.memory_space<vmem>>, vector<1x32x32xf32>
    %12 = vector.shape_cast %11 : vector<1x32x32xf32> to vector<32x32xf32>
    %c0_20 = arith.constant 0 : index
    %c0_21 = arith.constant 0 : index
    %c0_22 = arith.constant 0 : index
    %13 = vector.load %arg7[%c0_20, %c0_21, %c0_22] : memref<5x1x32xf32, #tpu.memory_space<vmem>>, vector<1x1x32xf32>
    %14 = vector.shape_cast %13 : vector<1x1x32xf32> to vector<1x32xf32>
    %c0_23 = arith.constant 0 : index
    %c0_24 = arith.constant 0 : index
    %c0_25 = arith.constant 0 : index
    %15 = vector.load %arg9[%c0_23, %c0_24, %c0_25] : memref<5x1x32xf32, #tpu.memory_space<vmem>>, vector<1x1x32xf32>
    %16 = vector.shape_cast %15 : vector<1x1x32xf32> to vector<1x32xf32>
    %c0_26 = arith.constant 0 : index
    %c0_27 = arith.constant 0 : index
    %c0_28 = arith.constant 0 : index
    %17 = vector.load %arg11[%c0_26, %c0_27, %c0_28] : memref<5x1x32xf32, #tpu.memory_space<vmem>>, vector<1x1x32xf32>
    %18 = vector.shape_cast %17 : vector<1x1x32xf32> to vector<1x32xf32>
    %c0_29 = arith.constant 0 : index
    %c0_30 = arith.constant 0 : index
    %c0_31 = arith.constant 0 : index
    %19 = vector.load %arg12[%c0_29, %c0_30, %c0_31] : memref<5x1x32xf32, #tpu.memory_space<vmem>>, vector<1x1x32xf32>
    %20 = vector.shape_cast %19 : vector<1x1x32xf32> to vector<1x32xf32>
    %c0_32 = arith.constant 0 : index
    %c0_33 = arith.constant 0 : index
    %c0_34 = arith.constant 0 : index
    %21 = vector.load %arg13[%c0_32, %c0_33, %c0_34] : memref<5x1x32xf32, #tpu.memory_space<vmem>>, vector<1x1x32xf32>
    %22 = vector.shape_cast %21 : vector<1x1x32xf32> to vector<1x32xf32>
    %cst = arith.constant dense<0.000000e+00> : vector<8x32xf32>
    %23 = tpu.matmul %3, %8, %cst {dimension_numbers = #tpu.dot_dimension_numbers<[1], [0], [0], [1], [0, 0, 1, 1], [], []>} : vector<8x32xf32>, vector<32x32xf32>, vector<8x32xf32> -> vector<8x32xf32>
    %24 = vector.broadcast %14 : vector<1x32xf32> to vector<8x32xf32>
    %25 = arith.addf %23, %24 : vector<8x32xf32>
    %cst_35 = arith.constant dense<0.000000e+00> : vector<8x32xf32>
    %26 = tpu.matmul %1, %10, %cst_35 {dimension_numbers = #tpu.dot_dimension_numbers<[1], [0], [0], [1], [0, 0, 1, 1], [], []>} : vector<8x32xf32>, vector<32x32xf32>, vector<8x32xf32> -> vector<8x32xf32>
    %27 = vector.broadcast %16 : vector<1x32xf32> to vector<8x32xf32>
    %28 = arith.addf %26, %27 : vector<8x32xf32>
    %29 = arith.mulf %25, %4 : vector<8x32xf32>
    %cst_36 = arith.constant dense<0.000000e+00> : vector<8x32xf32>
    %30 = tpu.matmul %25, %6, %cst_36 {dimension_numbers = #tpu.dot_dimension_numbers<[1], [0], [0], [1], [0, 0, 1, 1], [], []>} : vector<8x32xf32>, vector<32x32xf32>, vector<8x32xf32> -> vector<8x32xf32>
    %31 = arith.mulf %30, %5 : vector<8x32xf32>
    %32 = arith.addf %29, %31 : vector<8x32xf32>
    %33 = vector.extract_strided_slice %32 {offsets = [0, 0], sizes = [8, 8], strides = [1, 1]} : vector<8x32xf32> to vector<8x8xf32>
    %34 = vector.extract_strided_slice %28 {offsets = [0, 0], sizes = [8, 8], strides = [1, 1]} : vector<8x32xf32> to vector<8x8xf32>
    %35 = tpu.transpose %34, [1, 0] : vector<8x8xf32> -> vector<8x8xf32>
    %cst_37 = arith.constant dense<0.000000e+00> : vector<8x8xf32>
    %36 = tpu.matmul %33, %35, %cst_37 {dimension_numbers = #tpu.dot_dimension_numbers<[1], [0], [0], [1], [0, 0, 1, 1], [], []>} : vector<8x8xf32>, vector<8x8xf32>, vector<8x8xf32> -> vector<8x8xf32>
    %cst_38 = arith.constant 0.353553385 : f32
    %37 = vector.broadcast %cst_38 : f32 to vector<8x8xf32>
    %38 = arith.mulf %36, %37 : vector<8x8xf32>
    %cst_39 = arith.constant dense<0xFF800000> : vector<8xf32>
    %39 = vector.multi_reduction <maximumf>, %38, %cst_39 [1] : vector<8x8xf32> to vector<8xf32>
    %40 = vector.shape_cast %39 : vector<8xf32> to vector<8x1xf32>
    %41 = vector.broadcast %40 : vector<8x1xf32> to vector<8x8xf32>
    %42 = arith.subf %38, %41 : vector<8x8xf32>
    %43 = math.exp %42 : vector<8x8xf32>
    %cst_40 = arith.constant dense<0.000000e+00> : vector<8xf32>
    %44 = vector.multi_reduction <add>, %43, %cst_40 [1] : vector<8x8xf32> to vector<8xf32>
    %45 = vector.shape_cast %44 : vector<8xf32> to vector<8x1xf32>
    %46 = tpu.reciprocal %45 {approx = true} : vector<8x1xf32> -> vector<8x1xf32>
    %47 = vector.broadcast %46 : vector<8x1xf32> to vector<8x8xf32>
    %48 = arith.mulf %43, %47 : vector<8x8xf32>
    %cst_41 = arith.constant dense<0.000000e+00> : vector<8x8xf32>
    %49 = tpu.matmul %48, %34, %cst_41 {dimension_numbers = #tpu.dot_dimension_numbers<[1], [0], [0], [1], [0, 0, 1, 1], [], []>} : vector<8x8xf32>, vector<8x8xf32>, vector<8x8xf32> -> vector<8x8xf32>
    %50 = vector.extract_strided_slice %32 {offsets = [0, 8], sizes = [8, 8], strides = [1, 1]} : vector<8x32xf32> to vector<8x8xf32>
    %51 = vector.extract_strided_slice %28 {offsets = [0, 8], sizes = [8, 8], strides = [1, 1]} : vector<8x32xf32> to vector<8x8xf32>
    %52 = tpu.transpose %51, [1, 0] : vector<8x8xf32> -> vector<8x8xf32>
    %cst_42 = arith.constant dense<0.000000e+00> : vector<8x8xf32>
    %53 = tpu.matmul %50, %52, %cst_42 {dimension_numbers = #tpu.dot_dimension_numbers<[1], [0], [0], [1], [0, 0, 1, 1], [], []>} : vector<8x8xf32>, vector<8x8xf32>, vector<8x8xf32> -> vector<8x8xf32>
    %cst_43 = arith.constant 0.353553385 : f32
    %54 = vector.broadcast %cst_43 : f32 to vector<8x8xf32>
    %55 = arith.mulf %53, %54 : vector<8x8xf32>
    %cst_44 = arith.constant dense<0xFF800000> : vector<8xf32>
    %56 = vector.multi_reduction <maximumf>, %55, %cst_44 [1] : vector<8x8xf32> to vector<8xf32>
    %57 = vector.shape_cast %56 : vector<8xf32> to vector<8x1xf32>
    %58 = vector.broadcast %57 : vector<8x1xf32> to vector<8x8xf32>
    %59 = arith.subf %55, %58 : vector<8x8xf32>
    %60 = math.exp %59 : vector<8x8xf32>
    %cst_45 = arith.constant dense<0.000000e+00> : vector<8xf32>
    %61 = vector.multi_reduction <add>, %60, %cst_45 [1] : vector<8x8xf32> to vector<8xf32>
    %62 = vector.shape_cast %61 : vector<8xf32> to vector<8x1xf32>
    %63 = tpu.reciprocal %62 {approx = true} : vector<8x1xf32> -> vector<8x1xf32>
    %64 = vector.broadcast %63 : vector<8x1xf32> to vector<8x8xf32>
    %65 = arith.mulf %60, %64 : vector<8x8xf32>
    %cst_46 = arith.constant dense<0.000000e+00> : vector<8x8xf32>
    %66 = tpu.matmul %65, %51, %cst_46 {dimension_numbers = #tpu.dot_dimension_numbers<[1], [0], [0], [1], [0, 0, 1, 1], [], []>} : vector<8x8xf32>, vector<8x8xf32>, vector<8x8xf32> -> vector<8x8xf32>
    %67 = vector.extract_strided_slice %32 {offsets = [0, 16], sizes = [8, 8], strides = [1, 1]} : vector<8x32xf32> to vector<8x8xf32>
    %68 = vector.extract_strided_slice %28 {offsets = [0, 16], sizes = [8, 8], strides = [1, 1]} : vector<8x32xf32> to vector<8x8xf32>
    %69 = tpu.transpose %68, [1, 0] : vector<8x8xf32> -> vector<8x8xf32>
    %cst_47 = arith.constant dense<0.000000e+00> : vector<8x8xf32>
    %70 = tpu.matmul %67, %69, %cst_47 {dimension_numbers = #tpu.dot_dimension_numbers<[1], [0], [0], [1], [0, 0, 1, 1], [], []>} : vector<8x8xf32>, vector<8x8xf32>, vector<8x8xf32> -> vector<8x8xf32>
    %cst_48 = arith.constant 0.353553385 : f32
    %71 = vector.broadcast %cst_48 : f32 to vector<8x8xf32>
    %72 = arith.mulf %70, %71 : vector<8x8xf32>
    %cst_49 = arith.constant dense<0xFF800000> : vector<8xf32>
    %73 = vector.multi_reduction <maximumf>, %72, %cst_49 [1] : vector<8x8xf32> to vector<8xf32>
    %74 = vector.shape_cast %73 : vector<8xf32> to vector<8x1xf32>
    %75 = vector.broadcast %74 : vector<8x1xf32> to vector<8x8xf32>
    %76 = arith.subf %72, %75 : vector<8x8xf32>
    %77 = math.exp %76 : vector<8x8xf32>
    %cst_50 = arith.constant dense<0.000000e+00> : vector<8xf32>
    %78 = vector.multi_reduction <add>, %77, %cst_50 [1] : vector<8x8xf32> to vector<8xf32>
    %79 = vector.shape_cast %78 : vector<8xf32> to vector<8x1xf32>
    %80 = tpu.reciprocal %79 {approx = true} : vector<8x1xf32> -> vector<8x1xf32>
    %81 = vector.broadcast %80 : vector<8x1xf32> to vector<8x8xf32>
    %82 = arith.mulf %77, %81 : vector<8x8xf32>
    %cst_51 = arith.constant dense<0.000000e+00> : vector<8x8xf32>
    %83 = tpu.matmul %82, %68, %cst_51 {dimension_numbers = #tpu.dot_dimension_numbers<[1], [0], [0], [1], [0, 0, 1, 1], [], []>} : vector<8x8xf32>, vector<8x8xf32>, vector<8x8xf32> -> vector<8x8xf32>
    %84 = vector.extract_strided_slice %32 {offsets = [0, 24], sizes = [8, 8], strides = [1, 1]} : vector<8x32xf32> to vector<8x8xf32>
    %85 = vector.extract_strided_slice %28 {offsets = [0, 24], sizes = [8, 8], strides = [1, 1]} : vector<8x32xf32> to vector<8x8xf32>
    %86 = tpu.transpose %85, [1, 0] : vector<8x8xf32> -> vector<8x8xf32>
    %cst_52 = arith.constant dense<0.000000e+00> : vector<8x8xf32>
    %87 = tpu.matmul %84, %86, %cst_52 {dimension_numbers = #tpu.dot_dimension_numbers<[1], [0], [0], [1], [0, 0, 1, 1], [], []>} : vector<8x8xf32>, vector<8x8xf32>, vector<8x8xf32> -> vector<8x8xf32>
    %cst_53 = arith.constant 0.353553385 : f32
    %88 = vector.broadcast %cst_53 : f32 to vector<8x8xf32>
    %89 = arith.mulf %87, %88 : vector<8x8xf32>
    %cst_54 = arith.constant dense<0xFF800000> : vector<8xf32>
    %90 = vector.multi_reduction <maximumf>, %89, %cst_54 [1] : vector<8x8xf32> to vector<8xf32>
    %91 = vector.shape_cast %90 : vector<8xf32> to vector<8x1xf32>
    %92 = vector.broadcast %91 : vector<8x1xf32> to vector<8x8xf32>
    %93 = arith.subf %89, %92 : vector<8x8xf32>
    %94 = math.exp %93 : vector<8x8xf32>
    %cst_55 = arith.constant dense<0.000000e+00> : vector<8xf32>
    %95 = vector.multi_reduction <add>, %94, %cst_55 [1] : vector<8x8xf32> to vector<8xf32>
    %96 = vector.shape_cast %95 : vector<8xf32> to vector<8x1xf32>
    %97 = tpu.reciprocal %96 {approx = true} : vector<8x1xf32> -> vector<8x1xf32>
    %98 = vector.broadcast %97 : vector<8x1xf32> to vector<8x8xf32>
    %99 = arith.mulf %94, %98 : vector<8x8xf32>
    %cst_56 = arith.constant dense<0.000000e+00> : vector<8x8xf32>
    %100 = tpu.matmul %99, %85, %cst_56 {dimension_numbers = #tpu.dot_dimension_numbers<[1], [0], [0], [1], [0, 0, 1, 1], [], []>} : vector<8x8xf32>, vector<8x8xf32>, vector<8x8xf32> -> vector<8x8xf32>
    %101 = tpu.concatenate %49, %66, %83, %100 in 1 : vector<8x8xf32>, vector<8x8xf32>, vector<8x8xf32>, vector<8x8xf32> -> vector<8x32xf32>
    %cst_57 = arith.constant dense<0.000000e+00> : vector<8x32xf32>
    %102 = tpu.matmul %101, %12, %cst_57 {dimension_numbers = #tpu.dot_dimension_numbers<[1], [0], [0], [1], [0, 0, 1, 1], [], []>} : vector<8x32xf32>, vector<32x32xf32>, vector<8x32xf32> -> vector<8x32xf32>
    %103 = vector.broadcast %18 : vector<1x32xf32> to vector<8x32xf32>
    %104 = arith.addf %102, %103 : vector<8x32xf32>
    %105 = arith.addf %104, %1 : vector<8x32xf32>
    %cst_58 = arith.constant dense<0.000000e+00> : vector<8xf32>
    %106 = vector.multi_reduction <add>, %105, %cst_58 [1] : vector<8x32xf32> to vector<8xf32>
    %107 = vector.shape_cast %106 : vector<8xf32> to vector<8x1xf32>
    %cst_59 = arith.constant 3.200000e+01 : f32
    %108 = vector.broadcast %cst_59 : f32 to vector<8x1xf32>
    %109 = arith.divf %107, %108 : vector<8x1xf32>
    %110 = vector.broadcast %109 : vector<8x1xf32> to vector<8x32xf32>
    %111 = arith.subf %105, %110 : vector<8x32xf32>
    %112 = arith.mulf %111, %111 : vector<8x32xf32>
    %cst_60 = arith.constant dense<0.000000e+00> : vector<8xf32>
    %113 = vector.multi_reduction <add>, %112, %cst_60 [1] : vector<8x32xf32> to vector<8xf32>
    %114 = vector.shape_cast %113 : vector<8xf32> to vector<8x1xf32>
    %cst_61 = arith.constant 3.200000e+01 : f32
    %115 = vector.broadcast %cst_61 : f32 to vector<8x1xf32>
    %116 = arith.divf %114, %115 : vector<8x1xf32>
    %117 = vector.broadcast %109 : vector<8x1xf32> to vector<8x32xf32>
    %118 = arith.subf %105, %117 : vector<8x32xf32>
    %cst_62 = arith.constant 9.99999974E-6 : f32
    %119 = vector.broadcast %cst_62 : f32 to vector<8x1xf32>
    %120 = arith.addf %116, %119 : vector<8x1xf32>
    %121 = math.rsqrt %120 : vector<8x1xf32>
    %122 = vector.broadcast %121 : vector<8x1xf32> to vector<8x32xf32>
    %123 = arith.mulf %118, %122 : vector<8x32xf32>
    %124 = vector.broadcast %20 : vector<1x32xf32> to vector<8x32xf32>
    %125 = arith.mulf %123, %124 : vector<8x32xf32>
    %126 = vector.broadcast %22 : vector<1x32xf32> to vector<8x32xf32>
    %127 = arith.addf %125, %126 : vector<8x32xf32>
    %cst_63 = arith.constant 0.000000e+00 : f32
    %128 = vector.broadcast %cst_63 : f32 to vector<8x32xf32>
    %129 = arith.maximumf %127, %128 : vector<8x32xf32>
    %c1 = arith.constant 1 : index
    %c0_64 = arith.constant 0 : index
    %c0_65 = arith.constant 0 : index
    %130 = vector.load %arg6[%c1, %c0_64, %c0_65] : memref<5x32x32xf32, #tpu.memory_space<vmem>>, vector<1x32x32xf32>
    %131 = vector.shape_cast %130 : vector<1x32x32xf32> to vector<32x32xf32>
    %c1_66 = arith.constant 1 : index
    %c0_67 = arith.constant 0 : index
    %c0_68 = arith.constant 0 : index
    %132 = vector.load %arg8[%c1_66, %c0_67, %c0_68] : memref<5x32x32xf32, #tpu.memory_space<vmem>>, vector<1x32x32xf32>
    %133 = vector.shape_cast %132 : vector<1x32x32xf32> to vector<32x32xf32>
    %c1_69 = arith.constant 1 : index
    %c0_70 = arith.constant 0 : index
    %c0_71 = arith.constant 0 : index
    %134 = vector.load %arg10[%c1_69, %c0_70, %c0_71] : memref<5x32x32xf32, #tpu.memory_space<vmem>>, vector<1x32x32xf32>
    %135 = vector.shape_cast %134 : vector<1x32x32xf32> to vector<32x32xf32>
    %c1_72 = arith.constant 1 : index
    %c0_73 = arith.constant 0 : index
    %c0_74 = arith.constant 0 : index
    %136 = vector.load %arg7[%c1_72, %c0_73, %c0_74] : memref<5x1x32xf32, #tpu.memory_space<vmem>>, vector<1x1x32xf32>
    %137 = vector.shape_cast %136 : vector<1x1x32xf32> to vector<1x32xf32>
    %c1_75 = arith.constant 1 : index
    %c0_76 = arith.constant 0 : index
    %c0_77 = arith.constant 0 : index
    %138 = vector.load %arg9[%c1_75, %c0_76, %c0_77] : memref<5x1x32xf32, #tpu.memory_space<vmem>>, vector<1x1x32xf32>
    %139 = vector.shape_cast %138 : vector<1x1x32xf32> to vector<1x32xf32>
    %c1_78 = arith.constant 1 : index
    %c0_79 = arith.constant 0 : index
    %c0_80 = arith.constant 0 : index
    %140 = vector.load %arg11[%c1_78, %c0_79, %c0_80] : memref<5x1x32xf32, #tpu.memory_space<vmem>>, vector<1x1x32xf32>
    %141 = vector.shape_cast %140 : vector<1x1x32xf32> to vector<1x32xf32>
    %c1_81 = arith.constant 1 : index
    %c0_82 = arith.constant 0 : index
    %c0_83 = arith.constant 0 : index
    %142 = vector.load %arg12[%c1_81, %c0_82, %c0_83] : memref<5x1x32xf32, #tpu.memory_space<vmem>>, vector<1x1x32xf32>
    %143 = vector.shape_cast %142 : vector<1x1x32xf32> to vector<1x32xf32>
    %c1_84 = arith.constant 1 : index
    %c0_85 = arith.constant 0 : index
    %c0_86 = arith.constant 0 : index
    %144 = vector.load %arg13[%c1_84, %c0_85, %c0_86] : memref<5x1x32xf32, #tpu.memory_space<vmem>>, vector<1x1x32xf32>
    %145 = vector.shape_cast %144 : vector<1x1x32xf32> to vector<1x32xf32>
    %cst_87 = arith.constant dense<0.000000e+00> : vector<8x32xf32>
    %146 = tpu.matmul %3, %131, %cst_87 {dimension_numbers = #tpu.dot_dimension_numbers<[1], [0], [0], [1], [0, 0, 1, 1], [], []>} : vector<8x32xf32>, vector<32x32xf32>, vector<8x32xf32> -> vector<8x32xf32>
    %147 = vector.broadcast %137 : vector<1x32xf32> to vector<8x32xf32>
    %148 = arith.addf %146, %147 : vector<8x32xf32>
    %cst_88 = arith.constant dense<0.000000e+00> : vector<8x32xf32>
    %149 = tpu.matmul %129, %133, %cst_88 {dimension_numbers = #tpu.dot_dimension_numbers<[1], [0], [0], [1], [0, 0, 1, 1], [], []>} : vector<8x32xf32>, vector<32x32xf32>, vector<8x32xf32> -> vector<8x32xf32>
    %150 = vector.broadcast %139 : vector<1x32xf32> to vector<8x32xf32>
    %151 = arith.addf %149, %150 : vector<8x32xf32>
    %152 = arith.mulf %148, %4 : vector<8x32xf32>
    %cst_89 = arith.constant dense<0.000000e+00> : vector<8x32xf32>
    %153 = tpu.matmul %148, %6, %cst_89 {dimension_numbers = #tpu.dot_dimension_numbers<[1], [0], [0], [1], [0, 0, 1, 1], [], []>} : vector<8x32xf32>, vector<32x32xf32>, vector<8x32xf32> -> vector<8x32xf32>
    %154 = arith.mulf %153, %5 : vector<8x32xf32>
    %155 = arith.addf %152, %154 : vector<8x32xf32>
    %156 = vector.extract_strided_slice %155 {offsets = [0, 0], sizes = [8, 8], strides = [1, 1]} : vector<8x32xf32> to vector<8x8xf32>
    %157 = vector.extract_strided_slice %151 {offsets = [0, 0], sizes = [8, 8], strides = [1, 1]} : vector<8x32xf32> to vector<8x8xf32>
    %158 = tpu.transpose %157, [1, 0] : vector<8x8xf32> -> vector<8x8xf32>
    %cst_90 = arith.constant dense<0.000000e+00> : vector<8x8xf32>
    %159 = tpu.matmul %156, %158, %cst_90 {dimension_numbers = #tpu.dot_dimension_numbers<[1], [0], [0], [1], [0, 0, 1, 1], [], []>} : vector<8x8xf32>, vector<8x8xf32>, vector<8x8xf32> -> vector<8x8xf32>
    %cst_91 = arith.constant 0.353553385 : f32
    %160 = vector.broadcast %cst_91 : f32 to vector<8x8xf32>
    %161 = arith.mulf %159, %160 : vector<8x8xf32>
    %cst_92 = arith.constant dense<0xFF800000> : vector<8xf32>
    %162 = vector.multi_reduction <maximumf>, %161, %cst_92 [1] : vector<8x8xf32> to vector<8xf32>
    %163 = vector.shape_cast %162 : vector<8xf32> to vector<8x1xf32>
    %164 = vector.broadcast %163 : vector<8x1xf32> to vector<8x8xf32>
    %165 = arith.subf %161, %164 : vector<8x8xf32>
    %166 = math.exp %165 : vector<8x8xf32>
    %cst_93 = arith.constant dense<0.000000e+00> : vector<8xf32>
    %167 = vector.multi_reduction <add>, %166, %cst_93 [1] : vector<8x8xf32> to vector<8xf32>
    %168 = vector.shape_cast %167 : vector<8xf32> to vector<8x1xf32>
    %169 = tpu.reciprocal %168 {approx = true} : vector<8x1xf32> -> vector<8x1xf32>
    %170 = vector.broadcast %169 : vector<8x1xf32> to vector<8x8xf32>
    %171 = arith.mulf %166, %170 : vector<8x8xf32>
    %cst_94 = arith.constant dense<0.000000e+00> : vector<8x8xf32>
    %172 = tpu.matmul %171, %157, %cst_94 {dimension_numbers = #tpu.dot_dimension_numbers<[1], [0], [0], [1], [0, 0, 1, 1], [], []>} : vector<8x8xf32>, vector<8x8xf32>, vector<8x8xf32> -> vector<8x8xf32>
    %173 = vector.extract_strided_slice %155 {offsets = [0, 8], sizes = [8, 8], strides = [1, 1]} : vector<8x32xf32> to vector<8x8xf32>
    %174 = vector.extract_strided_slice %151 {offsets = [0, 8], sizes = [8, 8], strides = [1, 1]} : vector<8x32xf32> to vector<8x8xf32>
    %175 = tpu.transpose %174, [1, 0] : vector<8x8xf32> -> vector<8x8xf32>
    %cst_95 = arith.constant dense<0.000000e+00> : vector<8x8xf32>
    %176 = tpu.matmul %173, %175, %cst_95 {dimension_numbers = #tpu.dot_dimension_numbers<[1], [0], [0], [1], [0, 0, 1, 1], [], []>} : vector<8x8xf32>, vector<8x8xf32>, vector<8x8xf32> -> vector<8x8xf32>
    %cst_96 = arith.constant 0.353553385 : f32
    %177 = vector.broadcast %cst_96 : f32 to vector<8x8xf32>
    %178 = arith.mulf %176, %177 : vector<8x8xf32>
    %cst_97 = arith.constant dense<0xFF800000> : vector<8xf32>
    %179 = vector.multi_reduction <maximumf>, %178, %cst_97 [1] : vector<8x8xf32> to vector<8xf32>
    %180 = vector.shape_cast %179 : vector<8xf32> to vector<8x1xf32>
    %181 = vector.broadcast %180 : vector<8x1xf32> to vector<8x8xf32>
    %182 = arith.subf %178, %181 : vector<8x8xf32>
    %183 = math.exp %182 : vector<8x8xf32>
    %cst_98 = arith.constant dense<0.000000e+00> : vector<8xf32>
    %184 = vector.multi_reduction <add>, %183, %cst_98 [1] : vector<8x8xf32> to vector<8xf32>
    %185 = vector.shape_cast %184 : vector<8xf32> to vector<8x1xf32>
    %186 = tpu.reciprocal %185 {approx = true} : vector<8x1xf32> -> vector<8x1xf32>
    %187 = vector.broadcast %186 : vector<8x1xf32> to vector<8x8xf32>
    %188 = arith.mulf %183, %187 : vector<8x8xf32>
    %cst_99 = arith.constant dense<0.000000e+00> : vector<8x8xf32>
    %189 = tpu.matmul %188, %174, %cst_99 {dimension_numbers = #tpu.dot_dimension_numbers<[1], [0], [0], [1], [0, 0, 1, 1], [], []>} : vector<8x8xf32>, vector<8x8xf32>, vector<8x8xf32> -> vector<8x8xf32>
    %190 = vector.extract_strided_slice %155 {offsets = [0, 16], sizes = [8, 8], strides = [1, 1]} : vector<8x32xf32> to vector<8x8xf32>
    %191 = vector.extract_strided_slice %151 {offsets = [0, 16], sizes = [8, 8], strides = [1, 1]} : vector<8x32xf32> to vector<8x8xf32>
    %192 = tpu.transpose %191, [1, 0] : vector<8x8xf32> -> vector<8x8xf32>
    %cst_100 = arith.constant dense<0.000000e+00> : vector<8x8xf32>
    %193 = tpu.matmul %190, %192, %cst_100 {dimension_numbers = #tpu.dot_dimension_numbers<[1], [0], [0], [1], [0, 0, 1, 1], [], []>} : vector<8x8xf32>, vector<8x8xf32>, vector<8x8xf32> -> vector<8x8xf32>
    %cst_101 = arith.constant 0.353553385 : f32
    %194 = vector.broadcast %cst_101 : f32 to vector<8x8xf32>
    %195 = arith.mulf %193, %194 : vector<8x8xf32>
    %cst_102 = arith.constant dense<0xFF800000> : vector<8xf32>
    %196 = vector.multi_reduction <maximumf>, %195, %cst_102 [1] : vector<8x8xf32> to vector<8xf32>
    %197 = vector.shape_cast %196 : vector<8xf32> to vector<8x1xf32>
    %198 = vector.broadcast %197 : vector<8x1xf32> to vector<8x8xf32>
    %199 = arith.subf %195, %198 : vector<8x8xf32>
    %200 = math.exp %199 : vector<8x8xf32>
    %cst_103 = arith.constant dense<0.000000e+00> : vector<8xf32>
    %201 = vector.multi_reduction <add>, %200, %cst_103 [1] : vector<8x8xf32> to vector<8xf32>
    %202 = vector.shape_cast %201 : vector<8xf32> to vector<8x1xf32>
    %203 = tpu.reciprocal %202 {approx = true} : vector<8x1xf32> -> vector<8x1xf32>
    %204 = vector.broadcast %203 : vector<8x1xf32> to vector<8x8xf32>
    %205 = arith.mulf %200, %204 : vector<8x8xf32>
    %cst_104 = arith.constant dense<0.000000e+00> : vector<8x8xf32>
    %206 = tpu.matmul %205, %191, %cst_104 {dimension_numbers = #tpu.dot_dimension_numbers<[1], [0], [0], [1], [0, 0, 1, 1], [], []>} : vector<8x8xf32>, vector<8x8xf32>, vector<8x8xf32> -> vector<8x8xf32>
    %207 = vector.extract_strided_slice %155 {offsets = [0, 24], sizes = [8, 8], strides = [1, 1]} : vector<8x32xf32> to vector<8x8xf32>
    %208 = vector.extract_strided_slice %151 {offsets = [0, 24], sizes = [8, 8], strides = [1, 1]} : vector<8x32xf32> to vector<8x8xf32>
    %209 = tpu.transpose %208, [1, 0] : vector<8x8xf32> -> vector<8x8xf32>
    %cst_105 = arith.constant dense<0.000000e+00> : vector<8x8xf32>
    %210 = tpu.matmul %207, %209, %cst_105 {dimension_numbers = #tpu.dot_dimension_numbers<[1], [0], [0], [1], [0, 0, 1, 1], [], []>} : vector<8x8xf32>, vector<8x8xf32>, vector<8x8xf32> -> vector<8x8xf32>
    %cst_106 = arith.constant 0.353553385 : f32
    %211 = vector.broadcast %cst_106 : f32 to vector<8x8xf32>
    %212 = arith.mulf %210, %211 : vector<8x8xf32>
    %cst_107 = arith.constant dense<0xFF800000> : vector<8xf32>
    %213 = vector.multi_reduction <maximumf>, %212, %cst_107 [1] : vector<8x8xf32> to vector<8xf32>
    %214 = vector.shape_cast %213 : vector<8xf32> to vector<8x1xf32>
    %215 = vector.broadcast %214 : vector<8x1xf32> to vector<8x8xf32>
    %216 = arith.subf %212, %215 : vector<8x8xf32>
    %217 = math.exp %216 : vector<8x8xf32>
    %cst_108 = arith.constant dense<0.000000e+00> : vector<8xf32>
    %218 = vector.multi_reduction <add>, %217, %cst_108 [1] : vector<8x8xf32> to vector<8xf32>
    %219 = vector.shape_cast %218 : vector<8xf32> to vector<8x1xf32>
    %220 = tpu.reciprocal %219 {approx = true} : vector<8x1xf32> -> vector<8x1xf32>
    %221 = vector.broadcast %220 : vector<8x1xf32> to vector<8x8xf32>
    %222 = arith.mulf %217, %221 : vector<8x8xf32>
    %cst_109 = arith.constant dense<0.000000e+00> : vector<8x8xf32>
    %223 = tpu.matmul %222, %208, %cst_109 {dimension_numbers = #tpu.dot_dimension_numbers<[1], [0], [0], [1], [0, 0, 1, 1], [], []>} : vector<8x8xf32>, vector<8x8xf32>, vector<8x8xf32> -> vector<8x8xf32>
    %224 = tpu.concatenate %172, %189, %206, %223 in 1 : vector<8x8xf32>, vector<8x8xf32>, vector<8x8xf32>, vector<8x8xf32> -> vector<8x32xf32>
    %cst_110 = arith.constant dense<0.000000e+00> : vector<8x32xf32>
    %225 = tpu.matmul %224, %135, %cst_110 {dimension_numbers = #tpu.dot_dimension_numbers<[1], [0], [0], [1], [0, 0, 1, 1], [], []>} : vector<8x32xf32>, vector<32x32xf32>, vector<8x32xf32> -> vector<8x32xf32>
    %226 = vector.broadcast %141 : vector<1x32xf32> to vector<8x32xf32>
    %227 = arith.addf %225, %226 : vector<8x32xf32>
    %228 = arith.addf %227, %129 : vector<8x32xf32>
    %cst_111 = arith.constant dense<0.000000e+00> : vector<8xf32>
    %229 = vector.multi_reduction <add>, %228, %cst_111 [1] : vector<8x32xf32> to vector<8xf32>
    %230 = vector.shape_cast %229 : vector<8xf32> to vector<8x1xf32>
    %cst_112 = arith.constant 3.200000e+01 : f32
    %231 = vector.broadcast %cst_112 : f32 to vector<8x1xf32>
    %232 = arith.divf %230, %231 : vector<8x1xf32>
    %233 = vector.broadcast %232 : vector<8x1xf32> to vector<8x32xf32>
    %234 = arith.subf %228, %233 : vector<8x32xf32>
    %235 = arith.mulf %234, %234 : vector<8x32xf32>
    %cst_113 = arith.constant dense<0.000000e+00> : vector<8xf32>
    %236 = vector.multi_reduction <add>, %235, %cst_113 [1] : vector<8x32xf32> to vector<8xf32>
    %237 = vector.shape_cast %236 : vector<8xf32> to vector<8x1xf32>
    %cst_114 = arith.constant 3.200000e+01 : f32
    %238 = vector.broadcast %cst_114 : f32 to vector<8x1xf32>
    %239 = arith.divf %237, %238 : vector<8x1xf32>
    %240 = vector.broadcast %232 : vector<8x1xf32> to vector<8x32xf32>
    %241 = arith.subf %228, %240 : vector<8x32xf32>
    %cst_115 = arith.constant 9.99999974E-6 : f32
    %242 = vector.broadcast %cst_115 : f32 to vector<8x1xf32>
    %243 = arith.addf %239, %242 : vector<8x1xf32>
    %244 = math.rsqrt %243 : vector<8x1xf32>
    %245 = vector.broadcast %244 : vector<8x1xf32> to vector<8x32xf32>
    %246 = arith.mulf %241, %245 : vector<8x32xf32>
    %247 = vector.broadcast %143 : vector<1x32xf32> to vector<8x32xf32>
    %248 = arith.mulf %246, %247 : vector<8x32xf32>
    %249 = vector.broadcast %145 : vector<1x32xf32> to vector<8x32xf32>
    %250 = arith.addf %248, %249 : vector<8x32xf32>
    %cst_116 = arith.constant 0.000000e+00 : f32
    %251 = vector.broadcast %cst_116 : f32 to vector<8x32xf32>
    %252 = arith.maximumf %250, %251 : vector<8x32xf32>
    %c2 = arith.constant 2 : index
    %c0_117 = arith.constant 0 : index
    %c0_118 = arith.constant 0 : index
    %253 = vector.load %arg6[%c2, %c0_117, %c0_118] : memref<5x32x32xf32, #tpu.memory_space<vmem>>, vector<1x32x32xf32>
    %254 = vector.shape_cast %253 : vector<1x32x32xf32> to vector<32x32xf32>
    %c2_119 = arith.constant 2 : index
    %c0_120 = arith.constant 0 : index
    %c0_121 = arith.constant 0 : index
    %255 = vector.load %arg8[%c2_119, %c0_120, %c0_121] : memref<5x32x32xf32, #tpu.memory_space<vmem>>, vector<1x32x32xf32>
    %256 = vector.shape_cast %255 : vector<1x32x32xf32> to vector<32x32xf32>
    %c2_122 = arith.constant 2 : index
    %c0_123 = arith.constant 0 : index
    %c0_124 = arith.constant 0 : index
    %257 = vector.load %arg10[%c2_122, %c0_123, %c0_124] : memref<5x32x32xf32, #tpu.memory_space<vmem>>, vector<1x32x32xf32>
    %258 = vector.shape_cast %257 : vector<1x32x32xf32> to vector<32x32xf32>
    %c2_125 = arith.constant 2 : index
    %c0_126 = arith.constant 0 : index
    %c0_127 = arith.constant 0 : index
    %259 = vector.load %arg7[%c2_125, %c0_126, %c0_127] : memref<5x1x32xf32, #tpu.memory_space<vmem>>, vector<1x1x32xf32>
    %260 = vector.shape_cast %259 : vector<1x1x32xf32> to vector<1x32xf32>
    %c2_128 = arith.constant 2 : index
    %c0_129 = arith.constant 0 : index
    %c0_130 = arith.constant 0 : index
    %261 = vector.load %arg9[%c2_128, %c0_129, %c0_130] : memref<5x1x32xf32, #tpu.memory_space<vmem>>, vector<1x1x32xf32>
    %262 = vector.shape_cast %261 : vector<1x1x32xf32> to vector<1x32xf32>
    %c2_131 = arith.constant 2 : index
    %c0_132 = arith.constant 0 : index
    %c0_133 = arith.constant 0 : index
    %263 = vector.load %arg11[%c2_131, %c0_132, %c0_133] : memref<5x1x32xf32, #tpu.memory_space<vmem>>, vector<1x1x32xf32>
    %264 = vector.shape_cast %263 : vector<1x1x32xf32> to vector<1x32xf32>
    %c2_134 = arith.constant 2 : index
    %c0_135 = arith.constant 0 : index
    %c0_136 = arith.constant 0 : index
    %265 = vector.load %arg12[%c2_134, %c0_135, %c0_136] : memref<5x1x32xf32, #tpu.memory_space<vmem>>, vector<1x1x32xf32>
    %266 = vector.shape_cast %265 : vector<1x1x32xf32> to vector<1x32xf32>
    %c2_137 = arith.constant 2 : index
    %c0_138 = arith.constant 0 : index
    %c0_139 = arith.constant 0 : index
    %267 = vector.load %arg13[%c2_137, %c0_138, %c0_139] : memref<5x1x32xf32, #tpu.memory_space<vmem>>, vector<1x1x32xf32>
    %268 = vector.shape_cast %267 : vector<1x1x32xf32> to vector<1x32xf32>
    %cst_140 = arith.constant dense<0.000000e+00> : vector<8x32xf32>
    %269 = tpu.matmul %3, %254, %cst_140 {dimension_numbers = #tpu.dot_dimension_numbers<[1], [0], [0], [1], [0, 0, 1, 1], [], []>} : vector<8x32xf32>, vector<32x32xf32>, vector<8x32xf32> -> vector<8x32xf32>
    %270 = vector.broadcast %260 : vector<1x32xf32> to vector<8x32xf32>
    %271 = arith.addf %269, %270 : vector<8x32xf32>
    %cst_141 = arith.constant dense<0.000000e+00> : vector<8x32xf32>
    %272 = tpu.matmul %252, %256, %cst_141 {dimension_numbers = #tpu.dot_dimension_numbers<[1], [0], [0], [1], [0, 0, 1, 1], [], []>} : vector<8x32xf32>, vector<32x32xf32>, vector<8x32xf32> -> vector<8x32xf32>
    %273 = vector.broadcast %262 : vector<1x32xf32> to vector<8x32xf32>
    %274 = arith.addf %272, %273 : vector<8x32xf32>
    %275 = arith.mulf %271, %4 : vector<8x32xf32>
    %cst_142 = arith.constant dense<0.000000e+00> : vector<8x32xf32>
    %276 = tpu.matmul %271, %6, %cst_142 {dimension_numbers = #tpu.dot_dimension_numbers<[1], [0], [0], [1], [0, 0, 1, 1], [], []>} : vector<8x32xf32>, vector<32x32xf32>, vector<8x32xf32> -> vector<8x32xf32>
    %277 = arith.mulf %276, %5 : vector<8x32xf32>
    %278 = arith.addf %275, %277 : vector<8x32xf32>
    %279 = vector.extract_strided_slice %278 {offsets = [0, 0], sizes = [8, 8], strides = [1, 1]} : vector<8x32xf32> to vector<8x8xf32>
    %280 = vector.extract_strided_slice %274 {offsets = [0, 0], sizes = [8, 8], strides = [1, 1]} : vector<8x32xf32> to vector<8x8xf32>
    %281 = tpu.transpose %280, [1, 0] : vector<8x8xf32> -> vector<8x8xf32>
    %cst_143 = arith.constant dense<0.000000e+00> : vector<8x8xf32>
    %282 = tpu.matmul %279, %281, %cst_143 {dimension_numbers = #tpu.dot_dimension_numbers<[1], [0], [0], [1], [0, 0, 1, 1], [], []>} : vector<8x8xf32>, vector<8x8xf32>, vector<8x8xf32> -> vector<8x8xf32>
    %cst_144 = arith.constant 0.353553385 : f32
    %283 = vector.broadcast %cst_144 : f32 to vector<8x8xf32>
    %284 = arith.mulf %282, %283 : vector<8x8xf32>
    %cst_145 = arith.constant dense<0xFF800000> : vector<8xf32>
    %285 = vector.multi_reduction <maximumf>, %284, %cst_145 [1] : vector<8x8xf32> to vector<8xf32>
    %286 = vector.shape_cast %285 : vector<8xf32> to vector<8x1xf32>
    %287 = vector.broadcast %286 : vector<8x1xf32> to vector<8x8xf32>
    %288 = arith.subf %284, %287 : vector<8x8xf32>
    %289 = math.exp %288 : vector<8x8xf32>
    %cst_146 = arith.constant dense<0.000000e+00> : vector<8xf32>
    %290 = vector.multi_reduction <add>, %289, %cst_146 [1] : vector<8x8xf32> to vector<8xf32>
    %291 = vector.shape_cast %290 : vector<8xf32> to vector<8x1xf32>
    %292 = tpu.reciprocal %291 {approx = true} : vector<8x1xf32> -> vector<8x1xf32>
    %293 = vector.broadcast %292 : vector<8x1xf32> to vector<8x8xf32>
    %294 = arith.mulf %289, %293 : vector<8x8xf32>
    %cst_147 = arith.constant dense<0.000000e+00> : vector<8x8xf32>
    %295 = tpu.matmul %294, %280, %cst_147 {dimension_numbers = #tpu.dot_dimension_numbers<[1], [0], [0], [1], [0, 0, 1, 1], [], []>} : vector<8x8xf32>, vector<8x8xf32>, vector<8x8xf32> -> vector<8x8xf32>
    %296 = vector.extract_strided_slice %278 {offsets = [0, 8], sizes = [8, 8], strides = [1, 1]} : vector<8x32xf32> to vector<8x8xf32>
    %297 = vector.extract_strided_slice %274 {offsets = [0, 8], sizes = [8, 8], strides = [1, 1]} : vector<8x32xf32> to vector<8x8xf32>
    %298 = tpu.transpose %297, [1, 0] : vector<8x8xf32> -> vector<8x8xf32>
    %cst_148 = arith.constant dense<0.000000e+00> : vector<8x8xf32>
    %299 = tpu.matmul %296, %298, %cst_148 {dimension_numbers = #tpu.dot_dimension_numbers<[1], [0], [0], [1], [0, 0, 1, 1], [], []>} : vector<8x8xf32>, vector<8x8xf32>, vector<8x8xf32> -> vector<8x8xf32>
    %cst_149 = arith.constant 0.353553385 : f32
    %300 = vector.broadcast %cst_149 : f32 to vector<8x8xf32>
    %301 = arith.mulf %299, %300 : vector<8x8xf32>
    %cst_150 = arith.constant dense<0xFF800000> : vector<8xf32>
    %302 = vector.multi_reduction <maximumf>, %301, %cst_150 [1] : vector<8x8xf32> to vector<8xf32>
    %303 = vector.shape_cast %302 : vector<8xf32> to vector<8x1xf32>
    %304 = vector.broadcast %303 : vector<8x1xf32> to vector<8x8xf32>
    %305 = arith.subf %301, %304 : vector<8x8xf32>
    %306 = math.exp %305 : vector<8x8xf32>
    %cst_151 = arith.constant dense<0.000000e+00> : vector<8xf32>
    %307 = vector.multi_reduction <add>, %306, %cst_151 [1] : vector<8x8xf32> to vector<8xf32>
    %308 = vector.shape_cast %307 : vector<8xf32> to vector<8x1xf32>
    %309 = tpu.reciprocal %308 {approx = true} : vector<8x1xf32> -> vector<8x1xf32>
    %310 = vector.broadcast %309 : vector<8x1xf32> to vector<8x8xf32>
    %311 = arith.mulf %306, %310 : vector<8x8xf32>
    %cst_152 = arith.constant dense<0.000000e+00> : vector<8x8xf32>
    %312 = tpu.matmul %311, %297, %cst_152 {dimension_numbers = #tpu.dot_dimension_numbers<[1], [0], [0], [1], [0, 0, 1, 1], [], []>} : vector<8x8xf32>, vector<8x8xf32>, vector<8x8xf32> -> vector<8x8xf32>
    %313 = vector.extract_strided_slice %278 {offsets = [0, 16], sizes = [8, 8], strides = [1, 1]} : vector<8x32xf32> to vector<8x8xf32>
    %314 = vector.extract_strided_slice %274 {offsets = [0, 16], sizes = [8, 8], strides = [1, 1]} : vector<8x32xf32> to vector<8x8xf32>
    %315 = tpu.transpose %314, [1, 0] : vector<8x8xf32> -> vector<8x8xf32>
    %cst_153 = arith.constant dense<0.000000e+00> : vector<8x8xf32>
    %316 = tpu.matmul %313, %315, %cst_153 {dimension_numbers = #tpu.dot_dimension_numbers<[1], [0], [0], [1], [0, 0, 1, 1], [], []>} : vector<8x8xf32>, vector<8x8xf32>, vector<8x8xf32> -> vector<8x8xf32>
    %cst_154 = arith.constant 0.353553385 : f32
    %317 = vector.broadcast %cst_154 : f32 to vector<8x8xf32>
    %318 = arith.mulf %316, %317 : vector<8x8xf32>
    %cst_155 = arith.constant dense<0xFF800000> : vector<8xf32>
    %319 = vector.multi_reduction <maximumf>, %318, %cst_155 [1] : vector<8x8xf32> to vector<8xf32>
    %320 = vector.shape_cast %319 : vector<8xf32> to vector<8x1xf32>
    %321 = vector.broadcast %320 : vector<8x1xf32> to vector<8x8xf32>
    %322 = arith.subf %318, %321 : vector<8x8xf32>
    %323 = math.exp %322 : vector<8x8xf32>
    %cst_156 = arith.constant dense<0.000000e+00> : vector<8xf32>
    %324 = vector.multi_reduction <add>, %323, %cst_156 [1] : vector<8x8xf32> to vector<8xf32>
    %325 = vector.shape_cast %324 : vector<8xf32> to vector<8x1xf32>
    %326 = tpu.reciprocal %325 {approx = true} : vector<8x1xf32> -> vector<8x1xf32>
    %327 = vector.broadcast %326 : vector<8x1xf32> to vector<8x8xf32>
    %328 = arith.mulf %323, %327 : vector<8x8xf32>
    %cst_157 = arith.constant dense<0.000000e+00> : vector<8x8xf32>
    %329 = tpu.matmul %328, %314, %cst_157 {dimension_numbers = #tpu.dot_dimension_numbers<[1], [0], [0], [1], [0, 0, 1, 1], [], []>} : vector<8x8xf32>, vector<8x8xf32>, vector<8x8xf32> -> vector<8x8xf32>
    %330 = vector.extract_strided_slice %278 {offsets = [0, 24], sizes = [8, 8], strides = [1, 1]} : vector<8x32xf32> to vector<8x8xf32>
    %331 = vector.extract_strided_slice %274 {offsets = [0, 24], sizes = [8, 8], strides = [1, 1]} : vector<8x32xf32> to vector<8x8xf32>
    %332 = tpu.transpose %331, [1, 0] : vector<8x8xf32> -> vector<8x8xf32>
    %cst_158 = arith.constant dense<0.000000e+00> : vector<8x8xf32>
    %333 = tpu.matmul %330, %332, %cst_158 {dimension_numbers = #tpu.dot_dimension_numbers<[1], [0], [0], [1], [0, 0, 1, 1], [], []>} : vector<8x8xf32>, vector<8x8xf32>, vector<8x8xf32> -> vector<8x8xf32>
    %cst_159 = arith.constant 0.353553385 : f32
    %334 = vector.broadcast %cst_159 : f32 to vector<8x8xf32>
    %335 = arith.mulf %333, %334 : vector<8x8xf32>
    %cst_160 = arith.constant dense<0xFF800000> : vector<8xf32>
    %336 = vector.multi_reduction <maximumf>, %335, %cst_160 [1] : vector<8x8xf32> to vector<8xf32>
    %337 = vector.shape_cast %336 : vector<8xf32> to vector<8x1xf32>
    %338 = vector.broadcast %337 : vector<8x1xf32> to vector<8x8xf32>
    %339 = arith.subf %335, %338 : vector<8x8xf32>
    %340 = math.exp %339 : vector<8x8xf32>
    %cst_161 = arith.constant dense<0.000000e+00> : vector<8xf32>
    %341 = vector.multi_reduction <add>, %340, %cst_161 [1] : vector<8x8xf32> to vector<8xf32>
    %342 = vector.shape_cast %341 : vector<8xf32> to vector<8x1xf32>
    %343 = tpu.reciprocal %342 {approx = true} : vector<8x1xf32> -> vector<8x1xf32>
    %344 = vector.broadcast %343 : vector<8x1xf32> to vector<8x8xf32>
    %345 = arith.mulf %340, %344 : vector<8x8xf32>
    %cst_162 = arith.constant dense<0.000000e+00> : vector<8x8xf32>
    %346 = tpu.matmul %345, %331, %cst_162 {dimension_numbers = #tpu.dot_dimension_numbers<[1], [0], [0], [1], [0, 0, 1, 1], [], []>} : vector<8x8xf32>, vector<8x8xf32>, vector<8x8xf32> -> vector<8x8xf32>
    %347 = tpu.concatenate %295, %312, %329, %346 in 1 : vector<8x8xf32>, vector<8x8xf32>, vector<8x8xf32>, vector<8x8xf32> -> vector<8x32xf32>
    %cst_163 = arith.constant dense<0.000000e+00> : vector<8x32xf32>
    %348 = tpu.matmul %347, %258, %cst_163 {dimension_numbers = #tpu.dot_dimension_numbers<[1], [0], [0], [1], [0, 0, 1, 1], [], []>} : vector<8x32xf32>, vector<32x32xf32>, vector<8x32xf32> -> vector<8x32xf32>
    %349 = vector.broadcast %264 : vector<1x32xf32> to vector<8x32xf32>
    %350 = arith.addf %348, %349 : vector<8x32xf32>
    %351 = arith.addf %350, %252 : vector<8x32xf32>
    %cst_164 = arith.constant dense<0.000000e+00> : vector<8xf32>
    %352 = vector.multi_reduction <add>, %351, %cst_164 [1] : vector<8x32xf32> to vector<8xf32>
    %353 = vector.shape_cast %352 : vector<8xf32> to vector<8x1xf32>
    %cst_165 = arith.constant 3.200000e+01 : f32
    %354 = vector.broadcast %cst_165 : f32 to vector<8x1xf32>
    %355 = arith.divf %353, %354 : vector<8x1xf32>
    %356 = vector.broadcast %355 : vector<8x1xf32> to vector<8x32xf32>
    %357 = arith.subf %351, %356 : vector<8x32xf32>
    %358 = arith.mulf %357, %357 : vector<8x32xf32>
    %cst_166 = arith.constant dense<0.000000e+00> : vector<8xf32>
    %359 = vector.multi_reduction <add>, %358, %cst_166 [1] : vector<8x32xf32> to vector<8xf32>
    %360 = vector.shape_cast %359 : vector<8xf32> to vector<8x1xf32>
    %cst_167 = arith.constant 3.200000e+01 : f32
    %361 = vector.broadcast %cst_167 : f32 to vector<8x1xf32>
    %362 = arith.divf %360, %361 : vector<8x1xf32>
    %363 = vector.broadcast %355 : vector<8x1xf32> to vector<8x32xf32>
    %364 = arith.subf %351, %363 : vector<8x32xf32>
    %cst_168 = arith.constant 9.99999974E-6 : f32
    %365 = vector.broadcast %cst_168 : f32 to vector<8x1xf32>
    %366 = arith.addf %362, %365 : vector<8x1xf32>
    %367 = math.rsqrt %366 : vector<8x1xf32>
    %368 = vector.broadcast %367 : vector<8x1xf32> to vector<8x32xf32>
    %369 = arith.mulf %364, %368 : vector<8x32xf32>
    %370 = vector.broadcast %266 : vector<1x32xf32> to vector<8x32xf32>
    %371 = arith.mulf %369, %370 : vector<8x32xf32>
    %372 = vector.broadcast %268 : vector<1x32xf32> to vector<8x32xf32>
    %373 = arith.addf %371, %372 : vector<8x32xf32>
    %cst_169 = arith.constant 0.000000e+00 : f32
    %374 = vector.broadcast %cst_169 : f32 to vector<8x32xf32>
    %375 = arith.maximumf %373, %374 : vector<8x32xf32>
    %c3 = arith.constant 3 : index
    %c0_170 = arith.constant 0 : index
    %c0_171 = arith.constant 0 : index
    %376 = vector.load %arg6[%c3, %c0_170, %c0_171] : memref<5x32x32xf32, #tpu.memory_space<vmem>>, vector<1x32x32xf32>
    %377 = vector.shape_cast %376 : vector<1x32x32xf32> to vector<32x32xf32>
    %c3_172 = arith.constant 3 : index
    %c0_173 = arith.constant 0 : index
    %c0_174 = arith.constant 0 : index
    %378 = vector.load %arg8[%c3_172, %c0_173, %c0_174] : memref<5x32x32xf32, #tpu.memory_space<vmem>>, vector<1x32x32xf32>
    %379 = vector.shape_cast %378 : vector<1x32x32xf32> to vector<32x32xf32>
    %c3_175 = arith.constant 3 : index
    %c0_176 = arith.constant 0 : index
    %c0_177 = arith.constant 0 : index
    %380 = vector.load %arg10[%c3_175, %c0_176, %c0_177] : memref<5x32x32xf32, #tpu.memory_space<vmem>>, vector<1x32x32xf32>
    %381 = vector.shape_cast %380 : vector<1x32x32xf32> to vector<32x32xf32>
    %c3_178 = arith.constant 3 : index
    %c0_179 = arith.constant 0 : index
    %c0_180 = arith.constant 0 : index
    %382 = vector.load %arg7[%c3_178, %c0_179, %c0_180] : memref<5x1x32xf32, #tpu.memory_space<vmem>>, vector<1x1x32xf32>
    %383 = vector.shape_cast %382 : vector<1x1x32xf32> to vector<1x32xf32>
    %c3_181 = arith.constant 3 : index
    %c0_182 = arith.constant 0 : index
    %c0_183 = arith.constant 0 : index
    %384 = vector.load %arg9[%c3_181, %c0_182, %c0_183] : memref<5x1x32xf32, #tpu.memory_space<vmem>>, vector<1x1x32xf32>
    %385 = vector.shape_cast %384 : vector<1x1x32xf32> to vector<1x32xf32>
    %c3_184 = arith.constant 3 : index
    %c0_185 = arith.constant 0 : index
    %c0_186 = arith.constant 0 : index
    %386 = vector.load %arg11[%c3_184, %c0_185, %c0_186] : memref<5x1x32xf32, #tpu.memory_space<vmem>>, vector<1x1x32xf32>
    %387 = vector.shape_cast %386 : vector<1x1x32xf32> to vector<1x32xf32>
    %c3_187 = arith.constant 3 : index
    %c0_188 = arith.constant 0 : index
    %c0_189 = arith.constant 0 : index
    %388 = vector.load %arg12[%c3_187, %c0_188, %c0_189] : memref<5x1x32xf32, #tpu.memory_space<vmem>>, vector<1x1x32xf32>
    %389 = vector.shape_cast %388 : vector<1x1x32xf32> to vector<1x32xf32>
    %c3_190 = arith.constant 3 : index
    %c0_191 = arith.constant 0 : index
    %c0_192 = arith.constant 0 : index
    %390 = vector.load %arg13[%c3_190, %c0_191, %c0_192] : memref<5x1x32xf32, #tpu.memory_space<vmem>>, vector<1x1x32xf32>
    %391 = vector.shape_cast %390 : vector<1x1x32xf32> to vector<1x32xf32>
    %cst_193 = arith.constant dense<0.000000e+00> : vector<8x32xf32>
    %392 = tpu.matmul %3, %377, %cst_193 {dimension_numbers = #tpu.dot_dimension_numbers<[1], [0], [0], [1], [0, 0, 1, 1], [], []>} : vector<8x32xf32>, vector<32x32xf32>, vector<8x32xf32> -> vector<8x32xf32>
    %393 = vector.broadcast %383 : vector<1x32xf32> to vector<8x32xf32>
    %394 = arith.addf %392, %393 : vector<8x32xf32>
    %cst_194 = arith.constant dense<0.000000e+00> : vector<8x32xf32>
    %395 = tpu.matmul %375, %379, %cst_194 {dimension_numbers = #tpu.dot_dimension_numbers<[1], [0], [0], [1], [0, 0, 1, 1], [], []>} : vector<8x32xf32>, vector<32x32xf32>, vector<8x32xf32> -> vector<8x32xf32>
    %396 = vector.broadcast %385 : vector<1x32xf32> to vector<8x32xf32>
    %397 = arith.addf %395, %396 : vector<8x32xf32>
    %398 = arith.mulf %394, %4 : vector<8x32xf32>
    %cst_195 = arith.constant dense<0.000000e+00> : vector<8x32xf32>
    %399 = tpu.matmul %394, %6, %cst_195 {dimension_numbers = #tpu.dot_dimension_numbers<[1], [0], [0], [1], [0, 0, 1, 1], [], []>} : vector<8x32xf32>, vector<32x32xf32>, vector<8x32xf32> -> vector<8x32xf32>
    %400 = arith.mulf %399, %5 : vector<8x32xf32>
    %401 = arith.addf %398, %400 : vector<8x32xf32>
    %402 = vector.extract_strided_slice %401 {offsets = [0, 0], sizes = [8, 8], strides = [1, 1]} : vector<8x32xf32> to vector<8x8xf32>
    %403 = vector.extract_strided_slice %397 {offsets = [0, 0], sizes = [8, 8], strides = [1, 1]} : vector<8x32xf32> to vector<8x8xf32>
    %404 = tpu.transpose %403, [1, 0] : vector<8x8xf32> -> vector<8x8xf32>
    %cst_196 = arith.constant dense<0.000000e+00> : vector<8x8xf32>
    %405 = tpu.matmul %402, %404, %cst_196 {dimension_numbers = #tpu.dot_dimension_numbers<[1], [0], [0], [1], [0, 0, 1, 1], [], []>} : vector<8x8xf32>, vector<8x8xf32>, vector<8x8xf32> -> vector<8x8xf32>
    %cst_197 = arith.constant 0.353553385 : f32
    %406 = vector.broadcast %cst_197 : f32 to vector<8x8xf32>
    %407 = arith.mulf %405, %406 : vector<8x8xf32>
    %cst_198 = arith.constant dense<0xFF800000> : vector<8xf32>
    %408 = vector.multi_reduction <maximumf>, %407, %cst_198 [1] : vector<8x8xf32> to vector<8xf32>
    %409 = vector.shape_cast %408 : vector<8xf32> to vector<8x1xf32>
    %410 = vector.broadcast %409 : vector<8x1xf32> to vector<8x8xf32>
    %411 = arith.subf %407, %410 : vector<8x8xf32>
    %412 = math.exp %411 : vector<8x8xf32>
    %cst_199 = arith.constant dense<0.000000e+00> : vector<8xf32>
    %413 = vector.multi_reduction <add>, %412, %cst_199 [1] : vector<8x8xf32> to vector<8xf32>
    %414 = vector.shape_cast %413 : vector<8xf32> to vector<8x1xf32>
    %415 = tpu.reciprocal %414 {approx = true} : vector<8x1xf32> -> vector<8x1xf32>
    %416 = vector.broadcast %415 : vector<8x1xf32> to vector<8x8xf32>
    %417 = arith.mulf %412, %416 : vector<8x8xf32>
    %cst_200 = arith.constant dense<0.000000e+00> : vector<8x8xf32>
    %418 = tpu.matmul %417, %403, %cst_200 {dimension_numbers = #tpu.dot_dimension_numbers<[1], [0], [0], [1], [0, 0, 1, 1], [], []>} : vector<8x8xf32>, vector<8x8xf32>, vector<8x8xf32> -> vector<8x8xf32>
    %419 = vector.extract_strided_slice %401 {offsets = [0, 8], sizes = [8, 8], strides = [1, 1]} : vector<8x32xf32> to vector<8x8xf32>
    %420 = vector.extract_strided_slice %397 {offsets = [0, 8], sizes = [8, 8], strides = [1, 1]} : vector<8x32xf32> to vector<8x8xf32>
    %421 = tpu.transpose %420, [1, 0] : vector<8x8xf32> -> vector<8x8xf32>
    %cst_201 = arith.constant dense<0.000000e+00> : vector<8x8xf32>
    %422 = tpu.matmul %419, %421, %cst_201 {dimension_numbers = #tpu.dot_dimension_numbers<[1], [0], [0], [1], [0, 0, 1, 1], [], []>} : vector<8x8xf32>, vector<8x8xf32>, vector<8x8xf32> -> vector<8x8xf32>
    %cst_202 = arith.constant 0.353553385 : f32
    %423 = vector.broadcast %cst_202 : f32 to vector<8x8xf32>
    %424 = arith.mulf %422, %423 : vector<8x8xf32>
    %cst_203 = arith.constant dense<0xFF800000> : vector<8xf32>
    %425 = vector.multi_reduction <maximumf>, %424, %cst_203 [1] : vector<8x8xf32> to vector<8xf32>
    %426 = vector.shape_cast %425 : vector<8xf32> to vector<8x1xf32>
    %427 = vector.broadcast %426 : vector<8x1xf32> to vector<8x8xf32>
    %428 = arith.subf %424, %427 : vector<8x8xf32>
    %429 = math.exp %428 : vector<8x8xf32>
    %cst_204 = arith.constant dense<0.000000e+00> : vector<8xf32>
    %430 = vector.multi_reduction <add>, %429, %cst_204 [1] : vector<8x8xf32> to vector<8xf32>
    %431 = vector.shape_cast %430 : vector<8xf32> to vector<8x1xf32>
    %432 = tpu.reciprocal %431 {approx = true} : vector<8x1xf32> -> vector<8x1xf32>
    %433 = vector.broadcast %432 : vector<8x1xf32> to vector<8x8xf32>
    %434 = arith.mulf %429, %433 : vector<8x8xf32>
    %cst_205 = arith.constant dense<0.000000e+00> : vector<8x8xf32>
    %435 = tpu.matmul %434, %420, %cst_205 {dimension_numbers = #tpu.dot_dimension_numbers<[1], [0], [0], [1], [0, 0, 1, 1], [], []>} : vector<8x8xf32>, vector<8x8xf32>, vector<8x8xf32> -> vector<8x8xf32>
    %436 = vector.extract_strided_slice %401 {offsets = [0, 16], sizes = [8, 8], strides = [1, 1]} : vector<8x32xf32> to vector<8x8xf32>
    %437 = vector.extract_strided_slice %397 {offsets = [0, 16], sizes = [8, 8], strides = [1, 1]} : vector<8x32xf32> to vector<8x8xf32>
    %438 = tpu.transpose %437, [1, 0] : vector<8x8xf32> -> vector<8x8xf32>
    %cst_206 = arith.constant dense<0.000000e+00> : vector<8x8xf32>
    %439 = tpu.matmul %436, %438, %cst_206 {dimension_numbers = #tpu.dot_dimension_numbers<[1], [0], [0], [1], [0, 0, 1, 1], [], []>} : vector<8x8xf32>, vector<8x8xf32>, vector<8x8xf32> -> vector<8x8xf32>
    %cst_207 = arith.constant 0.353553385 : f32
    %440 = vector.broadcast %cst_207 : f32 to vector<8x8xf32>
    %441 = arith.mulf %439, %440 : vector<8x8xf32>
    %cst_208 = arith.constant dense<0xFF800000> : vector<8xf32>
    %442 = vector.multi_reduction <maximumf>, %441, %cst_208 [1] : vector<8x8xf32> to vector<8xf32>
    %443 = vector.shape_cast %442 : vector<8xf32> to vector<8x1xf32>
    %444 = vector.broadcast %443 : vector<8x1xf32> to vector<8x8xf32>
    %445 = arith.subf %441, %444 : vector<8x8xf32>
    %446 = math.exp %445 : vector<8x8xf32>
    %cst_209 = arith.constant dense<0.000000e+00> : vector<8xf32>
    %447 = vector.multi_reduction <add>, %446, %cst_209 [1] : vector<8x8xf32> to vector<8xf32>
    %448 = vector.shape_cast %447 : vector<8xf32> to vector<8x1xf32>
    %449 = tpu.reciprocal %448 {approx = true} : vector<8x1xf32> -> vector<8x1xf32>
    %450 = vector.broadcast %449 : vector<8x1xf32> to vector<8x8xf32>
    %451 = arith.mulf %446, %450 : vector<8x8xf32>
    %cst_210 = arith.constant dense<0.000000e+00> : vector<8x8xf32>
    %452 = tpu.matmul %451, %437, %cst_210 {dimension_numbers = #tpu.dot_dimension_numbers<[1], [0], [0], [1], [0, 0, 1, 1], [], []>} : vector<8x8xf32>, vector<8x8xf32>, vector<8x8xf32> -> vector<8x8xf32>
    %453 = vector.extract_strided_slice %401 {offsets = [0, 24], sizes = [8, 8], strides = [1, 1]} : vector<8x32xf32> to vector<8x8xf32>
    %454 = vector.extract_strided_slice %397 {offsets = [0, 24], sizes = [8, 8], strides = [1, 1]} : vector<8x32xf32> to vector<8x8xf32>
    %455 = tpu.transpose %454, [1, 0] : vector<8x8xf32> -> vector<8x8xf32>
    %cst_211 = arith.constant dense<0.000000e+00> : vector<8x8xf32>
    %456 = tpu.matmul %453, %455, %cst_211 {dimension_numbers = #tpu.dot_dimension_numbers<[1], [0], [0], [1], [0, 0, 1, 1], [], []>} : vector<8x8xf32>, vector<8x8xf32>, vector<8x8xf32> -> vector<8x8xf32>
    %cst_212 = arith.constant 0.353553385 : f32
    %457 = vector.broadcast %cst_212 : f32 to vector<8x8xf32>
    %458 = arith.mulf %456, %457 : vector<8x8xf32>
    %cst_213 = arith.constant dense<0xFF800000> : vector<8xf32>
    %459 = vector.multi_reduction <maximumf>, %458, %cst_213 [1] : vector<8x8xf32> to vector<8xf32>
    %460 = vector.shape_cast %459 : vector<8xf32> to vector<8x1xf32>
    %461 = vector.broadcast %460 : vector<8x1xf32> to vector<8x8xf32>
    %462 = arith.subf %458, %461 : vector<8x8xf32>
    %463 = math.exp %462 : vector<8x8xf32>
    %cst_214 = arith.constant dense<0.000000e+00> : vector<8xf32>
    %464 = vector.multi_reduction <add>, %463, %cst_214 [1] : vector<8x8xf32> to vector<8xf32>
    %465 = vector.shape_cast %464 : vector<8xf32> to vector<8x1xf32>
    %466 = tpu.reciprocal %465 {approx = true} : vector<8x1xf32> -> vector<8x1xf32>
    %467 = vector.broadcast %466 : vector<8x1xf32> to vector<8x8xf32>
    %468 = arith.mulf %463, %467 : vector<8x8xf32>
    %cst_215 = arith.constant dense<0.000000e+00> : vector<8x8xf32>
    %469 = tpu.matmul %468, %454, %cst_215 {dimension_numbers = #tpu.dot_dimension_numbers<[1], [0], [0], [1], [0, 0, 1, 1], [], []>} : vector<8x8xf32>, vector<8x8xf32>, vector<8x8xf32> -> vector<8x8xf32>
    %470 = tpu.concatenate %418, %435, %452, %469 in 1 : vector<8x8xf32>, vector<8x8xf32>, vector<8x8xf32>, vector<8x8xf32> -> vector<8x32xf32>
    %cst_216 = arith.constant dense<0.000000e+00> : vector<8x32xf32>
    %471 = tpu.matmul %470, %381, %cst_216 {dimension_numbers = #tpu.dot_dimension_numbers<[1], [0], [0], [1], [0, 0, 1, 1], [], []>} : vector<8x32xf32>, vector<32x32xf32>, vector<8x32xf32> -> vector<8x32xf32>
    %472 = vector.broadcast %387 : vector<1x32xf32> to vector<8x32xf32>
    %473 = arith.addf %471, %472 : vector<8x32xf32>
    %474 = arith.addf %473, %375 : vector<8x32xf32>
    %cst_217 = arith.constant dense<0.000000e+00> : vector<8xf32>
    %475 = vector.multi_reduction <add>, %474, %cst_217 [1] : vector<8x32xf32> to vector<8xf32>
    %476 = vector.shape_cast %475 : vector<8xf32> to vector<8x1xf32>
    %cst_218 = arith.constant 3.200000e+01 : f32
    %477 = vector.broadcast %cst_218 : f32 to vector<8x1xf32>
    %478 = arith.divf %476, %477 : vector<8x1xf32>
    %479 = vector.broadcast %478 : vector<8x1xf32> to vector<8x32xf32>
    %480 = arith.subf %474, %479 : vector<8x32xf32>
    %481 = arith.mulf %480, %480 : vector<8x32xf32>
    %cst_219 = arith.constant dense<0.000000e+00> : vector<8xf32>
    %482 = vector.multi_reduction <add>, %481, %cst_219 [1] : vector<8x32xf32> to vector<8xf32>
    %483 = vector.shape_cast %482 : vector<8xf32> to vector<8x1xf32>
    %cst_220 = arith.constant 3.200000e+01 : f32
    %484 = vector.broadcast %cst_220 : f32 to vector<8x1xf32>
    %485 = arith.divf %483, %484 : vector<8x1xf32>
    %486 = vector.broadcast %478 : vector<8x1xf32> to vector<8x32xf32>
    %487 = arith.subf %474, %486 : vector<8x32xf32>
    %cst_221 = arith.constant 9.99999974E-6 : f32
    %488 = vector.broadcast %cst_221 : f32 to vector<8x1xf32>
    %489 = arith.addf %485, %488 : vector<8x1xf32>
    %490 = math.rsqrt %489 : vector<8x1xf32>
    %491 = vector.broadcast %490 : vector<8x1xf32> to vector<8x32xf32>
    %492 = arith.mulf %487, %491 : vector<8x32xf32>
    %493 = vector.broadcast %389 : vector<1x32xf32> to vector<8x32xf32>
    %494 = arith.mulf %492, %493 : vector<8x32xf32>
    %495 = vector.broadcast %391 : vector<1x32xf32> to vector<8x32xf32>
    %496 = arith.addf %494, %495 : vector<8x32xf32>
    %cst_222 = arith.constant 0.000000e+00 : f32
    %497 = vector.broadcast %cst_222 : f32 to vector<8x32xf32>
    %498 = arith.maximumf %496, %497 : vector<8x32xf32>
    %c4 = arith.constant 4 : index
    %c0_223 = arith.constant 0 : index
    %c0_224 = arith.constant 0 : index
    %499 = vector.load %arg6[%c4, %c0_223, %c0_224] : memref<5x32x32xf32, #tpu.memory_space<vmem>>, vector<1x32x32xf32>
    %500 = vector.shape_cast %499 : vector<1x32x32xf32> to vector<32x32xf32>
    %c4_225 = arith.constant 4 : index
    %c0_226 = arith.constant 0 : index
    %c0_227 = arith.constant 0 : index
    %501 = vector.load %arg8[%c4_225, %c0_226, %c0_227] : memref<5x32x32xf32, #tpu.memory_space<vmem>>, vector<1x32x32xf32>
    %502 = vector.shape_cast %501 : vector<1x32x32xf32> to vector<32x32xf32>
    %c4_228 = arith.constant 4 : index
    %c0_229 = arith.constant 0 : index
    %c0_230 = arith.constant 0 : index
    %503 = vector.load %arg10[%c4_228, %c0_229, %c0_230] : memref<5x32x32xf32, #tpu.memory_space<vmem>>, vector<1x32x32xf32>
    %504 = vector.shape_cast %503 : vector<1x32x32xf32> to vector<32x32xf32>
    %c4_231 = arith.constant 4 : index
    %c0_232 = arith.constant 0 : index
    %c0_233 = arith.constant 0 : index
    %505 = vector.load %arg7[%c4_231, %c0_232, %c0_233] : memref<5x1x32xf32, #tpu.memory_space<vmem>>, vector<1x1x32xf32>
    %506 = vector.shape_cast %505 : vector<1x1x32xf32> to vector<1x32xf32>
    %c4_234 = arith.constant 4 : index
    %c0_235 = arith.constant 0 : index
    %c0_236 = arith.constant 0 : index
    %507 = vector.load %arg9[%c4_234, %c0_235, %c0_236] : memref<5x1x32xf32, #tpu.memory_space<vmem>>, vector<1x1x32xf32>
    %508 = vector.shape_cast %507 : vector<1x1x32xf32> to vector<1x32xf32>
    %c4_237 = arith.constant 4 : index
    %c0_238 = arith.constant 0 : index
    %c0_239 = arith.constant 0 : index
    %509 = vector.load %arg11[%c4_237, %c0_238, %c0_239] : memref<5x1x32xf32, #tpu.memory_space<vmem>>, vector<1x1x32xf32>
    %510 = vector.shape_cast %509 : vector<1x1x32xf32> to vector<1x32xf32>
    %c4_240 = arith.constant 4 : index
    %c0_241 = arith.constant 0 : index
    %c0_242 = arith.constant 0 : index
    %511 = vector.load %arg12[%c4_240, %c0_241, %c0_242] : memref<5x1x32xf32, #tpu.memory_space<vmem>>, vector<1x1x32xf32>
    %512 = vector.shape_cast %511 : vector<1x1x32xf32> to vector<1x32xf32>
    %c4_243 = arith.constant 4 : index
    %c0_244 = arith.constant 0 : index
    %c0_245 = arith.constant 0 : index
    %513 = vector.load %arg13[%c4_243, %c0_244, %c0_245] : memref<5x1x32xf32, #tpu.memory_space<vmem>>, vector<1x1x32xf32>
    %514 = vector.shape_cast %513 : vector<1x1x32xf32> to vector<1x32xf32>
    %cst_246 = arith.constant dense<0.000000e+00> : vector<8x32xf32>
    %515 = tpu.matmul %3, %500, %cst_246 {dimension_numbers = #tpu.dot_dimension_numbers<[1], [0], [0], [1], [0, 0, 1, 1], [], []>} : vector<8x32xf32>, vector<32x32xf32>, vector<8x32xf32> -> vector<8x32xf32>
    %516 = vector.broadcast %506 : vector<1x32xf32> to vector<8x32xf32>
    %517 = arith.addf %515, %516 : vector<8x32xf32>
    %cst_247 = arith.constant dense<0.000000e+00> : vector<8x32xf32>
    %518 = tpu.matmul %498, %502, %cst_247 {dimension_numbers = #tpu.dot_dimension_numbers<[1], [0], [0], [1], [0, 0, 1, 1], [], []>} : vector<8x32xf32>, vector<32x32xf32>, vector<8x32xf32> -> vector<8x32xf32>
    %519 = vector.broadcast %508 : vector<1x32xf32> to vector<8x32xf32>
    %520 = arith.addf %518, %519 : vector<8x32xf32>
    %521 = arith.mulf %517, %4 : vector<8x32xf32>
    %cst_248 = arith.constant dense<0.000000e+00> : vector<8x32xf32>
    %522 = tpu.matmul %517, %6, %cst_248 {dimension_numbers = #tpu.dot_dimension_numbers<[1], [0], [0], [1], [0, 0, 1, 1], [], []>} : vector<8x32xf32>, vector<32x32xf32>, vector<8x32xf32> -> vector<8x32xf32>
    %523 = arith.mulf %522, %5 : vector<8x32xf32>
    %524 = arith.addf %521, %523 : vector<8x32xf32>
    %525 = vector.extract_strided_slice %524 {offsets = [0, 0], sizes = [8, 8], strides = [1, 1]} : vector<8x32xf32> to vector<8x8xf32>
    %526 = vector.extract_strided_slice %520 {offsets = [0, 0], sizes = [8, 8], strides = [1, 1]} : vector<8x32xf32> to vector<8x8xf32>
    %527 = tpu.transpose %526, [1, 0] : vector<8x8xf32> -> vector<8x8xf32>
    %cst_249 = arith.constant dense<0.000000e+00> : vector<8x8xf32>
    %528 = tpu.matmul %525, %527, %cst_249 {dimension_numbers = #tpu.dot_dimension_numbers<[1], [0], [0], [1], [0, 0, 1, 1], [], []>} : vector<8x8xf32>, vector<8x8xf32>, vector<8x8xf32> -> vector<8x8xf32>
    %cst_250 = arith.constant 0.353553385 : f32
    %529 = vector.broadcast %cst_250 : f32 to vector<8x8xf32>
    %530 = arith.mulf %528, %529 : vector<8x8xf32>
    %cst_251 = arith.constant dense<0xFF800000> : vector<8xf32>
    %531 = vector.multi_reduction <maximumf>, %530, %cst_251 [1] : vector<8x8xf32> to vector<8xf32>
    %532 = vector.shape_cast %531 : vector<8xf32> to vector<8x1xf32>
    %533 = vector.broadcast %532 : vector<8x1xf32> to vector<8x8xf32>
    %534 = arith.subf %530, %533 : vector<8x8xf32>
    %535 = math.exp %534 : vector<8x8xf32>
    %cst_252 = arith.constant dense<0.000000e+00> : vector<8xf32>
    %536 = vector.multi_reduction <add>, %535, %cst_252 [1] : vector<8x8xf32> to vector<8xf32>
    %537 = vector.shape_cast %536 : vector<8xf32> to vector<8x1xf32>
    %538 = tpu.reciprocal %537 {approx = true} : vector<8x1xf32> -> vector<8x1xf32>
    %539 = vector.broadcast %538 : vector<8x1xf32> to vector<8x8xf32>
    %540 = arith.mulf %535, %539 : vector<8x8xf32>
    %cst_253 = arith.constant dense<0.000000e+00> : vector<8x8xf32>
    %541 = tpu.matmul %540, %526, %cst_253 {dimension_numbers = #tpu.dot_dimension_numbers<[1], [0], [0], [1], [0, 0, 1, 1], [], []>} : vector<8x8xf32>, vector<8x8xf32>, vector<8x8xf32> -> vector<8x8xf32>
    %542 = vector.extract_strided_slice %524 {offsets = [0, 8], sizes = [8, 8], strides = [1, 1]} : vector<8x32xf32> to vector<8x8xf32>
    %543 = vector.extract_strided_slice %520 {offsets = [0, 8], sizes = [8, 8], strides = [1, 1]} : vector<8x32xf32> to vector<8x8xf32>
    %544 = tpu.transpose %543, [1, 0] : vector<8x8xf32> -> vector<8x8xf32>
    %cst_254 = arith.constant dense<0.000000e+00> : vector<8x8xf32>
    %545 = tpu.matmul %542, %544, %cst_254 {dimension_numbers = #tpu.dot_dimension_numbers<[1], [0], [0], [1], [0, 0, 1, 1], [], []>} : vector<8x8xf32>, vector<8x8xf32>, vector<8x8xf32> -> vector<8x8xf32>
    %cst_255 = arith.constant 0.353553385 : f32
    %546 = vector.broadcast %cst_255 : f32 to vector<8x8xf32>
    %547 = arith.mulf %545, %546 : vector<8x8xf32>
    %cst_256 = arith.constant dense<0xFF800000> : vector<8xf32>
    %548 = vector.multi_reduction <maximumf>, %547, %cst_256 [1] : vector<8x8xf32> to vector<8xf32>
    %549 = vector.shape_cast %548 : vector<8xf32> to vector<8x1xf32>
    %550 = vector.broadcast %549 : vector<8x1xf32> to vector<8x8xf32>
    %551 = arith.subf %547, %550 : vector<8x8xf32>
    %552 = math.exp %551 : vector<8x8xf32>
    %cst_257 = arith.constant dense<0.000000e+00> : vector<8xf32>
    %553 = vector.multi_reduction <add>, %552, %cst_257 [1] : vector<8x8xf32> to vector<8xf32>
    %554 = vector.shape_cast %553 : vector<8xf32> to vector<8x1xf32>
    %555 = tpu.reciprocal %554 {approx = true} : vector<8x1xf32> -> vector<8x1xf32>
    %556 = vector.broadcast %555 : vector<8x1xf32> to vector<8x8xf32>
    %557 = arith.mulf %552, %556 : vector<8x8xf32>
    %cst_258 = arith.constant dense<0.000000e+00> : vector<8x8xf32>
    %558 = tpu.matmul %557, %543, %cst_258 {dimension_numbers = #tpu.dot_dimension_numbers<[1], [0], [0], [1], [0, 0, 1, 1], [], []>} : vector<8x8xf32>, vector<8x8xf32>, vector<8x8xf32> -> vector<8x8xf32>
    %559 = vector.extract_strided_slice %524 {offsets = [0, 16], sizes = [8, 8], strides = [1, 1]} : vector<8x32xf32> to vector<8x8xf32>
    %560 = vector.extract_strided_slice %520 {offsets = [0, 16], sizes = [8, 8], strides = [1, 1]} : vector<8x32xf32> to vector<8x8xf32>
    %561 = tpu.transpose %560, [1, 0] : vector<8x8xf32> -> vector<8x8xf32>
    %cst_259 = arith.constant dense<0.000000e+00> : vector<8x8xf32>
    %562 = tpu.matmul %559, %561, %cst_259 {dimension_numbers = #tpu.dot_dimension_numbers<[1], [0], [0], [1], [0, 0, 1, 1], [], []>} : vector<8x8xf32>, vector<8x8xf32>, vector<8x8xf32> -> vector<8x8xf32>
    %cst_260 = arith.constant 0.353553385 : f32
    %563 = vector.broadcast %cst_260 : f32 to vector<8x8xf32>
    %564 = arith.mulf %562, %563 : vector<8x8xf32>
    %cst_261 = arith.constant dense<0xFF800000> : vector<8xf32>
    %565 = vector.multi_reduction <maximumf>, %564, %cst_261 [1] : vector<8x8xf32> to vector<8xf32>
    %566 = vector.shape_cast %565 : vector<8xf32> to vector<8x1xf32>
    %567 = vector.broadcast %566 : vector<8x1xf32> to vector<8x8xf32>
    %568 = arith.subf %564, %567 : vector<8x8xf32>
    %569 = math.exp %568 : vector<8x8xf32>
    %cst_262 = arith.constant dense<0.000000e+00> : vector<8xf32>
    %570 = vector.multi_reduction <add>, %569, %cst_262 [1] : vector<8x8xf32> to vector<8xf32>
    %571 = vector.shape_cast %570 : vector<8xf32> to vector<8x1xf32>
    %572 = tpu.reciprocal %571 {approx = true} : vector<8x1xf32> -> vector<8x1xf32>
    %573 = vector.broadcast %572 : vector<8x1xf32> to vector<8x8xf32>
    %574 = arith.mulf %569, %573 : vector<8x8xf32>
    %cst_263 = arith.constant dense<0.000000e+00> : vector<8x8xf32>
    %575 = tpu.matmul %574, %560, %cst_263 {dimension_numbers = #tpu.dot_dimension_numbers<[1], [0], [0], [1], [0, 0, 1, 1], [], []>} : vector<8x8xf32>, vector<8x8xf32>, vector<8x8xf32> -> vector<8x8xf32>
    %576 = vector.extract_strided_slice %524 {offsets = [0, 24], sizes = [8, 8], strides = [1, 1]} : vector<8x32xf32> to vector<8x8xf32>
    %577 = vector.extract_strided_slice %520 {offsets = [0, 24], sizes = [8, 8], strides = [1, 1]} : vector<8x32xf32> to vector<8x8xf32>
    %578 = tpu.transpose %577, [1, 0] : vector<8x8xf32> -> vector<8x8xf32>
    %cst_264 = arith.constant dense<0.000000e+00> : vector<8x8xf32>
    %579 = tpu.matmul %576, %578, %cst_264 {dimension_numbers = #tpu.dot_dimension_numbers<[1], [0], [0], [1], [0, 0, 1, 1], [], []>} : vector<8x8xf32>, vector<8x8xf32>, vector<8x8xf32> -> vector<8x8xf32>
    %cst_265 = arith.constant 0.353553385 : f32
    %580 = vector.broadcast %cst_265 : f32 to vector<8x8xf32>
    %581 = arith.mulf %579, %580 : vector<8x8xf32>
    %cst_266 = arith.constant dense<0xFF800000> : vector<8xf32>
    %582 = vector.multi_reduction <maximumf>, %581, %cst_266 [1] : vector<8x8xf32> to vector<8xf32>
    %583 = vector.shape_cast %582 : vector<8xf32> to vector<8x1xf32>
    %584 = vector.broadcast %583 : vector<8x1xf32> to vector<8x8xf32>
    %585 = arith.subf %581, %584 : vector<8x8xf32>
    %586 = math.exp %585 : vector<8x8xf32>
    %cst_267 = arith.constant dense<0.000000e+00> : vector<8xf32>
    %587 = vector.multi_reduction <add>, %586, %cst_267 [1] : vector<8x8xf32> to vector<8xf32>
    %588 = vector.shape_cast %587 : vector<8xf32> to vector<8x1xf32>
    %589 = tpu.reciprocal %588 {approx = true} : vector<8x1xf32> -> vector<8x1xf32>
    %590 = vector.broadcast %589 : vector<8x1xf32> to vector<8x8xf32>
    %591 = arith.mulf %586, %590 : vector<8x8xf32>
    %cst_268 = arith.constant dense<0.000000e+00> : vector<8x8xf32>
    %592 = tpu.matmul %591, %577, %cst_268 {dimension_numbers = #tpu.dot_dimension_numbers<[1], [0], [0], [1], [0, 0, 1, 1], [], []>} : vector<8x8xf32>, vector<8x8xf32>, vector<8x8xf32> -> vector<8x8xf32>
    %593 = tpu.concatenate %541, %558, %575, %592 in 1 : vector<8x8xf32>, vector<8x8xf32>, vector<8x8xf32>, vector<8x8xf32> -> vector<8x32xf32>
    %cst_269 = arith.constant dense<0.000000e+00> : vector<8x32xf32>
    %594 = tpu.matmul %593, %504, %cst_269 {dimension_numbers = #tpu.dot_dimension_numbers<[1], [0], [0], [1], [0, 0, 1, 1], [], []>} : vector<8x32xf32>, vector<32x32xf32>, vector<8x32xf32> -> vector<8x32xf32>
    %595 = vector.broadcast %510 : vector<1x32xf32> to vector<8x32xf32>
    %596 = arith.addf %594, %595 : vector<8x32xf32>
    %597 = arith.addf %596, %498 : vector<8x32xf32>
    %cst_270 = arith.constant dense<0.000000e+00> : vector<8xf32>
    %598 = vector.multi_reduction <add>, %597, %cst_270 [1] : vector<8x32xf32> to vector<8xf32>
    %599 = vector.shape_cast %598 : vector<8xf32> to vector<8x1xf32>
    %cst_271 = arith.constant 3.200000e+01 : f32
    %600 = vector.broadcast %cst_271 : f32 to vector<8x1xf32>
    %601 = arith.divf %599, %600 : vector<8x1xf32>
    %602 = vector.broadcast %601 : vector<8x1xf32> to vector<8x32xf32>
    %603 = arith.subf %597, %602 : vector<8x32xf32>
    %604 = arith.mulf %603, %603 : vector<8x32xf32>
    %cst_272 = arith.constant dense<0.000000e+00> : vector<8xf32>
    %605 = vector.multi_reduction <add>, %604, %cst_272 [1] : vector<8x32xf32> to vector<8xf32>
    %606 = vector.shape_cast %605 : vector<8xf32> to vector<8x1xf32>
    %cst_273 = arith.constant 3.200000e+01 : f32
    %607 = vector.broadcast %cst_273 : f32 to vector<8x1xf32>
    %608 = arith.divf %606, %607 : vector<8x1xf32>
    %609 = vector.broadcast %601 : vector<8x1xf32> to vector<8x32xf32>
    %610 = arith.subf %597, %609 : vector<8x32xf32>
    %cst_274 = arith.constant 9.99999974E-6 : f32
    %611 = vector.broadcast %cst_274 : f32 to vector<8x1xf32>
    %612 = arith.addf %608, %611 : vector<8x1xf32>
    %613 = math.rsqrt %612 : vector<8x1xf32>
    %614 = vector.broadcast %613 : vector<8x1xf32> to vector<8x32xf32>
    %615 = arith.mulf %610, %614 : vector<8x32xf32>
    %616 = vector.broadcast %512 : vector<1x32xf32> to vector<8x32xf32>
    %617 = arith.mulf %615, %616 : vector<8x32xf32>
    %618 = vector.broadcast %514 : vector<1x32xf32> to vector<8x32xf32>
    %619 = arith.addf %617, %618 : vector<8x32xf32>
    %cst_275 = arith.constant 0.000000e+00 : f32
    %620 = vector.broadcast %cst_275 : f32 to vector<8x32xf32>
    %621 = arith.maximumf %619, %620 : vector<8x32xf32>
    %c0_276 = arith.constant 0 : index
    %c0_277 = arith.constant 0 : index
    %c0_278 = arith.constant 0 : index
    %622 = vector.load %arg14[%c0_276, %c0_277, %c0_278] : memref<1x8x32xf32, #tpu.memory_space<vmem>>, vector<1x8x32xf32>
    %623 = vector.shape_cast %622 : vector<1x8x32xf32> to vector<8x32xf32>
    %624 = vector.shape_cast %621 : vector<8x32xf32> to vector<1x8x32xf32>
    tpu.vector_store %arg14[%c0_276, %c0_277, %c0_278], %624 {strides = array<i32>} : memref<1x8x32xf32, #tpu.memory_space<vmem>>, vector<1x8x32xf32>,
    return
  }
  func.func @transform_0(%arg0: i32) -> (i32, i32, i32) {
    %c0_i32 = arith.constant 0 : i32
    %c0_i32_0 = arith.constant 0 : i32
    %c0_i32_1 = arith.constant 0 : i32
    return %arg0, %c0_i32, %c0_i32_0 : i32, i32, i32
  }
  func.func @transform_1(%arg0: i32) -> (i32, i32, i32) {
    %c0_i32 = arith.constant 0 : i32
    %c0_i32_0 = arith.constant 0 : i32
    %c0_i32_1 = arith.constant 0 : i32
    return %arg0, %c0_i32, %c0_i32_0 : i32, i32, i32
  }
  func.func @transform_2(%arg0: i32) -> (i32, i32) {
    %c0_i32 = arith.constant 0 : i32
    %c0_i32_0 = arith.constant 0 : i32
    %c0_i32_1 = arith.constant 0 : i32
    return %c0_i32, %c0_i32_0 : i32, i32
  }
  func.func @transform_3(%arg0: i32) -> (i32, i32) {
    %c0_i32 = arith.constant 0 : i32
    %c0_i32_0 = arith.constant 0 : i32
    %c0_i32_1 = arith.constant 0 : i32
    return %c0_i32, %c0_i32_0 : i32, i32
  }
  func.func @transform_4(%arg0: i32) -> (i32, i32) {
    %c0_i32 = arith.constant 0 : i32
    %c0_i32_0 = arith.constant 0 : i32
    %c0_i32_1 = arith.constant 0 : i32
    return %c0_i32, %c0_i32_0 : i32, i32
  }
  func.func @transform_5(%arg0: i32) -> (i32, i32, i32) {
    %c0_i32 = arith.constant 0 : i32
    %c0_i32_0 = arith.constant 0 : i32
    %c0_i32_1 = arith.constant 0 : i32
    %c0_i32_2 = arith.constant 0 : i32
    return %c0_i32, %c0_i32_0, %c0_i32_1 : i32, i32, i32
  }
  func.func @transform_6(%arg0: i32) -> (i32, i32, i32) {
    %c0_i32 = arith.constant 0 : i32
    %c0_i32_0 = arith.constant 0 : i32
    %c0_i32_1 = arith.constant 0 : i32
    %c0_i32_2 = arith.constant 0 : i32
    return %c0_i32, %c0_i32_0, %c0_i32_1 : i32, i32, i32
  }
  func.func @transform_7(%arg0: i32) -> (i32, i32, i32) {
    %c0_i32 = arith.constant 0 : i32
    %c0_i32_0 = arith.constant 0 : i32
    %c0_i32_1 = arith.constant 0 : i32
    %c0_i32_2 = arith.constant 0 : i32
    return %c0_i32, %c0_i32_0, %c0_i32_1 : i32, i32, i32
  }
  func.func @transform_8(%arg0: i32) -> (i32, i32, i32) {
    %c0_i32 = arith.constant 0 : i32
    %c0_i32_0 = arith.constant 0 : i32
    %c0_i32_1 = arith.constant 0 : i32
    %c0_i32_2 = arith.constant 0 : i32
    return %c0_i32, %c0_i32_0, %c0_i32_1 : i32, i32, i32
  }
  func.func @transform_9(%arg0: i32) -> (i32, i32, i32) {
    %c0_i32 = arith.constant 0 : i32
    %c0_i32_0 = arith.constant 0 : i32
    %c0_i32_1 = arith.constant 0 : i32
    %c0_i32_2 = arith.constant 0 : i32
    return %c0_i32, %c0_i32_0, %c0_i32_1 : i32, i32, i32
  }
  func.func @transform_10(%arg0: i32) -> (i32, i32, i32) {
    %c0_i32 = arith.constant 0 : i32
    %c0_i32_0 = arith.constant 0 : i32
    %c0_i32_1 = arith.constant 0 : i32
    %c0_i32_2 = arith.constant 0 : i32
    return %c0_i32, %c0_i32_0, %c0_i32_1 : i32, i32, i32
  }
  func.func @transform_11(%arg0: i32) -> (i32, i32, i32) {
    %c0_i32 = arith.constant 0 : i32
    %c0_i32_0 = arith.constant 0 : i32
    %c0_i32_1 = arith.constant 0 : i32
    %c0_i32_2 = arith.constant 0 : i32
    return %c0_i32, %c0_i32_0, %c0_i32_1 : i32, i32, i32
  }
  func.func @transform_12(%arg0: i32) -> (i32, i32, i32) {
    %c0_i32 = arith.constant 0 : i32
    %c0_i32_0 = arith.constant 0 : i32
    %c0_i32_1 = arith.constant 0 : i32
    %c0_i32_2 = arith.constant 0 : i32
    return %c0_i32, %c0_i32_0, %c0_i32_1 : i32, i32, i32
  }
  func.func @transform_13(%arg0: i32) -> (i32, i32, i32) {
    %c0_i32 = arith.constant 0 : i32
    %c0_i32_0 = arith.constant 0 : i32
    %c0_i32_1 = arith.constant 0 : i32
    return %arg0, %c0_i32, %c0_i32_0 : i32, i32, i32
  }
}

</mosaic_0001>

<llo_original>
// kernel: tpu_custom_call.1
$region0: #{tpu_custom_call.1}
  #allocation0 [shape = 'u32[]', space=smem, size = 0x4, offset = 0x4, fixed_abs, tag = 'smem constant byte address 0x4 - core index']
  #allocation1 [shape = 'u32[144,128]{1,0:T(1,128)}', space=vmem, size = 0x12000, scoped, tag = 'internal scratch']
  %s0 = inlined_call_operand.hbm [shape: f32[2,8,32], index: 0, kind: input, shape index: {}]
  %s1 = inlined_call_operand.hbm [shape: f32[2,8,32], index: 1, kind: input, shape index: {}]
  %s2 = inlined_call_operand.hbm [shape: f32[8,32], index: 2, kind: input, shape index: {}]
  %s3 = inlined_call_operand.vmem [shape: f32[8,32], index: 3, kind: input, shape index: {}]
  %s4 = inlined_call_operand.hbm [shape: f32[32,32], index: 4, kind: input, shape index: {}]
  %s5 = inlined_call_operand.hbm [shape: f32[5,32,32], index: 5, kind: input, shape index: {}]
  %s6 = inlined_call_operand.vmem [shape: f32[5,1,32], index: 6, kind: input, shape index: {}]
  %s7 = inlined_call_operand.hbm [shape: f32[5,32,32], index: 7, kind: input, shape index: {}]
  %s8 = inlined_call_operand.vmem [shape: f32[5,1,32], index: 8, kind: input, shape index: {}]
  %s9 = inlined_call_operand.hbm [shape: f32[5,32,32], index: 9, kind: input, shape index: {}]
  %s10 = inlined_call_operand.vmem [shape: f32[5,1,32], index: 10, kind: input, shape index: {}]
  %s11 = inlined_call_operand.vmem [shape: f32[5,1,32], index: 11, kind: input, shape index: {}]
  %s12 = inlined_call_operand.vmem [shape: f32[5,1,32], index: 12, kind: input, shape index: {}]
  %s13 = inlined_call_operand.hbm [shape: f32[2,8,32], index: 13, kind: output, shape index: {}]
  %s14 = sld [smem:[#allocation0]]
  $region113: #{tpu_custom_call.1} parent=0
    _
  %s16 = ssub.s32 1, %s14
  %s17 = scalar_select 0, %s16, %s14
  $region1: #{tpu_custom_call.1} parent=0
    #allocation2 [shape = 'u8[8192]{0}', space=vmem, size = 0x2000, scoped, tag = 'input window, operand 0']
    #allocation3 [shape = 's32[2]{0}', space=sflag, size = 0x8, scoped, tag = 'scoped memory for tpu_custom_call.1']
    #allocation4 [shape = 's32[2]{0}', space=sflag, size = 0x8, scoped, tag = 'scoped memory for tpu_custom_call.1']
    #allocation5 [shape = 'u8[8192]{0}', space=vmem, size = 0x2000, scoped, tag = 'input window, operand 1']
    #allocation6 [shape = 's32[2]{0}', space=sflag, size = 0x8, scoped, tag = 'scoped memory for tpu_custom_call.1']
    #allocation7 [shape = 'u8[4096]{0}', space=vmem, size = 0x1000, scoped, tag = 'input window, operand 2, single buffered']
    #allocation8 [shape = 'u8[16384]{0}', space=vmem, size = 0x4000, scoped, tag = 'input window, operand 4, single buffered']
    #allocation9 [shape = 's32[1]{0}', space=sflag, size = 0x4, scoped, tag = 'scoped memory for tpu_custom_call.1']
    #allocation10 [shape = 'u8[81920]{0}', space=vmem, size = 0x14000, scoped, tag = 'input window, operand 5, single buffered']
    #allocation11 [shape = 'u8[81920]{0}', space=vmem, size = 0x14000, scoped, tag = 'input window, operand 7, single buffered']
    #allocation12 [shape = 's32[1]{0}', space=sflag, size = 0x4, scoped, tag = 'scoped memory for tpu_custom_call.1']
    #allocation13 [shape = 'u8[81920]{0}', space=vmem, size = 0x14000, scoped, tag = 'input window, operand 9, single buffered']
    #allocation14 [shape = 'u8[8192]{0}', space=vmem, size = 0x2000, scoped, tag = 'output window, operand 0']
    %18 = vsyncpa [#allocation3], 0
    %s19 = scalar_lea.sflag [#allocation3], 1
    %20 = vsyncpa %s19, 0
    %21 = vsyncpa [#allocation6], 0
    %s22 = scalar_lea.sflag [#allocation6], 1
    %23 = vsyncpa %s22, 0
    %24 = vsyncpa [#allocation9], 0
    %25 = vsyncpa [#allocation12], 0
    %26 = vsyncpa [#allocation4], 0
    %s27 = scalar_lea.sflag [#allocation4], 1
    %28 = vsyncpa %s27, 0
    loop: start=0, step=1, limit=4
    $region2: #{tpu_custom_call.1} parent=1 // loop_pre_header
      _
    $region3: #{tpu_custom_call.1} parent=1 // loop_header
      %s30 = sphi 0, %s34
      %p31 = scmp.ge.s32.totalorder %s30, 4
      %s40 = sphi 0, %s42
      %s43 = sphi 0, %s40
      %s44 = sphi 0, %s43
      %s60 = sphi 0, %s44
      %s66 = sphi 0, %s68
      %s69 = sphi 0, %s66
      %s70 = sphi 0, %s69
      %s86 = sphi 0, %s70
      %s90 = sphi 0, %s90
      %s92 = sphi 0, %s90
      %s93 = sphi 0, %s92
      %s107 = sphi 0, %s93
      %s111 = sphi 0, %s111
      %s113 = sphi 0, %s111
      %s114 = sphi 0, %s113
      %s128 = sphi 0, %s114
      %s132 = sphi 0, %s132
      %s134 = sphi 0, %s132
      %s135 = sphi 0, %s134
      %s149 = sphi 0, %s135
      %s153 = sphi 0, %s153
      %s155 = sphi 0, %s153
      %s156 = sphi 0, %s155
      %s170 = sphi 0, %s156
      %s174 = sphi 0, %s174
      %s176 = sphi 0, %s174
      %s177 = sphi 0, %s176
      %s191 = sphi 0, %s177
      %s195 = sphi 0, %s195
      %s197 = sphi 0, %s195
      %s198 = sphi 0, %s197
      %s212 = sphi 0, %s198
      %s216 = sphi 0, %s216
      %s218 = sphi 0, %s216
      %s219 = sphi 0, %s218
      %s233 = sphi 0, %s219
      %s237 = sphi 0, %s237
      %s239 = sphi 0, %s237
      %s240 = sphi 0, %s239
      %s254 = sphi 0, %s240
      %s258 = sphi 0, %s258
      %s260 = sphi 0, %s258
      %s261 = sphi 0, %s260
      %s275 = sphi 0, %s261
      %s279 = sphi 0, %s279
      %s281 = sphi 0, %s279
      %s282 = sphi 0, %s281
      %s296 = sphi 0, %s282
      %s300 = sphi 0, %s300
      %s302 = sphi 0, %s300
      %s303 = sphi 0, %s302
      %s317 = sphi 0, %s303
      %s323 = sphi 0, %s325
      %s326 = sphi 0, %s323
      %s327 = sphi 0, %s326
      %s343 = sphi 0, %s327
    $region4: #{tpu_custom_call.1} parent=1 // loop_header_branch
      %33 = sbr.rel (%p31) target = $region8
    $region5: #{tpu_custom_call.1} parent=1 // loop_body
      %s35 = ssub.s32 %s30, 1
      %s36 = ssub.s32 %s30, 2
      %s37 = sadd.s32 %s30, 1
      %s38 = ssub.s32 %s30, %s37
      %p39 = scmp.eq.s32.totalorder %s38, 0
      %s41 = sadd.s32 %s40, 1
      %s42 = scalar_select %p39, %s40, %s41
      %p45 = pneg %p39
      %p46 = scmp.eq.s32.totalorder %s30, 1
      %p47 = por %p45, %p46
      %p48 = scmp.ne.s32.totalorder %s40, %s43
      %p49 = scmp.eq.s32.totalorder %s30, 0
      %p50 = por %p48, %p49
      %p51 = scmp.ne.s32.totalorder %s40, %s43
      %p52 = scmp.eq.s32.totalorder %s35, 1
      %p53 = por %p51, %p52
      %p54 = scmp.ne.s32.totalorder %s43, %s44
      %p55 = scmp.eq.s32.totalorder %s35, 0
      %p56 = por %p54, %p55
      %p57 = scmp.ne.s32.totalorder %s43, %s44
      %p58 = scmp.eq.s32.totalorder %s36, 1
      %p59 = por %p57, %p58
      %p61 = scmp.ne.s32.totalorder %s44, %s60
      %p62 = scmp.eq.s32.totalorder %s36, 0
      %p63 = por %p61, %p62
      %s64 = ssub.s32 %s30, %s37
      %p65 = scmp.eq.s32.totalorder %s64, 0
      %s67 = sadd.s32 %s66, 1
      %s68 = scalar_select %p65, %s66, %s67
      %p71 = pneg %p65
      %p72 = scmp.eq.s32.totalorder %s30, 1
      %p73 = por %p71, %p72
      %p74 = scmp.ne.s32.totalorder %s66, %s69
      %p75 = scmp.eq.s32.totalorder %s30, 0
      %p76 = por %p74, %p75
      %p77 = scmp.ne.s32.totalorder %s66, %s69
      %p78 = scmp.eq.s32.totalorder %s35, 1
      %p79 = por %p77, %p78
      %p80 = scmp.ne.s32.totalorder %s69, %s70
      %p81 = scmp.eq.s32.totalorder %s35, 0
      %p82 = por %p80, %p81
      %p83 = scmp.ne.s32.totalorder %s69, %s70
      %p84 = scmp.eq.s32.totalorder %s36, 1
      %p85 = por %p83, %p84
      %p87 = scmp.ne.s32.totalorder %s70, %s86
      %p88 = scmp.eq.s32.totalorder %s36, 0
      %p89 = por %p87, %p88
      %s91 = sadd.s32 %s90, 1
      %p94 = scmp.eq.s32.totalorder %s30, 1
      %p95 = scmp.ne.s32.totalorder %s90, %s92
      %p96 = scmp.eq.s32.totalorder %s30, 0
      %p97 = por %p95, %p96
      %p98 = scmp.ne.s32.totalorder %s90, %s92
      %p99 = scmp.eq.s32.totalorder %s35, 1
      %p100 = por %p98, %p99
      %p101 = scmp.ne.s32.totalorder %s92, %s93
      %p102 = scmp.eq.s32.totalorder %s35, 0
      %p103 = por %p101, %p102
      %p104 = scmp.ne.s32.totalorder %s92, %s93
      %p105 = scmp.eq.s32.totalorder %s36, 1
      %p106 = por %p104, %p105
      %p108 = scmp.ne.s32.totalorder %s93, %s107
      %p109 = scmp.eq.s32.totalorder %s36, 0
      %p110 = por %p108, %p109
      %s112 = sadd.s32 %s111, 1
      %p115 = scmp.eq.s32.totalorder %s30, 1
      %p116 = scmp.ne.s32.totalorder %s111, %s113
      %p117 = scmp.eq.s32.totalorder %s30, 0
      %p118 = por %p116, %p117
      %p119 = scmp.ne.s32.totalorder %s111, %s113
      %p120 = scmp.eq.s32.totalorder %s35, 1
      %p121 = por %p119, %p120
      %p122 = scmp.ne.s32.totalorder %s113, %s114
      %p123 = scmp.eq.s32.totalorder %s35, 0
      %p124 = por %p122, %p123
      %p125 = scmp.ne.s32.totalorder %s113, %s114
      %p126 = scmp.eq.s32.totalorder %s36, 1
      %p127 = por %p125, %p126
      %p129 = scmp.ne.s32.totalorder %s114, %s128
      %p130 = scmp.eq.s32.totalorder %s36, 0
      %p131 = por %p129, %p130
      %s133 = sadd.s32 %s132, 1
      %p136 = scmp.eq.s32.totalorder %s30, 1
      %p137 = scmp.ne.s32.totalorder %s132, %s134
      %p138 = scmp.eq.s32.totalorder %s30, 0
      %p139 = por %p137, %p138
      %p140 = scmp.ne.s32.totalorder %s132, %s134
      %p141 = scmp.eq.s32.totalorder %s35, 1
      %p142 = por %p140, %p141
      %p143 = scmp.ne.s32.totalorder %s134, %s135
      %p144 = scmp.eq.s32.totalorder %s35, 0
      %p145 = por %p143, %p144
      %p146 = scmp.ne.s32.totalorder %s134, %s135
      %p147 = scmp.eq.s32.totalorder %s36, 1
      %p148 = por %p146, %p147
      %p150 = scmp.ne.s32.totalorder %s135, %s149
      %p151 = scmp.eq.s32.totalorder %s36, 0
      %p152 = por %p150, %p151
      %s154 = sadd.s32 %s153, 1
      %p157 = scmp.eq.s32.totalorder %s30, 1
      %p158 = scmp.ne.s32.totalorder %s153, %s155
      %p159 = scmp.eq.s32.totalorder %s30, 0
      %p160 = por %p158, %p159
      %p161 = scmp.ne.s32.totalorder %s153, %s155
      %p162 = scmp.eq.s32.totalorder %s35, 1
      %p163 = por %p161, %p162
      %p164 = scmp.ne.s32.totalorder %s155, %s156
      %p165 = scmp.eq.s32.totalorder %s35, 0
      %p166 = por %p164, %p165
      %p167 = scmp.ne.s32.totalorder %s155, %s156
      %p168 = scmp.eq.s32.totalorder %s36, 1
      %p169 = por %p167, %p168
      %p171 = scmp.ne.s32.totalorder %s156, %s170
      %p172 = scmp.eq.s32.totalorder %s36, 0
      %p173 = por %p171, %p172
      %s175 = sadd.s32 %s174, 1
      %p178 = scmp.eq.s32.totalorder %s30, 1
      %p179 = scmp.ne.s32.totalorder %s174, %s176
      %p180 = scmp.eq.s32.totalorder %s30, 0
      %p181 = por %p179, %p180
      %p182 = scmp.ne.s32.totalorder %s174, %s176
      %p183 = scmp.eq.s32.totalorder %s35, 1
      %p184 = por %p182, %p183
      %p185 = scmp.ne.s32.totalorder %s176, %s177
      %p186 = scmp.eq.s32.totalorder %s35, 0
      %p187 = por %p185, %p186
      %p188 = scmp.ne.s32.totalorder %s176, %s177
      %p189 = scmp.eq.s32.totalorder %s36, 1
      %p190 = por %p188, %p189
      %p192 = scmp.ne.s32.totalorder %s177, %s191
      %p193 = scmp.eq.s32.totalorder %s36, 0
      %p194 = por %p192, %p193
      %s196 = sadd.s32 %s195, 1
      %p199 = scmp.eq.s32.totalorder %s30, 1
      %p200 = scmp.ne.s32.totalorder %s195, %s197
      %p201 = scmp.eq.s32.totalorder %s30, 0
      %p202 = por %p200, %p201
      %p203 = scmp.ne.s32.totalorder %s195, %s197
      %p204 = scmp.eq.s32.totalorder %s35, 1
      %p205 = por %p203, %p204
      %p206 = scmp.ne.s32.totalorder %s197, %s198
      %p207 = scmp.eq.s32.totalorder %s35, 0
      %p208 = por %p206, %p207
      %p209 = scmp.ne.s32.totalorder %s197, %s198
      %p210 = scmp.eq.s32.totalorder %s36, 1
      %p211 = por %p209, %p210
      %p213 = scmp.ne.s32.totalorder %s198, %s212
      %p214 = scmp.eq.s32.totalorder %s36, 0
      %p215 = por %p213, %p214
      %s217 = sadd.s32 %s216, 1
      %p220 = scmp.eq.s32.totalorder %s30, 1
      %p221 = scmp.ne.s32.totalorder %s216, %s218
      %p222 = scmp.eq.s32.totalorder %s30, 0
      %p223 = por %p221, %p222
      %p224 = scmp.ne.s32.totalorder %s216, %s218
      %p225 = scmp.eq.s32.totalorder %s35, 1
      %p226 = por %p224, %p225
      %p227 = scmp.ne.s32.totalorder %s218, %s219
      %p228 = scmp.eq.s32.totalorder %s35, 0
      %p229 = por %p227, %p228
      %p230 = scmp.ne.s32.totalorder %s218, %s219
      %p231 = scmp.eq.s32.totalorder %s36, 1
      %p232 = por %p230, %p231
      %p234 = scmp.ne.s32.totalorder %s219, %s233
      %p235 = scmp.eq.s32.totalorder %s36, 0
      %p236 = por %p234, %p235
      %s238 = sadd.s32 %s237, 1
      %p241 = scmp.eq.s32.totalorder %s30, 1
      %p242 = scmp.ne.s32.totalorder %s237, %s239
      %p243 = scmp.eq.s32.totalorder %s30, 0
      %p244 = por %p242, %p243
      %p245 = scmp.ne.s32.totalorder %s237, %s239
      %p246 = scmp.eq.s32.totalorder %s35, 1
      %p247 = por %p245, %p246
      %p248 = scmp.ne.s32.totalorder %s239, %s240
      %p249 = scmp.eq.s32.totalorder %s35, 0
      %p250 = por %p248, %p249
      %p251 = scmp.ne.s32.totalorder %s239, %s240
      %p252 = scmp.eq.s32.totalorder %s36, 1
      %p253 = por %p251, %p252
      %p255 = scmp.ne.s32.totalorder %s240, %s254
      %p256 = scmp.eq.s32.totalorder %s36, 0
      %p257 = por %p255, %p256
      %s259 = sadd.s32 %s258, 1
      %p262 = scmp.eq.s32.totalorder %s30, 1
      %p263 = scmp.ne.s32.totalorder %s258, %s260
      %p264 = scmp.eq.s32.totalorder %s30, 0
      %p265 = por %p263, %p264
      %p266 = scmp.ne.s32.totalorder %s258, %s260
      %p267 = scmp.eq.s32.totalorder %s35, 1
      %p268 = por %p266, %p267
      %p269 = scmp.ne.s32.totalorder %s260, %s261
      %p270 = scmp.eq.s32.totalorder %s35, 0
      %p271 = por %p269, %p270
      %p272 = scmp.ne.s32.totalorder %s260, %s261
      %p273 = scmp.eq.s32.totalorder %s36, 1
      %p274 = por %p272, %p273
      %p276 = scmp.ne.s32.totalorder %s261, %s275
      %p277 = scmp.eq.s32.totalorder %s36, 0
      %p278 = por %p276, %p277
      %s280 = sadd.s32 %s279, 1
      %p283 = scmp.eq.s32.totalorder %s30, 1
      %p284 = scmp.ne.s32.totalorder %s279, %s281
      %p285 = scmp.eq.s32.totalorder %s30, 0
      %p286 = por %p284, %p285
      %p287 = scmp.ne.s32.totalorder %s279, %s281
      %p288 = scmp.eq.s32.totalorder %s35, 1
      %p289 = por %p287, %p288
      %p290 = scmp.ne.s32.totalorder %s281, %s282
      %p291 = scmp.eq.s32.totalorder %s35, 0
      %p292 = por %p290, %p291
      %p293 = scmp.ne.s32.totalorder %s281, %s282
      %p294 = scmp.eq.s32.totalorder %s36, 1
      %p295 = por %p293, %p294
      %p297 = scmp.ne.s32.totalorder %s282, %s296
      %p298 = scmp.eq.s32.totalorder %s36, 0
      %p299 = por %p297, %p298
      %s301 = sadd.s32 %s300, 1
      %p304 = scmp.eq.s32.totalorder %s30, 1
      %p305 = scmp.ne.s32.totalorder %s300, %s302
      %p306 = scmp.eq.s32.totalorder %s30, 0
      %p307 = por %p305, %p306
      %p308 = scmp.ne.s32.totalorder %s300, %s302
      %p309 = scmp.eq.s32.totalorder %s35, 1
      %p310 = por %p308, %p309
      %p311 = scmp.ne.s32.totalorder %s302, %s303
      %p312 = scmp.eq.s32.totalorder %s35, 0
      %p313 = por %p311, %p312
      %p314 = scmp.ne.s32.totalorder %s302, %s303
      %p315 = scmp.eq.s32.totalorder %s36, 1
      %p316 = por %p314, %p315
      %p318 = scmp.ne.s32.totalorder %s303, %s317
      %p319 = scmp.eq.s32.totalorder %s36, 0
      %p320 = por %p318, %p319
      %s321 = ssub.s32 %s30, %s37
      %p322 = scmp.eq.s32.totalorder %s321, 0
      %s324 = sadd.s32 %s323, 1
      %s325 = scalar_select %p322, %s323, %s324
      %p328 = pneg %p322
      %p329 = scmp.eq.s32.totalorder %s30, 1
      %p330 = por %p328, %p329
      %p331 = scmp.ne.s32.totalorder %s323, %s326
      %p332 = scmp.eq.s32.totalorder %s30, 0
      %p333 = por %p331, %p332
      %p334 = scmp.ne.s32.totalorder %s323, %s326
      %p335 = scmp.eq.s32.totalorder %s35, 1
      %p336 = por %p334, %p335
      %p337 = scmp.ne.s32.totalorder %s326, %s327
      %p338 = scmp.eq.s32.totalorder %s35, 0
      %p339 = por %p337, %p338
      %p340 = scmp.ne.s32.totalorder %s326, %s327
      %p341 = scmp.eq.s32.totalorder %s36, 1
      %p342 = por %p340, %p341
      %p344 = scmp.ne.s32.totalorder %s327, %s343
      %p345 = scmp.eq.s32.totalorder %s36, 0
      %p346 = por %p344, %p345
      %p347 = scmp.le.s32.totalorder 1, %s30
      %p348 = scmp.lt.s32.totalorder %s30, 3
      %p349 = pnand %p347, %p348
      %p350 = pneg %p349
      // Predicated region
      $region9: #{tpu_custom_call.1} parent=5 // pred_check
        _
      $region10: #{tpu_custom_call.1} parent=5 // pred_check_branch
        %352 = sbr.rel (%p349) target = $region12
      $region11: #{tpu_custom_call.1} parent=5 // pred_region
        %s353 = ssub.s32 %s30, 1
        // Predicated region
        $region13: #{tpu_custom_call.1} parent=11 // pred_check
          %p354 = pneg %p103
        $region14: #{tpu_custom_call.1} parent=11 // pred_check_branch
          %356 = sbr.rel (%p354) target = $region16
        $region15: #{tpu_custom_call.1} parent=11 // pred_region
          %s358 = ssub.s32 128, 128
          %359 = vsyncadd [#allocation6], %s358
          %s361 = sshll.u32 [#allocation7], 4
          %s362 = int_to_ptr.vmem [resolvable:$true] %s361
          %364 = dma.hbm_to_vmem [thread:$0]  %s2, 128, %s362, [#allocation6]
        $region16: #{tpu_custom_call.1} parent=11 // pred_fallthru
          _
        // Predicated region
        $region17: #{tpu_custom_call.1} parent=11 // pred_check
          %p365 = pneg %p124
        $region18: #{tpu_custom_call.1} parent=11 // pred_check_branch
          %367 = sbr.rel (%p365) target = $region20
        $region19: #{tpu_custom_call.1} parent=11 // pred_region
          _
        $region20: #{tpu_custom_call.1} parent=11 // pred_fallthru
          _
        // Predicated region
        $region21: #{tpu_custom_call.1} parent=11 // pred_check
          %p368 = pneg %p145
        $region22: #{tpu_custom_call.1} parent=11 // pred_check_branch
          %370 = sbr.rel (%p368) target = $region24
        $region23: #{tpu_custom_call.1} parent=11 // pred_region
          %s372 = ssub.s32 512, 512
          %373 = vsyncadd [#allocation9], %s372
          %s374 = sshll.u32 [#allocation8], 4
          %s375 = int_to_ptr.vmem [resolvable:$true] %s374
          %380 = dma.hbm_to_vmem [thread:$0]  %s4, 512, %s375, [#allocation9], 128, 128, 8
        $region24: #{tpu_custom_call.1} parent=11 // pred_fallthru
          _
        // Predicated region
        $region25: #{tpu_custom_call.1} parent=11 // pred_check
          %p381 = pneg %p166
        $region26: #{tpu_custom_call.1} parent=11 // pred_check_branch
          %383 = sbr.rel (%p381) target = $region28
        $region27: #{tpu_custom_call.1} parent=11 // pred_region
          %s385 = ssub.s32 2560, 2560
          %386 = vsyncadd [#allocation9], %s385
          %s387 = sshll.u32 [#allocation10], 4
          %s388 = int_to_ptr.vmem [resolvable:$true] %s387
          %393 = dma.hbm_to_vmem [thread:$0]  %s5, 2560, %s388, [#allocation9], 128, 128, 8
        $region28: #{tpu_custom_call.1} parent=11 // pred_fallthru
          _
        // Predicated region
        $region29: #{tpu_custom_call.1} parent=11 // pred_check
          %p394 = pneg %p187
        $region30: #{tpu_custom_call.1} parent=11 // pred_check_branch
          %396 = sbr.rel (%p394) target = $region32
        $region31: #{tpu_custom_call.1} parent=11 // pred_region
          _
        $region32: #{tpu_custom_call.1} parent=11 // pred_fallthru
          _
        // Predicated region
        $region33: #{tpu_custom_call.1} parent=11 // pred_check
          %p397 = pneg %p208
        $region34: #{tpu_custom_call.1} parent=11 // pred_check_branch
          %399 = sbr.rel (%p397) target = $region36
        $region35: #{tpu_custom_call.1} parent=11 // pred_region
          %s401 = ssub.s32 2560, 2560
          %402 = vsyncadd [#allocation12], %s401
          %s403 = sshll.u32 [#allocation11], 4
          %s404 = int_to_ptr.vmem [resolvable:$true] %s403
          %409 = dma.hbm_to_vmem [thread:$0]  %s7, 2560, %s404, [#allocation12], 128, 128, 8
        $region36: #{tpu_custom_call.1} parent=11 // pred_fallthru
          _
        // Predicated region
        $region37: #{tpu_custom_call.1} parent=11 // pred_check
          %p410 = pneg %p229
        $region38: #{tpu_custom_call.1} parent=11 // pred_check_branch
          %412 = sbr.rel (%p410) target = $region40
        $region39: #{tpu_custom_call.1} parent=11 // pred_region
          _
        $region40: #{tpu_custom_call.1} parent=11 // pred_fallthru
          _
        // Predicated region
        $region41: #{tpu_custom_call.1} parent=11 // pred_check
          %p413 = pneg %p250
        $region42: #{tpu_custom_call.1} parent=11 // pred_check_branch
          %415 = sbr.rel (%p413) target = $region44
        $region43: #{tpu_custom_call.1} parent=11 // pred_region
          %s417 = ssub.s32 2560, 2560
          %418 = vsyncadd [#allocation12], %s417
          %s419 = sshll.u32 [#allocation13], 4
          %s420 = int_to_ptr.vmem [resolvable:$true] %s419
          %425 = dma.hbm_to_vmem [thread:$0]  %s9, 2560, %s420, [#allocation12], 128, 128, 8
        $region44: #{tpu_custom_call.1} parent=11 // pred_fallthru
          _
        // Predicated region
        $region45: #{tpu_custom_call.1} parent=11 // pred_check
          %p426 = pneg %p271
        $region46: #{tpu_custom_call.1} parent=11 // pred_check_branch
          %428 = sbr.rel (%p426) target = $region48
        $region47: #{tpu_custom_call.1} parent=11 // pred_region
          _
        $region48: #{tpu_custom_call.1} parent=11 // pred_fallthru
          _
        // Predicated region
        $region49: #{tpu_custom_call.1} parent=11 // pred_check
          %p429 = pneg %p292
        $region50: #{tpu_custom_call.1} parent=11 // pred_check_branch
          %431 = sbr.rel (%p429) target = $region52
        $region51: #{tpu_custom_call.1} parent=11 // pred_region
          _
        $region52: #{tpu_custom_call.1} parent=11 // pred_fallthru
          _
        // Predicated region
        $region53: #{tpu_custom_call.1} parent=11 // pred_check
          %p432 = pneg %p313
        $region54: #{tpu_custom_call.1} parent=11 // pred_check_branch
          %434 = sbr.rel (%p432) target = $region56
        $region55: #{tpu_custom_call.1} parent=11 // pred_region
          _
        $region56: #{tpu_custom_call.1} parent=11 // pred_fallthru
          _
      $region12: #{tpu_custom_call.1} parent=5 // pred_fallthru
        _
      %p435 = scmp.lt.s32.totalorder %s30, 2
      // Predicated region
      $region57: #{tpu_custom_call.1} parent=5 // pred_check
        %p436 = pneg %p435
      $region58: #{tpu_custom_call.1} parent=5 // pred_check_branch
        %438 = sbr.rel (%p436) target = $region60
      $region59: #{tpu_custom_call.1} parent=5 // pred_region
        // Predicated region
        $region61: #{tpu_custom_call.1} parent=59 // pred_check
          %p439 = pneg %p50
        $region62: #{tpu_custom_call.1} parent=59 // pred_check_branch
          %441 = sbr.rel (%p439) target = $region64
        $region63: #{tpu_custom_call.1} parent=59 // pred_region
          %s442 = sand.u32 %s40, 1
          %s443 = scalar_lea.sflag [#allocation3], %s442
          %s444 = sand.u32 %s40, 1
          %s445 = smul.addr %s444, 8
          %s446 = scalar_lea.vmem [#allocation2], %s445
          %s448 = ssub.s32 128, 128
          %449 = vsyncadd %s443, %s448
          %s450 = smul.addr %s30, 128
          %s451 = scalar_lea.hbm %s0, %s450
          %s453 = sshll.u32 %s446, 4
          %s454 = int_to_ptr.vmem [resolvable:$true] %s453
          %456 = dma.hbm_to_vmem [thread:$0]  %s451, 128, %s454, %s443
        $region64: #{tpu_custom_call.1} parent=59 // pred_fallthru
          _
        // Predicated region
        $region65: #{tpu_custom_call.1} parent=59 // pred_check
          %p457 = pneg %p76
        $region66: #{tpu_custom_call.1} parent=59 // pred_check_branch
          %459 = sbr.rel (%p457) target = $region68
        $region67: #{tpu_custom_call.1} parent=59 // pred_region
          %s460 = sand.u32 %s30, 1
          %s461 = scalar_lea.sflag [#allocation6], %s460
          %s462 = sand.u32 %s66, 1
          %s463 = smul.addr %s462, 8
          %s464 = scalar_lea.vmem [#allocation5], %s463
          %s466 = ssub.s32 128, 128
          %467 = vsyncadd %s461, %s466
          %s468 = smul.addr %s30, 128
          %s469 = scalar_lea.hbm %s1, %s468
          %s471 = sshll.u32 %s464, 4
          %s472 = int_to_ptr.vmem [resolvable:$true] %s471
          %474 = dma.hbm_to_vmem [thread:$0]  %s469, 128, %s472, %s461
        $region68: #{tpu_custom_call.1} parent=59 // pred_fallthru
          _
      $region60: #{tpu_custom_call.1} parent=5 // pred_fallthru
        _
      %p475 = scmp.le.s32.totalorder 1, %s30
      %p476 = scmp.lt.s32.totalorder %s30, 3
      %p477 = pnand %p475, %p476
      %p478 = pneg %p477
      // Predicated region
      $region69: #{tpu_custom_call.1} parent=5 // pred_check
        _
      $region70: #{tpu_custom_call.1} parent=5 // pred_check_branch
        %480 = sbr.rel (%p477) target = $region72
      $region71: #{tpu_custom_call.1} parent=5 // pred_region
        %s481 = ssub.s32 %s30, 1
        %s482 = sand.u32 %s43, 1
        %s483 = scalar_lea.sflag [#allocation3], %s482
        %s484 = sand.u32 %s43, 1
        %s485 = smul.addr %s484, 8
        %s486 = scalar_lea.vmem [#allocation2], %s485
        // Predicated region
        $region73: #{tpu_custom_call.1} parent=71 // pred_check
          %p487 = pneg %p56
        $region74: #{tpu_custom_call.1} parent=71 // pred_check_branch
          %489 = sbr.rel (%p487) target = $region76
        $region75: #{tpu_custom_call.1} parent=71 // pred_region
          %490 = dma.done %s483, 128
        $region76: #{tpu_custom_call.1} parent=71 // pred_fallthru
          _
        %s491 = sand.u32 %s35, 1
        %s492 = scalar_lea.sflag [#allocation6], %s491
        %s493 = sand.u32 %s69, 1
        %s494 = smul.addr %s493, 8
        %s495 = scalar_lea.vmem [#allocation5], %s494
        // Predicated region
        $region77: #{tpu_custom_call.1} parent=71 // pred_check
          %p496 = pneg %p82
        $region78: #{tpu_custom_call.1} parent=71 // pred_check_branch
          %498 = sbr.rel (%p496) target = $region80
        $region79: #{tpu_custom_call.1} parent=71 // pred_region
          %499 = dma.done %s492, 128
        $region80: #{tpu_custom_call.1} parent=71 // pred_fallthru
          _
        // Predicated region
        $region81: #{tpu_custom_call.1} parent=71 // pred_check
          %p500 = pneg %p103
        $region82: #{tpu_custom_call.1} parent=71 // pred_check_branch
          %502 = sbr.rel (%p500) target = $region84
        $region83: #{tpu_custom_call.1} parent=71 // pred_region
          %503 = dma.done [#allocation6], 128
        $region84: #{tpu_custom_call.1} parent=71 // pred_fallthru
          _
        // Predicated region
        $region85: #{tpu_custom_call.1} parent=71 // pred_check
          %p504 = pneg %p145
        $region86: #{tpu_custom_call.1} parent=71 // pred_check_branch
          %506 = sbr.rel (%p504) target = $region88
        $region87: #{tpu_custom_call.1} parent=71 // pred_region
          %507 = dma.done [#allocation9], 512
        $region88: #{tpu_custom_call.1} parent=71 // pred_fallthru
          _
        // Predicated region
        $region89: #{tpu_custom_call.1} parent=71 // pred_check
          %p508 = pneg %p166
        $region90: #{tpu_custom_call.1} parent=71 // pred_check_branch
          %510 = sbr.rel (%p508) target = $region92
        $region91: #{tpu_custom_call.1} parent=71 // pred_region
          %511 = dma.done [#allocation9], 2560
        $region92: #{tpu_custom_call.1} parent=71 // pred_fallthru
          _
        // Predicated region
        $region93: #{tpu_custom_call.1} parent=71 // pred_check
          %p512 = pneg %p208
        $region94: #{tpu_custom_call.1} parent=71 // pred_check_branch
          %514 = sbr.rel (%p512) target = $region96
        $region95: #{tpu_custom_call.1} parent=71 // pred_region
          %515 = dma.done [#allocation12], 2560
        $region96: #{tpu_custom_call.1} parent=71 // pred_fallthru
          _
        // Predicated region
        $region97: #{tpu_custom_call.1} parent=71 // pred_check
          %p516 = pneg %p250
        $region98: #{tpu_custom_call.1} parent=71 // pred_check_branch
          %518 = sbr.rel (%p516) target = $region100
        $region99: #{tpu_custom_call.1} parent=71 // pred_region
          %519 = dma.done [#allocation12], 2560
        $region100: #{tpu_custom_call.1} parent=71 // pred_fallthru
          _
        %s520 = sand.u32 %s43, 1
        %s521 = scalar_lea.sflag [#allocation3], %s520
        %s522 = sand.u32 %s43, 1
        %s523 = smul.addr %s522, 8
        %s524 = scalar_lea.vmem [#allocation2], %s523
        %p525 = pneg %p56
        %p526 = pneg %p53
        %s527 = sand.u32 %s35, 1
        %s528 = scalar_lea.sflag [#allocation6], %s527
        %s529 = sand.u32 %s69, 1
        %s530 = smul.addr %s529, 8
        %s531 = scalar_lea.vmem [#allocation5], %s530
        %p532 = pneg %p82
        %p533 = pneg %p79
        %p534 = pneg %p103
        %p535 = pneg %p100
        %p536 = pneg %p124
        %p537 = pneg %p121
        %p538 = pneg %p145
        %p539 = pneg %p142
        %p540 = pneg %p166
        %p541 = pneg %p163
        %p542 = pneg %p187
        %p543 = pneg %p184
        %p544 = pneg %p208
        %p545 = pneg %p205
        %p546 = pneg %p229
        %p547 = pneg %p226
        %p548 = pneg %p250
        %p549 = pneg %p247
        %p550 = pneg %p271
        %p551 = pneg %p268
        %p552 = pneg %p292
        %p553 = pneg %p289
        %p554 = pneg %p313
        %p555 = pneg %p310
        %p556 = pneg %p339
        %p557 = pneg %p336
        %s558 = sand.u32 %s326, 1
        %s559 = scalar_lea.sflag [#allocation4], %s558
        %s560 = sand.u32 %s326, 1
        %s561 = smul.addr %s560, 8
        %s562 = scalar_lea.vmem [#allocation14], %s561
        %v563 = vld [vmem:[%s486] sm:$0xff]
        %v564 = vld [vmem:[%s495] sm:$0xff]
        %v565 = vld [vmem:[#allocation7] sm:$0xff]
        %v566 = vld [vmem:[%s3] sm:$0xff]
        %v567 = vld [vmem:[#allocation8] sm:$0xff]
        %v568 = vld [vmem:[#allocation8 + $0x8] sm:$0xff]
        %v569 = vld [vmem:[#allocation8 + $0x10] sm:$0xff]
        %v570 = vld [vmem:[#allocation8 + $0x18] sm:$0xff]
        %v571 = vld [vmem:[#allocation10] sm:$0xff]
        %v572 = vld [vmem:[#allocation10 + $0x8] sm:$0xff]
        %v573 = vld [vmem:[#allocation10 + $0x10] sm:$0xff]
        %v574 = vld [vmem:[#allocation10 + $0x18] sm:$0xff]
        %v575 = vld [vmem:[#allocation11] sm:$0xff]
        %v576 = vld [vmem:[#allocation11 + $0x8] sm:$0xff]
        %v577 = vld [vmem:[#allocation11 + $0x10] sm:$0xff]
        %v578 = vld [vmem:[#allocation11 + $0x18] sm:$0xff]
        %v579 = vld [vmem:[#allocation13] sm:$0xff]
        %v580 = vld [vmem:[#allocation13 + $0x8] sm:$0xff]
        %v581 = vld [vmem:[#allocation13 + $0x10] sm:$0xff]
        %v582 = vld [vmem:[#allocation13 + $0x18] sm:$0xff]
        %v583 = vld [vmem:[%s6] sm:$0x1]
        %v584 = vld [vmem:[%s8] sm:$0x1]
        %v585 = vld [vmem:[%s10] sm:$0x1]
        %v586 = vld [vmem:[%s11] sm:$0x1]
        %v587 = vld [vmem:[%s12] sm:$0x1]
        %v589 = vlaneseq
        %v590 = vshrl.u32 %v589, 7
        %v591 = vsub.s32 0, %v590
        %v592 = vrot.slane %v583, %v591
        %vm594 = vcmask 261120
        %v596 = vsel %vm594, %v564, 0
        %598 = vmatprep.subr.mxu0 0.0
        %599 = vmatpush1.msra.mxu0 %v571
        %600 = vmatprep.subr.mxu0 0.0
        %601 = vmatpush1.msra.mxu0 %v572
        %602 = vmatprep.subr.mxu0 0.0
        %603 = vmatpush1.msra.mxu0 %v573
        %604 = vmatprep.subr.mxu0 0.0
        %605 = vmatpush1.msra.mxu0 %v574
        %606 = vmatprep.subr.mxu0 0.0
        %607 = vmatpush1.msra.mxu0 0.0
        %608 = vmatprep.subr.mxu0 0.0
        %609 = vmatpush1.msra.mxu0 0.0
        %610 = vmatprep.subr.mxu0 0.0
        %611 = vmatpush1.msra.mxu0 0.0
        %612 = vmatprep.subr.mxu0 0.0
        %613 = vmatpush1.msra.mxu0 0.0
        %614 = vmatprep.subr.mxu0 0.0
        %615 = vmatpush1.msra.mxu0 0.0
        %616 = vmatprep.subr.mxu0 0.0
        %617 = vmatpush1.msra.mxu0 0.0
        %618 = vmatprep.subr.mxu0 0.0
        %619 = vmatpush1.msra.mxu0 0.0
        %620 = vmatprep.subr.mxu0 0.0
        %621 = vmatpush1.msra.mxu0 0.0
        %622 = vmatprep.subr.mxu0 0.0
        %623 = vmatpush1.msra.mxu0 0.0
        %624 = vmatprep.subr.mxu0 0.0
        %625 = vmatpush1.msra.mxu0 0.0
        %626 = vmatprep.subr.mxu0 0.0
        %627 = vmatpush1.msra.mxu0 0.0
        %628 = vmatprep.subr.mxu0 0.0
        %629 = vmatpush1.msra.mxu0 0.0
        %630 = vmatprep.subr.mxu0 0.0
        %631 = vmatpush1.msra.mxu0 0.0
        %632 = vmatprep.subr.mxu0 0.0
        %633 = vmatpush1.msra.mxu0 0.0
        %634 = vmatprep.subr.mxu0 0.0
        %635 = vmatpush1.msra.mxu0 0.0
        %636 = vmatprep.subr.mxu0 0.0
        %637 = vmatpush1.msra.mxu0 0.0
        %638 = vmatprep.subr.mxu0 0.0
        %639 = vmatpush1.msra.mxu0 0.0
        %640 = vmatprep.subr.mxu0 0.0
        %641 = vmatpush1.msra.mxu0 0.0
        %642 = vmatprep.subr.mxu0 0.0
        %643 = vmatpush1.msra.mxu0 0.0
        %644 = vmatprep.subr.mxu0 0.0
        %645 = vmatpush1.msra.mxu0 0.0
        %646 = vmatprep.subr.mxu0 0.0
        %647 = vmatpush1.msra.mxu0 0.0
        %648 = vmatprep.subr.mxu0 0.0
        %649 = vmatpush1.msra.mxu0 0.0
        %650 = vmatprep.subr.mxu0 0.0
        %651 = vmatpush1.msra.mxu0 0.0
        %652 = vmatprep.subr.mxu0 0.0
        %653 = vmatpush1.msra.mxu0 0.0
        %654 = vmatprep.subr.mxu0 0.0
        %655 = vmatpush1.msra.mxu0 0.0
        %656 = vmatprep.subr.mxu0 0.0
        %657 = vmatpush1.msra.mxu0 0.0
        %658 = vmatprep.subr.mxu0 0.0
        %659 = vmatpush1.msra.mxu0 0.0
        %660 = vmatprep.subr.mxu0 0.0
        %661 = vmatpush1.msra.mxu0 0.0
        %662 = vmatprep.mubr.f32.mxu0 0.0
        %663 = vmatmul.mubr.f32.gmra.mrb[0].mxu0 %v596
        %v664 = vpop.f32.mrb[0].mxu0
        %v665 = vadd.f32 %v592, %v664
        %v666 = vpop.f32.mrb[0].mxu0
        %667 = vdwg.mxu0
        %v669 = vlaneseq
        %v670 = vshrl.u32 %v669, 7
        %v671 = vsub.s32 0, %v670
        %v672 = vrot.slane %v584, %v671
        %v675 = vsel %vm594, %v563, 0
        %677 = vmatprep.subr.mxu0 0.0
        %678 = vmatpush1.msra.mxu0 %v575
        %679 = vmatprep.subr.mxu0 0.0
        %680 = vmatpush1.msra.mxu0 %v576
        %681 = vmatprep.subr.mxu0 0.0
        %682 = vmatpush1.msra.mxu0 %v577
        %683 = vmatprep.subr.mxu0 0.0
        %684 = vmatpush1.msra.mxu0 %v578
        %685 = vmatprep.subr.mxu0 0.0
        %686 = vmatpush1.msra.mxu0 0.0
        %687 = vmatprep.subr.mxu0 0.0
        %688 = vmatpush1.msra.mxu0 0.0
        %689 = vmatprep.subr.mxu0 0.0
        %690 = vmatpush1.msra.mxu0 0.0
        %691 = vmatprep.subr.mxu0 0.0
        %692 = vmatpush1.msra.mxu0 0.0
        %693 = vmatprep.subr.mxu0 0.0
        %694 = vmatpush1.msra.mxu0 0.0
        %695 = vmatprep.subr.mxu0 0.0
        %696 = vmatpush1.msra.mxu0 0.0
        %697 = vmatprep.subr.mxu0 0.0
        %698 = vmatpush1.msra.mxu0 0.0
        %699 = vmatprep.subr.mxu0 0.0
        %700 = vmatpush1.msra.mxu0 0.0
        %701 = vmatprep.subr.mxu0 0.0
        %702 = vmatpush1.msra.mxu0 0.0
        %703 = vmatprep.subr.mxu0 0.0
        %704 = vmatpush1.msra.mxu0 0.0
        %705 = vmatprep.subr.mxu0 0.0
        %706 = vmatpush1.msra.mxu0 0.0
        %707 = vmatprep.subr.mxu0 0.0
        %708 = vmatpush1.msra.mxu0 0.0
        %709 = vmatprep.subr.mxu0 0.0
        %710 = vmatpush1.msra.mxu0 0.0
        %711 = vmatprep.subr.mxu0 0.0
        %712 = vmatpush1.msra.mxu0 0.0
        %713 = vmatprep.subr.mxu0 0.0
        %714 = vmatpush1.msra.mxu0 0.0
        %715 = vmatprep.subr.mxu0 0.0
        %716 = vmatpush1.msra.mxu0 0.0
        %717 = vmatprep.subr.mxu0 0.0
        %718 = vmatpush1.msra.mxu0 0.0
        %719 = vmatprep.subr.mxu0 0.0
        %720 = vmatpush1.msra.mxu0 0.0
        %721 = vmatprep.subr.mxu0 0.0
        %722 = vmatpush1.msra.mxu0 0.0
        %723 = vmatprep.subr.mxu0 0.0
        %724 = vmatpush1.msra.mxu0 0.0
        %725 = vmatprep.subr.mxu0 0.0
        %726 = vmatpush1.msra.mxu0 0.0
        %727 = vmatprep.subr.mxu0 0.0
        %728 = vmatpush1.msra.mxu0 0.0
        %729 = vmatprep.subr.mxu0 0.0
        %730 = vmatpush1.msra.mxu0 0.0
        %731 = vmatprep.subr.mxu0 0.0
        %732 = vmatpush1.msra.mxu0 0.0
        %733 = vmatprep.subr.mxu0 0.0
        %734 = vmatpush1.msra.mxu0 0.0
        %735 = vmatprep.subr.mxu0 0.0
        %736 = vmatpush1.msra.mxu0 0.0
        %737 = vmatprep.subr.mxu0 0.0
        %738 = vmatpush1.msra.mxu0 0.0
        %739 = vmatprep.subr.mxu0 0.0
        %740 = vmatpush1.msra.mxu0 0.0
        %741 = vmatprep.mubr.f32.mxu0 0.0
        %742 = vmatmul.mubr.f32.gmra.mrb[0].mxu0 %v675
        %v743 = vpop.f32.mrb[0].mxu0
        %v744 = vadd.f32 %v672, %v743
        %v745 = vpop.f32.mrb[0].mxu0
        %746 = vdwg.mxu0
        %v747 = vmul.f32 %v665, %v565
        %v749 = vsel %vm594, %v665, 0
        %751 = vmatprep.subr.mxu0 0.0
        %752 = vmatpush1.msra.mxu0 %v567
        %753 = vmatprep.subr.mxu0 0.0
        %754 = vmatpush1.msra.mxu0 %v568
        %755 = vmatprep.subr.mxu0 0.0
        %756 = vmatpush1.msra.mxu0 %v569
        %757 = vmatprep.subr.mxu0 0.0
        %758 = vmatpush1.msra.mxu0 %v570
        %759 = vmatprep.subr.mxu0 0.0
        %760 = vmatpush1.msra.mxu0 0.0
        %761 = vmatprep.subr.mxu0 0.0
        %762 = vmatpush1.msra.mxu0 0.0
        %763 = vmatprep.subr.mxu0 0.0
        %764 = vmatpush1.msra.mxu0 0.0
        %765 = vmatprep.subr.mxu0 0.0
        %766 = vmatpush1.msra.mxu0 0.0
        %767 = vmatprep.subr.mxu0 0.0
        %768 = vmatpush1.msra.mxu0 0.0
        %769 = vmatprep.subr.mxu0 0.0
        %770 = vmatpush1.msra.mxu0 0.0
        %771 = vmatprep.subr.mxu0 0.0
        %772 = vmatpush1.msra.mxu0 0.0
        %773 = vmatprep.subr.mxu0 0.0
        %774 = vmatpush1.msra.mxu0 0.0
        %775 = vmatprep.subr.mxu0 0.0
        %776 = vmatpush1.msra.mxu0 0.0
        %777 = vmatprep.subr.mxu0 0.0
        %778 = vmatpush1.msra.mxu0 0.0
        %779 = vmatprep.subr.mxu0 0.0
        %780 = vmatpush1.msra.mxu0 0.0
        %781 = vmatprep.subr.mxu0 0.0
        %782 = vmatpush1.msra.mxu0 0.0
        %783 = vmatprep.subr.mxu0 0.0
        %784 = vmatpush1.msra.mxu0 0.0
        %785 = vmatprep.subr.mxu0 0.0
        %786 = vmatpush1.msra.mxu0 0.0
        %787 = vmatprep.subr.mxu0 0.0
        %788 = vmatpush1.msra.mxu0 0.0
        %789 = vmatprep.subr.mxu0 0.0
        %790 = vmatpush1.msra.mxu0 0.0
        %791 = vmatprep.subr.mxu0 0.0
        %792 = vmatpush1.msra.mxu0 0.0
        %793 = vmatprep.subr.mxu0 0.0
        %794 = vmatpush1.msra.mxu0 0.0
        %795 = vmatprep.subr.mxu0 0.0
        %796 = vmatpush1.msra.mxu0 0.0
        %797 = vmatprep.subr.mxu0 0.0
        %798 = vmatpush1.msra.mxu0 0.0
        %799 = vmatprep.subr.mxu0 0.0
        %800 = vmatpush1.msra.mxu0 0.0
        %801 = vmatprep.subr.mxu0 0.0
        %802 = vmatpush1.msra.mxu0 0.0
        %803 = vmatprep.subr.mxu0 0.0
        %804 = vmatpush1.msra.mxu0 0.0
        %805 = vmatprep.subr.mxu0 0.0
        %806 = vmatpush1.msra.mxu0 0.0
        %807 = vmatprep.subr.mxu0 0.0
        %808 = vmatpush1.msra.mxu0 0.0
        %809 = vmatprep.subr.mxu0 0.0
        %810 = vmatpush1.msra.mxu0 0.0
        %811 = vmatprep.subr.mxu0 0.0
        %812 = vmatpush1.msra.mxu0 0.0
        %813 = vmatprep.subr.mxu0 0.0
        %814 = vmatpush1.msra.mxu0 0.0
        %815 = vmatprep.mubr.f32.mxu0 0.0
        %816 = vmatmul.mubr.f32.gmra.mrb[0].mxu0 %v749
        %v817 = vpop.f32.mrb[0].mxu0
        %v818 = vadd.f32 0.0, %v817
        %v819 = vpop.f32.mrb[0].mxu0
        %820 = vdwg.mxu0
        %v821 = vmul.f32 %v818, %v566
        %v822 = vadd.f32 %v747, %v821
        %vm823 = vcmask 64512
        %v825 = vsel %vm823, %v822, 0
        %v828 = vsel %vm823, %v744, 0
        %830 = vmatprep.subr.mxu0 0.0
        %831 = vmatpush1.xpose.msra.mxu0 %v828
        %832 = vmatprep.subr.mxu0 0.0
        %833 = vmatpush1.xpose.msra.mxu0 0.0
        %834 = vmatprep.subr.mxu0 0.0
        %835 = vmatpush1.xpose.msra.mxu0 0.0
        %836 = vmatprep.subr.mxu0 0.0
        %837 = vmatpush1.xpose.msra.mxu0 0.0
        %838 = vmatprep.subr.mxu0 0.0
        %839 = vmatpush1.xpose.msra.mxu0 0.0
        %840 = vmatprep.subr.mxu0 0.0
        %841 = vmatpush1.xpose.msra.mxu0 0.0
        %842 = vmatprep.subr.mxu0 0.0
        %843 = vmatpush1.xpose.msra.mxu0 0.0
        %844 = vmatprep.subr.mxu0 0.0
        %845 = vmatpush1.xpose.msra.mxu0 0.0
        %846 = vmatprep.subr.mxu0 0.0
        %847 = vmatpush1.xpose.msra.mxu0 0.0
        %848 = vmatprep.subr.mxu0 0.0
        %849 = vmatpush1.xpose.msra.mxu0 0.0
        %850 = vmatprep.subr.mxu0 0.0
        %851 = vmatpush1.xpose.msra.mxu0 0.0
        %852 = vmatprep.subr.mxu0 0.0
        %853 = vmatpush1.xpose.msra.mxu0 0.0
        %854 = vmatprep.subr.mxu0 0.0
        %855 = vmatpush1.xpose.msra.mxu0 0.0
        %856 = vmatprep.subr.mxu0 0.0
        %857 = vmatpush1.xpose.msra.mxu0 0.0
        %858 = vmatprep.subr.mxu0 0.0
        %859 = vmatpush1.xpose.msra.mxu0 0.0
        %860 = vmatprep.subr.mxu0 0.0
        %861 = vmatpush1.xpose.msra.mxu0 0.0
        %862 = vmatprep.subr.mxu0 0.0
        %863 = vmatpush1.xpose.msra.mxu0 0.0
        %864 = vmatprep.subr.mxu0 0.0
        %865 = vmatpush1.xpose.msra.mxu0 0.0
        %866 = vmatprep.subr.mxu0 0.0
        %867 = vmatpush1.xpose.msra.mxu0 0.0
        %868 = vmatprep.subr.mxu0 0.0
        %869 = vmatpush1.xpose.msra.mxu0 0.0
        %870 = vmatprep.subr.mxu0 0.0
        %871 = vmatpush1.xpose.msra.mxu0 0.0
        %872 = vmatprep.subr.mxu0 0.0
        %873 = vmatpush1.xpose.msra.mxu0 0.0
        %874 = vmatprep.subr.mxu0 0.0
        %875 = vmatpush1.xpose.msra.mxu0 0.0
        %876 = vmatprep.subr.mxu0 0.0
        %877 = vmatpush1.xpose.msra.mxu0 0.0
        %878 = vmatprep.subr.mxu0 0.0
        %879 = vmatpush1.xpose.msra.mxu0 0.0
        %880 = vmatprep.subr.mxu0 0.0
        %881 = vmatpush1.xpose.msra.mxu0 0.0
        %882 = vmatprep.subr.mxu0 0.0
        %883 = vmatpush1.xpose.msra.mxu0 0.0
        %884 = vmatprep.subr.mxu0 0.0
        %885 = vmatpush1.xpose.msra.mxu0 0.0
        %886 = vmatprep.subr.mxu0 0.0
        %887 = vmatpush1.xpose.msra.mxu0 0.0
        %888 = vmatprep.subr.mxu0 0.0
        %889 = vmatpush1.xpose.msra.mxu0 0.0
        %890 = vmatprep.subr.mxu0 0.0
        %891 = vmatpush1.xpose.msra.mxu0 0.0
        %892 = vmatprep.subr.mxu0 0.0
        %893 = vmatpush1.xpose.msra.mxu0 0.0
        %894 = vmatprep.mubr.f32.mxu0 0.0
        %895 = vmatmul.mubr.f32.gmra.mrb[0].mxu0 %v825
        %v896 = vpop.f32.mrb[0].mxu0
        %v897 = vadd.f32 0.0, %v896
        %v898 = vpop.f32.mrb[0].mxu0
        %899 = vdwg.mxu0
        %v900 = vmul.f32 %v897, 0.35355338
        %v901 = vsel %vm823, %v900, -inf
        %902 = vmax.xlane.f32.xlu0 %v901
        %v903 = vpop.xlane.xlu0 %902
        %v904 = vsub.f32 %v900, %v903
        %v905 = vmul.f32 %v904, 1.442695
        %v906 = vpow.pop %v905
        %v907 = vsel %vm823, %v906, 0.0
        %908 = vadd.xlane.f32.xlu0 %v907
        %v909 = vpop.xlane.xlu0 %908
        %v910 = vrcp.pop %v909
        %v911 = vmul.f32 %v906, %v910
        %v913 = vsel %vm823, %v911, 0
        %915 = vmatprep.subr.mxu0 0.0
        %916 = vmatpush1.msra.mxu0 %v744
        %917 = vmatprep.subr.mxu0 0.0
        %918 = vmatpush1.msra.mxu0 0.0
        %919 = vmatprep.subr.mxu0 0.0
        %920 = vmatpush1.msra.mxu0 0.0
        %921 = vmatprep.subr.mxu0 0.0
        %922 = vmatpush1.msra.mxu0 0.0
        %923 = vmatprep.subr.mxu0 0.0
        %924 = vmatpush1.msra.mxu0 0.0
        %925 = vmatprep.subr.mxu0 0.0
        %926 = vmatpush1.msra.mxu0 0.0
        %927 = vmatprep.subr.mxu0 0.0
        %928 = vmatpush1.msra.mxu0 0.0
        %929 = vmatprep.subr.mxu0 0.0
        %930 = vmatpush1.msra.mxu0 0.0
        %931 = vmatprep.subr.mxu0 0.0
        %932 = vmatpush1.msra.mxu0 0.0
        %933 = vmatprep.subr.mxu0 0.0
        %934 = vmatpush1.msra.mxu0 0.0
        %935 = vmatprep.subr.mxu0 0.0
        %936 = vmatpush1.msra.mxu0 0.0
        %937 = vmatprep.subr.mxu0 0.0
        %938 = vmatpush1.msra.mxu0 0.0
        %939 = vmatprep.subr.mxu0 0.0
        %940 = vmatpush1.msra.mxu0 0.0
        %941 = vmatprep.subr.mxu0 0.0
        %942 = vmatpush1.msra.mxu0 0.0
        %943 = vmatprep.subr.mxu0 0.0
        %944 = vmatpush1.msra.mxu0 0.0
        %945 = vmatprep.subr.mxu0 0.0
        %946 = vmatpush1.msra.mxu0 0.0
        %947 = vmatprep.subr.mxu0 0.0
        %948 = vmatpush1.msra.mxu0 0.0
        %949 = vmatprep.subr.mxu0 0.0
        %950 = vmatpush1.msra.mxu0 0.0
        %951 = vmatprep.subr.mxu0 0.0
        %952 = vmatpush1.msra.mxu0 0.0
        %953 = vmatprep.subr.mxu0 0.0
        %954 = vmatpush1.msra.mxu0 0.0
        %955 = vmatprep.subr.mxu0 0.0
        %956 = vmatpush1.msra.mxu0 0.0
        %957 = vmatprep.subr.mxu0 0.0
        %958 = vmatpush1.msra.mxu0 0.0
        %959 = vmatprep.subr.mxu0 0.0
        %960 = vmatpush1.msra.mxu0 0.0
        %961 = vmatprep.subr.mxu0 0.0
        %962 = vmatpush1.msra.mxu0 0.0
        %963 = vmatprep.subr.mxu0 0.0
        %964 = vmatpush1.msra.mxu0 0.0
        %965 = vmatprep.subr.mxu0 0.0
        %966 = vmatpush1.msra.mxu0 0.0
        %967 = vmatprep.subr.mxu0 0.0
        %968 = vmatpush1.msra.mxu0 0.0
        %969 = vmatprep.subr.mxu0 0.0
        %970 = vmatpush1.msra.mxu0 0.0
        %971 = vmatprep.subr.mxu0 0.0
        %972 = vmatpush1.msra.mxu0 0.0
        %973 = vmatprep.subr.mxu0 0.0
        %974 = vmatpush1.msra.mxu0 0.0
        %975 = vmatprep.subr.mxu0 0.0
        %976 = vmatpush1.msra.mxu0 0.0
        %977 = vmatprep.subr.mxu0 0.0
        %978 = vmatpush1.msra.mxu0 0.0
        %979 = vmatprep.mubr.f32.mxu0 0.0
        %980 = vmatmul.mubr.f32.gmra.mrb[0].mxu0 %v913
        %v981 = vpop.f32.mrb[0].mxu0
        %v982 = vadd.f32 0.0, %v981
        %v983 = vpop.f32.mrb[0].mxu0
        %984 = vdwg.mxu0
        %985 = vrot.lane.b32.xlu0 %v822, 120
        %v986 = vpop.permute.xlu0 %985
        %987 = vrot.lane.b32.xlu0 %v744, 120
        %v988 = vpop.permute.xlu0 %987
        %v989 = vsel %vm823, %v986, 0
        %v991 = vsel %vm823, %v988, 0
        %993 = vmatprep.subr.mxu0 0.0
        %994 = vmatpush1.xpose.msra.mxu0 %v991
        %995 = vmatprep.subr.mxu0 0.0
        %996 = vmatpush1.xpose.msra.mxu0 0.0
        %997 = vmatprep.subr.mxu0 0.0
        %998 = vmatpush1.xpose.msra.mxu0 0.0
        %999 = vmatprep.subr.mxu0 0.0
        %1000 = vmatpush1.xpose.msra.mxu0 0.0
        %1001 = vmatprep.subr.mxu0 0.0
        %1002 = vmatpush1.xpose.msra.mxu0 0.0
        %1003 = vmatprep.subr.mxu0 0.0
        %1004 = vmatpush1.xpose.msra.mxu0 0.0
        %1005 = vmatprep.subr.mxu0 0.0
        %1006 = vmatpush1.xpose.msra.mxu0 0.0
        %1007 = vmatprep.subr.mxu0 0.0
        %1008 = vmatpush1.xpose.msra.mxu0 0.0
        %1009 = vmatprep.subr.mxu0 0.0
        %1010 = vmatpush1.xpose.msra.mxu0 0.0
        %1011 = vmatprep.subr.mxu0 0.0
        %1012 = vmatpush1.xpose.msra.mxu0 0.0
        %1013 = vmatprep.subr.mxu0 0.0
        %1014 = vmatpush1.xpose.msra.mxu0 0.0
        %1015 = vmatprep.subr.mxu0 0.0
        %1016 = vmatpush1.xpose.msra.mxu0 0.0
        %1017 = vmatprep.subr.mxu0 0.0
        %1018 = vmatpush1.xpose.msra.mxu0 0.0
        %1019 = vmatprep.subr.mxu0 0.0
        %1020 = vmatpush1.xpose.msra.mxu0 0.0
        %1021 = vmatprep.subr.mxu0 0.0
        %1022 = vmatpush1.xpose.msra.mxu0 0.0
        %1023 = vmatprep.subr.mxu0 0.0
        %1024 = vmatpush1.xpose.msra.mxu0 0.0
        %1025 = vmatprep.subr.mxu0 0.0
        %1026 = vmatpush1.xpose.msra.mxu0 0.0
        %1027 = vmatprep.subr.mxu0 0.0
        %1028 = vmatpush1.xpose.msra.mxu0 0.0
        %1029 = vmatprep.subr.mxu0 0.0
        %1030 = vmatpush1.xpose.msra.mxu0 0.0
        %1031 = vmatprep.subr.mxu0 0.0
        %1032 = vmatpush1.xpose.msra.mxu0 0.0
        %1033 = vmatprep.subr.mxu0 0.0
        %1034 = vmatpush1.xpose.msra.mxu0 0.0
        %1035 = vmatprep.subr.mxu0 0.0
        %1036 = vmatpush1.xpose.msra.mxu0 0.0
        %1037 = vmatprep.subr.mxu0 0.0
        %1038 = vmatpush1.xpose.msra.mxu0 0.0
        %1039 = vmatprep.subr.mxu0 0.0
        %1040 = vmatpush1.xpose.msra.mxu0 0.0
        %1041 = vmatprep.subr.mxu0 0.0
        %1042 = vmatpush1.xpose.msra.mxu0 0.0
        %1043 = vmatprep.subr.mxu0 0.0
        %1044 = vmatpush1.xpose.msra.mxu0 0.0
        %1045 = vmatprep.subr.mxu0 0.0
        %1046 = vmatpush1.xpose.msra.mxu0 0.0
        %1047 = vmatprep.subr.mxu0 0.0
        %1048 = vmatpush1.xpose.msra.mxu0 0.0
        %1049 = vmatprep.subr.mxu0 0.0
        %1050 = vmatpush1.xpose.msra.mxu0 0.0
        %1051 = vmatprep.subr.mxu0 0.0
        %1052 = vmatpush1.xpose.msra.mxu0 0.0
        %1053 = vmatprep.subr.mxu0 0.0
        %1054 = vmatpush1.xpose.msra.mxu0 0.0
        %1055 = vmatprep.subr.mxu0 0.0
        %1056 = vmatpush1.xpose.msra.mxu0 0.0
        %1057 = vmatprep.mubr.f32.mxu0 0.0
        %1058 = vmatmul.mubr.f32.gmra.mrb[0].mxu0 %v989
        %v1059 = vpop.f32.mrb[0].mxu0
        %v1060 = vadd.f32 0.0, %v1059
        %v1061 = vpop.f32.mrb[0].mxu0
        %1062 = vdwg.mxu0
        %v1063 = vmul.f32 %v1060, 0.35355338
        %v1064 = vsel %vm823, %v1063, -inf
        %1065 = vmax.xlane.f32.xlu0 %v1064
        %v1066 = vpop.xlane.xlu0 %1065
        %v1067 = vsub.f32 %v1063, %v1066
        %v1068 = vmul.f32 %v1067, 1.442695
        %v1069 = vpow.pop %v1068
        %v1070 = vsel %vm823, %v1069, 0.0
        %1071 = vadd.xlane.f32.xlu0 %v1070
        %v1072 = vpop.xlane.xlu0 %1071
        %v1073 = vrcp.pop %v1072
        %v1074 = vmul.f32 %v1069, %v1073
        %v1077 = vsel %vm823, %v1074, 0
        %1079 = vmatprep.subr.mxu0 0.0
        %1080 = vmatpush1.msra.mxu0 %v988
        %1081 = vmatprep.subr.mxu0 0.0
        %1082 = vmatpush1.msra.mxu0 0.0
        %1083 = vmatprep.subr.mxu0 0.0
        %1084 = vmatpush1.msra.mxu0 0.0
        %1085 = vmatprep.subr.mxu0 0.0
        %1086 = vmatpush1.msra.mxu0 0.0
        %1087 = vmatprep.subr.mxu0 0.0
        %1088 = vmatpush1.msra.mxu0 0.0
        %1089 = vmatprep.subr.mxu0 0.0
        %1090 = vmatpush1.msra.mxu0 0.0
        %1091 = vmatprep.subr.mxu0 0.0
        %1092 = vmatpush1.msra.mxu0 0.0
        %1093 = vmatprep.subr.mxu0 0.0
        %1094 = vmatpush1.msra.mxu0 0.0
        %1095 = vmatprep.subr.mxu0 0.0
        %1096 = vmatpush1.msra.mxu0 0.0
        %1097 = vmatprep.subr.mxu0 0.0
        %1098 = vmatpush1.msra.mxu0 0.0
        %1099 = vmatprep.subr.mxu0 0.0
        %1100 = vmatpush1.msra.mxu0 0.0
        %1101 = vmatprep.subr.mxu0 0.0
        %1102 = vmatpush1.msra.mxu0 0.0
        %1103 = vmatprep.subr.mxu0 0.0
        %1104 = vmatpush1.msra.mxu0 0.0
        %1105 = vmatprep.subr.mxu0 0.0
        %1106 = vmatpush1.msra.mxu0 0.0
        %1107 = vmatprep.subr.mxu0 0.0
        %1108 = vmatpush1.msra.mxu0 0.0
        %1109 = vmatprep.subr.mxu0 0.0
        %1110 = vmatpush1.msra.mxu0 0.0
        %1111 = vmatprep.subr.mxu0 0.0
        %1112 = vmatpush1.msra.mxu0 0.0
        %1113 = vmatprep.subr.mxu0 0.0
        %1114 = vmatpush1.msra.mxu0 0.0
        %1115 = vmatprep.subr.mxu0 0.0
        %1116 = vmatpush1.msra.mxu0 0.0
        %1117 = vmatprep.subr.mxu0 0.0
        %1118 = vmatpush1.msra.mxu0 0.0
        %1119 = vmatprep.subr.mxu0 0.0
        %1120 = vmatpush1.msra.mxu0 0.0
        %1121 = vmatprep.subr.mxu0 0.0
        %1122 = vmatpush1.msra.mxu0 0.0
        %1123 = vmatprep.subr.mxu0 0.0
        %1124 = vmatpush1.msra.mxu0 0.0
        %1125 = vmatprep.subr.mxu0 0.0
        %1126 = vmatpush1.msra.mxu0 0.0
        %1127 = vmatprep.subr.mxu0 0.0
        %1128 = vmatpush1.msra.mxu0 0.0
        %1129 = vmatprep.subr.mxu0 0.0
        %1130 = vmatpush1.msra.mxu0 0.0
        %1131 = vmatprep.subr.mxu0 0.0
        %1132 = vmatpush1.msra.mxu0 0.0
        %1133 = vmatprep.subr.mxu0 0.0
        %1134 = vmatpush1.msra.mxu0 0.0
        %1135 = vmatprep.subr.mxu0 0.0
        %1136 = vmatpush1.msra.mxu0 0.0
        %1137 = vmatprep.subr.mxu0 0.0
        %1138 = vmatpush1.msra.mxu0 0.0
        %1139 = vmatprep.subr.mxu0 0.0
        %1140 = vmatpush1.msra.mxu0 0.0
        %1141 = vmatprep.subr.mxu0 0.0
        %1142 = vmatpush1.msra.mxu0 0.0
        %1143 = vmatprep.mubr.f32.mxu0 0.0
        %1144 = vmatmul.mubr.f32.gmra.mrb[0].mxu0 %v1077
        %v1145 = vpop.f32.mrb[0].mxu0
        %v1146 = vadd.f32 0.0, %v1145
        %v1147 = vpop.f32.mrb[0].mxu0
        %1148 = vdwg.mxu0
        %1149 = vrot.lane.b32.xlu0 %v822, 112
        %v1150 = vpop.permute.xlu0 %1149
        %1151 = vrot.lane.b32.xlu0 %v744, 112
        %v1152 = vpop.permute.xlu0 %1151
        %v1153 = vsel %vm823, %v1150, 0
        %v1155 = vsel %vm823, %v1152, 0
        %1157 = vmatprep.subr.mxu0 0.0
        %1158 = vmatpush1.xpose.msra.mxu0 %v1155
        %1159 = vmatprep.subr.mxu0 0.0
        %1160 = vmatpush1.xpose.msra.mxu0 0.0
        %1161 = vmatprep.subr.mxu0 0.0
        %1162 = vmatpush1.xpose.msra.mxu0 0.0
        %1163 = vmatprep.subr.mxu0 0.0
        %1164 = vmatpush1.xpose.msra.mxu0 0.0
        %1165 = vmatprep.subr.mxu0 0.0
        %1166 = vmatpush1.xpose.msra.mxu0 0.0
        %1167 = vmatprep.subr.mxu0 0.0
        %1168 = vmatpush1.xpose.msra.mxu0 0.0
        %1169 = vmatprep.subr.mxu0 0.0
        %1170 = vmatpush1.xpose.msra.mxu0 0.0
        %1171 = vmatprep.subr.mxu0 0.0
        %1172 = vmatpush1.xpose.msra.mxu0 0.0
        %1173 = vmatprep.subr.mxu0 0.0
        %1174 = vmatpush1.xpose.msra.mxu0 0.0
        %1175 = vmatprep.subr.mxu0 0.0
        %1176 = vmatpush1.xpose.msra.mxu0 0.0
        %1177 = vmatprep.subr.mxu0 0.0
        %1178 = vmatpush1.xpose.msra.mxu0 0.0
        %1179 = vmatprep.subr.mxu0 0.0
        %1180 = vmatpush1.xpose.msra.mxu0 0.0
        %1181 = vmatprep.subr.mxu0 0.0
        %1182 = vmatpush1.xpose.msra.mxu0 0.0
        %1183 = vmatprep.subr.mxu0 0.0
        %1184 = vmatpush1.xpose.msra.mxu0 0.0
        %1185 = vmatprep.subr.mxu0 0.0
        %1186 = vmatpush1.xpose.msra.mxu0 0.0
        %1187 = vmatprep.subr.mxu0 0.0
        %1188 = vmatpush1.xpose.msra.mxu0 0.0
        %1189 = vmatprep.subr.mxu0 0.0
        %1190 = vmatpush1.xpose.msra.mxu0 0.0
        %1191 = vmatprep.subr.mxu0 0.0
        %1192 = vmatpush1.xpose.msra.mxu0 0.0
        %1193 = vmatprep.subr.mxu0 0.0
        %1194 = vmatpush1.xpose.msra.mxu0 0.0
        %1195 = vmatprep.subr.mxu0 0.0
        %1196 = vmatpush1.xpose.msra.mxu0 0.0
        %1197 = vmatprep.subr.mxu0 0.0
        %1198 = vmatpush1.xpose.msra.mxu0 0.0
        %1199 = vmatprep.subr.mxu0 0.0
        %1200 = vmatpush1.xpose.msra.mxu0 0.0
        %1201 = vmatprep.subr.mxu0 0.0
        %1202 = vmatpush1.xpose.msra.mxu0 0.0
        %1203 = vmatprep.subr.mxu0 0.0
        %1204 = vmatpush1.xpose.msra.mxu0 0.0
        %1205 = vmatprep.subr.mxu0 0.0
        %1206 = vmatpush1.xpose.msra.mxu0 0.0
        %1207 = vmatprep.subr.mxu0 0.0
        %1208 = vmatpush1.xpose.msra.mxu0 0.0
        %1209 = vmatprep.subr.mxu0 0.0
        %1210 = vmatpush1.xpose.msra.mxu0 0.0
        %1211 = vmatprep.subr.mxu0 0.0
        %1212 = vmatpush1.xpose.msra.mxu0 0.0
        %1213 = vmatprep.subr.mxu0 0.0
        %1214 = vmatpush1.xpose.msra.mxu0 0.0
        %1215 = vmatprep.subr.mxu0 0.0
        %1216 = vmatpush1.xpose.msra.mxu0 0.0
        %1217 = vmatprep.subr.mxu0 0.0
        %1218 = vmatpush1.xpose.msra.mxu0 0.0
        %1219 = vmatprep.subr.mxu0 0.0
        %1220 = vmatpush1.xpose.msra.mxu0 0.0
        %1221 = vmatprep.mubr.f32.mxu0 0.0
        %1222 = vmatmul.mubr.f32.gmra.mrb[0].mxu0 %v1153
        %v1223 = vpop.f32.mrb[0].mxu0
        %v1224 = vadd.f32 0.0, %v1223
        %v1225 = vpop.f32.mrb[0].mxu0
        %1226 = vdwg.mxu0
        %v1227 = vmul.f32 %v1224, 0.35355338
        %v1228 = vsel %vm823, %v1227, -inf
        %1229 = vmax.xlane.f32.xlu0 %v1228
        %v1230 = vpop.xlane.xlu0 %1229
        %v1231 = vsub.f32 %v1227, %v1230
        %v1232 = vmul.f32 %v1231, 1.442695
        %v1233 = vpow.pop %v1232
        %v1234 = vsel %vm823, %v1233, 0.0
        %1235 = vadd.xlane.f32.xlu0 %v1234
        %v1236 = vpop.xlane.xlu0 %1235
        %v1237 = vrcp.pop %v1236
        %v1238 = vmul.f32 %v1233, %v1237
        %v1241 = vsel %vm823, %v1238, 0
        %1243 = vmatprep.subr.mxu0 0.0
        %1244 = vmatpush1.msra.mxu0 %v1152
        %1245 = vmatprep.subr.mxu0 0.0
        %1246 = vmatpush1.msra.mxu0 0.0
        %1247 = vmatprep.subr.mxu0 0.0
        %1248 = vmatpush1.msra.mxu0 0.0
        %1249 = vmatprep.subr.mxu0 0.0
        %1250 = vmatpush1.msra.mxu0 0.0
        %1251 = vmatprep.subr.mxu0 0.0
        %1252 = vmatpush1.msra.mxu0 0.0
        %1253 = vmatprep.subr.mxu0 0.0
        %1254 = vmatpush1.msra.mxu0 0.0
        %1255 = vmatprep.subr.mxu0 0.0
        %1256 = vmatpush1.msra.mxu0 0.0
        %1257 = vmatprep.subr.mxu0 0.0
        %1258 = vmatpush1.msra.mxu0 0.0
        %1259 = vmatprep.subr.mxu0 0.0
        %1260 = vmatpush1.msra.mxu0 0.0
        %1261 = vmatprep.subr.mxu0 0.0
        %1262 = vmatpush1.msra.mxu0 0.0
        %1263 = vmatprep.subr.mxu0 0.0
        %1264 = vmatpush1.msra.mxu0 0.0
        %1265 = vmatprep.subr.mxu0 0.0
        %1266 = vmatpush1.msra.mxu0 0.0
        %1267 = vmatprep.subr.mxu0 0.0
        %1268 = vmatpush1.msra.mxu0 0.0
        %1269 = vmatprep.subr.mxu0 0.0
        %1270 = vmatpush1.msra.mxu0 0.0
        %1271 = vmatprep.subr.mxu0 0.0
        %1272 = vmatpush1.msra.mxu0 0.0
        %1273 = vmatprep.subr.mxu0 0.0
        %1274 = vmatpush1.msra.mxu0 0.0
        %1275 = vmatprep.subr.mxu0 0.0
        %1276 = vmatpush1.msra.mxu0 0.0
        %1277 = vmatprep.subr.mxu0 0.0
        %1278 = vmatpush1.msra.mxu0 0.0
        %1279 = vmatprep.subr.mxu0 0.0
        %1280 = vmatpush1.msra.mxu0 0.0
        %1281 = vmatprep.subr.mxu0 0.0
        %1282 = vmatpush1.msra.mxu0 0.0
        %1283 = vmatprep.subr.mxu0 0.0
        %1284 = vmatpush1.msra.mxu0 0.0
        %1285 = vmatprep.subr.mxu0 0.0
        %1286 = vmatpush1.msra.mxu0 0.0
        %1287 = vmatprep.subr.mxu0 0.0
        %1288 = vmatpush1.msra.mxu0 0.0
        %1289 = vmatprep.subr.mxu0 0.0
        %1290 = vmatpush1.msra.mxu0 0.0
        %1291 = vmatprep.subr.mxu0 0.0
        %1292 = vmatpush1.msra.mxu0 0.0
        %1293 = vmatprep.subr.mxu0 0.0
        %1294 = vmatpush1.msra.mxu0 0.0
        %1295 = vmatprep.subr.mxu0 0.0
        %1296 = vmatpush1.msra.mxu0 0.0
        %1297 = vmatprep.subr.mxu0 0.0
        %1298 = vmatpush1.msra.mxu0 0.0
        %1299 = vmatprep.subr.mxu0 0.0
        %1300 = vmatpush1.msra.mxu0 0.0
        %1301 = vmatprep.subr.mxu0 0.0
        %1302 = vmatpush1.msra.mxu0 0.0
        %1303 = vmatprep.subr.mxu0 0.0
        %1304 = vmatpush1.msra.mxu0 0.0
        %1305 = vmatprep.subr.mxu0 0.0
        %1306 = vmatpush1.msra.mxu0 0.0
        %1307 = vmatprep.mubr.f32.mxu0 0.0
        %1308 = vmatmul.mubr.f32.gmra.mrb[0].mxu0 %v1241
        %v1309 = vpop.f32.mrb[0].mxu0
        %v1310 = vadd.f32 0.0, %v1309
        %v1311 = vpop.f32.mrb[0].mxu0
        %1312 = vdwg.mxu0
        %1313 = vrot.lane.b32.xlu0 %v822, 104
        %v1314 = vpop.permute.xlu0 %1313
        %1315 = vrot.lane.b32.xlu0 %v744, 104
        %v1316 = vpop.permute.xlu0 %1315
        %v1317 = vsel %vm823, %v1314, 0
        %v1319 = vsel %vm823, %v1316, 0
        %1321 = vmatprep.subr.mxu0 0.0
        %1322 = vmatpush1.xpose.msra.mxu0 %v1319
        %1323 = vmatprep.subr.mxu0 0.0
        %1324 = vmatpush1.xpose.msra.mxu0 0.0
        %1325 = vmatprep.subr.mxu0 0.0
        %1326 = vmatpush1.xpose.msra.mxu0 0.0
        %1327 = vmatprep.subr.mxu0 0.0
        %1328 = vmatpush1.xpose.msra.mxu0 0.0
        %1329 = vmatprep.subr.mxu0 0.0
        %1330 = vmatpush1.xpose.msra.mxu0 0.0
        %1331 = vmatprep.subr.mxu0 0.0
        %1332 = vmatpush1.xpose.msra.mxu0 0.0
        %1333 = vmatprep.subr.mxu0 0.0
        %1334 = vmatpush1.xpose.msra.mxu0 0.0
        %1335 = vmatprep.subr.mxu0 0.0
        %1336 = vmatpush1.xpose.msra.mxu0 0.0
        %1337 = vmatprep.subr.mxu0 0.0
        %1338 = vmatpush1.xpose.msra.mxu0 0.0
        %1339 = vmatprep.subr.mxu0 0.0
        %1340 = vmatpush1.xpose.msra.mxu0 0.0
        %1341 = vmatprep.subr.mxu0 0.0
        %1342 = vmatpush1.xpose.msra.mxu0 0.0
        %1343 = vmatprep.subr.mxu0 0.0
        %1344 = vmatpush1.xpose.msra.mxu0 0.0
        %1345 = vmatprep.subr.mxu0 0.0
        %1346 = vmatpush1.xpose.msra.mxu0 0.0
        %1347 = vmatprep.subr.mxu0 0.0
        %1348 = vmatpush1.xpose.msra.mxu0 0.0
        %1349 = vmatprep.subr.mxu0 0.0
        %1350 = vmatpush1.xpose.msra.mxu0 0.0
        %1351 = vmatprep.subr.mxu0 0.0
        %1352 = vmatpush1.xpose.msra.mxu0 0.0
        %1353 = vmatprep.subr.mxu0 0.0
        %1354 = vmatpush1.xpose.msra.mxu0 0.0
        %1355 = vmatprep.subr.mxu0 0.0
        %1356 = vmatpush1.xpose.msra.mxu0 0.0
        %1357 = vmatprep.subr.mxu0 0.0
        %1358 = vmatpush1.xpose.msra.mxu0 0.0
        %1359 = vmatprep.subr.mxu0 0.0
        %1360 = vmatpush1.xpose.msra.mxu0 0.0
        %1361 = vmatprep.subr.mxu0 0.0
        %1362 = vmatpush1.xpose.msra.mxu0 0.0
        %1363 = vmatprep.subr.mxu0 0.0
        %1364 = vmatpush1.xpose.msra.mxu0 0.0
        %1365 = vmatprep.subr.mxu0 0.0
        %1366 = vmatpush1.xpose.msra.mxu0 0.0
        %1367 = vmatprep.subr.mxu0 0.0
        %1368 = vmatpush1.xpose.msra.mxu0 0.0
        %1369 = vmatprep.subr.mxu0 0.0
        %1370 = vmatpush1.xpose.msra.mxu0 0.0
        %1371 = vmatprep.subr.mxu0 0.0
        %1372 = vmatpush1.xpose.msra.mxu0 0.0
        %1373 = vmatprep.subr.mxu0 0.0
        %1374 = vmatpush1.xpose.msra.mxu0 0.0
        %1375 = vmatprep.subr.mxu0 0.0
        %1376 = vmatpush1.xpose.msra.mxu0 0.0
        %1377 = vmatprep.subr.mxu0 0.0
        %1378 = vmatpush1.xpose.msra.mxu0 0.0
        %1379 = vmatprep.subr.mxu0 0.0
        %1380 = vmatpush1.xpose.msra.mxu0 0.0
        %1381 = vmatprep.subr.mxu0 0.0
        %1382 = vmatpush1.xpose.msra.mxu0 0.0
        %1383 = vmatprep.subr.mxu0 0.0
        %1384 = vmatpush1.xpose.msra.mxu0 0.0
        %1385 = vmatprep.mubr.f32.mxu0 0.0
        %1386 = vmatmul.mubr.f32.gmra.mrb[0].mxu0 %v1317
        %v1387 = vpop.f32.mrb[0].mxu0
        %v1388 = vadd.f32 0.0, %v1387
        %v1389 = vpop.f32.mrb[0].mxu0
        %1390 = vdwg.mxu0
        %v1391 = vmul.f32 %v1388, 0.35355338
        %v1392 = vsel %vm823, %v1391, -inf
        %1393 = vmax.xlane.f32.xlu0 %v1392
        %v1394 = vpop.xlane.xlu0 %1393
        %v1395 = vsub.f32 %v1391, %v1394
        %v1396 = vmul.f32 %v1395, 1.442695
        %v1397 = vpow.pop %v1396
        %v1398 = vsel %vm823, %v1397, 0.0
        %1399 = vadd.xlane.f32.xlu0 %v1398
        %v1400 = vpop.xlane.xlu0 %1399
        %v1401 = vrcp.pop %v1400
        %v1402 = vmul.f32 %v1397, %v1401
        %v1405 = vsel %vm823, %v1402, 0
        %1407 = vmatprep.subr.mxu0 0.0
        %1408 = vmatpush1.msra.mxu0 %v1316
        %1409 = vmatprep.subr.mxu0 0.0
        %1410 = vmatpush1.msra.mxu0 0.0
        %1411 = vmatprep.subr.mxu0 0.0
        %1412 = vmatpush1.msra.mxu0 0.0
        %1413 = vmatprep.subr.mxu0 0.0
        %1414 = vmatpush1.msra.mxu0 0.0
        %1415 = vmatprep.subr.mxu0 0.0
        %1416 = vmatpush1.msra.mxu0 0.0
        %1417 = vmatprep.subr.mxu0 0.0
        %1418 = vmatpush1.msra.mxu0 0.0
        %1419 = vmatprep.subr.mxu0 0.0
        %1420 = vmatpush1.msra.mxu0 0.0
        %1421 = vmatprep.subr.mxu0 0.0
        %1422 = vmatpush1.msra.mxu0 0.0
        %1423 = vmatprep.subr.mxu0 0.0
        %1424 = vmatpush1.msra.mxu0 0.0
        %1425 = vmatprep.subr.mxu0 0.0
        %1426 = vmatpush1.msra.mxu0 0.0
        %1427 = vmatprep.subr.mxu0 0.0
        %1428 = vmatpush1.msra.mxu0 0.0
        %1429 = vmatprep.subr.mxu0 0.0
        %1430 = vmatpush1.msra.mxu0 0.0
        %1431 = vmatprep.subr.mxu0 0.0
        %1432 = vmatpush1.msra.mxu0 0.0
        %1433 = vmatprep.subr.mxu0 0.0
        %1434 = vmatpush1.msra.mxu0 0.0
        %1435 = vmatprep.subr.mxu0 0.0
        %1436 = vmatpush1.msra.mxu0 0.0
        %1437 = vmatprep.subr.mxu0 0.0
        %1438 = vmatpush1.msra.mxu0 0.0
        %1439 = vmatprep.subr.mxu0 0.0
        %1440 = vmatpush1.msra.mxu0 0.0
        %1441 = vmatprep.subr.mxu0 0.0
        %1442 = vmatpush1.msra.mxu0 0.0
        %1443 = vmatprep.subr.mxu0 0.0
        %1444 = vmatpush1.msra.mxu0 0.0
        %1445 = vmatprep.subr.mxu0 0.0
        %1446 = vmatpush1.msra.mxu0 0.0
        %1447 = vmatprep.subr.mxu0 0.0
        %1448 = vmatpush1.msra.mxu0 0.0
        %1449 = vmatprep.subr.mxu0 0.0
        %1450 = vmatpush1.msra.mxu0 0.0
        %1451 = vmatprep.subr.mxu0 0.0
        %1452 = vmatpush1.msra.mxu0 0.0
        %1453 = vmatprep.subr.mxu0 0.0
        %1454 = vmatpush1.msra.mxu0 0.0
        %1455 = vmatprep.subr.mxu0 0.0
        %1456 = vmatpush1.msra.mxu0 0.0
        %1457 = vmatprep.subr.mxu0 0.0
        %1458 = vmatpush1.msra.mxu0 0.0
        %1459 = vmatprep.subr.mxu0 0.0
        %1460 = vmatpush1.msra.mxu0 0.0
        %1461 = vmatprep.subr.mxu0 0.0
        %1462 = vmatpush1.msra.mxu0 0.0
        %1463 = vmatprep.subr.mxu0 0.0
        %1464 = vmatpush1.msra.mxu0 0.0
        %1465 = vmatprep.subr.mxu0 0.0
        %1466 = vmatpush1.msra.mxu0 0.0
        %1467 = vmatprep.subr.mxu0 0.0
        %1468 = vmatpush1.msra.mxu0 0.0
        %1469 = vmatprep.subr.mxu0 0.0
        %1470 = vmatpush1.msra.mxu0 0.0
        %1471 = vmatprep.mubr.f32.mxu0 0.0
        %1472 = vmatmul.mubr.f32.gmra.mrb[0].mxu0 %v1405
        %v1473 = vpop.f32.mrb[0].mxu0
        %v1474 = vadd.f32 0.0, %v1473
        %v1475 = vpop.f32.mrb[0].mxu0
        %1476 = vdwg.mxu0
        %1478 = vrot.lane.b32.xlu0 %v1146, 8
        %v1479 = vpop.permute.xlu0 %1478
        %1482 = vrot.lane.b32.xlu0 %v1310, 16
        %v1483 = vpop.permute.xlu0 %1482
        %1486 = vrot.lane.b32.xlu0 %v1474, 24
        %v1487 = vpop.permute.xlu0 %1486
        %v1489 = vsel %vm823, %v982, %v1479
        %vm1490 = vcmask 130048
        %v1491 = vsel %vm1490, %v1489, %v1483
        %vm1492 = vcmask 195584
        %v1493 = vsel %vm1492, %v1491, %v1487
        %v1495 = vlaneseq
        %v1496 = vshrl.u32 %v1495, 7
        %v1497 = vsub.s32 0, %v1496
        %v1498 = vrot.slane %v585, %v1497
        %v1501 = vsel %vm594, %v1493, 0
        %1503 = vmatprep.subr.mxu0 0.0
        %1504 = vmatpush1.msra.mxu0 %v579
        %1505 = vmatprep.subr.mxu0 0.0
        %1506 = vmatpush1.msra.mxu0 %v580
        %1507 = vmatprep.subr.mxu0 0.0
        %1508 = vmatpush1.msra.mxu0 %v581
        %1509 = vmatprep.subr.mxu0 0.0
        %1510 = vmatpush1.msra.mxu0 %v582
        %1511 = vmatprep.subr.mxu0 0.0
        %1512 = vmatpush1.msra.mxu0 0.0
        %1513 = vmatprep.subr.mxu0 0.0
        %1514 = vmatpush1.msra.mxu0 0.0
        %1515 = vmatprep.subr.mxu0 0.0
        %1516 = vmatpush1.msra.mxu0 0.0
        %1517 = vmatprep.subr.mxu0 0.0
        %1518 = vmatpush1.msra.mxu0 0.0
        %1519 = vmatprep.subr.mxu0 0.0
        %1520 = vmatpush1.msra.mxu0 0.0
        %1521 = vmatprep.subr.mxu0 0.0
        %1522 = vmatpush1.msra.mxu0 0.0
        %1523 = vmatprep.subr.mxu0 0.0
        %1524 = vmatpush1.msra.mxu0 0.0
        %1525 = vmatprep.subr.mxu0 0.0
        %1526 = vmatpush1.msra.mxu0 0.0
        %1527 = vmatprep.subr.mxu0 0.0
        %1528 = vmatpush1.msra.mxu0 0.0
        %1529 = vmatprep.subr.mxu0 0.0
        %1530 = vmatpush1.msra.mxu0 0.0
        %1531 = vmatprep.subr.mxu0 0.0
        %1532 = vmatpush1.msra.mxu0 0.0
        %1533 = vmatprep.subr.mxu0 0.0
        %1534 = vmatpush1.msra.mxu0 0.0
        %1535 = vmatprep.subr.mxu0 0.0
        %1536 = vmatpush1.msra.mxu0 0.0
        %1537 = vmatprep.subr.mxu0 0.0
        %1538 = vmatpush1.msra.mxu0 0.0
        %1539 = vmatprep.subr.mxu0 0.0
        %1540 = vmatpush1.msra.mxu0 0.0
        %1541 = vmatprep.subr.mxu0 0.0
        %1542 = vmatpush1.msra.mxu0 0.0
        %1543 = vmatprep.subr.mxu0 0.0
        %1544 = vmatpush1.msra.mxu0 0.0
        %1545 = vmatprep.subr.mxu0 0.0
        %1546 = vmatpush1.msra.mxu0 0.0
        %1547 = vmatprep.subr.mxu0 0.0
        %1548 = vmatpush1.msra.mxu0 0.0
        %1549 = vmatprep.subr.mxu0 0.0
        %1550 = vmatpush1.msra.mxu0 0.0
        %1551 = vmatprep.subr.mxu0 0.0
        %1552 = vmatpush1.msra.mxu0 0.0
        %1553 = vmatprep.subr.mxu0 0.0
        %1554 = vmatpush1.msra.mxu0 0.0
        %1555 = vmatprep.subr.mxu0 0.0
        %1556 = vmatpush1.msra.mxu0 0.0
        %1557 = vmatprep.subr.mxu0 0.0
        %1558 = vmatpush1.msra.mxu0 0.0
        %1559 = vmatprep.subr.mxu0 0.0
        %1560 = vmatpush1.msra.mxu0 0.0
        %1561 = vmatprep.subr.mxu0 0.0
        %1562 = vmatpush1.msra.mxu0 0.0
        %1563 = vmatprep.subr.mxu0 0.0
        %1564 = vmatpush1.msra.mxu0 0.0
        %1565 = vmatprep.subr.mxu0 0.0
        %1566 = vmatpush1.msra.mxu0 0.0
        %1567 = vmatprep.mubr.f32.mxu0 0.0
        %1568 = vmatmul.mubr.f32.gmra.mrb[0].mxu0 %v1501
        %v1569 = vpop.f32.mrb[0].mxu0
        %v1570 = vadd.f32 %v1498, %v1569
        %v1571 = vpop.f32.mrb[0].mxu0
        %1572 = vdwg.mxu0
        %v1573 = vadd.f32 %v1570, %v563
        %v1574 = vsel %vm594, %v1573, 0.0
        %1575 = vadd.xlane.f32.xlu0 %v1574
        %v1576 = vpop.xlane.xlu0 %1575
        %v1577 = vrcp.pop 32.0
        %v1578 = vmul.f32 %v1576, %v1577
        %v1579 = vsub.f32 %v1573, %v1578
        %v1580 = vmul.f32 %v1579, %v1579
        %v1581 = vsel %vm594, %v1580, 0.0
        %1582 = vadd.xlane.f32.xlu0 %v1581
        %v1583 = vpop.xlane.xlu0 %1582
        %v1584 = vmul.f32 %v1583, %v1577
        %v1585 = vadd.f32 %v1584, 1e-05
        %v1586 = vrsqrt.pop %v1585
        %v1587 = vmul.f32 %v1579, %v1586
        %v1589 = vlaneseq
        %v1590 = vshrl.u32 %v1589, 7
        %v1591 = vsub.s32 0, %v1590
        %v1592 = vrot.slane %v586, %v1591
        %v1594 = vmul.f32 %v1587, %v1592
        %v1596 = vlaneseq
        %v1597 = vshrl.u32 %v1596, 7
        %v1598 = vsub.s32 0, %v1597
        %v1599 = vrot.slane %v587, %v1598
        %v1601 = vadd.f32 %v1594, %v1599
        %v1602 = vmax.f32 %v1601, 0.0
        %s1603 = scalar_lea.vmem [#allocation10], 32
        %v1604 = vld [vmem:[%s1603] sm:$0xff]
        %v1605 = vld [vmem:[%s1603 + $0x8] sm:$0xff]
        %v1606 = vld [vmem:[%s1603 + $0x10] sm:$0xff]
        %v1607 = vld [vmem:[%s1603 + $0x18] sm:$0xff]
        %s1608 = scalar_lea.vmem [#allocation11], 32
        %v1609 = vld [vmem:[%s1608] sm:$0xff]
        %v1610 = vld [vmem:[%s1608 + $0x8] sm:$0xff]
        %v1611 = vld [vmem:[%s1608 + $0x10] sm:$0xff]
        %v1612 = vld [vmem:[%s1608 + $0x18] sm:$0xff]
        %s1613 = scalar_lea.vmem [#allocation13], 32
        %v1614 = vld [vmem:[%s1613] sm:$0xff]
        %v1615 = vld [vmem:[%s1613 + $0x8] sm:$0xff]
        %v1616 = vld [vmem:[%s1613 + $0x10] sm:$0xff]
        %v1617 = vld [vmem:[%s1613 + $0x18] sm:$0xff]
        %s1618 = scalar_lea.vmem %s6, 1
        %v1619 = vld [vmem:[%s1618] sm:$0x1]
        %s1620 = scalar_lea.vmem %s8, 1
        %v1621 = vld [vmem:[%s1620] sm:$0x1]
        %s1622 = scalar_lea.vmem %s10, 1
        %v1623 = vld [vmem:[%s1622] sm:$0x1]
        %s1624 = scalar_lea.vmem %s11, 1
        %v1625 = vld [vmem:[%s1624] sm:$0x1]
        %s1626 = scalar_lea.vmem %s12, 1
        %v1627 = vld [vmem:[%s1626] sm:$0x1]
        %v1629 = vlaneseq
        %v1630 = vshrl.u32 %v1629, 7
        %v1631 = vsub.s32 0, %v1630
        %v1632 = vrot.slane %v1619, %v1631
        %1634 = vmatprep.subr.mxu0 0.0
        %1635 = vmatpush1.msra.mxu0 %v1604
        %1636 = vmatprep.subr.mxu0 0.0
        %1637 = vmatpush1.msra.mxu0 %v1605
        %1638 = vmatprep.subr.mxu0 0.0
        %1639 = vmatpush1.msra.mxu0 %v1606
        %1640 = vmatprep.subr.mxu0 0.0
        %1641 = vmatpush1.msra.mxu0 %v1607
        %1642 = vmatprep.subr.mxu0 0.0
        %1643 = vmatpush1.msra.mxu0 0.0
        %1644 = vmatprep.subr.mxu0 0.0
        %1645 = vmatpush1.msra.mxu0 0.0
        %1646 = vmatprep.subr.mxu0 0.0
        %1647 = vmatpush1.msra.mxu0 0.0
        %1648 = vmatprep.subr.mxu0 0.0
        %1649 = vmatpush1.msra.mxu0 0.0
        %1650 = vmatprep.subr.mxu0 0.0
        %1651 = vmatpush1.msra.mxu0 0.0
        %1652 = vmatprep.subr.mxu0 0.0
        %1653 = vmatpush1.msra.mxu0 0.0
        %1654 = vmatprep.subr.mxu0 0.0
        %1655 = vmatpush1.msra.mxu0 0.0
        %1656 = vmatprep.subr.mxu0 0.0
        %1657 = vmatpush1.msra.mxu0 0.0
        %1658 = vmatprep.subr.mxu0 0.0
        %1659 = vmatpush1.msra.mxu0 0.0
        %1660 = vmatprep.subr.mxu0 0.0
        %1661 = vmatpush1.msra.mxu0 0.0
        %1662 = vmatprep.subr.mxu0 0.0
        %1663 = vmatpush1.msra.mxu0 0.0
        %1664 = vmatprep.subr.mxu0 0.0
        %1665 = vmatpush1.msra.mxu0 0.0
        %1666 = vmatprep.subr.mxu0 0.0
        %1667 = vmatpush1.msra.mxu0 0.0
        %1668 = vmatprep.subr.mxu0 0.0
        %1669 = vmatpush1.msra.mxu0 0.0
        %1670 = vmatprep.subr.mxu0 0.0
        %1671 = vmatpush1.msra.mxu0 0.0
        %1672 = vmatprep.subr.mxu0 0.0
        %1673 = vmatpush1.msra.mxu0 0.0
        %1674 = vmatprep.subr.mxu0 0.0
        %1675 = vmatpush1.msra.mxu0 0.0
        %1676 = vmatprep.subr.mxu0 0.0
        %1677 = vmatpush1.msra.mxu0 0.0
        %1678 = vmatprep.subr.mxu0 0.0
        %1679 = vmatpush1.msra.mxu0 0.0
        %1680 = vmatprep.subr.mxu0 0.0
        %1681 = vmatpush1.msra.mxu0 0.0
        %1682 = vmatprep.subr.mxu0 0.0
        %1683 = vmatpush1.msra.mxu0 0.0
        %1684 = vmatprep.subr.mxu0 0.0
        %1685 = vmatpush1.msra.mxu0 0.0
        %1686 = vmatprep.subr.mxu0 0.0
        %1687 = vmatpush1.msra.mxu0 0.0
        %1688 = vmatprep.subr.mxu0 0.0
        %1689 = vmatpush1.msra.mxu0 0.0
        %1690 = vmatprep.subr.mxu0 0.0
        %1691 = vmatpush1.msra.mxu0 0.0
        %1692 = vmatprep.subr.mxu0 0.0
        %1693 = vmatpush1.msra.mxu0 0.0
        %1694 = vmatprep.subr.mxu0 0.0
        %1695 = vmatpush1.msra.mxu0 0.0
        %1696 = vmatprep.subr.mxu0 0.0
        %1697 = vmatpush1.msra.mxu0 0.0
        %1698 = vmatprep.mubr.f32.mxu0 0.0
        %1699 = vmatmul.mubr.f32.gmra.mrb[0].mxu0 %v596
        %v1700 = vpop.f32.mrb[0].mxu0
        %v1701 = vadd.f32 %v1632, %v1700
        %v1702 = vpop.f32.mrb[0].mxu0
        %1703 = vdwg.mxu0
        %v1705 = vlaneseq
        %v1706 = vshrl.u32 %v1705, 7
        %v1707 = vsub.s32 0, %v1706
        %v1708 = vrot.slane %v1621, %v1707
        %v1711 = vsel %vm594, %v1602, 0
        %1713 = vmatprep.subr.mxu0 0.0
        %1714 = vmatpush1.msra.mxu0 %v1609
        %1715 = vmatprep.subr.mxu0 0.0
        %1716 = vmatpush1.msra.mxu0 %v1610
        %1717 = vmatprep.subr.mxu0 0.0
        %1718 = vmatpush1.msra.mxu0 %v1611
        %1719 = vmatprep.subr.mxu0 0.0
        %1720 = vmatpush1.msra.mxu0 %v1612
        %1721 = vmatprep.subr.mxu0 0.0
        %1722 = vmatpush1.msra.mxu0 0.0
        %1723 = vmatprep.subr.mxu0 0.0
        %1724 = vmatpush1.msra.mxu0 0.0
        %1725 = vmatprep.subr.mxu0 0.0
        %1726 = vmatpush1.msra.mxu0 0.0
        %1727 = vmatprep.subr.mxu0 0.0
        %1728 = vmatpush1.msra.mxu0 0.0
        %1729 = vmatprep.subr.mxu0 0.0
        %1730 = vmatpush1.msra.mxu0 0.0
        %1731 = vmatprep.subr.mxu0 0.0
        %1732 = vmatpush1.msra.mxu0 0.0
        %1733 = vmatprep.subr.mxu0 0.0
        %1734 = vmatpush1.msra.mxu0 0.0
        %1735 = vmatprep.subr.mxu0 0.0
        %1736 = vmatpush1.msra.mxu0 0.0
        %1737 = vmatprep.subr.mxu0 0.0
        %1738 = vmatpush1.msra.mxu0 0.0
        %1739 = vmatprep.subr.mxu0 0.0
        %1740 = vmatpush1.msra.mxu0 0.0
        %1741 = vmatprep.subr.mxu0 0.0
        %1742 = vmatpush1.msra.mxu0 0.0
        %1743 = vmatprep.subr.mxu0 0.0
        %1744 = vmatpush1.msra.mxu0 0.0
        %1745 = vmatprep.subr.mxu0 0.0
        %1746 = vmatpush1.msra.mxu0 0.0
        %1747 = vmatprep.subr.mxu0 0.0
        %1748 = vmatpush1.msra.mxu0 0.0
        %1749 = vmatprep.subr.mxu0 0.0
        %1750 = vmatpush1.msra.mxu0 0.0
        %1751 = vmatprep.subr.mxu0 0.0
        %1752 = vmatpush1.msra.mxu0 0.0
        %1753 = vmatprep.subr.mxu0 0.0
        %1754 = vmatpush1.msra.mxu0 0.0
        %1755 = vmatprep.subr.mxu0 0.0
        %1756 = vmatpush1.msra.mxu0 0.0
        %1757 = vmatprep.subr.mxu0 0.0
        %1758 = vmatpush1.msra.mxu0 0.0
        %1759 = vmatprep.subr.mxu0 0.0
        %1760 = vmatpush1.msra.mxu0 0.0
        %1761 = vmatprep.subr.mxu0 0.0
        %1762 = vmatpush1.msra.mxu0 0.0
        %1763 = vmatprep.subr.mxu0 0.0
        %1764 = vmatpush1.msra.mxu0 0.0
        %1765 = vmatprep.subr.mxu0 0.0
        %1766 = vmatpush1.msra.mxu0 0.0
        %1767 = vmatprep.subr.mxu0 0.0
        %1768 = vmatpush1.msra.mxu0 0.0
        %1769 = vmatprep.subr.mxu0 0.0
        %1770 = vmatpush1.msra.mxu0 0.0
        %1771 = vmatprep.subr.mxu0 0.0
        %1772 = vmatpush1.msra.mxu0 0.0
        %1773 = vmatprep.subr.mxu0 0.0
        %1774 = vmatpush1.msra.mxu0 0.0
        %1775 = vmatprep.subr.mxu0 0.0
        %1776 = vmatpush1.msra.mxu0 0.0
        %1777 = vmatprep.mubr.f32.mxu0 0.0
        %1778 = vmatmul.mubr.f32.gmra.mrb[0].mxu0 %v1711
        %v1779 = vpop.f32.mrb[0].mxu0
        %v1780 = vadd.f32 %v1708, %v1779
        %v1781 = vpop.f32.mrb[0].mxu0
        %1782 = vdwg.mxu0
        %v1783 = vmul.f32 %v1701, %v565
        %v1785 = vsel %vm594, %v1701, 0
        %1787 = vmatprep.subr.mxu0 0.0
        %1788 = vmatpush1.msra.mxu0 %v567
        %1789 = vmatprep.subr.mxu0 0.0
        %1790 = vmatpush1.msra.mxu0 %v568
        %1791 = vmatprep.subr.mxu0 0.0
        %1792 = vmatpush1.msra.mxu0 %v569
        %1793 = vmatprep.subr.mxu0 0.0
        %1794 = vmatpush1.msra.mxu0 %v570
        %1795 = vmatprep.subr.mxu0 0.0
        %1796 = vmatpush1.msra.mxu0 0.0
        %1797 = vmatprep.subr.mxu0 0.0
        %1798 = vmatpush1.msra.mxu0 0.0
        %1799 = vmatprep.subr.mxu0 0.0
        %1800 = vmatpush1.msra.mxu0 0.0
        %1801 = vmatprep.subr.mxu0 0.0
        %1802 = vmatpush1.msra.mxu0 0.0
        %1803 = vmatprep.subr.mxu0 0.0
        %1804 = vmatpush1.msra.mxu0 0.0
        %1805 = vmatprep.subr.mxu0 0.0
        %1806 = vmatpush1.msra.mxu0 0.0
        %1807 = vmatprep.subr.mxu0 0.0
        %1808 = vmatpush1.msra.mxu0 0.0
        %1809 = vmatprep.subr.mxu0 0.0
        %1810 = vmatpush1.msra.mxu0 0.0
        %1811 = vmatprep.subr.mxu0 0.0
        %1812 = vmatpush1.msra.mxu0 0.0
        %1813 = vmatprep.subr.mxu0 0.0
        %1814 = vmatpush1.msra.mxu0 0.0
        %1815 = vmatprep.subr.mxu0 0.0
        %1816 = vmatpush1.msra.mxu0 0.0
        %1817 = vmatprep.subr.mxu0 0.0
        %1818 = vmatpush1.msra.mxu0 0.0
        %1819 = vmatprep.subr.mxu0 0.0
        %1820 = vmatpush1.msra.mxu0 0.0
        %1821 = vmatprep.subr.mxu0 0.0
        %1822 = vmatpush1.msra.mxu0 0.0
        %1823 = vmatprep.subr.mxu0 0.0
        %1824 = vmatpush1.msra.mxu0 0.0
        %1825 = vmatprep.subr.mxu0 0.0
        %1826 = vmatpush1.msra.mxu0 0.0
        %1827 = vmatprep.subr.mxu0 0.0
        %1828 = vmatpush1.msra.mxu0 0.0
        %1829 = vmatprep.subr.mxu0 0.0
        %1830 = vmatpush1.msra.mxu0 0.0
        %1831 = vmatprep.subr.mxu0 0.0
        %1832 = vmatpush1.msra.mxu0 0.0
        %1833 = vmatprep.subr.mxu0 0.0
        %1834 = vmatpush1.msra.mxu0 0.0
        %1835 = vmatprep.subr.mxu0 0.0
        %1836 = vmatpush1.msra.mxu0 0.0
        %1837 = vmatprep.subr.mxu0 0.0
        %1838 = vmatpush1.msra.mxu0 0.0
        %1839 = vmatprep.subr.mxu0 0.0
        %1840 = vmatpush1.msra.mxu0 0.0
        %1841 = vmatprep.subr.mxu0 0.0
        %1842 = vmatpush1.msra.mxu0 0.0
        %1843 = vmatprep.subr.mxu0 0.0
        %1844 = vmatpush1.msra.mxu0 0.0
        %1845 = vmatprep.subr.mxu0 0.0
        %1846 = vmatpush1.msra.mxu0 0.0
        %1847 = vmatprep.subr.mxu0 0.0
        %1848 = vmatpush1.msra.mxu0 0.0
        %1849 = vmatprep.subr.mxu0 0.0
        %1850 = vmatpush1.msra.mxu0 0.0
        %1851 = vmatprep.mubr.f32.mxu0 0.0
        %1852 = vmatmul.mubr.f32.gmra.mrb[0].mxu0 %v1785
        %v1853 = vpop.f32.mrb[0].mxu0
        %v1854 = vadd.f32 0.0, %v1853
        %v1855 = vpop.f32.mrb[0].mxu0
        %1856 = vdwg.mxu0
        %v1857 = vmul.f32 %v1854, %v566
        %v1858 = vadd.f32 %v1783, %v1857
        %v1860 = vsel %vm823, %v1858, 0
        %v1863 = vsel %vm823, %v1780, 0
        %1865 = vmatprep.subr.mxu0 0.0
        %1866 = vmatpush1.xpose.msra.mxu0 %v1863
        %1867 = vmatprep.subr.mxu0 0.0
        %1868 = vmatpush1.xpose.msra.mxu0 0.0
        %1869 = vmatprep.subr.mxu0 0.0
        %1870 = vmatpush1.xpose.msra.mxu0 0.0
        %1871 = vmatprep.subr.mxu0 0.0
        %1872 = vmatpush1.xpose.msra.mxu0 0.0
        %1873 = vmatprep.subr.mxu0 0.0
        %1874 = vmatpush1.xpose.msra.mxu0 0.0
        %1875 = vmatprep.subr.mxu0 0.0
        %1876 = vmatpush1.xpose.msra.mxu0 0.0
        %1877 = vmatprep.subr.mxu0 0.0
        %1878 = vmatpush1.xpose.msra.mxu0 0.0
        %1879 = vmatprep.subr.mxu0 0.0
        %1880 = vmatpush1.xpose.msra.mxu0 0.0
        %1881 = vmatprep.subr.mxu0 0.0
        %1882 = vmatpush1.xpose.msra.mxu0 0.0
        %1883 = vmatprep.subr.mxu0 0.0
        %1884 = vmatpush1.xpose.msra.mxu0 0.0
        %1885 = vmatprep.subr.mxu0 0.0
        %1886 = vmatpush1.xpose.msra.mxu0 0.0
        %1887 = vmatprep.subr.mxu0 0.0
        %1888 = vmatpush1.xpose.msra.mxu0 0.0
        %1889 = vmatprep.subr.mxu0 0.0
        %1890 = vmatpush1.xpose.msra.mxu0 0.0
        %1891 = vmatprep.subr.mxu0 0.0
        %1892 = vmatpush1.xpose.msra.mxu0 0.0
        %1893 = vmatprep.subr.mxu0 0.0
        %1894 = vmatpush1.xpose.msra.mxu0 0.0
        %1895 = vmatprep.subr.mxu0 0.0
        %1896 = vmatpush1.xpose.msra.mxu0 0.0
        %1897 = vmatprep.subr.mxu0 0.0
        %1898 = vmatpush1.xpose.msra.mxu0 0.0
        %1899 = vmatprep.subr.mxu0 0.0
        %1900 = vmatpush1.xpose.msra.mxu0 0.0
        %1901 = vmatprep.subr.mxu0 0.0
        %1902 = vmatpush1.xpose.msra.mxu0 0.0
        %1903 = vmatprep.subr.mxu0 0.0
        %1904 = vmatpush1.xpose.msra.mxu0 0.0
        %1905 = vmatprep.subr.mxu0 0.0
        %1906 = vmatpush1.xpose.msra.mxu0 0.0
        %1907 = vmatprep.subr.mxu0 0.0
        %1908 = vmatpush1.xpose.msra.mxu0 0.0
        %1909 = vmatprep.subr.mxu0 0.0
        %1910 = vmatpush1.xpose.msra.mxu0 0.0
        %1911 = vmatprep.subr.mxu0 0.0
        %1912 = vmatpush1.xpose.msra.mxu0 0.0
        %1913 = vmatprep.subr.mxu0 0.0
        %1914 = vmatpush1.xpose.msra.mxu0 0.0
        %1915 = vmatprep.subr.mxu0 0.0
        %1916 = vmatpush1.xpose.msra.mxu0 0.0
        %1917 = vmatprep.subr.mxu0 0.0
        %1918 = vmatpush1.xpose.msra.mxu0 0.0
        %1919 = vmatprep.subr.mxu0 0.0
        %1920 = vmatpush1.xpose.msra.mxu0 0.0
        %1921 = vmatprep.subr.mxu0 0.0
        %1922 = vmatpush1.xpose.msra.mxu0 0.0
        %1923 = vmatprep.subr.mxu0 0.0
        %1924 = vmatpush1.xpose.msra.mxu0 0.0
        %1925 = vmatprep.subr.mxu0 0.0
        %1926 = vmatpush1.xpose.msra.mxu0 0.0
        %1927 = vmatprep.subr.mxu0 0.0
        %1928 = vmatpush1.xpose.msra.mxu0 0.0
        %1929 = vmatprep.mubr.f32.mxu0 0.0
        %1930 = vmatmul.mubr.f32.gmra.mrb[0].mxu0 %v1860
        %v1931 = vpop.f32.mrb[0].mxu0
        %v1932 = vadd.f32 0.0, %v1931
        %v1933 = vpop.f32.mrb[0].mxu0
        %1934 = vdwg.mxu0
        %v1935 = vmul.f32 %v1932, 0.35355338
        %v1936 = vsel %vm823, %v1935, -inf
        %1937 = vmax.xlane.f32.xlu0 %v1936
        %v1938 = vpop.xlane.xlu0 %1937
        %v1939 = vsub.f32 %v1935, %v1938
        %v1940 = vmul.f32 %v1939, 1.442695
        %v1941 = vpow.pop %v1940
        %v1942 = vsel %vm823, %v1941, 0.0
        %1943 = vadd.xlane.f32.xlu0 %v1942
        %v1944 = vpop.xlane.xlu0 %1943
        %v1945 = vrcp.pop %v1944
        %v1946 = vmul.f32 %v1941, %v1945
        %v1948 = vsel %vm823, %v1946, 0
        %1950 = vmatprep.subr.mxu0 0.0
        %1951 = vmatpush1.msra.mxu0 %v1780
        %1952 = vmatprep.subr.mxu0 0.0
        %1953 = vmatpush1.msra.mxu0 0.0
        %1954 = vmatprep.subr.mxu0 0.0
        %1955 = vmatpush1.msra.mxu0 0.0
        %1956 = vmatprep.subr.mxu0 0.0
        %1957 = vmatpush1.msra.mxu0 0.0
        %1958 = vmatprep.subr.mxu0 0.0
        %1959 = vmatpush1.msra.mxu0 0.0
        %1960 = vmatprep.subr.mxu0 0.0
        %1961 = vmatpush1.msra.mxu0 0.0
        %1962 = vmatprep.subr.mxu0 0.0
        %1963 = vmatpush1.msra.mxu0 0.0
        %1964 = vmatprep.subr.mxu0 0.0
        %1965 = vmatpush1.msra.mxu0 0.0
        %1966 = vmatprep.subr.mxu0 0.0
        %1967 = vmatpush1.msra.mxu0 0.0
        %1968 = vmatprep.subr.mxu0 0.0
        %1969 = vmatpush1.msra.mxu0 0.0
        %1970 = vmatprep.subr.mxu0 0.0
        %1971 = vmatpush1.msra.mxu0 0.0
        %1972 = vmatprep.subr.mxu0 0.0
        %1973 = vmatpush1.msra.mxu0 0.0
        %1974 = vmatprep.subr.mxu0 0.0
        %1975 = vmatpush1.msra.mxu0 0.0
        %1976 = vmatprep.subr.mxu0 0.0
        %1977 = vmatpush1.msra.mxu0 0.0
        %1978 = vmatprep.subr.mxu0 0.0
        %1979 = vmatpush1.msra.mxu0 0.0
        %1980 = vmatprep.subr.mxu0 0.0
        %1981 = vmatpush1.msra.mxu0 0.0
        %1982 = vmatprep.subr.mxu0 0.0
        %1983 = vmatpush1.msra.mxu0 0.0
        %1984 = vmatprep.subr.mxu0 0.0
        %1985 = vmatpush1.msra.mxu0 0.0
        %1986 = vmatprep.subr.mxu0 0.0
        %1987 = vmatpush1.msra.mxu0 0.0
        %1988 = vmatprep.subr.mxu0 0.0
        %1989 = vmatpush1.msra.mxu0 0.0
        %1990 = vmatprep.subr.mxu0 0.0
        %1991 = vmatpush1.msra.mxu0 0.0
        %1992 = vmatprep.subr.mxu0 0.0
        %1993 = vmatpush1.msra.mxu0 0.0
        %1994 = vmatprep.subr.mxu0 0.0
        %1995 = vmatpush1.msra.mxu0 0.0
        %1996 = vmatprep.subr.mxu0 0.0
        %1997 = vmatpush1.msra.mxu0 0.0
        %1998 = vmatprep.subr.mxu0 0.0
        %1999 = vmatpush1.msra.mxu0 0.0
        %2000 = vmatprep.subr.mxu0 0.0
        %2001 = vmatpush1.msra.mxu0 0.0
        %2002 = vmatprep.subr.mxu0 0.0
        %2003 = vmatpush1.msra.mxu0 0.0
        %2004 = vmatprep.subr.mxu0 0.0
        %2005 = vmatpush1.msra.mxu0 0.0
        %2006 = vmatprep.subr.mxu0 0.0
        %2007 = vmatpush1.msra.mxu0 0.0
        %2008 = vmatprep.subr.mxu0 0.0
        %2009 = vmatpush1.msra.mxu0 0.0
        %2010 = vmatprep.subr.mxu0 0.0
        %2011 = vmatpush1.msra.mxu0 0.0
        %2012 = vmatprep.subr.mxu0 0.0
        %2013 = vmatpush1.msra.mxu0 0.0
        %2014 = vmatprep.mubr.f32.mxu0 0.0
        %2015 = vmatmul.mubr.f32.gmra.mrb[0].mxu0 %v1948
        %v2016 = vpop.f32.mrb[0].mxu0
        %v2017 = vadd.f32 0.0, %v2016
        %v2018 = vpop.f32.mrb[0].mxu0
        %2019 = vdwg.mxu0
        %2020 = vrot.lane.b32.xlu0 %v1858, 120
        %v2021 = vpop.permute.xlu0 %2020
        %2022 = vrot.lane.b32.xlu0 %v1780, 120
        %v2023 = vpop.permute.xlu0 %2022
        %v2024 = vsel %vm823, %v2021, 0
        %v2026 = vsel %vm823, %v2023, 0
        %2028 = vmatprep.subr.mxu0 0.0
        %2029 = vmatpush1.xpose.msra.mxu0 %v2026
        %2030 = vmatprep.subr.mxu0 0.0
        %2031 = vmatpush1.xpose.msra.mxu0 0.0
        %2032 = vmatprep.subr.mxu0 0.0
        %2033 = vmatpush1.xpose.msra.mxu0 0.0
        %2034 = vmatprep.subr.mxu0 0.0
        %2035 = vmatpush1.xpose.msra.mxu0 0.0
        %2036 = vmatprep.subr.mxu0 0.0
        %2037 = vmatpush1.xpose.msra.mxu0 0.0
        %2038 = vmatprep.subr.mxu0 0.0
        %2039 = vmatpush1.xpose.msra.mxu0 0.0
        %2040 = vmatprep.subr.mxu0 0.0
        %2041 = vmatpush1.xpose.msra.mxu0 0.0
        %2042 = vmatprep.subr.mxu0 0.0
        %2043 = vmatpush1.xpose.msra.mxu0 0.0
        %2044 = vmatprep.subr.mxu0 0.0
        %2045 = vmatpush1.xpose.msra.mxu0 0.0
        %2046 = vmatprep.subr.mxu0 0.0
        %2047 = vmatpush1.xpose.msra.mxu0 0.0
        %2048 = vmatprep.subr.mxu0 0.0
        %2049 = vmatpush1.xpose.msra.mxu0 0.0
        %2050 = vmatprep.subr.mxu0 0.0
        %2051 = vmatpush1.xpose.msra.mxu0 0.0
        %2052 = vmatprep.subr.mxu0 0.0
        %2053 = vmatpush1.xpose.msra.mxu0 0.0
        %2054 = vmatprep.subr.mxu0 0.0
        %2055 = vmatpush1.xpose.msra.mxu0 0.0
        %2056 = vmatprep.subr.mxu0 0.0
        %2057 = vmatpush1.xpose.msra.mxu0 0.0
        %2058 = vmatprep.subr.mxu0 0.0
        %2059 = vmatpush1.xpose.msra.mxu0 0.0
        %2060 = vmatprep.subr.mxu0 0.0
        %2061 = vmatpush1.xpose.msra.mxu0 0.0
        %2062 = vmatprep.subr.mxu0 0.0
        %2063 = vmatpush1.xpose.msra.mxu0 0.0
        %2064 = vmatprep.subr.mxu0 0.0
        %2065 = vmatpush1.xpose.msra.mxu0 0.0
        %2066 = vmatprep.subr.mxu0 0.0
        %2067 = vmatpush1.xpose.msra.mxu0 0.0
        %2068 = vmatprep.subr.mxu0 0.0
        %2069 = vmatpush1.xpose.msra.mxu0 0.0
        %2070 = vmatprep.subr.mxu0 0.0
        %2071 = vmatpush1.xpose.msra.mxu0 0.0
        %2072 = vmatprep.subr.mxu0 0.0
        %2073 = vmatpush1.xpose.msra.mxu0 0.0
        %2074 = vmatprep.subr.mxu0 0.0
        %2075 = vmatpush1.xpose.msra.mxu0 0.0
        %2076 = vmatprep.subr.mxu0 0.0
        %2077 = vmatpush1.xpose.msra.mxu0 0.0
        %2078 = vmatprep.subr.mxu0 0.0
        %2079 = vmatpush1.xpose.msra.mxu0 0.0
        %2080 = vmatprep.subr.mxu0 0.0
        %2081 = vmatpush1.xpose.msra.mxu0 0.0
        %2082 = vmatprep.subr.mxu0 0.0
        %2083 = vmatpush1.xpose.msra.mxu0 0.0
        %2084 = vmatprep.subr.mxu0 0.0
        %2085 = vmatpush1.xpose.msra.mxu0 0.0
        %2086 = vmatprep.subr.mxu0 0.0
        %2087 = vmatpush1.xpose.msra.mxu0 0.0
        %2088 = vmatprep.subr.mxu0 0.0
        %2089 = vmatpush1.xpose.msra.mxu0 0.0
        %2090 = vmatprep.subr.mxu0 0.0
        %2091 = vmatpush1.xpose.msra.mxu0 0.0
        %2092 = vmatprep.mubr.f32.mxu0 0.0
        %2093 = vmatmul.mubr.f32.gmra.mrb[0].mxu0 %v2024
        %v2094 = vpop.f32.mrb[0].mxu0
        %v2095 = vadd.f32 0.0, %v2094
        %v2096 = vpop.f32.mrb[0].mxu0
        %2097 = vdwg.mxu0
        %v2098 = vmul.f32 %v2095, 0.35355338
        %v2099 = vsel %vm823, %v2098, -inf
        %2100 = vmax.xlane.f32.xlu0 %v2099
        %v2101 = vpop.xlane.xlu0 %2100
        %v2102 = vsub.f32 %v2098, %v2101
        %v2103 = vmul.f32 %v2102, 1.442695
        %v2104 = vpow.pop %v2103
        %v2105 = vsel %vm823, %v2104, 0.0
        %2106 = vadd.xlane.f32.xlu0 %v2105
        %v2107 = vpop.xlane.xlu0 %2106
        %v2108 = vrcp.pop %v2107
        %v2109 = vmul.f32 %v2104, %v2108
        %v2112 = vsel %vm823, %v2109, 0
        %2114 = vmatprep.subr.mxu0 0.0
        %2115 = vmatpush1.msra.mxu0 %v2023
        %2116 = vmatprep.subr.mxu0 0.0
        %2117 = vmatpush1.msra.mxu0 0.0
        %2118 = vmatprep.subr.mxu0 0.0
        %2119 = vmatpush1.msra.mxu0 0.0
        %2120 = vmatprep.subr.mxu0 0.0
        %2121 = vmatpush1.msra.mxu0 0.0
        %2122 = vmatprep.subr.mxu0 0.0
        %2123 = vmatpush1.msra.mxu0 0.0
        %2124 = vmatprep.subr.mxu0 0.0
        %2125 = vmatpush1.msra.mxu0 0.0
        %2126 = vmatprep.subr.mxu0 0.0
        %2127 = vmatpush1.msra.mxu0 0.0
        %2128 = vmatprep.subr.mxu0 0.0
        %2129 = vmatpush1.msra.mxu0 0.0
        %2130 = vmatprep.subr.mxu0 0.0
        %2131 = vmatpush1.msra.mxu0 0.0
        %2132 = vmatprep.subr.mxu0 0.0
        %2133 = vmatpush1.msra.mxu0 0.0
        %2134 = vmatprep.subr.mxu0 0.0
        %2135 = vmatpush1.msra.mxu0 0.0
        %2136 = vmatprep.subr.mxu0 0.0
        %2137 = vmatpush1.msra.mxu0 0.0
        %2138 = vmatprep.subr.mxu0 0.0
        %2139 = vmatpush1.msra.mxu0 0.0
        %2140 = vmatprep.subr.mxu0 0.0
        %2141 = vmatpush1.msra.mxu0 0.0
        %2142 = vmatprep.subr.mxu0 0.0
        %2143 = vmatpush1.msra.mxu0 0.0
        %2144 = vmatprep.subr.mxu0 0.0
        %2145 = vmatpush1.msra.mxu0 0.0
        %2146 = vmatprep.subr.mxu0 0.0
        %2147 = vmatpush1.msra.mxu0 0.0
        %2148 = vmatprep.subr.mxu0 0.0
        %2149 = vmatpush1.msra.mxu0 0.0
        %2150 = vmatprep.subr.mxu0 0.0
        %2151 = vmatpush1.msra.mxu0 0.0
        %2152 = vmatprep.subr.mxu0 0.0
        %2153 = vmatpush1.msra.mxu0 0.0
        %2154 = vmatprep.subr.mxu0 0.0
        %2155 = vmatpush1.msra.mxu0 0.0
        %2156 = vmatprep.subr.mxu0 0.0
        %2157 = vmatpush1.msra.mxu0 0.0
        %2158 = vmatprep.subr.mxu0 0.0
        %2159 = vmatpush1.msra.mxu0 0.0
        %2160 = vmatprep.subr.mxu0 0.0
        %2161 = vmatpush1.msra.mxu0 0.0
        %2162 = vmatprep.subr.mxu0 0.0
        %2163 = vmatpush1.msra.mxu0 0.0
        %2164 = vmatprep.subr.mxu0 0.0
        %2165 = vmatpush1.msra.mxu0 0.0
        %2166 = vmatprep.subr.mxu0 0.0
        %2167 = vmatpush1.msra.mxu0 0.0
        %2168 = vmatprep.subr.mxu0 0.0
        %2169 = vmatpush1.msra.mxu0 0.0
        %2170 = vmatprep.subr.mxu0 0.0
        %2171 = vmatpush1.msra.mxu0 0.0
        %2172 = vmatprep.subr.mxu0 0.0
        %2173 = vmatpush1.msra.mxu0 0.0
        %2174 = vmatprep.subr.mxu0 0.0
        %2175 = vmatpush1.msra.mxu0 0.0
        %2176 = vmatprep.subr.mxu0 0.0
        %2177 = vmatpush1.msra.mxu0 0.0
        %2178 = vmatprep.mubr.f32.mxu0 0.0
        %2179 = vmatmul.mubr.f32.gmra.mrb[0].mxu0 %v2112
        %v2180 = vpop.f32.mrb[0].mxu0
        %v2181 = vadd.f32 0.0, %v2180
        %v2182 = vpop.f32.mrb[0].mxu0
        %2183 = vdwg.mxu0
        %2184 = vrot.lane.b32.xlu0 %v1858, 112
        %v2185 = vpop.permute.xlu0 %2184
        %2186 = vrot.lane.b32.xlu0 %v1780, 112
        %v2187 = vpop.permute.xlu0 %2186
        %v2188 = vsel %vm823, %v2185, 0
        %v2190 = vsel %vm823, %v2187, 0
        %2192 = vmatprep.subr.mxu0 0.0
        %2193 = vmatpush1.xpose.msra.mxu0 %v2190
        %2194 = vmatprep.subr.mxu0 0.0
        %2195 = vmatpush1.xpose.msra.mxu0 0.0
        %2196 = vmatprep.subr.mxu0 0.0
        %2197 = vmatpush1.xpose.msra.mxu0 0.0
        %2198 = vmatprep.subr.mxu0 0.0
        %2199 = vmatpush1.xpose.msra.mxu0 0.0
        %2200 = vmatprep.subr.mxu0 0.0
        %2201 = vmatpush1.xpose.msra.mxu0 0.0
        %2202 = vmatprep.subr.mxu0 0.0
        %2203 = vmatpush1.xpose.msra.mxu0 0.0
        %2204 = vmatprep.subr.mxu0 0.0
        %2205 = vmatpush1.xpose.msra.mxu0 0.0
        %2206 = vmatprep.subr.mxu0 0.0
        %2207 = vmatpush1.xpose.msra.mxu0 0.0
        %2208 = vmatprep.subr.mxu0 0.0
        %2209 = vmatpush1.xpose.msra.mxu0 0.0
        %2210 = vmatprep.subr.mxu0 0.0
        %2211 = vmatpush1.xpose.msra.mxu0 0.0
        %2212 = vmatprep.subr.mxu0 0.0
        %2213 = vmatpush1.xpose.msra.mxu0 0.0
        %2214 = vmatprep.subr.mxu0 0.0
        %2215 = vmatpush1.xpose.msra.mxu0 0.0
        %2216 = vmatprep.subr.mxu0 0.0
        %2217 = vmatpush1.xpose.msra.mxu0 0.0
        %2218 = vmatprep.subr.mxu0 0.0
        %2219 = vmatpush1.xpose.msra.mxu0 0.0
        %2220 = vmatprep.subr.mxu0 0.0
        %2221 = vmatpush1.xpose.msra.mxu0 0.0
        %2222 = vmatprep.subr.mxu0 0.0
        %2223 = vmatpush1.xpose.msra.mxu0 0.0
        %2224 = vmatprep.subr.mxu0 0.0
        %2225 = vmatpush1.xpose.msra.mxu0 0.0
        %2226 = vmatprep.subr.mxu0 0.0
        %2227 = vmatpush1.xpose.msra.mxu0 0.0
        %2228 = vmatprep.subr.mxu0 0.0
        %2229 = vmatpush1.xpose.msra.mxu0 0.0
        %2230 = vmatprep.subr.mxu0 0.0
        %2231 = vmatpush1.xpose.msra.mxu0 0.0
        %2232 = vmatprep.subr.mxu0 0.0
        %2233 = vmatpush1.xpose.msra.mxu0 0.0
        %2234 = vmatprep.subr.mxu0 0.0
        %2235 = vmatpush1.xpose.msra.mxu0 0.0
        %2236 = vmatprep.subr.mxu0 0.0
        %2237 = vmatpush1.xpose.msra.mxu0 0.0
        %2238 = vmatprep.subr.mxu0 0.0
        %2239 = vmatpush1.xpose.msra.mxu0 0.0
        %2240 = vmatprep.subr.mxu0 0.0
        %2241 = vmatpush1.xpose.msra.mxu0 0.0
        %2242 = vmatprep.subr.mxu0 0.0
        %2243 = vmatpush1.xpose.msra.mxu0 0.0
        %2244 = vmatprep.subr.mxu0 0.0
        %2245 = vmatpush1.xpose.msra.mxu0 0.0
        %2246 = vmatprep.subr.mxu0 0.0
        %2247 = vmatpush1.xpose.msra.mxu0 0.0
        %2248 = vmatprep.subr.mxu0 0.0
        %2249 = vmatpush1.xpose.msra.mxu0 0.0
        %2250 = vmatprep.subr.mxu0 0.0
        %2251 = vmatpush1.xpose.msra.mxu0 0.0
        %2252 = vmatprep.subr.mxu0 0.0
        %2253 = vmatpush1.xpose.msra.mxu0 0.0
        %2254 = vmatprep.subr.mxu0 0.0
        %2255 = vmatpush1.xpose.msra.mxu0 0.0
        %2256 = vmatprep.mubr.f32.mxu0 0.0
        %2257 = vmatmul.mubr.f32.gmra.mrb[0].mxu0 %v2188
        %v2258 = vpop.f32.mrb[0].mxu0
        %v2259 = vadd.f32 0.0, %v2258
        %v2260 = vpop.f32.mrb[0].mxu0
        %2261 = vdwg.mxu0
        %v2262 = vmul.f32 %v2259, 0.35355338
        %v2263 = vsel %vm823, %v2262, -inf
        %2264 = vmax.xlane.f32.xlu0 %v2263
        %v2265 = vpop.xlane.xlu0 %2264
        %v2266 = vsub.f32 %v2262, %v2265
        %v2267 = vmul.f32 %v2266, 1.442695
        %v2268 = vpow.pop %v2267
        %v2269 = vsel %vm823, %v2268, 0.0
        %2270 = vadd.xlane.f32.xlu0 %v2269
        %v2271 = vpop.xlane.xlu0 %2270
        %v2272 = vrcp.pop %v2271
        %v2273 = vmul.f32 %v2268, %v2272
        %v2276 = vsel %vm823, %v2273, 0
        %2278 = vmatprep.subr.mxu0 0.0
        %2279 = vmatpush1.msra.mxu0 %v2187
        %2280 = vmatprep.subr.mxu0 0.0
        %2281 = vmatpush1.msra.mxu0 0.0
        %2282 = vmatprep.subr.mxu0 0.0
        %2283 = vmatpush1.msra.mxu0 0.0
        %2284 = vmatprep.subr.mxu0 0.0
        %2285 = vmatpush1.msra.mxu0 0.0
        %2286 = vmatprep.subr.mxu0 0.0
        %2287 = vmatpush1.msra.mxu0 0.0
        %2288 = vmatprep.subr.mxu0 0.0
        %2289 = vmatpush1.msra.mxu0 0.0
        %2290 = vmatprep.subr.mxu0 0.0
        %2291 = vmatpush1.msra.mxu0 0.0
        %2292 = vmatprep.subr.mxu0 0.0
        %2293 = vmatpush1.msra.mxu0 0.0
        %2294 = vmatprep.subr.mxu0 0.0
        %2295 = vmatpush1.msra.mxu0 0.0
        %2296 = vmatprep.subr.mxu0 0.0
        %2297 = vmatpush1.msra.mxu0 0.0
        %2298 = vmatprep.subr.mxu0 0.0
        %2299 = vmatpush1.msra.mxu0 0.0
        %2300 = vmatprep.subr.mxu0 0.0
        %2301 = vmatpush1.msra.mxu0 0.0
        %2302 = vmatprep.subr.mxu0 0.0
        %2303 = vmatpush1.msra.mxu0 0.0
        %2304 = vmatprep.subr.mxu0 0.0
        %2305 = vmatpush1.msra.mxu0 0.0
        %2306 = vmatprep.subr.mxu0 0.0
        %2307 = vmatpush1.msra.mxu0 0.0
        %2308 = vmatprep.subr.mxu0 0.0
        %2309 = vmatpush1.msra.mxu0 0.0
        %2310 = vmatprep.subr.mxu0 0.0
        %2311 = vmatpush1.msra.mxu0 0.0
        %2312 = vmatprep.subr.mxu0 0.0
        %2313 = vmatpush1.msra.mxu0 0.0
        %2314 = vmatprep.subr.mxu0 0.0
        %2315 = vmatpush1.msra.mxu0 0.0
        %2316 = vmatprep.subr.mxu0 0.0
        %2317 = vmatpush1.msra.mxu0 0.0
        %2318 = vmatprep.subr.mxu0 0.0
        %2319 = vmatpush1.msra.mxu0 0.0
        %2320 = vmatprep.subr.mxu0 0.0
        %2321 = vmatpush1.msra.mxu0 0.0
        %2322 = vmatprep.subr.mxu0 0.0
        %2323 = vmatpush1.msra.mxu0 0.0
        %2324 = vmatprep.subr.mxu0 0.0
        %2325 = vmatpush1.msra.mxu0 0.0
        %2326 = vmatprep.subr.mxu0 0.0
        %2327 = vmatpush1.msra.mxu0 0.0
        %2328 = vmatprep.subr.mxu0 0.0
        %2329 = vmatpush1.msra.mxu0 0.0
        %2330 = vmatprep.subr.mxu0 0.0
        %2331 = vmatpush1.msra.mxu0 0.0
        %2332 = vmatprep.subr.mxu0 0.0
        %2333 = vmatpush1.msra.mxu0 0.0
        %2334 = vmatprep.subr.mxu0 0.0
        %2335 = vmatpush1.msra.mxu0 0.0
        %2336 = vmatprep.subr.mxu0 0.0
        %2337 = vmatpush1.msra.mxu0 0.0
        %2338 = vmatprep.subr.mxu0 0.0
        %2339 = vmatpush1.msra.mxu0 0.0
        %2340 = vmatprep.subr.mxu0 0.0
        %2341 = vmatpush1.msra.mxu0 0.0
        %2342 = vmatprep.mubr.f32.mxu0 0.0
        %2343 = vmatmul.mubr.f32.gmra.mrb[0].mxu0 %v2276
        %v2344 = vpop.f32.mrb[0].mxu0
        %v2345 = vadd.f32 0.0, %v2344
        %v2346 = vpop.f32.mrb[0].mxu0
        %2347 = vdwg.mxu0
        %2348 = vrot.lane.b32.xlu0 %v1858, 104
        %v2349 = vpop.permute.xlu0 %2348
        %2350 = vrot.lane.b32.xlu0 %v1780, 104
        %v2351 = vpop.permute.xlu0 %2350
        %v2352 = vsel %vm823, %v2349, 0
        %v2354 = vsel %vm823, %v2351, 0
        %2356 = vmatprep.subr.mxu0 0.0
        %2357 = vmatpush1.xpose.msra.mxu0 %v2354
        %2358 = vmatprep.subr.mxu0 0.0
        %2359 = vmatpush1.xpose.msra.mxu0 0.0
        %2360 = vmatprep.subr.mxu0 0.0
        %2361 = vmatpush1.xpose.msra.mxu0 0.0
        %2362 = vmatprep.subr.mxu0 0.0
        %2363 = vmatpush1.xpose.msra.mxu0 0.0
        %2364 = vmatprep.subr.mxu0 0.0
        %2365 = vmatpush1.xpose.msra.mxu0 0.0
        %2366 = vmatprep.subr.mxu0 0.0
        %2367 = vmatpush1.xpose.msra.mxu0 0.0
        %2368 = vmatprep.subr.mxu0 0.0
        %2369 = vmatpush1.xpose.msra.mxu0 0.0
        %2370 = vmatprep.subr.mxu0 0.0
        %2371 = vmatpush1.xpose.msra.mxu0 0.0
        %2372 = vmatprep.subr.mxu0 0.0
        %2373 = vmatpush1.xpose.msra.mxu0 0.0
        %2374 = vmatprep.subr.mxu0 0.0
        %2375 = vmatpush1.xpose.msra.mxu0 0.0
        %2376 = vmatprep.subr.mxu0 0.0
        %2377 = vmatpush1.xpose.msra.mxu0 0.0
        %2378 = vmatprep.subr.mxu0 0.0
        %2379 = vmatpush1.xpose.msra.mxu0 0.0
        %2380 = vmatprep.subr.mxu0 0.0
        %2381 = vmatpush1.xpose.msra.mxu0 0.0
        %2382 = vmatprep.subr.mxu0 0.0
        %2383 = vmatpush1.xpose.msra.mxu0 0.0
        %2384 = vmatprep.subr.mxu0 0.0
        %2385 = vmatpush1.xpose.msra.mxu0 0.0
        %2386 = vmatprep.subr.mxu0 0.0
        %2387 = vmatpush1.xpose.msra.mxu0 0.0
        %2388 = vmatprep.subr.mxu0 0.0
        %2389 = vmatpush1.xpose.msra.mxu0 0.0
        %2390 = vmatprep.subr.mxu0 0.0
        %2391 = vmatpush1.xpose.msra.mxu0 0.0
        %2392 = vmatprep.subr.mxu0 0.0
        %2393 = vmatpush1.xpose.msra.mxu0 0.0
        %2394 = vmatprep.subr.mxu0 0.0
        %2395 = vmatpush1.xpose.msra.mxu0 0.0
        %2396 = vmatprep.subr.mxu0 0.0
        %2397 = vmatpush1.xpose.msra.mxu0 0.0
        %2398 = vmatprep.subr.mxu0 0.0
        %2399 = vmatpush1.xpose.msra.mxu0 0.0
        %2400 = vmatprep.subr.mxu0 0.0
        %2401 = vmatpush1.xpose.msra.mxu0 0.0
        %2402 = vmatprep.subr.mxu0 0.0
        %2403 = vmatpush1.xpose.msra.mxu0 0.0
        %2404 = vmatprep.subr.mxu0 0.0
        %2405 = vmatpush1.xpose.msra.mxu0 0.0
        %2406 = vmatprep.subr.mxu0 0.0
        %2407 = vmatpush1.xpose.msra.mxu0 0.0
        %2408 = vmatprep.subr.mxu0 0.0
        %2409 = vmatpush1.xpose.msra.mxu0 0.0
        %2410 = vmatprep.subr.mxu0 0.0
        %2411 = vmatpush1.xpose.msra.mxu0 0.0
        %2412 = vmatprep.subr.mxu0 0.0
        %2413 = vmatpush1.xpose.msra.mxu0 0.0
        %2414 = vmatprep.subr.mxu0 0.0
        %2415 = vmatpush1.xpose.msra.mxu0 0.0
        %2416 = vmatprep.subr.mxu0 0.0
        %2417 = vmatpush1.xpose.msra.mxu0 0.0
        %2418 = vmatprep.subr.mxu0 0.0
        %2419 = vmatpush1.xpose.msra.mxu0 0.0
        %2420 = vmatprep.mubr.f32.mxu0 0.0
        %2421 = vmatmul.mubr.f32.gmra.mrb[0].mxu0 %v2352
        %v2422 = vpop.f32.mrb[0].mxu0
        %v2423 = vadd.f32 0.0, %v2422
        %v2424 = vpop.f32.mrb[0].mxu0
        %2425 = vdwg.mxu0
        %v2426 = vmul.f32 %v2423, 0.35355338
        %v2427 = vsel %vm823, %v2426, -inf
        %2428 = vmax.xlane.f32.xlu0 %v2427
        %v2429 = vpop.xlane.xlu0 %2428
        %v2430 = vsub.f32 %v2426, %v2429
        %v2431 = vmul.f32 %v2430, 1.442695
        %v2432 = vpow.pop %v2431
        %v2433 = vsel %vm823, %v2432, 0.0
        %2434 = vadd.xlane.f32.xlu0 %v2433
        %v2435 = vpop.xlane.xlu0 %2434
        %v2436 = vrcp.pop %v2435
        %v2437 = vmul.f32 %v2432, %v2436
        %v2440 = vsel %vm823, %v2437, 0
        %2442 = vmatprep.subr.mxu0 0.0
        %2443 = vmatpush1.msra.mxu0 %v2351
        %2444 = vmatprep.subr.mxu0 0.0
        %2445 = vmatpush1.msra.mxu0 0.0
        %2446 = vmatprep.subr.mxu0 0.0
        %2447 = vmatpush1.msra.mxu0 0.0
        %2448 = vmatprep.subr.mxu0 0.0
        %2449 = vmatpush1.msra.mxu0 0.0
        %2450 = vmatprep.subr.mxu0 0.0
        %2451 = vmatpush1.msra.mxu0 0.0
        %2452 = vmatprep.subr.mxu0 0.0
        %2453 = vmatpush1.msra.mxu0 0.0
        %2454 = vmatprep.subr.mxu0 0.0
        %2455 = vmatpush1.msra.mxu0 0.0
        %2456 = vmatprep.subr.mxu0 0.0
        %2457 = vmatpush1.msra.mxu0 0.0
        %2458 = vmatprep.subr.mxu0 0.0
        %2459 = vmatpush1.msra.mxu0 0.0
        %2460 = vmatprep.subr.mxu0 0.0
        %2461 = vmatpush1.msra.mxu0 0.0
        %2462 = vmatprep.subr.mxu0 0.0
        %2463 = vmatpush1.msra.mxu0 0.0
        %2464 = vmatprep.subr.mxu0 0.0
        %2465 = vmatpush1.msra.mxu0 0.0
        %2466 = vmatprep.subr.mxu0 0.0
        %2467 = vmatpush1.msra.mxu0 0.0
        %2468 = vmatprep.subr.mxu0 0.0
        %2469 = vmatpush1.msra.mxu0 0.0
        %2470 = vmatprep.subr.mxu0 0.0
        %2471 = vmatpush1.msra.mxu0 0.0
        %2472 = vmatprep.subr.mxu0 0.0
        %2473 = vmatpush1.msra.mxu0 0.0
        %2474 = vmatprep.subr.mxu0 0.0
        %2475 = vmatpush1.msra.mxu0 0.0
        %2476 = vmatprep.subr.mxu0 0.0
        %2477 = vmatpush1.msra.mxu0 0.0
        %2478 = vmatprep.subr.mxu0 0.0
        %2479 = vmatpush1.msra.mxu0 0.0
        %2480 = vmatprep.subr.mxu0 0.0
        %2481 = vmatpush1.msra.mxu0 0.0
        %2482 = vmatprep.subr.mxu0 0.0
        %2483 = vmatpush1.msra.mxu0 0.0
        %2484 = vmatprep.subr.mxu0 0.0
        %2485 = vmatpush1.msra.mxu0 0.0
        %2486 = vmatprep.subr.mxu0 0.0
        %2487 = vmatpush1.msra.mxu0 0.0
        %2488 = vmatprep.subr.mxu0 0.0
        %2489 = vmatpush1.msra.mxu0 0.0
        %2490 = vmatprep.subr.mxu0 0.0
        %2491 = vmatpush1.msra.mxu0 0.0
        %2492 = vmatprep.subr.mxu0 0.0
        %2493 = vmatpush1.msra.mxu0 0.0
        %2494 = vmatprep.subr.mxu0 0.0
        %2495 = vmatpush1.msra.mxu0 0.0
        %2496 = vmatprep.subr.mxu0 0.0
        %2497 = vmatpush1.msra.mxu0 0.0
        %2498 = vmatprep.subr.mxu0 0.0
        %2499 = vmatpush1.msra.mxu0 0.0
        %2500 = vmatprep.subr.mxu0 0.0
        %2501 = vmatpush1.msra.mxu0 0.0
        %2502 = vmatprep.subr.mxu0 0.0
        %2503 = vmatpush1.msra.mxu0 0.0
        %2504 = vmatprep.subr.mxu0 0.0
        %2505 = vmatpush1.msra.mxu0 0.0
        %2506 = vmatprep.mubr.f32.mxu0 0.0
        %2507 = vmatmul.mubr.f32.gmra.mrb[0].mxu0 %v2440
        %v2508 = vpop.f32.mrb[0].mxu0
        %v2509 = vadd.f32 0.0, %v2508
        %v2510 = vpop.f32.mrb[0].mxu0
        %2511 = vdwg.mxu0
        %2513 = vrot.lane.b32.xlu0 %v2181, 8
        %v2514 = vpop.permute.xlu0 %2513
        %2517 = vrot.lane.b32.xlu0 %v2345, 16
        %v2518 = vpop.permute.xlu0 %2517
        %2521 = vrot.lane.b32.xlu0 %v2509, 24
        %v2522 = vpop.permute.xlu0 %2521
        %v2524 = vsel %vm823, %v2017, %v2514
        %v2525 = vsel %vm1490, %v2524, %v2518
        %v2526 = vsel %vm1492, %v2525, %v2522
        %v2528 = vlaneseq
        %v2529 = vshrl.u32 %v2528, 7
        %v2530 = vsub.s32 0, %v2529
        %v2531 = vrot.slane %v1623, %v2530
        %v2534 = vsel %vm594, %v2526, 0
        %2536 = vmatprep.subr.mxu0 0.0
        %2537 = vmatpush1.msra.mxu0 %v1614
        %2538 = vmatprep.subr.mxu0 0.0
        %2539 = vmatpush1.msra.mxu0 %v1615
        %2540 = vmatprep.subr.mxu0 0.0
        %2541 = vmatpush1.msra.mxu0 %v1616
        %2542 = vmatprep.subr.mxu0 0.0
        %2543 = vmatpush1.msra.mxu0 %v1617
        %2544 = vmatprep.subr.mxu0 0.0
        %2545 = vmatpush1.msra.mxu0 0.0
        %2546 = vmatprep.subr.mxu0 0.0
        %2547 = vmatpush1.msra.mxu0 0.0
        %2548 = vmatprep.subr.mxu0 0.0
        %2549 = vmatpush1.msra.mxu0 0.0
        %2550 = vmatprep.subr.mxu0 0.0
        %2551 = vmatpush1.msra.mxu0 0.0
        %2552 = vmatprep.subr.mxu0 0.0
        %2553 = vmatpush1.msra.mxu0 0.0
        %2554 = vmatprep.subr.mxu0 0.0
        %2555 = vmatpush1.msra.mxu0 0.0
        %2556 = vmatprep.subr.mxu0 0.0
        %2557 = vmatpush1.msra.mxu0 0.0
        %2558 = vmatprep.subr.mxu0 0.0
        %2559 = vmatpush1.msra.mxu0 0.0
        %2560 = vmatprep.subr.mxu0 0.0
        %2561 = vmatpush1.msra.mxu0 0.0
        %2562 = vmatprep.subr.mxu0 0.0
        %2563 = vmatpush1.msra.mxu0 0.0
        %2564 = vmatprep.subr.mxu0 0.0
        %2565 = vmatpush1.msra.mxu0 0.0
        %2566 = vmatprep.subr.mxu0 0.0
        %2567 = vmatpush1.msra.mxu0 0.0
        %2568 = vmatprep.subr.mxu0 0.0
        %2569 = vmatpush1.msra.mxu0 0.0
        %2570 = vmatprep.subr.mxu0 0.0
        %2571 = vmatpush1.msra.mxu0 0.0
        %2572 = vmatprep.subr.mxu0 0.0
        %2573 = vmatpush1.msra.mxu0 0.0
        %2574 = vmatprep.subr.mxu0 0.0
        %2575 = vmatpush1.msra.mxu0 0.0
        %2576 = vmatprep.subr.mxu0 0.0
        %2577 = vmatpush1.msra.mxu0 0.0
        %2578 = vmatprep.subr.mxu0 0.0
        %2579 = vmatpush1.msra.mxu0 0.0
        %2580 = vmatprep.subr.mxu0 0.0
        %2581 = vmatpush1.msra.mxu0 0.0
        %2582 = vmatprep.subr.mxu0 0.0
        %2583 = vmatpush1.msra.mxu0 0.0
        %2584 = vmatprep.subr.mxu0 0.0
        %2585 = vmatpush1.msra.mxu0 0.0
        %2586 = vmatprep.subr.mxu0 0.0
        %2587 = vmatpush1.msra.mxu0 0.0
        %2588 = vmatprep.subr.mxu0 0.0
        %2589 = vmatpush1.msra.mxu0 0.0
        %2590 = vmatprep.subr.mxu0 0.0
        %2591 = vmatpush1.msra.mxu0 0.0
        %2592 = vmatprep.subr.mxu0 0.0
        %2593 = vmatpush1.msra.mxu0 0.0
        %2594 = vmatprep.subr.mxu0 0.0
        %2595 = vmatpush1.msra.mxu0 0.0
        %2596 = vmatprep.subr.mxu0 0.0
        %2597 = vmatpush1.msra.mxu0 0.0
        %2598 = vmatprep.subr.mxu0 0.0
        %2599 = vmatpush1.msra.mxu0 0.0
        %2600 = vmatprep.mubr.f32.mxu0 0.0
        %2601 = vmatmul.mubr.f32.gmra.mrb[0].mxu0 %v2534
        %v2602 = vpop.f32.mrb[0].mxu0
        %v2603 = vadd.f32 %v2531, %v2602
        %v2604 = vpop.f32.mrb[0].mxu0
        %2605 = vdwg.mxu0
        %v2606 = vadd.f32 %v2603, %v1602
        %v2607 = vsel %vm594, %v2606, 0.0
        %2608 = vadd.xlane.f32.xlu0 %v2607
        %v2609 = vpop.xlane.xlu0 %2608
        %v2610 = vmul.f32 %v2609, %v1577
        %v2611 = vsub.f32 %v2606, %v2610
        %v2612 = vmul.f32 %v2611, %v2611
        %v2613 = vsel %vm594, %v2612, 0.0
        %2614 = vadd.xlane.f32.xlu0 %v2613
        %v2615 = vpop.xlane.xlu0 %2614
        %v2616 = vmul.f32 %v2615, %v1577
        %v2617 = vadd.f32 %v2616, 1e-05
        %v2618 = vrsqrt.pop %v2617
        %v2619 = vmul.f32 %v2611, %v2618
        %v2621 = vlaneseq
        %v2622 = vshrl.u32 %v2621, 7
        %v2623 = vsub.s32 0, %v2622
        %v2624 = vrot.slane %v1625, %v2623
        %v2626 = vmul.f32 %v2619, %v2624
        %v2628 = vlaneseq
        %v2629 = vshrl.u32 %v2628, 7
        %v2630 = vsub.s32 0, %v2629
        %v2631 = vrot.slane %v1627, %v2630
        %v2633 = vadd.f32 %v2626, %v2631
        %v2634 = vmax.f32 %v2633, 0.0
        %s2635 = scalar_lea.vmem [#allocation10], 64
        %v2636 = vld [vmem:[%s2635] sm:$0xff]
        %v2637 = vld [vmem:[%s2635 + $0x8] sm:$0xff]
        %v2638 = vld [vmem:[%s2635 + $0x10] sm:$0xff]
        %v2639 = vld [vmem:[%s2635 + $0x18] sm:$0xff]
        %s2640 = scalar_lea.vmem [#allocation11], 64
        %v2641 = vld [vmem:[%s2640] sm:$0xff]
        %v2642 = vld [vmem:[%s2640 + $0x8] sm:$0xff]
        %v2643 = vld [vmem:[%s2640 + $0x10] sm:$0xff]
        %v2644 = vld [vmem:[%s2640 + $0x18] sm:$0xff]
        %s2645 = scalar_lea.vmem [#allocation13], 64
        %v2646 = vld [vmem:[%s2645] sm:$0xff]
        %v2647 = vld [vmem:[%s2645 + $0x8] sm:$0xff]
        %v2648 = vld [vmem:[%s2645 + $0x10] sm:$0xff]
        %v2649 = vld [vmem:[%s2645 + $0x18] sm:$0xff]
        %s2650 = scalar_lea.vmem %s6, 2
        %v2651 = vld [vmem:[%s2650] sm:$0x1]
        %s2652 = scalar_lea.vmem %s8, 2
        %v2653 = vld [vmem:[%s2652] sm:$0x1]
        %s2654 = scalar_lea.vmem %s10, 2
        %v2655 = vld [vmem:[%s2654] sm:$0x1]
        %s2656 = scalar_lea.vmem %s11, 2
        %v2657 = vld [vmem:[%s2656] sm:$0x1]
        %s2658 = scalar_lea.vmem %s12, 2
        %v2659 = vld [vmem:[%s2658] sm:$0x1]
        %v2661 = vlaneseq
        %v2662 = vshrl.u32 %v2661, 7
        %v2663 = vsub.s32 0, %v2662
        %v2664 = vrot.slane %v2651, %v2663
        %2666 = vmatprep.subr.mxu0 0.0
        %2667 = vmatpush1.msra.mxu0 %v2636
        %2668 = vmatprep.subr.mxu0 0.0
        %2669 = vmatpush1.msra.mxu0 %v2637
        %2670 = vmatprep.subr.mxu0 0.0
        %2671 = vmatpush1.msra.mxu0 %v2638
        %2672 = vmatprep.subr.mxu0 0.0
        %2673 = vmatpush1.msra.mxu0 %v2639
        %2674 = vmatprep.subr.mxu0 0.0
        %2675 = vmatpush1.msra.mxu0 0.0
        %2676 = vmatprep.subr.mxu0 0.0
        %2677 = vmatpush1.msra.mxu0 0.0
        %2678 = vmatprep.subr.mxu0 0.0
        %2679 = vmatpush1.msra.mxu0 0.0
        %2680 = vmatprep.subr.mxu0 0.0
        %2681 = vmatpush1.msra.mxu0 0.0
        %2682 = vmatprep.subr.mxu0 0.0
        %2683 = vmatpush1.msra.mxu0 0.0
        %2684 = vmatprep.subr.mxu0 0.0
        %2685 = vmatpush1.msra.mxu0 0.0
        %2686 = vmatprep.subr.mxu0 0.0
        %2687 = vmatpush1.msra.mxu0 0.0
        %2688 = vmatprep.subr.mxu0 0.0
        %2689 = vmatpush1.msra.mxu0 0.0
        %2690 = vmatprep.subr.mxu0 0.0
        %2691 = vmatpush1.msra.mxu0 0.0
        %2692 = vmatprep.subr.mxu0 0.0
        %2693 = vmatpush1.msra.mxu0 0.0
        %2694 = vmatprep.subr.mxu0 0.0
        %2695 = vmatpush1.msra.mxu0 0.0
        %2696 = vmatprep.subr.mxu0 0.0
        %2697 = vmatpush1.msra.mxu0 0.0
        %2698 = vmatprep.subr.mxu0 0.0
        %2699 = vmatpush1.msra.mxu0 0.0
        %2700 = vmatprep.subr.mxu0 0.0
        %2701 = vmatpush1.msra.mxu0 0.0
        %2702 = vmatprep.subr.mxu0 0.0
        %2703 = vmatpush1.msra.mxu0 0.0
        %2704 = vmatprep.subr.mxu0 0.0
        %2705 = vmatpush1.msra.mxu0 0.0
        %2706 = vmatprep.subr.mxu0 0.0
        %2707 = vmatpush1.msra.mxu0 0.0
        %2708 = vmatprep.subr.mxu0 0.0
        %2709 = vmatpush1.msra.mxu0 0.0
        %2710 = vmatprep.subr.mxu0 0.0
        %2711 = vmatpush1.msra.mxu0 0.0
        %2712 = vmatprep.subr.mxu0 0.0
        %2713 = vmatpush1.msra.mxu0 0.0
        %2714 = vmatprep.subr.mxu0 0.0
        %2715 = vmatpush1.msra.mxu0 0.0
        %2716 = vmatprep.subr.mxu0 0.0
        %2717 = vmatpush1.msra.mxu0 0.0
        %2718 = vmatprep.subr.mxu0 0.0
        %2719 = vmatpush1.msra.mxu0 0.0
        %2720 = vmatprep.subr.mxu0 0.0
        %2721 = vmatpush1.msra.mxu0 0.0
        %2722 = vmatprep.subr.mxu0 0.0
        %2723 = vmatpush1.msra.mxu0 0.0
        %2724 = vmatprep.subr.mxu0 0.0
        %2725 = vmatpush1.msra.mxu0 0.0
        %2726 = vmatprep.subr.mxu0 0.0
        %2727 = vmatpush1.msra.mxu0 0.0
        %2728 = vmatprep.subr.mxu0 0.0
        %2729 = vmatpush1.msra.mxu0 0.0
        %2730 = vmatprep.mubr.f32.mxu0 0.0
        %2731 = vmatmul.mubr.f32.gmra.mrb[0].mxu0 %v596
        %v2732 = vpop.f32.mrb[0].mxu0
        %v2733 = vadd.f32 %v2664, %v2732
        %v2734 = vpop.f32.mrb[0].mxu0
        %2735 = vdwg.mxu0
        %v2737 = vlaneseq
        %v2738 = vshrl.u32 %v2737, 7
        %v2739 = vsub.s32 0, %v2738
        %v2740 = vrot.slane %v2653, %v2739
        %v2743 = vsel %vm594, %v2634, 0
        %2745 = vmatprep.subr.mxu0 0.0
        %2746 = vmatpush1.msra.mxu0 %v2641
        %2747 = vmatprep.subr.mxu0 0.0
        %2748 = vmatpush1.msra.mxu0 %v2642
        %2749 = vmatprep.subr.mxu0 0.0
        %2750 = vmatpush1.msra.mxu0 %v2643
        %2751 = vmatprep.subr.mxu0 0.0
        %2752 = vmatpush1.msra.mxu0 %v2644
        %2753 = vmatprep.subr.mxu0 0.0
        %2754 = vmatpush1.msra.mxu0 0.0
        %2755 = vmatprep.subr.mxu0 0.0
        %2756 = vmatpush1.msra.mxu0 0.0
        %2757 = vmatprep.subr.mxu0 0.0
        %2758 = vmatpush1.msra.mxu0 0.0
        %2759 = vmatprep.subr.mxu0 0.0
        %2760 = vmatpush1.msra.mxu0 0.0
        %2761 = vmatprep.subr.mxu0 0.0
        %2762 = vmatpush1.msra.mxu0 0.0
        %2763 = vmatprep.subr.mxu0 0.0
        %2764 = vmatpush1.msra.mxu0 0.0
        %2765 = vmatprep.subr.mxu0 0.0
        %2766 = vmatpush1.msra.mxu0 0.0
        %2767 = vmatprep.subr.mxu0 0.0
        %2768 = vmatpush1.msra.mxu0 0.0
        %2769 = vmatprep.subr.mxu0 0.0
        %2770 = vmatpush1.msra.mxu0 0.0
        %2771 = vmatprep.subr.mxu0 0.0
        %2772 = vmatpush1.msra.mxu0 0.0
        %2773 = vmatprep.subr.mxu0 0.0
        %2774 = vmatpush1.msra.mxu0 0.0
        %2775 = vmatprep.subr.mxu0 0.0
        %2776 = vmatpush1.msra.mxu0 0.0
        %2777 = vmatprep.subr.mxu0 0.0
        %2778 = vmatpush1.msra.mxu0 0.0
        %2779 = vmatprep.subr.mxu0 0.0
        %2780 = vmatpush1.msra.mxu0 0.0
        %2781 = vmatprep.subr.mxu0 0.0
        %2782 = vmatpush1.msra.mxu0 0.0
        %2783 = vmatprep.subr.mxu0 0.0
        %2784 = vmatpush1.msra.mxu0 0.0
        %2785 = vmatprep.subr.mxu0 0.0
        %2786 = vmatpush1.msra.mxu0 0.0
        %2787 = vmatprep.subr.mxu0 0.0
        %2788 = vmatpush1.msra.mxu0 0.0
        %2789 = vmatprep.subr.mxu0 0.0
        %2790 = vmatpush1.msra.mxu0 0.0
        %2791 = vmatprep.subr.mxu0 0.0
        %2792 = vmatpush1.msra.mxu0 0.0
        %2793 = vmatprep.subr.mxu0 0.0
        %2794 = vmatpush1.msra.mxu0 0.0
        %2795 = vmatprep.subr.mxu0 0.0
        %2796 = vmatpush1.msra.mxu0 0.0
        %2797 = vmatprep.subr.mxu0 0.0
        %2798 = vmatpush1.msra.mxu0 0.0
        %2799 = vmatprep.subr.mxu0 0.0
        %2800 = vmatpush1.msra.mxu0 0.0
        %2801 = vmatprep.subr.mxu0 0.0
        %2802 = vmatpush1.msra.mxu0 0.0
        %2803 = vmatprep.subr.mxu0 0.0
        %2804 = vmatpush1.msra.mxu0 0.0
        %2805 = vmatprep.subr.mxu0 0.0
        %2806 = vmatpush1.msra.mxu0 0.0
        %2807 = vmatprep.subr.mxu0 0.0
        %2808 = vmatpush1.msra.mxu0 0.0
        %2809 = vmatprep.mubr.f32.mxu0 0.0
        %2810 = vmatmul.mubr.f32.gmra.mrb[0].mxu0 %v2743
        %v2811 = vpop.f32.mrb[0].mxu0
        %v2812 = vadd.f32 %v2740, %v2811
        %v2813 = vpop.f32.mrb[0].mxu0
        %2814 = vdwg.mxu0
        %v2815 = vmul.f32 %v2733, %v565
        %v2817 = vsel %vm594, %v2733, 0
        %2819 = vmatprep.subr.mxu0 0.0
        %2820 = vmatpush1.msra.mxu0 %v567
        %2821 = vmatprep.subr.mxu0 0.0
        %2822 = vmatpush1.msra.mxu0 %v568
        %2823 = vmatprep.subr.mxu0 0.0
        %2824 = vmatpush1.msra.mxu0 %v569
        %2825 = vmatprep.subr.mxu0 0.0
        %2826 = vmatpush1.msra.mxu0 %v570
        %2827 = vmatprep.subr.mxu0 0.0
        %2828 = vmatpush1.msra.mxu0 0.0
        %2829 = vmatprep.subr.mxu0 0.0
        %2830 = vmatpush1.msra.mxu0 0.0
        %2831 = vmatprep.subr.mxu0 0.0
        %2832 = vmatpush1.msra.mxu0 0.0
        %2833 = vmatprep.subr.mxu0 0.0
        %2834 = vmatpush1.msra.mxu0 0.0
        %2835 = vmatprep.subr.mxu0 0.0
        %2836 = vmatpush1.msra.mxu0 0.0
        %2837 = vmatprep.subr.mxu0 0.0
        %2838 = vmatpush1.msra.mxu0 0.0
        %2839 = vmatprep.subr.mxu0 0.0
        %2840 = vmatpush1.msra.mxu0 0.0
        %2841 = vmatprep.subr.mxu0 0.0
        %2842 = vmatpush1.msra.mxu0 0.0
        %2843 = vmatprep.subr.mxu0 0.0
        %2844 = vmatpush1.msra.mxu0 0.0
        %2845 = vmatprep.subr.mxu0 0.0
        %2846 = vmatpush1.msra.mxu0 0.0
        %2847 = vmatprep.subr.mxu0 0.0
        %2848 = vmatpush1.msra.mxu0 0.0
        %2849 = vmatprep.subr.mxu0 0.0
        %2850 = vmatpush1.msra.mxu0 0.0
        %2851 = vmatprep.subr.mxu0 0.0
        %2852 = vmatpush1.msra.mxu0 0.0
        %2853 = vmatprep.subr.mxu0 0.0
        %2854 = vmatpush1.msra.mxu0 0.0
        %2855 = vmatprep.subr.mxu0 0.0
        %2856 = vmatpush1.msra.mxu0 0.0
        %2857 = vmatprep.subr.mxu0 0.0
        %2858 = vmatpush1.msra.mxu0 0.0
        %2859 = vmatprep.subr.mxu0 0.0
        %2860 = vmatpush1.msra.mxu0 0.0
        %2861 = vmatprep.subr.mxu0 0.0
        %2862 = vmatpush1.msra.mxu0 0.0
        %2863 = vmatprep.subr.mxu0 0.0
        %2864 = vmatpush1.msra.mxu0 0.0
        %2865 = vmatprep.subr.mxu0 0.0
        %2866 = vmatpush1.msra.mxu0 0.0
        %2867 = vmatprep.subr.mxu0 0.0
        %2868 = vmatpush1.msra.mxu0 0.0
        %2869 = vmatprep.subr.mxu0 0.0
        %2870 = vmatpush1.msra.mxu0 0.0
        %2871 = vmatprep.subr.mxu0 0.0
        %2872 = vmatpush1.msra.mxu0 0.0
        %2873 = vmatprep.subr.mxu0 0.0
        %2874 = vmatpush1.msra.mxu0 0.0
        %2875 = vmatprep.subr.mxu0 0.0
        %2876 = vmatpush1.msra.mxu0 0.0
        %2877 = vmatprep.subr.mxu0 0.0
        %2878 = vmatpush1.msra.mxu0 0.0
        %2879 = vmatprep.subr.mxu0 0.0
        %2880 = vmatpush1.msra.mxu0 0.0
        %2881 = vmatprep.subr.mxu0 0.0
        %2882 = vmatpush1.msra.mxu0 0.0
        %2883 = vmatprep.mubr.f32.mxu0 0.0
        %2884 = vmatmul.mubr.f32.gmra.mrb[0].mxu0 %v2817
        %v2885 = vpop.f32.mrb[0].mxu0
        %v2886 = vadd.f32 0.0, %v2885
        %v2887 = vpop.f32.mrb[0].mxu0
        %2888 = vdwg.mxu0
        %v2889 = vmul.f32 %v2886, %v566
        %v2890 = vadd.f32 %v2815, %v2889
        %v2892 = vsel %vm823, %v2890, 0
        %v2895 = vsel %vm823, %v2812, 0
        %2897 = vmatprep.subr.mxu0 0.0
        %2898 = vmatpush1.xpose.msra.mxu0 %v2895
        %2899 = vmatprep.subr.mxu0 0.0
        %2900 = vmatpush1.xpose.msra.mxu0 0.0
        %2901 = vmatprep.subr.mxu0 0.0
        %2902 = vmatpush1.xpose.msra.mxu0 0.0
        %2903 = vmatprep.subr.mxu0 0.0
        %2904 = vmatpush1.xpose.msra.mxu0 0.0
        %2905 = vmatprep.subr.mxu0 0.0
        %2906 = vmatpush1.xpose.msra.mxu0 0.0
        %2907 = vmatprep.subr.mxu0 0.0
        %2908 = vmatpush1.xpose.msra.mxu0 0.0
        %2909 = vmatprep.subr.mxu0 0.0
        %2910 = vmatpush1.xpose.msra.mxu0 0.0
        %2911 = vmatprep.subr.mxu0 0.0
        %2912 = vmatpush1.xpose.msra.mxu0 0.0
        %2913 = vmatprep.subr.mxu0 0.0
        %2914 = vmatpush1.xpose.msra.mxu0 0.0
        %2915 = vmatprep.subr.mxu0 0.0
        %2916 = vmatpush1.xpose.msra.mxu0 0.0
        %2917 = vmatprep.subr.mxu0 0.0
        %2918 = vmatpush1.xpose.msra.mxu0 0.0
        %2919 = vmatprep.subr.mxu0 0.0
        %2920 = vmatpush1.xpose.msra.mxu0 0.0
        %2921 = vmatprep.subr.mxu0 0.0
        %2922 = vmatpush1.xpose.msra.mxu0 0.0
        %2923 = vmatprep.subr.mxu0 0.0
        %2924 = vmatpush1.xpose.msra.mxu0 0.0
        %2925 = vmatprep.subr.mxu0 0.0
        %2926 = vmatpush1.xpose.msra.mxu0 0.0
        %2927 = vmatprep.subr.mxu0 0.0
        %2928 = vmatpush1.xpose.msra.mxu0 0.0
        %2929 = vmatprep.subr.mxu0 0.0
        %2930 = vmatpush1.xpose.msra.mxu0 0.0
        %2931 = vmatprep.subr.mxu0 0.0
        %2932 = vmatpush1.xpose.msra.mxu0 0.0
        %2933 = vmatprep.subr.mxu0 0.0
        %2934 = vmatpush1.xpose.msra.mxu0 0.0
        %2935 = vmatprep.subr.mxu0 0.0
        %2936 = vmatpush1.xpose.msra.mxu0 0.0
        %2937 = vmatprep.subr.mxu0 0.0
        %2938 = vmatpush1.xpose.msra.mxu0 0.0
        %2939 = vmatprep.subr.mxu0 0.0
        %2940 = vmatpush1.xpose.msra.mxu0 0.0
        %2941 = vmatprep.subr.mxu0 0.0
        %2942 = vmatpush1.xpose.msra.mxu0 0.0
        %2943 = vmatprep.subr.mxu0 0.0
        %2944 = vmatpush1.xpose.msra.mxu0 0.0
        %2945 = vmatprep.subr.mxu0 0.0
        %2946 = vmatpush1.xpose.msra.mxu0 0.0
        %2947 = vmatprep.subr.mxu0 0.0
        %2948 = vmatpush1.xpose.msra.mxu0 0.0
        %2949 = vmatprep.subr.mxu0 0.0
        %2950 = vmatpush1.xpose.msra.mxu0 0.0
        %2951 = vmatprep.subr.mxu0 0.0
        %2952 = vmatpush1.xpose.msra.mxu0 0.0
        %2953 = vmatprep.subr.mxu0 0.0
        %2954 = vmatpush1.xpose.msra.mxu0 0.0
        %2955 = vmatprep.subr.mxu0 0.0
        %2956 = vmatpush1.xpose.msra.mxu0 0.0
        %2957 = vmatprep.subr.mxu0 0.0
        %2958 = vmatpush1.xpose.msra.mxu0 0.0
        %2959 = vmatprep.subr.mxu0 0.0
        %2960 = vmatpush1.xpose.msra.mxu0 0.0
        %2961 = vmatprep.mubr.f32.mxu0 0.0
        %2962 = vmatmul.mubr.f32.gmra.mrb[0].mxu0 %v2892
        %v2963 = vpop.f32.mrb[0].mxu0
        %v2964 = vadd.f32 0.0, %v2963
        %v2965 = vpop.f32.mrb[0].mxu0
        %2966 = vdwg.mxu0
        %v2967 = vmul.f32 %v2964, 0.35355338
        %v2968 = vsel %vm823, %v2967, -inf
        %2969 = vmax.xlane.f32.xlu0 %v2968
        %v2970 = vpop.xlane.xlu0 %2969
        %v2971 = vsub.f32 %v2967, %v2970
        %v2972 = vmul.f32 %v2971, 1.442695
        %v2973 = vpow.pop %v2972
        %v2974 = vsel %vm823, %v2973, 0.0
        %2975 = vadd.xlane.f32.xlu0 %v2974
        %v2976 = vpop.xlane.xlu0 %2975
        %v2977 = vrcp.pop %v2976
        %v2978 = vmul.f32 %v2973, %v2977
        %v2980 = vsel %vm823, %v2978, 0
        %2982 = vmatprep.subr.mxu0 0.0
        %2983 = vmatpush1.msra.mxu0 %v2812
        %2984 = vmatprep.subr.mxu0 0.0
        %2985 = vmatpush1.msra.mxu0 0.0
        %2986 = vmatprep.subr.mxu0 0.0
        %2987 = vmatpush1.msra.mxu0 0.0
        %2988 = vmatprep.subr.mxu0 0.0
        %2989 = vmatpush1.msra.mxu0 0.0
        %2990 = vmatprep.subr.mxu0 0.0
        %2991 = vmatpush1.msra.mxu0 0.0
        %2992 = vmatprep.subr.mxu0 0.0
        %2993 = vmatpush1.msra.mxu0 0.0
        %2994 = vmatprep.subr.mxu0 0.0
        %2995 = vmatpush1.msra.mxu0 0.0
        %2996 = vmatprep.subr.mxu0 0.0
        %2997 = vmatpush1.msra.mxu0 0.0
        %2998 = vmatprep.subr.mxu0 0.0
        %2999 = vmatpush1.msra.mxu0 0.0
        %3000 = vmatprep.subr.mxu0 0.0
        %3001 = vmatpush1.msra.mxu0 0.0
        %3002 = vmatprep.subr.mxu0 0.0
        %3003 = vmatpush1.msra.mxu0 0.0
        %3004 = vmatprep.subr.mxu0 0.0
        %3005 = vmatpush1.msra.mxu0 0.0
        %3006 = vmatprep.subr.mxu0 0.0
        %3007 = vmatpush1.msra.mxu0 0.0
        %3008 = vmatprep.subr.mxu0 0.0
        %3009 = vmatpush1.msra.mxu0 0.0
        %3010 = vmatprep.subr.mxu0 0.0
        %3011 = vmatpush1.msra.mxu0 0.0
        %3012 = vmatprep.subr.mxu0 0.0
        %3013 = vmatpush1.msra.mxu0 0.0
        %3014 = vmatprep.subr.mxu0 0.0
        %3015 = vmatpush1.msra.mxu0 0.0
        %3016 = vmatprep.subr.mxu0 0.0
        %3017 = vmatpush1.msra.mxu0 0.0
        %3018 = vmatprep.subr.mxu0 0.0
        %3019 = vmatpush1.msra.mxu0 0.0
        %3020 = vmatprep.subr.mxu0 0.0
        %3021 = vmatpush1.msra.mxu0 0.0
        %3022 = vmatprep.subr.mxu0 0.0
        %3023 = vmatpush1.msra.mxu0 0.0
        %3024 = vmatprep.subr.mxu0 0.0
        %3025 = vmatpush1.msra.mxu0 0.0
        %3026 = vmatprep.subr.mxu0 0.0
        %3027 = vmatpush1.msra.mxu0 0.0
        %3028 = vmatprep.subr.mxu0 0.0
        %3029 = vmatpush1.msra.mxu0 0.0
        %3030 = vmatprep.subr.mxu0 0.0
        %3031 = vmatpush1.msra.mxu0 0.0
        %3032 = vmatprep.subr.mxu0 0.0
        %3033 = vmatpush1.msra.mxu0 0.0
        %3034 = vmatprep.subr.mxu0 0.0
        %3035 = vmatpush1.msra.mxu0 0.0
        %3036 = vmatprep.subr.mxu0 0.0
        %3037 = vmatpush1.msra.mxu0 0.0
        %3038 = vmatprep.subr.mxu0 0.0
        %3039 = vmatpush1.msra.mxu0 0.0
        %3040 = vmatprep.subr.mxu0 0.0
        %3041 = vmatpush1.msra.mxu0 0.0
        %3042 = vmatprep.subr.mxu0 0.0
        %3043 = vmatpush1.msra.mxu0 0.0
        %3044 = vmatprep.subr.mxu0 0.0
        %3045 = vmatpush1.msra.mxu0 0.0
        %3046 = vmatprep.mubr.f32.mxu0 0.0
        %3047 = vmatmul.mubr.f32.gmra.mrb[0].mxu0 %v2980
        %v3048 = vpop.f32.mrb[0].mxu0
        %v3049 = vadd.f32 0.0, %v3048
        %v3050 = vpop.f32.mrb[0].mxu0
        %3051 = vdwg.mxu0
        %3052 = vrot.lane.b32.xlu0 %v2890, 120
        %v3053 = vpop.permute.xlu0 %3052
        %3054 = vrot.lane.b32.xlu0 %v2812, 120
        %v3055 = vpop.permute.xlu0 %3054
        %v3056 = vsel %vm823, %v3053, 0
        %v3058 = vsel %vm823, %v3055, 0
        %3060 = vmatprep.subr.mxu0 0.0
        %3061 = vmatpush1.xpose.msra.mxu0 %v3058
        %3062 = vmatprep.subr.mxu0 0.0
        %3063 = vmatpush1.xpose.msra.mxu0 0.0
        %3064 = vmatprep.subr.mxu0 0.0
        %3065 = vmatpush1.xpose.msra.mxu0 0.0
        %3066 = vmatprep.subr.mxu0 0.0
        %3067 = vmatpush1.xpose.msra.mxu0 0.0
        %3068 = vmatprep.subr.mxu0 0.0
        %3069 = vmatpush1.xpose.msra.mxu0 0.0
        %3070 = vmatprep.subr.mxu0 0.0
        %3071 = vmatpush1.xpose.msra.mxu0 0.0
        %3072 = vmatprep.subr.mxu0 0.0
        %3073 = vmatpush1.xpose.msra.mxu0 0.0
        %3074 = vmatprep.subr.mxu0 0.0
        %3075 = vmatpush1.xpose.msra.mxu0 0.0
        %3076 = vmatprep.subr.mxu0 0.0
        %3077 = vmatpush1.xpose.msra.mxu0 0.0
        %3078 = vmatprep.subr.mxu0 0.0
        %3079 = vmatpush1.xpose.msra.mxu0 0.0
        %3080 = vmatprep.subr.mxu0 0.0
        %3081 = vmatpush1.xpose.msra.mxu0 0.0
        %3082 = vmatprep.subr.mxu0 0.0
        %3083 = vmatpush1.xpose.msra.mxu0 0.0
        %3084 = vmatprep.subr.mxu0 0.0
        %3085 = vmatpush1.xpose.msra.mxu0 0.0
        %3086 = vmatprep.subr.mxu0 0.0
        %3087 = vmatpush1.xpose.msra.mxu0 0.0
        %3088 = vmatprep.subr.mxu0 0.0
        %3089 = vmatpush1.xpose.msra.mxu0 0.0
        %3090 = vmatprep.subr.mxu0 0.0
        %3091 = vmatpush1.xpose.msra.mxu0 0.0
        %3092 = vmatprep.subr.mxu0 0.0
        %3093 = vmatpush1.xpose.msra.mxu0 0.0
        %3094 = vmatprep.subr.mxu0 0.0
        %3095 = vmatpush1.xpose.msra.mxu0 0.0
        %3096 = vmatprep.subr.mxu0 0.0
        %3097 = vmatpush1.xpose.msra.mxu0 0.0
        %3098 = vmatprep.subr.mxu0 0.0
        %3099 = vmatpush1.xpose.msra.mxu0 0.0
        %3100 = vmatprep.subr.mxu0 0.0
        %3101 = vmatpush1.xpose.msra.mxu0 0.0
        %3102 = vmatprep.subr.mxu0 0.0
        %3103 = vmatpush1.xpose.msra.mxu0 0.0
        %3104 = vmatprep.subr.mxu0 0.0
        %3105 = vmatpush1.xpose.msra.mxu0 0.0
        %3106 = vmatprep.subr.mxu0 0.0
        %3107 = vmatpush1.xpose.msra.mxu0 0.0
        %3108 = vmatprep.subr.mxu0 0.0
        %3109 = vmatpush1.xpose.msra.mxu0 0.0
        %3110 = vmatprep.subr.mxu0 0.0
        %3111 = vmatpush1.xpose.msra.mxu0 0.0
        %3112 = vmatprep.subr.mxu0 0.0
        %3113 = vmatpush1.xpose.msra.mxu0 0.0
        %3114 = vmatprep.subr.mxu0 0.0
        %3115 = vmatpush1.xpose.msra.mxu0 0.0
        %3116 = vmatprep.subr.mxu0 0.0
        %3117 = vmatpush1.xpose.msra.mxu0 0.0
        %3118 = vmatprep.subr.mxu0 0.0
        %3119 = vmatpush1.xpose.msra.mxu0 0.0
        %3120 = vmatprep.subr.mxu0 0.0
        %3121 = vmatpush1.xpose.msra.mxu0 0.0
        %3122 = vmatprep.subr.mxu0 0.0
        %3123 = vmatpush1.xpose.msra.mxu0 0.0
        %3124 = vmatprep.mubr.f32.mxu0 0.0
        %3125 = vmatmul.mubr.f32.gmra.mrb[0].mxu0 %v3056
        %v3126 = vpop.f32.mrb[0].mxu0
        %v3127 = vadd.f32 0.0, %v3126
        %v3128 = vpop.f32.mrb[0].mxu0
        %3129 = vdwg.mxu0
        %v3130 = vmul.f32 %v3127, 0.35355338
        %v3131 = vsel %vm823, %v3130, -inf
        %3132 = vmax.xlane.f32.xlu0 %v3131
        %v3133 = vpop.xlane.xlu0 %3132
        %v3134 = vsub.f32 %v3130, %v3133
        %v3135 = vmul.f32 %v3134, 1.442695
        %v3136 = vpow.pop %v3135
        %v3137 = vsel %vm823, %v3136, 0.0
        %3138 = vadd.xlane.f32.xlu0 %v3137
        %v3139 = vpop.xlane.xlu0 %3138
        %v3140 = vrcp.pop %v3139
        %v3141 = vmul.f32 %v3136, %v3140
        %v3144 = vsel %vm823, %v3141, 0
        %3146 = vmatprep.subr.mxu0 0.0
        %3147 = vmatpush1.msra.mxu0 %v3055
        %3148 = vmatprep.subr.mxu0 0.0
        %3149 = vmatpush1.msra.mxu0 0.0
        %3150 = vmatprep.subr.mxu0 0.0
        %3151 = vmatpush1.msra.mxu0 0.0
        %3152 = vmatprep.subr.mxu0 0.0
        %3153 = vmatpush1.msra.mxu0 0.0
        %3154 = vmatprep.subr.mxu0 0.0
        %3155 = vmatpush1.msra.mxu0 0.0
        %3156 = vmatprep.subr.mxu0 0.0
        %3157 = vmatpush1.msra.mxu0 0.0
        %3158 = vmatprep.subr.mxu0 0.0
        %3159 = vmatpush1.msra.mxu0 0.0
        %3160 = vmatprep.subr.mxu0 0.0
        %3161 = vmatpush1.msra.mxu0 0.0
        %3162 = vmatprep.subr.mxu0 0.0
        %3163 = vmatpush1.msra.mxu0 0.0
        %3164 = vmatprep.subr.mxu0 0.0
        %3165 = vmatpush1.msra.mxu0 0.0
        %3166 = vmatprep.subr.mxu0 0.0
        %3167 = vmatpush1.msra.mxu0 0.0
        %3168 = vmatprep.subr.mxu0 0.0
        %3169 = vmatpush1.msra.mxu0 0.0
        %3170 = vmatprep.subr.mxu0 0.0
        %3171 = vmatpush1.msra.mxu0 0.0
        %3172 = vmatprep.subr.mxu0 0.0
        %3173 = vmatpush1.msra.mxu0 0.0
        %3174 = vmatprep.subr.mxu0 0.0
        %3175 = vmatpush1.msra.mxu0 0.0
        %3176 = vmatprep.subr.mxu0 0.0
        %3177 = vmatpush1.msra.mxu0 0.0
        %3178 = vmatprep.subr.mxu0 0.0
        %3179 = vmatpush1.msra.mxu0 0.0
        %3180 = vmatprep.subr.mxu0 0.0
        %3181 = vmatpush1.msra.mxu0 0.0
        %3182 = vmatprep.subr.mxu0 0.0
        %3183 = vmatpush1.msra.mxu0 0.0
        %3184 = vmatprep.subr.mxu0 0.0
        %3185 = vmatpush1.msra.mxu0 0.0
        %3186 = vmatprep.subr.mxu0 0.0
        %3187 = vmatpush1.msra.mxu0 0.0
        %3188 = vmatprep.subr.mxu0 0.0
        %3189 = vmatpush1.msra.mxu0 0.0
        %3190 = vmatprep.subr.mxu0 0.0
        %3191 = vmatpush1.msra.mxu0 0.0
        %3192 = vmatprep.subr.mxu0 0.0
        %3193 = vmatpush1.msra.mxu0 0.0
        %3194 = vmatprep.subr.mxu0 0.0
        %3195 = vmatpush1.msra.mxu0 0.0
        %3196 = vmatprep.subr.mxu0 0.0
        %3197 = vmatpush1.msra.mxu0 0.0
        %3198 = vmatprep.subr.mxu0 0.0
        %3199 = vmatpush1.msra.mxu0 0.0
        %3200 = vmatprep.subr.mxu0 0.0
        %3201 = vmatpush1.msra.mxu0 0.0
        %3202 = vmatprep.subr.mxu0 0.0
        %3203 = vmatpush1.msra.mxu0 0.0
        %3204 = vmatprep.subr.mxu0 0.0
        %3205 = vmatpush1.msra.mxu0 0.0
        %3206 = vmatprep.subr.mxu0 0.0
        %3207 = vmatpush1.msra.mxu0 0.0
        %3208 = vmatprep.subr.mxu0 0.0
        %3209 = vmatpush1.msra.mxu0 0.0
        %3210 = vmatprep.mubr.f32.mxu0 0.0
        %3211 = vmatmul.mubr.f32.gmra.mrb[0].mxu0 %v3144
        %v3212 = vpop.f32.mrb[0].mxu0
        %v3213 = vadd.f32 0.0, %v3212
        %v3214 = vpop.f32.mrb[0].mxu0
        %3215 = vdwg.mxu0
        %3216 = vrot.lane.b32.xlu0 %v2890, 112
        %v3217 = vpop.permute.xlu0 %3216
        %3218 = vrot.lane.b32.xlu0 %v2812, 112
        %v3219 = vpop.permute.xlu0 %3218
        %v3220 = vsel %vm823, %v3217, 0
        %v3222 = vsel %vm823, %v3219, 0
        %3224 = vmatprep.subr.mxu0 0.0
        %3225 = vmatpush1.xpose.msra.mxu0 %v3222
        %3226 = vmatprep.subr.mxu0 0.0
        %3227 = vmatpush1.xpose.msra.mxu0 0.0
        %3228 = vmatprep.subr.mxu0 0.0
        %3229 = vmatpush1.xpose.msra.mxu0 0.0
        %3230 = vmatprep.subr.mxu0 0.0
        %3231 = vmatpush1.xpose.msra.mxu0 0.0
        %3232 = vmatprep.subr.mxu0 0.0
        %3233 = vmatpush1.xpose.msra.mxu0 0.0
        %3234 = vmatprep.subr.mxu0 0.0
        %3235 = vmatpush1.xpose.msra.mxu0 0.0
        %3236 = vmatprep.subr.mxu0 0.0
        %3237 = vmatpush1.xpose.msra.mxu0 0.0
        %3238 = vmatprep.subr.mxu0 0.0
        %3239 = vmatpush1.xpose.msra.mxu0 0.0
        %3240 = vmatprep.subr.mxu0 0.0
        %3241 = vmatpush1.xpose.msra.mxu0 0.0
        %3242 = vmatprep.subr.mxu0 0.0
        %3243 = vmatpush1.xpose.msra.mxu0 0.0
        %3244 = vmatprep.subr.mxu0 0.0
        %3245 = vmatpush1.xpose.msra.mxu0 0.0
        %3246 = vmatprep.subr.mxu0 0.0
        %3247 = vmatpush1.xpose.msra.mxu0 0.0
        %3248 = vmatprep.subr.mxu0 0.0
        %3249 = vmatpush1.xpose.msra.mxu0 0.0
        %3250 = vmatprep.subr.mxu0 0.0
        %3251 = vmatpush1.xpose.msra.mxu0 0.0
        %3252 = vmatprep.subr.mxu0 0.0
        %3253 = vmatpush1.xpose.msra.mxu0 0.0
        %3254 = vmatprep.subr.mxu0 0.0
        %3255 = vmatpush1.xpose.msra.mxu0 0.0
        %3256 = vmatprep.subr.mxu0 0.0
        %3257 = vmatpush1.xpose.msra.mxu0 0.0
        %3258 = vmatprep.subr.mxu0 0.0
        %3259 = vmatpush1.xpose.msra.mxu0 0.0
        %3260 = vmatprep.subr.mxu0 0.0
        %3261 = vmatpush1.xpose.msra.mxu0 0.0
        %3262 = vmatprep.subr.mxu0 0.0
        %3263 = vmatpush1.xpose.msra.mxu0 0.0
        %3264 = vmatprep.subr.mxu0 0.0
        %3265 = vmatpush1.xpose.msra.mxu0 0.0
        %3266 = vmatprep.subr.mxu0 0.0
        %3267 = vmatpush1.xpose.msra.mxu0 0.0
        %3268 = vmatprep.subr.mxu0 0.0
        %3269 = vmatpush1.xpose.msra.mxu0 0.0
        %3270 = vmatprep.subr.mxu0 0.0
        %3271 = vmatpush1.xpose.msra.mxu0 0.0
        %3272 = vmatprep.subr.mxu0 0.0
        %3273 = vmatpush1.xpose.msra.mxu0 0.0
        %3274 = vmatprep.subr.mxu0 0.0
        %3275 = vmatpush1.xpose.msra.mxu0 0.0
        %3276 = vmatprep.subr.mxu0 0.0
        %3277 = vmatpush1.xpose.msra.mxu0 0.0
        %3278 = vmatprep.subr.mxu0 0.0
        %3279 = vmatpush1.xpose.msra.mxu0 0.0
        %3280 = vmatprep.subr.mxu0 0.0
        %3281 = vmatpush1.xpose.msra.mxu0 0.0
        %3282 = vmatprep.subr.mxu0 0.0
        %3283 = vmatpush1.xpose.msra.mxu0 0.0
        %3284 = vmatprep.subr.mxu0 0.0
        %3285 = vmatpush1.xpose.msra.mxu0 0.0
        %3286 = vmatprep.subr.mxu0 0.0
        %3287 = vmatpush1.xpose.msra.mxu0 0.0
        %3288 = vmatprep.mubr.f32.mxu0 0.0
        %3289 = vmatmul.mubr.f32.gmra.mrb[0].mxu0 %v3220
        %v3290 = vpop.f32.mrb[0].mxu0
        %v3291 = vadd.f32 0.0, %v3290
        %v3292 = vpop.f32.mrb[0].mxu0
        %3293 = vdwg.mxu0
        %v3294 = vmul.f32 %v3291, 0.35355338
        %v3295 = vsel %vm823, %v3294, -inf
        %3296 = vmax.xlane.f32.xlu0 %v3295
        %v3297 = vpop.xlane.xlu0 %3296
        %v3298 = vsub.f32 %v3294, %v3297
        %v3299 = vmul.f32 %v3298, 1.442695
        %v3300 = vpow.pop %v3299
        %v3301 = vsel %vm823, %v3300, 0.0
        %3302 = vadd.xlane.f32.xlu0 %v3301
        %v3303 = vpop.xlane.xlu0 %3302
        %v3304 = vrcp.pop %v3303
        %v3305 = vmul.f32 %v3300, %v3304
        %v3308 = vsel %vm823, %v3305, 0
        %3310 = vmatprep.subr.mxu0 0.0
        %3311 = vmatpush1.msra.mxu0 %v3219
        %3312 = vmatprep.subr.mxu0 0.0
        %3313 = vmatpush1.msra.mxu0 0.0
        %3314 = vmatprep.subr.mxu0 0.0
        %3315 = vmatpush1.msra.mxu0 0.0
        %3316 = vmatprep.subr.mxu0 0.0
        %3317 = vmatpush1.msra.mxu0 0.0
        %3318 = vmatprep.subr.mxu0 0.0
        %3319 = vmatpush1.msra.mxu0 0.0
        %3320 = vmatprep.subr.mxu0 0.0
        %3321 = vmatpush1.msra.mxu0 0.0
        %3322 = vmatprep.subr.mxu0 0.0
        %3323 = vmatpush1.msra.mxu0 0.0
        %3324 = vmatprep.subr.mxu0 0.0
        %3325 = vmatpush1.msra.mxu0 0.0
        %3326 = vmatprep.subr.mxu0 0.0
        %3327 = vmatpush1.msra.mxu0 0.0
        %3328 = vmatprep.subr.mxu0 0.0
        %3329 = vmatpush1.msra.mxu0 0.0
        %3330 = vmatprep.subr.mxu0 0.0
        %3331 = vmatpush1.msra.mxu0 0.0
        %3332 = vmatprep.subr.mxu0 0.0
        %3333 = vmatpush1.msra.mxu0 0.0
        %3334 = vmatprep.subr.mxu0 0.0
        %3335 = vmatpush1.msra.mxu0 0.0
        %3336 = vmatprep.subr.mxu0 0.0
        %3337 = vmatpush1.msra.mxu0 0.0
        %3338 = vmatprep.subr.mxu0 0.0
        %3339 = vmatpush1.msra.mxu0 0.0
        %3340 = vmatprep.subr.mxu0 0.0
        %3341 = vmatpush1.msra.mxu0 0.0
        %3342 = vmatprep.subr.mxu0 0.0
        %3343 = vmatpush1.msra.mxu0 0.0
        %3344 = vmatprep.subr.mxu0 0.0
        %3345 = vmatpush1.msra.mxu0 0.0
        %3346 = vmatprep.subr.mxu0 0.0
        %3347 = vmatpush1.msra.mxu0 0.0
        %3348 = vmatprep.subr.mxu0 0.0
        %3349 = vmatpush1.msra.mxu0 0.0
        %3350 = vmatprep.subr.mxu0 0.0
        %3351 = vmatpush1.msra.mxu0 0.0
        %3352 = vmatprep.subr.mxu0 0.0
        %3353 = vmatpush1.msra.mxu0 0.0
        %3354 = vmatprep.subr.mxu0 0.0
        %3355 = vmatpush1.msra.mxu0 0.0
        %3356 = vmatprep.subr.mxu0 0.0
        %3357 = vmatpush1.msra.mxu0 0.0
        %3358 = vmatprep.subr.mxu0 0.0
        %3359 = vmatpush1.msra.mxu0 0.0
        %3360 = vmatprep.subr.mxu0 0.0
        %3361 = vmatpush1.msra.mxu0 0.0
        %3362 = vmatprep.subr.mxu0 0.0
        %3363 = vmatpush1.msra.mxu0 0.0
        %3364 = vmatprep.subr.mxu0 0.0
        %3365 = vmatpush1.msra.mxu0 0.0
        %3366 = vmatprep.subr.mxu0 0.0
        %3367 = vmatpush1.msra.mxu0 0.0
        %3368 = vmatprep.subr.mxu0 0.0
        %3369 = vmatpush1.msra.mxu0 0.0
        %3370 = vmatprep.subr.mxu0 0.0
        %3371 = vmatpush1.msra.mxu0 0.0
        %3372 = vmatprep.subr.mxu0 0.0
        %3373 = vmatpush1.msra.mxu0 0.0
        %3374 = vmatprep.mubr.f32.mxu0 0.0
        %3375 = vmatmul.mubr.f32.gmra.mrb[0].mxu0 %v3308
        %v3376 = vpop.f32.mrb[0].mxu0
        %v3377 = vadd.f32 0.0, %v3376
        %v3378 = vpop.f32.mrb[0].mxu0
        %3379 = vdwg.mxu0
        %3380 = vrot.lane.b32.xlu0 %v2890, 104
        %v3381 = vpop.permute.xlu0 %3380
        %3382 = vrot.lane.b32.xlu0 %v2812, 104
        %v3383 = vpop.permute.xlu0 %3382
        %v3384 = vsel %vm823, %v3381, 0
        %v3386 = vsel %vm823, %v3383, 0
        %3388 = vmatprep.subr.mxu0 0.0
        %3389 = vmatpush1.xpose.msra.mxu0 %v3386
        %3390 = vmatprep.subr.mxu0 0.0
        %3391 = vmatpush1.xpose.msra.mxu0 0.0
        %3392 = vmatprep.subr.mxu0 0.0
        %3393 = vmatpush1.xpose.msra.mxu0 0.0
        %3394 = vmatprep.subr.mxu0 0.0
        %3395 = vmatpush1.xpose.msra.mxu0 0.0
        %3396 = vmatprep.subr.mxu0 0.0
        %3397 = vmatpush1.xpose.msra.mxu0 0.0
        %3398 = vmatprep.subr.mxu0 0.0
        %3399 = vmatpush1.xpose.msra.mxu0 0.0
        %3400 = vmatprep.subr.mxu0 0.0
        %3401 = vmatpush1.xpose.msra.mxu0 0.0
        %3402 = vmatprep.subr.mxu0 0.0
        %3403 = vmatpush1.xpose.msra.mxu0 0.0
        %3404 = vmatprep.subr.mxu0 0.0
        %3405 = vmatpush1.xpose.msra.mxu0 0.0
        %3406 = vmatprep.subr.mxu0 0.0
        %3407 = vmatpush1.xpose.msra.mxu0 0.0
        %3408 = vmatprep.subr.mxu0 0.0
        %3409 = vmatpush1.xpose.msra.mxu0 0.0
        %3410 = vmatprep.subr.mxu0 0.0
        %3411 = vmatpush1.xpose.msra.mxu0 0.0
        %3412 = vmatprep.subr.mxu0 0.0
        %3413 = vmatpush1.xpose.msra.mxu0 0.0
        %3414 = vmatprep.subr.mxu0 0.0
        %3415 = vmatpush1.xpose.msra.mxu0 0.0
        %3416 = vmatprep.subr.mxu0 0.0
        %3417 = vmatpush1.xpose.msra.mxu0 0.0
        %3418 = vmatprep.subr.mxu0 0.0
        %3419 = vmatpush1.xpose.msra.mxu0 0.0
        %3420 = vmatprep.subr.mxu0 0.0
        %3421 = vmatpush1.xpose.msra.mxu0 0.0
        %3422 = vmatprep.subr.mxu0 0.0
        %3423 = vmatpush1.xpose.msra.mxu0 0.0
        %3424 = vmatprep.subr.mxu0 0.0
        %3425 = vmatpush1.xpose.msra.mxu0 0.0
        %3426 = vmatprep.subr.mxu0 0.0
        %3427 = vmatpush1.xpose.msra.mxu0 0.0
        %3428 = vmatprep.subr.mxu0 0.0
        %3429 = vmatpush1.xpose.msra.mxu0 0.0
        %3430 = vmatprep.subr.mxu0 0.0
        %3431 = vmatpush1.xpose.msra.mxu0 0.0
        %3432 = vmatprep.subr.mxu0 0.0
        %3433 = vmatpush1.xpose.msra.mxu0 0.0
        %3434 = vmatprep.subr.mxu0 0.0
        %3435 = vmatpush1.xpose.msra.mxu0 0.0
        %3436 = vmatprep.subr.mxu0 0.0
        %3437 = vmatpush1.xpose.msra.mxu0 0.0
        %3438 = vmatprep.subr.mxu0 0.0
        %3439 = vmatpush1.xpose.msra.mxu0 0.0
        %3440 = vmatprep.subr.mxu0 0.0
        %3441 = vmatpush1.xpose.msra.mxu0 0.0
        %3442 = vmatprep.subr.mxu0 0.0
        %3443 = vmatpush1.xpose.msra.mxu0 0.0
        %3444 = vmatprep.subr.mxu0 0.0
        %3445 = vmatpush1.xpose.msra.mxu0 0.0
        %3446 = vmatprep.subr.mxu0 0.0
        %3447 = vmatpush1.xpose.msra.mxu0 0.0
        %3448 = vmatprep.subr.mxu0 0.0
        %3449 = vmatpush1.xpose.msra.mxu0 0.0
        %3450 = vmatprep.subr.mxu0 0.0
        %3451 = vmatpush1.xpose.msra.mxu0 0.0
        %3452 = vmatprep.mubr.f32.mxu0 0.0
        %3453 = vmatmul.mubr.f32.gmra.mrb[0].mxu0 %v3384
        %v3454 = vpop.f32.mrb[0].mxu0
        %v3455 = vadd.f32 0.0, %v3454
        %v3456 = vpop.f32.mrb[0].mxu0
        %3457 = vdwg.mxu0
        %v3458 = vmul.f32 %v3455, 0.35355338
        %v3459 = vsel %vm823, %v3458, -inf
        %3460 = vmax.xlane.f32.xlu0 %v3459
        %v3461 = vpop.xlane.xlu0 %3460
        %v3462 = vsub.f32 %v3458, %v3461
        %v3463 = vmul.f32 %v3462, 1.442695
        %v3464 = vpow.pop %v3463
        %v3465 = vsel %vm823, %v3464, 0.0
        %3466 = vadd.xlane.f32.xlu0 %v3465
        %v3467 = vpop.xlane.xlu0 %3466
        %v3468 = vrcp.pop %v3467
        %v3469 = vmul.f32 %v3464, %v3468
        %v3472 = vsel %vm823, %v3469, 0
        %3474 = vmatprep.subr.mxu0 0.0
        %3475 = vmatpush1.msra.mxu0 %v3383
        %3476 = vmatprep.subr.mxu0 0.0
        %3477 = vmatpush1.msra.mxu0 0.0
        %3478 = vmatprep.subr.mxu0 0.0
        %3479 = vmatpush1.msra.mxu0 0.0
        %3480 = vmatprep.subr.mxu0 0.0
        %3481 = vmatpush1.msra.mxu0 0.0
        %3482 = vmatprep.subr.mxu0 0.0
        %3483 = vmatpush1.msra.mxu0 0.0
        %3484 = vmatprep.subr.mxu0 0.0
        %3485 = vmatpush1.msra.mxu0 0.0
        %3486 = vmatprep.subr.mxu0 0.0
        %3487 = vmatpush1.msra.mxu0 0.0
        %3488 = vmatprep.subr.mxu0 0.0
        %3489 = vmatpush1.msra.mxu0 0.0
        %3490 = vmatprep.subr.mxu0 0.0
        %3491 = vmatpush1.msra.mxu0 0.0
        %3492 = vmatprep.subr.mxu0 0.0
        %3493 = vmatpush1.msra.mxu0 0.0
        %3494 = vmatprep.subr.mxu0 0.0
        %3495 = vmatpush1.msra.mxu0 0.0
        %3496 = vmatprep.subr.mxu0 0.0
        %3497 = vmatpush1.msra.mxu0 0.0
        %3498 = vmatprep.subr.mxu0 0.0
        %3499 = vmatpush1.msra.mxu0 0.0
        %3500 = vmatprep.subr.mxu0 0.0
        %3501 = vmatpush1.msra.mxu0 0.0
        %3502 = vmatprep.subr.mxu0 0.0
        %3503 = vmatpush1.msra.mxu0 0.0
        %3504 = vmatprep.subr.mxu0 0.0
        %3505 = vmatpush1.msra.mxu0 0.0
        %3506 = vmatprep.subr.mxu0 0.0
        %3507 = vmatpush1.msra.mxu0 0.0
        %3508 = vmatprep.subr.mxu0 0.0
        %3509 = vmatpush1.msra.mxu0 0.0
        %3510 = vmatprep.subr.mxu0 0.0
        %3511 = vmatpush1.msra.mxu0 0.0
        %3512 = vmatprep.subr.mxu0 0.0
        %3513 = vmatpush1.msra.mxu0 0.0
        %3514 = vmatprep.subr.mxu0 0.0
        %3515 = vmatpush1.msra.mxu0 0.0
        %3516 = vmatprep.subr.mxu0 0.0
        %3517 = vmatpush1.msra.mxu0 0.0
        %3518 = vmatprep.subr.mxu0 0.0
        %3519 = vmatpush1.msra.mxu0 0.0
        %3520 = vmatprep.subr.mxu0 0.0
        %3521 = vmatpush1.msra.mxu0 0.0
        %3522 = vmatprep.subr.mxu0 0.0
        %3523 = vmatpush1.msra.mxu0 0.0
        %3524 = vmatprep.subr.mxu0 0.0
        %3525 = vmatpush1.msra.mxu0 0.0
        %3526 = vmatprep.subr.mxu0 0.0
        %3527 = vmatpush1.msra.mxu0 0.0
        %3528 = vmatprep.subr.mxu0 0.0
        %3529 = vmatpush1.msra.mxu0 0.0
        %3530 = vmatprep.subr.mxu0 0.0
        %3531 = vmatpush1.msra.mxu0 0.0
        %3532 = vmatprep.subr.mxu0 0.0
        %3533 = vmatpush1.msra.mxu0 0.0
        %3534 = vmatprep.subr.mxu0 0.0
        %3535 = vmatpush1.msra.mxu0 0.0
        %3536 = vmatprep.subr.mxu0 0.0
        %3537 = vmatpush1.msra.mxu0 0.0
        %3538 = vmatprep.mubr.f32.mxu0 0.0
        %3539 = vmatmul.mubr.f32.gmra.mrb[0].mxu0 %v3472
        %v3540 = vpop.f32.mrb[0].mxu0
        %v3541 = vadd.f32 0.0, %v3540
        %v3542 = vpop.f32.mrb[0].mxu0
        %3543 = vdwg.mxu0
        %3545 = vrot.lane.b32.xlu0 %v3213, 8
        %v3546 = vpop.permute.xlu0 %3545
        %3549 = vrot.lane.b32.xlu0 %v3377, 16
        %v3550 = vpop.permute.xlu0 %3549
        %3553 = vrot.lane.b32.xlu0 %v3541, 24
        %v3554 = vpop.permute.xlu0 %3553
        %v3556 = vsel %vm823, %v3049, %v3546
        %v3557 = vsel %vm1490, %v3556, %v3550
        %v3558 = vsel %vm1492, %v3557, %v3554
        %v3560 = vlaneseq
        %v3561 = vshrl.u32 %v3560, 7
        %v3562 = vsub.s32 0, %v3561
        %v3563 = vrot.slane %v2655, %v3562
        %v3566 = vsel %vm594, %v3558, 0
        %3568 = vmatprep.subr.mxu0 0.0
        %3569 = vmatpush1.msra.mxu0 %v2646
        %3570 = vmatprep.subr.mxu0 0.0
        %3571 = vmatpush1.msra.mxu0 %v2647
        %3572 = vmatprep.subr.mxu0 0.0
        %3573 = vmatpush1.msra.mxu0 %v2648
        %3574 = vmatprep.subr.mxu0 0.0
        %3575 = vmatpush1.msra.mxu0 %v2649
        %3576 = vmatprep.subr.mxu0 0.0
        %3577 = vmatpush1.msra.mxu0 0.0
        %3578 = vmatprep.subr.mxu0 0.0
        %3579 = vmatpush1.msra.mxu0 0.0
        %3580 = vmatprep.subr.mxu0 0.0
        %3581 = vmatpush1.msra.mxu0 0.0
        %3582 = vmatprep.subr.mxu0 0.0
        %3583 = vmatpush1.msra.mxu0 0.0
        %3584 = vmatprep.subr.mxu0 0.0
        %3585 = vmatpush1.msra.mxu0 0.0
        %3586 = vmatprep.subr.mxu0 0.0
        %3587 = vmatpush1.msra.mxu0 0.0
        %3588 = vmatprep.subr.mxu0 0.0
        %3589 = vmatpush1.msra.mxu0 0.0
        %3590 = vmatprep.subr.mxu0 0.0
        %3591 = vmatpush1.msra.mxu0 0.0
        %3592 = vmatprep.subr.mxu0 0.0
        %3593 = vmatpush1.msra.mxu0 0.0
        %3594 = vmatprep.subr.mxu0 0.0
        %3595 = vmatpush1.msra.mxu0 0.0
        %3596 = vmatprep.subr.mxu0 0.0
        %3597 = vmatpush1.msra.mxu0 0.0
        %3598 = vmatprep.subr.mxu0 0.0
        %3599 = vmatpush1.msra.mxu0 0.0
        %3600 = vmatprep.subr.mxu0 0.0
        %3601 = vmatpush1.msra.mxu0 0.0
        %3602 = vmatprep.subr.mxu0 0.0
        %3603 = vmatpush1.msra.mxu0 0.0
        %3604 = vmatprep.subr.mxu0 0.0
        %3605 = vmatpush1.msra.mxu0 0.0
        %3606 = vmatprep.subr.mxu0 0.0
        %3607 = vmatpush1.msra.mxu0 0.0
        %3608 = vmatprep.subr.mxu0 0.0
        %3609 = vmatpush1.msra.mxu0 0.0
        %3610 = vmatprep.subr.mxu0 0.0
        %3611 = vmatpush1.msra.mxu0 0.0
        %3612 = vmatprep.subr.mxu0 0.0
        %3613 = vmatpush1.msra.mxu0 0.0
        %3614 = vmatprep.subr.mxu0 0.0
        %3615 = vmatpush1.msra.mxu0 0.0
        %3616 = vmatprep.subr.mxu0 0.0
        %3617 = vmatpush1.msra.mxu0 0.0
        %3618 = vmatprep.subr.mxu0 0.0
        %3619 = vmatpush1.msra.mxu0 0.0
        %3620 = vmatprep.subr.mxu0 0.0
        %3621 = vmatpush1.msra.mxu0 0.0
        %3622 = vmatprep.subr.mxu0 0.0
        %3623 = vmatpush1.msra.mxu0 0.0
        %3624 = vmatprep.subr.mxu0 0.0
        %3625 = vmatpush1.msra.mxu0 0.0
        %3626 = vmatprep.subr.mxu0 0.0
        %3627 = vmatpush1.msra.mxu0 0.0
        %3628 = vmatprep.subr.mxu0 0.0
        %3629 = vmatpush1.msra.mxu0 0.0
        %3630 = vmatprep.subr.mxu0 0.0
        %3631 = vmatpush1.msra.mxu0 0.0
        %3632 = vmatprep.mubr.f32.mxu0 0.0
        %3633 = vmatmul.mubr.f32.gmra.mrb[0].mxu0 %v3566
        %v3634 = vpop.f32.mrb[0].mxu0
        %v3635 = vadd.f32 %v3563, %v3634
        %v3636 = vpop.f32.mrb[0].mxu0
        %3637 = vdwg.mxu0
        %v3638 = vadd.f32 %v3635, %v2634
        %v3639 = vsel %vm594, %v3638, 0.0
        %3640 = vadd.xlane.f32.xlu0 %v3639
        %v3641 = vpop.xlane.xlu0 %3640
        %v3642 = vmul.f32 %v3641, %v1577
        %v3643 = vsub.f32 %v3638, %v3642
        %v3644 = vmul.f32 %v3643, %v3643
        %v3645 = vsel %vm594, %v3644, 0.0
        %3646 = vadd.xlane.f32.xlu0 %v3645
        %v3647 = vpop.xlane.xlu0 %3646
        %v3648 = vmul.f32 %v3647, %v1577
        %v3649 = vadd.f32 %v3648, 1e-05
        %v3650 = vrsqrt.pop %v3649
        %v3651 = vmul.f32 %v3643, %v3650
        %v3653 = vlaneseq
        %v3654 = vshrl.u32 %v3653, 7
        %v3655 = vsub.s32 0, %v3654
        %v3656 = vrot.slane %v2657, %v3655
        %v3658 = vmul.f32 %v3651, %v3656
        %v3660 = vlaneseq
        %v3661 = vshrl.u32 %v3660, 7
        %v3662 = vsub.s32 0, %v3661
        %v3663 = vrot.slane %v2659, %v3662
        %v3665 = vadd.f32 %v3658, %v3663
        %v3666 = vmax.f32 %v3665, 0.0
        %s3667 = scalar_lea.vmem [#allocation10], 96
        %v3668 = vld [vmem:[%s3667] sm:$0xff]
        %v3669 = vld [vmem:[%s3667 + $0x8] sm:$0xff]
        %v3670 = vld [vmem:[%s3667 + $0x10] sm:$0xff]
        %v3671 = vld [vmem:[%s3667 + $0x18] sm:$0xff]
        %s3672 = scalar_lea.vmem [#allocation11], 96
        %v3673 = vld [vmem:[%s3672] sm:$0xff]
        %v3674 = vld [vmem:[%s3672 + $0x8] sm:$0xff]
        %v3675 = vld [vmem:[%s3672 + $0x10] sm:$0xff]
        %v3676 = vld [vmem:[%s3672 + $0x18] sm:$0xff]
        %s3677 = scalar_lea.vmem [#allocation13], 96
        %v3678 = vld [vmem:[%s3677] sm:$0xff]
        %v3679 = vld [vmem:[%s3677 + $0x8] sm:$0xff]
        %v3680 = vld [vmem:[%s3677 + $0x10] sm:$0xff]
        %v3681 = vld [vmem:[%s3677 + $0x18] sm:$0xff]
        %s3682 = scalar_lea.vmem %s6, 3
        %v3683 = vld [vmem:[%s3682] sm:$0x1]
        %s3684 = scalar_lea.vmem %s8, 3
        %v3685 = vld [vmem:[%s3684] sm:$0x1]
        %s3686 = scalar_lea.vmem %s10, 3
        %v3687 = vld [vmem:[%s3686] sm:$0x1]
        %s3688 = scalar_lea.vmem %s11, 3
        %v3689 = vld [vmem:[%s3688] sm:$0x1]
        %s3690 = scalar_lea.vmem %s12, 3
        %v3691 = vld [vmem:[%s3690] sm:$0x1]
        %v3693 = vlaneseq
        %v3694 = vshrl.u32 %v3693, 7
        %v3695 = vsub.s32 0, %v3694
        %v3696 = vrot.slane %v3683, %v3695
        %3698 = vmatprep.subr.mxu0 0.0
        %3699 = vmatpush1.msra.mxu0 %v3668
        %3700 = vmatprep.subr.mxu0 0.0
        %3701 = vmatpush1.msra.mxu0 %v3669
        %3702 = vmatprep.subr.mxu0 0.0
        %3703 = vmatpush1.msra.mxu0 %v3670
        %3704 = vmatprep.subr.mxu0 0.0
        %3705 = vmatpush1.msra.mxu0 %v3671
        %3706 = vmatprep.subr.mxu0 0.0
        %3707 = vmatpush1.msra.mxu0 0.0
        %3708 = vmatprep.subr.mxu0 0.0
        %3709 = vmatpush1.msra.mxu0 0.0
        %3710 = vmatprep.subr.mxu0 0.0
        %3711 = vmatpush1.msra.mxu0 0.0
        %3712 = vmatprep.subr.mxu0 0.0
        %3713 = vmatpush1.msra.mxu0 0.0
        %3714 = vmatprep.subr.mxu0 0.0
        %3715 = vmatpush1.msra.mxu0 0.0
        %3716 = vmatprep.subr.mxu0 0.0
        %3717 = vmatpush1.msra.mxu0 0.0
        %3718 = vmatprep.subr.mxu0 0.0
        %3719 = vmatpush1.msra.mxu0 0.0
        %3720 = vmatprep.subr.mxu0 0.0
        %3721 = vmatpush1.msra.mxu0 0.0
        %3722 = vmatprep.subr.mxu0 0.0
        %3723 = vmatpush1.msra.mxu0 0.0
        %3724 = vmatprep.subr.mxu0 0.0
        %3725 = vmatpush1.msra.mxu0 0.0
        %3726 = vmatprep.subr.mxu0 0.0
        %3727 = vmatpush1.msra.mxu0 0.0
        %3728 = vmatprep.subr.mxu0 0.0
        %3729 = vmatpush1.msra.mxu0 0.0
        %3730 = vmatprep.subr.mxu0 0.0
        %3731 = vmatpush1.msra.mxu0 0.0
        %3732 = vmatprep.subr.mxu0 0.0
        %3733 = vmatpush1.msra.mxu0 0.0
        %3734 = vmatprep.subr.mxu0 0.0
        %3735 = vmatpush1.msra.mxu0 0.0
        %3736 = vmatprep.subr.mxu0 0.0
        %3737 = vmatpush1.msra.mxu0 0.0
        %3738 = vmatprep.subr.mxu0 0.0
        %3739 = vmatpush1.msra.mxu0 0.0
        %3740 = vmatprep.subr.mxu0 0.0
        %3741 = vmatpush1.msra.mxu0 0.0
        %3742 = vmatprep.subr.mxu0 0.0
        %3743 = vmatpush1.msra.mxu0 0.0
        %3744 = vmatprep.subr.mxu0 0.0
        %3745 = vmatpush1.msra.mxu0 0.0
        %3746 = vmatprep.subr.mxu0 0.0
        %3747 = vmatpush1.msra.mxu0 0.0
        %3748 = vmatprep.subr.mxu0 0.0
        %3749 = vmatpush1.msra.mxu0 0.0
        %3750 = vmatprep.subr.mxu0 0.0
        %3751 = vmatpush1.msra.mxu0 0.0
        %3752 = vmatprep.subr.mxu0 0.0
        %3753 = vmatpush1.msra.mxu0 0.0
        %3754 = vmatprep.subr.mxu0 0.0
        %3755 = vmatpush1.msra.mxu0 0.0
        %3756 = vmatprep.subr.mxu0 0.0
        %3757 = vmatpush1.msra.mxu0 0.0
        %3758 = vmatprep.subr.mxu0 0.0
        %3759 = vmatpush1.msra.mxu0 0.0
        %3760 = vmatprep.subr.mxu0 0.0
        %3761 = vmatpush1.msra.mxu0 0.0
        %3762 = vmatprep.mubr.f32.mxu0 0.0
        %3763 = vmatmul.mubr.f32.gmra.mrb[0].mxu0 %v596
        %v3764 = vpop.f32.mrb[0].mxu0
        %v3765 = vadd.f32 %v3696, %v3764
        %v3766 = vpop.f32.mrb[0].mxu0
        %3767 = vdwg.mxu0
        %v3769 = vlaneseq
        %v3770 = vshrl.u32 %v3769, 7
        %v3771 = vsub.s32 0, %v3770
        %v3772 = vrot.slane %v3685, %v3771
        %v3775 = vsel %vm594, %v3666, 0
        %3777 = vmatprep.subr.mxu0 0.0
        %3778 = vmatpush1.msra.mxu0 %v3673
        %3779 = vmatprep.subr.mxu0 0.0
        %3780 = vmatpush1.msra.mxu0 %v3674
        %3781 = vmatprep.subr.mxu0 0.0
        %3782 = vmatpush1.msra.mxu0 %v3675
        %3783 = vmatprep.subr.mxu0 0.0
        %3784 = vmatpush1.msra.mxu0 %v3676
        %3785 = vmatprep.subr.mxu0 0.0
        %3786 = vmatpush1.msra.mxu0 0.0
        %3787 = vmatprep.subr.mxu0 0.0
        %3788 = vmatpush1.msra.mxu0 0.0
        %3789 = vmatprep.subr.mxu0 0.0
        %3790 = vmatpush1.msra.mxu0 0.0
        %3791 = vmatprep.subr.mxu0 0.0
        %3792 = vmatpush1.msra.mxu0 0.0
        %3793 = vmatprep.subr.mxu0 0.0
        %3794 = vmatpush1.msra.mxu0 0.0
        %3795 = vmatprep.subr.mxu0 0.0
        %3796 = vmatpush1.msra.mxu0 0.0
        %3797 = vmatprep.subr.mxu0 0.0
        %3798 = vmatpush1.msra.mxu0 0.0
        %3799 = vmatprep.subr.mxu0 0.0
        %3800 = vmatpush1.msra.mxu0 0.0
        %3801 = vmatprep.subr.mxu0 0.0
        %3802 = vmatpush1.msra.mxu0 0.0
        %3803 = vmatprep.subr.mxu0 0.0
        %3804 = vmatpush1.msra.mxu0 0.0
        %3805 = vmatprep.subr.mxu0 0.0
        %3806 = vmatpush1.msra.mxu0 0.0
        %3807 = vmatprep.subr.mxu0 0.0
        %3808 = vmatpush1.msra.mxu0 0.0
        %3809 = vmatprep.subr.mxu0 0.0
        %3810 = vmatpush1.msra.mxu0 0.0
        %3811 = vmatprep.subr.mxu0 0.0
        %3812 = vmatpush1.msra.mxu0 0.0
        %3813 = vmatprep.subr.mxu0 0.0
        %3814 = vmatpush1.msra.mxu0 0.0
        %3815 = vmatprep.subr.mxu0 0.0
        %3816 = vmatpush1.msra.mxu0 0.0
        %3817 = vmatprep.subr.mxu0 0.0
        %3818 = vmatpush1.msra.mxu0 0.0
        %3819 = vmatprep.subr.mxu0 0.0
        %3820 = vmatpush1.msra.mxu0 0.0
        %3821 = vmatprep.subr.mxu0 0.0
        %3822 = vmatpush1.msra.mxu0 0.0
        %3823 = vmatprep.subr.mxu0 0.0
        %3824 = vmatpush1.msra.mxu0 0.0
        %3825 = vmatprep.subr.mxu0 0.0
        %3826 = vmatpush1.msra.mxu0 0.0
        %3827 = vmatprep.subr.mxu0 0.0
        %3828 = vmatpush1.msra.mxu0 0.0
        %3829 = vmatprep.subr.mxu0 0.0
        %3830 = vmatpush1.msra.mxu0 0.0
        %3831 = vmatprep.subr.mxu0 0.0
        %3832 = vmatpush1.msra.mxu0 0.0
        %3833 = vmatprep.subr.mxu0 0.0
        %3834 = vmatpush1.msra.mxu0 0.0
        %3835 = vmatprep.subr.mxu0 0.0
        %3836 = vmatpush1.msra.mxu0 0.0
        %3837 = vmatprep.subr.mxu0 0.0
        %3838 = vmatpush1.msra.mxu0 0.0
        %3839 = vmatprep.subr.mxu0 0.0
        %3840 = vmatpush1.msra.mxu0 0.0
        %3841 = vmatprep.mubr.f32.mxu0 0.0
        %3842 = vmatmul.mubr.f32.gmra.mrb[0].mxu0 %v3775
        %v3843 = vpop.f32.mrb[0].mxu0
        %v3844 = vadd.f32 %v3772, %v3843
        %v3845 = vpop.f32.mrb[0].mxu0
        %3846 = vdwg.mxu0
        %v3847 = vmul.f32 %v3765, %v565
        %v3849 = vsel %vm594, %v3765, 0
        %3851 = vmatprep.subr.mxu0 0.0
        %3852 = vmatpush1.msra.mxu0 %v567
        %3853 = vmatprep.subr.mxu0 0.0
        %3854 = vmatpush1.msra.mxu0 %v568
        %3855 = vmatprep.subr.mxu0 0.0
        %3856 = vmatpush1.msra.mxu0 %v569
        %3857 = vmatprep.subr.mxu0 0.0
        %3858 = vmatpush1.msra.mxu0 %v570
        %3859 = vmatprep.subr.mxu0 0.0
        %3860 = vmatpush1.msra.mxu0 0.0
        %3861 = vmatprep.subr.mxu0 0.0
        %3862 = vmatpush1.msra.mxu0 0.0
        %3863 = vmatprep.subr.mxu0 0.0
        %3864 = vmatpush1.msra.mxu0 0.0
        %3865 = vmatprep.subr.mxu0 0.0
        %3866 = vmatpush1.msra.mxu0 0.0
        %3867 = vmatprep.subr.mxu0 0.0
        %3868 = vmatpush1.msra.mxu0 0.0
        %3869 = vmatprep.subr.mxu0 0.0
        %3870 = vmatpush1.msra.mxu0 0.0
        %3871 = vmatprep.subr.mxu0 0.0
        %3872 = vmatpush1.msra.mxu0 0.0
        %3873 = vmatprep.subr.mxu0 0.0
        %3874 = vmatpush1.msra.mxu0 0.0
        %3875 = vmatprep.subr.mxu0 0.0
        %3876 = vmatpush1.msra.mxu0 0.0
        %3877 = vmatprep.subr.mxu0 0.0
        %3878 = vmatpush1.msra.mxu0 0.0
        %3879 = vmatprep.subr.mxu0 0.0
        %3880 = vmatpush1.msra.mxu0 0.0
        %3881 = vmatprep.subr.mxu0 0.0
        %3882 = vmatpush1.msra.mxu0 0.0
        %3883 = vmatprep.subr.mxu0 0.0
        %3884 = vmatpush1.msra.mxu0 0.0
        %3885 = vmatprep.subr.mxu0 0.0
        %3886 = vmatpush1.msra.mxu0 0.0
        %3887 = vmatprep.subr.mxu0 0.0
        %3888 = vmatpush1.msra.mxu0 0.0
        %3889 = vmatprep.subr.mxu0 0.0
        %3890 = vmatpush1.msra.mxu0 0.0
        %3891 = vmatprep.subr.mxu0 0.0
        %3892 = vmatpush1.msra.mxu0 0.0
        %3893 = vmatprep.subr.mxu0 0.0
        %3894 = vmatpush1.msra.mxu0 0.0
        %3895 = vmatprep.subr.mxu0 0.0
        %3896 = vmatpush1.msra.mxu0 0.0
        %3897 = vmatprep.subr.mxu0 0.0
        %3898 = vmatpush1.msra.mxu0 0.0
        %3899 = vmatprep.subr.mxu0 0.0
        %3900 = vmatpush1.msra.mxu0 0.0
        %3901 = vmatprep.subr.mxu0 0.0
        %3902 = vmatpush1.msra.mxu0 0.0
        %3903 = vmatprep.subr.mxu0 0.0
        %3904 = vmatpush1.msra.mxu0 0.0
        %3905 = vmatprep.subr.mxu0 0.0
        %3906 = vmatpush1.msra.mxu0 0.0
        %3907 = vmatprep.subr.mxu0 0.0
        %3908 = vmatpush1.msra.mxu0 0.0
        %3909 = vmatprep.subr.mxu0 0.0
        %3910 = vmatpush1.msra.mxu0 0.0
        %3911 = vmatprep.subr.mxu0 0.0
        %3912 = vmatpush1.msra.mxu0 0.0
        %3913 = vmatprep.subr.mxu0 0.0
        %3914 = vmatpush1.msra.mxu0 0.0
        %3915 = vmatprep.mubr.f32.mxu0 0.0
        %3916 = vmatmul.mubr.f32.gmra.mrb[0].mxu0 %v3849
        %v3917 = vpop.f32.mrb[0].mxu0
        %v3918 = vadd.f32 0.0, %v3917
        %v3919 = vpop.f32.mrb[0].mxu0
        %3920 = vdwg.mxu0
        %v3921 = vmul.f32 %v3918, %v566
        %v3922 = vadd.f32 %v3847, %v3921
        %v3924 = vsel %vm823, %v3922, 0
        %v3927 = vsel %vm823, %v3844, 0
        %3929 = vmatprep.subr.mxu0 0.0
        %3930 = vmatpush1.xpose.msra.mxu0 %v3927
        %3931 = vmatprep.subr.mxu0 0.0
        %3932 = vmatpush1.xpose.msra.mxu0 0.0
        %3933 = vmatprep.subr.mxu0 0.0
        %3934 = vmatpush1.xpose.msra.mxu0 0.0
        %3935 = vmatprep.subr.mxu0 0.0
        %3936 = vmatpush1.xpose.msra.mxu0 0.0
        %3937 = vmatprep.subr.mxu0 0.0
        %3938 = vmatpush1.xpose.msra.mxu0 0.0
        %3939 = vmatprep.subr.mxu0 0.0
        %3940 = vmatpush1.xpose.msra.mxu0 0.0
        %3941 = vmatprep.subr.mxu0 0.0
        %3942 = vmatpush1.xpose.msra.mxu0 0.0
        %3943 = vmatprep.subr.mxu0 0.0
        %3944 = vmatpush1.xpose.msra.mxu0 0.0
        %3945 = vmatprep.subr.mxu0 0.0
        %3946 = vmatpush1.xpose.msra.mxu0 0.0
        %3947 = vmatprep.subr.mxu0 0.0
        %3948 = vmatpush1.xpose.msra.mxu0 0.0
        %3949 = vmatprep.subr.mxu0 0.0
        %3950 = vmatpush1.xpose.msra.mxu0 0.0
        %3951 = vmatprep.subr.mxu0 0.0
        %3952 = vmatpush1.xpose.msra.mxu0 0.0
        %3953 = vmatprep.subr.mxu0 0.0
        %3954 = vmatpush1.xpose.msra.mxu0 0.0
        %3955 = vmatprep.subr.mxu0 0.0
        %3956 = vmatpush1.xpose.msra.mxu0 0.0
        %3957 = vmatprep.subr.mxu0 0.0
        %3958 = vmatpush1.xpose.msra.mxu0 0.0
        %3959 = vmatprep.subr.mxu0 0.0
        %3960 = vmatpush1.xpose.msra.mxu0 0.0
        %3961 = vmatprep.subr.mxu0 0.0
        %3962 = vmatpush1.xpose.msra.mxu0 0.0
        %3963 = vmatprep.subr.mxu0 0.0
        %3964 = vmatpush1.xpose.msra.mxu0 0.0
        %3965 = vmatprep.subr.mxu0 0.0
        %3966 = vmatpush1.xpose.msra.mxu0 0.0
        %3967 = vmatprep.subr.mxu0 0.0
        %3968 = vmatpush1.xpose.msra.mxu0 0.0
        %3969 = vmatprep.subr.mxu0 0.0
        %3970 = vmatpush1.xpose.msra.mxu0 0.0
        %3971 = vmatprep.subr.mxu0 0.0
        %3972 = vmatpush1.xpose.msra.mxu0 0.0
        %3973 = vmatprep.subr.mxu0 0.0
        %3974 = vmatpush1.xpose.msra.mxu0 0.0
        %3975 = vmatprep.subr.mxu0 0.0
        %3976 = vmatpush1.xpose.msra.mxu0 0.0
        %3977 = vmatprep.subr.mxu0 0.0
        %3978 = vmatpush1.xpose.msra.mxu0 0.0
        %3979 = vmatprep.subr.mxu0 0.0
        %3980 = vmatpush1.xpose.msra.mxu0 0.0
        %3981 = vmatprep.subr.mxu0 0.0
        %3982 = vmatpush1.xpose.msra.mxu0 0.0
        %3983 = vmatprep.subr.mxu0 0.0
        %3984 = vmatpush1.xpose.msra.mxu0 0.0
        %3985 = vmatprep.subr.mxu0 0.0
        %3986 = vmatpush1.xpose.msra.mxu0 0.0
        %3987 = vmatprep.subr.mxu0 0.0
        %3988 = vmatpush1.xpose.msra.mxu0 0.0
        %3989 = vmatprep.subr.mxu0 0.0
        %3990 = vmatpush1.xpose.msra.mxu0 0.0
        %3991 = vmatprep.subr.mxu0 0.0
        %3992 = vmatpush1.xpose.msra.mxu0 0.0
        %3993 = vmatprep.mubr.f32.mxu0 0.0
        %3994 = vmatmul.mubr.f32.gmra.mrb[0].mxu0 %v3924
        %v3995 = vpop.f32.mrb[0].mxu0
        %v3996 = vadd.f32 0.0, %v3995
        %v3997 = vpop.f32.mrb[0].mxu0
        %3998 = vdwg.mxu0
        %v3999 = vmul.f32 %v3996, 0.35355338
        %v4000 = vsel %vm823, %v3999, -inf
        %4001 = vmax.xlane.f32.xlu0 %v4000
        %v4002 = vpop.xlane.xlu0 %4001
        %v4003 = vsub.f32 %v3999, %v4002
        %v4004 = vmul.f32 %v4003, 1.442695
        %v4005 = vpow.pop %v4004
        %v4006 = vsel %vm823, %v4005, 0.0
        %4007 = vadd.xlane.f32.xlu0 %v4006
        %v4008 = vpop.xlane.xlu0 %4007
        %v4009 = vrcp.pop %v4008
        %v4010 = vmul.f32 %v4005, %v4009
        %v4012 = vsel %vm823, %v4010, 0
        %4014 = vmatprep.subr.mxu0 0.0
        %4015 = vmatpush1.msra.mxu0 %v3844
        %4016 = vmatprep.subr.mxu0 0.0
        %4017 = vmatpush1.msra.mxu0 0.0
        %4018 = vmatprep.subr.mxu0 0.0
        %4019 = vmatpush1.msra.mxu0 0.0
        %4020 = vmatprep.subr.mxu0 0.0
        %4021 = vmatpush1.msra.mxu0 0.0
        %4022 = vmatprep.subr.mxu0 0.0
        %4023 = vmatpush1.msra.mxu0 0.0
        %4024 = vmatprep.subr.mxu0 0.0
        %4025 = vmatpush1.msra.mxu0 0.0
        %4026 = vmatprep.subr.mxu0 0.0
        %4027 = vmatpush1.msra.mxu0 0.0
        %4028 = vmatprep.subr.mxu0 0.0
        %4029 = vmatpush1.msra.mxu0 0.0
        %4030 = vmatprep.subr.mxu0 0.0
        %4031 = vmatpush1.msra.mxu0 0.0
        %4032 = vmatprep.subr.mxu0 0.0
        %4033 = vmatpush1.msra.mxu0 0.0
        %4034 = vmatprep.subr.mxu0 0.0
        %4035 = vmatpush1.msra.mxu0 0.0
        %4036 = vmatprep.subr.mxu0 0.0
        %4037 = vmatpush1.msra.mxu0 0.0
        %4038 = vmatprep.subr.mxu0 0.0
        %4039 = vmatpush1.msra.mxu0 0.0
        %4040 = vmatprep.subr.mxu0 0.0
        %4041 = vmatpush1.msra.mxu0 0.0
        %4042 = vmatprep.subr.mxu0 0.0
        %4043 = vmatpush1.msra.mxu0 0.0
        %4044 = vmatprep.subr.mxu0 0.0
        %4045 = vmatpush1.msra.mxu0 0.0
        %4046 = vmatprep.subr.mxu0 0.0
        %4047 = vmatpush1.msra.mxu0 0.0
        %4048 = vmatprep.subr.mxu0 0.0
        %4049 = vmatpush1.msra.mxu0 0.0
        %4050 = vmatprep.subr.mxu0 0.0
        %4051 = vmatpush1.msra.mxu0 0.0
        %4052 = vmatprep.subr.mxu0 0.0
        %4053 = vmatpush1.msra.mxu0 0.0
        %4054 = vmatprep.subr.mxu0 0.0
        %4055 = vmatpush1.msra.mxu0 0.0
        %4056 = vmatprep.subr.mxu0 0.0
        %4057 = vmatpush1.msra.mxu0 0.0
        %4058 = vmatprep.subr.mxu0 0.0
        %4059 = vmatpush1.msra.mxu0 0.0
        %4060 = vmatprep.subr.mxu0 0.0
        %4061 = vmatpush1.msra.mxu0 0.0
        %4062 = vmatprep.subr.mxu0 0.0
        %4063 = vmatpush1.msra.mxu0 0.0
        %4064 = vmatprep.subr.mxu0 0.0
        %4065 = vmatpush1.msra.mxu0 0.0
        %4066 = vmatprep.subr.mxu0 0.0
        %4067 = vmatpush1.msra.mxu0 0.0
        %4068 = vmatprep.subr.mxu0 0.0
        %4069 = vmatpush1.msra.mxu0 0.0
        %4070 = vmatprep.subr.mxu0 0.0
        %4071 = vmatpush1.msra.mxu0 0.0
        %4072 = vmatprep.subr.mxu0 0.0
        %4073 = vmatpush1.msra.mxu0 0.0
        %4074 = vmatprep.subr.mxu0 0.0
        %4075 = vmatpush1.msra.mxu0 0.0
        %4076 = vmatprep.subr.mxu0 0.0
        %4077 = vmatpush1.msra.mxu0 0.0
        %4078 = vmatprep.mubr.f32.mxu0 0.0
        %4079 = vmatmul.mubr.f32.gmra.mrb[0].mxu0 %v4012
        %v4080 = vpop.f32.mrb[0].mxu0
        %v4081 = vadd.f32 0.0, %v4080
        %v4082 = vpop.f32.mrb[0].mxu0
        %4083 = vdwg.mxu0
        %4084 = vrot.lane.b32.xlu0 %v3922, 120
        %v4085 = vpop.permute.xlu0 %4084
        %4086 = vrot.lane.b32.xlu0 %v3844, 120
        %v4087 = vpop.permute.xlu0 %4086
        %v4088 = vsel %vm823, %v4085, 0
        %v4090 = vsel %vm823, %v4087, 0
        %4092 = vmatprep.subr.mxu0 0.0
        %4093 = vmatpush1.xpose.msra.mxu0 %v4090
        %4094 = vmatprep.subr.mxu0 0.0
        %4095 = vmatpush1.xpose.msra.mxu0 0.0
        %4096 = vmatprep.subr.mxu0 0.0
        %4097 = vmatpush1.xpose.msra.mxu0 0.0
        %4098 = vmatprep.subr.mxu0 0.0
        %4099 = vmatpush1.xpose.msra.mxu0 0.0
        %4100 = vmatprep.subr.mxu0 0.0
        %4101 = vmatpush1.xpose.msra.mxu0 0.0
        %4102 = vmatprep.subr.mxu0 0.0
        %4103 = vmatpush1.xpose.msra.mxu0 0.0
        %4104 = vmatprep.subr.mxu0 0.0
        %4105 = vmatpush1.xpose.msra.mxu0 0.0
        %4106 = vmatprep.subr.mxu0 0.0
        %4107 = vmatpush1.xpose.msra.mxu0 0.0
        %4108 = vmatprep.subr.mxu0 0.0
        %4109 = vmatpush1.xpose.msra.mxu0 0.0
        %4110 = vmatprep.subr.mxu0 0.0
        %4111 = vmatpush1.xpose.msra.mxu0 0.0
        %4112 = vmatprep.subr.mxu0 0.0
        %4113 = vmatpush1.xpose.msra.mxu0 0.0
        %4114 = vmatprep.subr.mxu0 0.0
        %4115 = vmatpush1.xpose.msra.mxu0 0.0
        %4116 = vmatprep.subr.mxu0 0.0
        %4117 = vmatpush1.xpose.msra.mxu0 0.0
        %4118 = vmatprep.subr.mxu0 0.0
        %4119 = vmatpush1.xpose.msra.mxu0 0.0
        %4120 = vmatprep.subr.mxu0 0.0
        %4121 = vmatpush1.xpose.msra.mxu0 0.0
        %4122 = vmatprep.subr.mxu0 0.0
        %4123 = vmatpush1.xpose.msra.mxu0 0.0
        %4124 = vmatprep.subr.mxu0 0.0
        %4125 = vmatpush1.xpose.msra.mxu0 0.0
        %4126 = vmatprep.subr.mxu0 0.0
        %4127 = vmatpush1.xpose.msra.mxu0 0.0
        %4128 = vmatprep.subr.mxu0 0.0
        %4129 = vmatpush1.xpose.msra.mxu0 0.0
        %4130 = vmatprep.subr.mxu0 0.0
        %4131 = vmatpush1.xpose.msra.mxu0 0.0
        %4132 = vmatprep.subr.mxu0 0.0
        %4133 = vmatpush1.xpose.msra.mxu0 0.0
        %4134 = vmatprep.subr.mxu0 0.0
        %4135 = vmatpush1.xpose.msra.mxu0 0.0
        %4136 = vmatprep.subr.mxu0 0.0
        %4137 = vmatpush1.xpose.msra.mxu0 0.0
        %4138 = vmatprep.subr.mxu0 0.0
        %4139 = vmatpush1.xpose.msra.mxu0 0.0
        %4140 = vmatprep.subr.mxu0 0.0
        %4141 = vmatpush1.xpose.msra.mxu0 0.0
        %4142 = vmatprep.subr.mxu0 0.0
        %4143 = vmatpush1.xpose.msra.mxu0 0.0
        %4144 = vmatprep.subr.mxu0 0.0
        %4145 = vmatpush1.xpose.msra.mxu0 0.0
        %4146 = vmatprep.subr.mxu0 0.0
        %4147 = vmatpush1.xpose.msra.mxu0 0.0
        %4148 = vmatprep.subr.mxu0 0.0
        %4149 = vmatpush1.xpose.msra.mxu0 0.0
        %4150 = vmatprep.subr.mxu0 0.0
        %4151 = vmatpush1.xpose.msra.mxu0 0.0
        %4152 = vmatprep.subr.mxu0 0.0
        %4153 = vmatpush1.xpose.msra.mxu0 0.0
        %4154 = vmatprep.subr.mxu0 0.0
        %4155 = vmatpush1.xpose.msra.mxu0 0.0
        %4156 = vmatprep.mubr.f32.mxu0 0.0
        %4157 = vmatmul.mubr.f32.gmra.mrb[0].mxu0 %v4088
        %v4158 = vpop.f32.mrb[0].mxu0
        %v4159 = vadd.f32 0.0, %v4158
        %v4160 = vpop.f32.mrb[0].mxu0
        %4161 = vdwg.mxu0
        %v4162 = vmul.f32 %v4159, 0.35355338
        %v4163 = vsel %vm823, %v4162, -inf
        %4164 = vmax.xlane.f32.xlu0 %v4163
        %v4165 = vpop.xlane.xlu0 %4164
        %v4166 = vsub.f32 %v4162, %v4165
        %v4167 = vmul.f32 %v4166, 1.442695
        %v4168 = vpow.pop %v4167
        %v4169 = vsel %vm823, %v4168, 0.0
        %4170 = vadd.xlane.f32.xlu0 %v4169
        %v4171 = vpop.xlane.xlu0 %4170
        %v4172 = vrcp.pop %v4171
        %v4173 = vmul.f32 %v4168, %v4172
        %v4176 = vsel %vm823, %v4173, 0
        %4178 = vmatprep.subr.mxu0 0.0
        %4179 = vmatpush1.msra.mxu0 %v4087
        %4180 = vmatprep.subr.mxu0 0.0
        %4181 = vmatpush1.msra.mxu0 0.0
        %4182 = vmatprep.subr.mxu0 0.0
        %4183 = vmatpush1.msra.mxu0 0.0
        %4184 = vmatprep.subr.mxu0 0.0
        %4185 = vmatpush1.msra.mxu0 0.0
        %4186 = vmatprep.subr.mxu0 0.0
        %4187 = vmatpush1.msra.mxu0 0.0
        %4188 = vmatprep.subr.mxu0 0.0
        %4189 = vmatpush1.msra.mxu0 0.0
        %4190 = vmatprep.subr.mxu0 0.0
        %4191 = vmatpush1.msra.mxu0 0.0
        %4192 = vmatprep.subr.mxu0 0.0
        %4193 = vmatpush1.msra.mxu0 0.0
        %4194 = vmatprep.subr.mxu0 0.0
        %4195 = vmatpush1.msra.mxu0 0.0
        %4196 = vmatprep.subr.mxu0 0.0
        %4197 = vmatpush1.msra.mxu0 0.0
        %4198 = vmatprep.subr.mxu0 0.0
        %4199 = vmatpush1.msra.mxu0 0.0
        %4200 = vmatprep.subr.mxu0 0.0
        %4201 = vmatpush1.msra.mxu0 0.0
        %4202 = vmatprep.subr.mxu0 0.0
        %4203 = vmatpush1.msra.mxu0 0.0
        %4204 = vmatprep.subr.mxu0 0.0
        %4205 = vmatpush1.msra.mxu0 0.0
        %4206 = vmatprep.subr.mxu0 0.0
        %4207 = vmatpush1.msra.mxu0 0.0
        %4208 = vmatprep.subr.mxu0 0.0
        %4209 = vmatpush1.msra.mxu0 0.0
        %4210 = vmatprep.subr.mxu0 0.0
        %4211 = vmatpush1.msra.mxu0 0.0
        %4212 = vmatprep.subr.mxu0 0.0
        %4213 = vmatpush1.msra.mxu0 0.0
        %4214 = vmatprep.subr.mxu0 0.0
        %4215 = vmatpush1.msra.mxu0 0.0
        %4216 = vmatprep.subr.mxu0 0.0
        %4217 = vmatpush1.msra.mxu0 0.0
        %4218 = vmatprep.subr.mxu0 0.0
        %4219 = vmatpush1.msra.mxu0 0.0
        %4220 = vmatprep.subr.mxu0 0.0
        %4221 = vmatpush1.msra.mxu0 0.0
        %4222 = vmatprep.subr.mxu0 0.0
        %4223 = vmatpush1.msra.mxu0 0.0
        %4224 = vmatprep.subr.mxu0 0.0
        %4225 = vmatpush1.msra.mxu0 0.0
        %4226 = vmatprep.subr.mxu0 0.0
        %4227 = vmatpush1.msra.mxu0 0.0
        %4228 = vmatprep.subr.mxu0 0.0
        %4229 = vmatpush1.msra.mxu0 0.0
        %4230 = vmatprep.subr.mxu0 0.0
        %4231 = vmatpush1.msra.mxu0 0.0
        %4232 = vmatprep.subr.mxu0 0.0
        %4233 = vmatpush1.msra.mxu0 0.0
        %4234 = vmatprep.subr.mxu0 0.0
        %4235 = vmatpush1.msra.mxu0 0.0
        %4236 = vmatprep.subr.mxu0 0.0
        %4237 = vmatpush1.msra.mxu0 0.0
        %4238 = vmatprep.subr.mxu0 0.0
        %4239 = vmatpush1.msra.mxu0 0.0
        %4240 = vmatprep.subr.mxu0 0.0
        %4241 = vmatpush1.msra.mxu0 0.0
        %4242 = vmatprep.mubr.f32.mxu0 0.0
        %4243 = vmatmul.mubr.f32.gmra.mrb[0].mxu0 %v4176
        %v4244 = vpop.f32.mrb[0].mxu0
        %v4245 = vadd.f32 0.0, %v4244
        %v4246 = vpop.f32.mrb[0].mxu0
        %4247 = vdwg.mxu0
        %4248 = vrot.lane.b32.xlu0 %v3922, 112
        %v4249 = vpop.permute.xlu0 %4248
        %4250 = vrot.lane.b32.xlu0 %v3844, 112
        %v4251 = vpop.permute.xlu0 %4250
        %v4252 = vsel %vm823, %v4249, 0
        %v4254 = vsel %vm823, %v4251, 0
        %4256 = vmatprep.subr.mxu0 0.0
        %4257 = vmatpush1.xpose.msra.mxu0 %v4254
        %4258 = vmatprep.subr.mxu0 0.0
        %4259 = vmatpush1.xpose.msra.mxu0 0.0
        %4260 = vmatprep.subr.mxu0 0.0
        %4261 = vmatpush1.xpose.msra.mxu0 0.0
        %4262 = vmatprep.subr.mxu0 0.0
        %4263 = vmatpush1.xpose.msra.mxu0 0.0
        %4264 = vmatprep.subr.mxu0 0.0
        %4265 = vmatpush1.xpose.msra.mxu0 0.0
        %4266 = vmatprep.subr.mxu0 0.0
        %4267 = vmatpush1.xpose.msra.mxu0 0.0
        %4268 = vmatprep.subr.mxu0 0.0
        %4269 = vmatpush1.xpose.msra.mxu0 0.0
        %4270 = vmatprep.subr.mxu0 0.0
        %4271 = vmatpush1.xpose.msra.mxu0 0.0
        %4272 = vmatprep.subr.mxu0 0.0
        %4273 = vmatpush1.xpose.msra.mxu0 0.0
        %4274 = vmatprep.subr.mxu0 0.0
        %4275 = vmatpush1.xpose.msra.mxu0 0.0
        %4276 = vmatprep.subr.mxu0 0.0
        %4277 = vmatpush1.xpose.msra.mxu0 0.0
        %4278 = vmatprep.subr.mxu0 0.0
        %4279 = vmatpush1.xpose.msra.mxu0 0.0
        %4280 = vmatprep.subr.mxu0 0.0
        %4281 = vmatpush1.xpose.msra.mxu0 0.0
        %4282 = vmatprep.subr.mxu0 0.0
        %4283 = vmatpush1.xpose.msra.mxu0 0.0
        %4284 = vmatprep.subr.mxu0 0.0
        %4285 = vmatpush1.xpose.msra.mxu0 0.0
        %4286 = vmatprep.subr.mxu0 0.0
        %4287 = vmatpush1.xpose.msra.mxu0 0.0
        %4288 = vmatprep.subr.mxu0 0.0
        %4289 = vmatpush1.xpose.msra.mxu0 0.0
        %4290 = vmatprep.subr.mxu0 0.0
        %4291 = vmatpush1.xpose.msra.mxu0 0.0
        %4292 = vmatprep.subr.mxu0 0.0
        %4293 = vmatpush1.xpose.msra.mxu0 0.0
        %4294 = vmatprep.subr.mxu0 0.0
        %4295 = vmatpush1.xpose.msra.mxu0 0.0
        %4296 = vmatprep.subr.mxu0 0.0
        %4297 = vmatpush1.xpose.msra.mxu0 0.0
        %4298 = vmatprep.subr.mxu0 0.0
        %4299 = vmatpush1.xpose.msra.mxu0 0.0
        %4300 = vmatprep.subr.mxu0 0.0
        %4301 = vmatpush1.xpose.msra.mxu0 0.0
        %4302 = vmatprep.subr.mxu0 0.0
        %4303 = vmatpush1.xpose.msra.mxu0 0.0
        %4304 = vmatprep.subr.mxu0 0.0
        %4305 = vmatpush1.xpose.msra.mxu0 0.0
        %4306 = vmatprep.subr.mxu0 0.0
        %4307 = vmatpush1.xpose.msra.mxu0 0.0
        %4308 = vmatprep.subr.mxu0 0.0
        %4309 = vmatpush1.xpose.msra.mxu0 0.0
        %4310 = vmatprep.subr.mxu0 0.0
        %4311 = vmatpush1.xpose.msra.mxu0 0.0
        %4312 = vmatprep.subr.mxu0 0.0
        %4313 = vmatpush1.xpose.msra.mxu0 0.0
        %4314 = vmatprep.subr.mxu0 0.0
        %4315 = vmatpush1.xpose.msra.mxu0 0.0
        %4316 = vmatprep.subr.mxu0 0.0
        %4317 = vmatpush1.xpose.msra.mxu0 0.0
        %4318 = vmatprep.subr.mxu0 0.0
        %4319 = vmatpush1.xpose.msra.mxu0 0.0
        %4320 = vmatprep.mubr.f32.mxu0 0.0
        %4321 = vmatmul.mubr.f32.gmra.mrb[0].mxu0 %v4252
        %v4322 = vpop.f32.mrb[0].mxu0
        %v4323 = vadd.f32 0.0, %v4322
        %v4324 = vpop.f32.mrb[0].mxu0
        %4325 = vdwg.mxu0
        %v4326 = vmul.f32 %v4323, 0.35355338
        %v4327 = vsel %vm823, %v4326, -inf
        %4328 = vmax.xlane.f32.xlu0 %v4327
        %v4329 = vpop.xlane.xlu0 %4328
        %v4330 = vsub.f32 %v4326, %v4329
        %v4331 = vmul.f32 %v4330, 1.442695
        %v4332 = vpow.pop %v4331
        %v4333 = vsel %vm823, %v4332, 0.0
        %4334 = vadd.xlane.f32.xlu0 %v4333
        %v4335 = vpop.xlane.xlu0 %4334
        %v4336 = vrcp.pop %v4335
        %v4337 = vmul.f32 %v4332, %v4336
        %v4340 = vsel %vm823, %v4337, 0
        %4342 = vmatprep.subr.mxu0 0.0
        %4343 = vmatpush1.msra.mxu0 %v4251
        %4344 = vmatprep.subr.mxu0 0.0
        %4345 = vmatpush1.msra.mxu0 0.0
        %4346 = vmatprep.subr.mxu0 0.0
        %4347 = vmatpush1.msra.mxu0 0.0
        %4348 = vmatprep.subr.mxu0 0.0
        %4349 = vmatpush1.msra.mxu0 0.0
        %4350 = vmatprep.subr.mxu0 0.0
        %4351 = vmatpush1.msra.mxu0 0.0
        %4352 = vmatprep.subr.mxu0 0.0
        %4353 = vmatpush1.msra.mxu0 0.0
        %4354 = vmatprep.subr.mxu0 0.0
        %4355 = vmatpush1.msra.mxu0 0.0
        %4356 = vmatprep.subr.mxu0 0.0
        %4357 = vmatpush1.msra.mxu0 0.0
        %4358 = vmatprep.subr.mxu0 0.0
        %4359 = vmatpush1.msra.mxu0 0.0
        %4360 = vmatprep.subr.mxu0 0.0
        %4361 = vmatpush1.msra.mxu0 0.0
        %4362 = vmatprep.subr.mxu0 0.0
        %4363 = vmatpush1.msra.mxu0 0.0
        %4364 = vmatprep.subr.mxu0 0.0
        %4365 = vmatpush1.msra.mxu0 0.0
        %4366 = vmatprep.subr.mxu0 0.0
        %4367 = vmatpush1.msra.mxu0 0.0
        %4368 = vmatprep.subr.mxu0 0.0
        %4369 = vmatpush1.msra.mxu0 0.0
        %4370 = vmatprep.subr.mxu0 0.0
        %4371 = vmatpush1.msra.mxu0 0.0
        %4372 = vmatprep.subr.mxu0 0.0
        %4373 = vmatpush1.msra.mxu0 0.0
        %4374 = vmatprep.subr.mxu0 0.0
        %4375 = vmatpush1.msra.mxu0 0.0
        %4376 = vmatprep.subr.mxu0 0.0
        %4377 = vmatpush1.msra.mxu0 0.0
        %4378 = vmatprep.subr.mxu0 0.0
        %4379 = vmatpush1.msra.mxu0 0.0
        %4380 = vmatprep.subr.mxu0 0.0
        %4381 = vmatpush1.msra.mxu0 0.0
        %4382 = vmatprep.subr.mxu0 0.0
        %4383 = vmatpush1.msra.mxu0 0.0
        %4384 = vmatprep.subr.mxu0 0.0
        %4385 = vmatpush1.msra.mxu0 0.0
        %4386 = vmatprep.subr.mxu0 0.0
        %4387 = vmatpush1.msra.mxu0 0.0
        %4388 = vmatprep.subr.mxu0 0.0
        %4389 = vmatpush1.msra.mxu0 0.0
        %4390 = vmatprep.subr.mxu0 0.0
        %4391 = vmatpush1.msra.mxu0 0.0
        %4392 = vmatprep.subr.mxu0 0.0
        %4393 = vmatpush1.msra.mxu0 0.0
        %4394 = vmatprep.subr.mxu0 0.0
        %4395 = vmatpush1.msra.mxu0 0.0
        %4396 = vmatprep.subr.mxu0 0.0
        %4397 = vmatpush1.msra.mxu0 0.0
        %4398 = vmatprep.subr.mxu0 0.0
        %4399 = vmatpush1.msra.mxu0 0.0
        %4400 = vmatprep.subr.mxu0 0.0
        %4401 = vmatpush1.msra.mxu0 0.0
        %4402 = vmatprep.subr.mxu0 0.0
        %4403 = vmatpush1.msra.mxu0 0.0
        %4404 = vmatprep.subr.mxu0 0.0
        %4405 = vmatpush1.msra.mxu0 0.0
        %4406 = vmatprep.mubr.f32.mxu0 0.0
        %4407 = vmatmul.mubr.f32.gmra.mrb[0].mxu0 %v4340
        %v4408 = vpop.f32.mrb[0].mxu0
        %v4409 = vadd.f32 0.0, %v4408
        %v4410 = vpop.f32.mrb[0].mxu0
        %4411 = vdwg.mxu0
        %4412 = vrot.lane.b32.xlu0 %v3922, 104
        %v4413 = vpop.permute.xlu0 %4412
        %4414 = vrot.lane.b32.xlu0 %v3844, 104
        %v4415 = vpop.permute.xlu0 %4414
        %v4416 = vsel %vm823, %v4413, 0
        %v4418 = vsel %vm823, %v4415, 0
        %4420 = vmatprep.subr.mxu0 0.0
        %4421 = vmatpush1.xpose.msra.mxu0 %v4418
        %4422 = vmatprep.subr.mxu0 0.0
        %4423 = vmatpush1.xpose.msra.mxu0 0.0
        %4424 = vmatprep.subr.mxu0 0.0
        %4425 = vmatpush1.xpose.msra.mxu0 0.0
        %4426 = vmatprep.subr.mxu0 0.0
        %4427 = vmatpush1.xpose.msra.mxu0 0.0
        %4428 = vmatprep.subr.mxu0 0.0
        %4429 = vmatpush1.xpose.msra.mxu0 0.0
        %4430 = vmatprep.subr.mxu0 0.0
        %4431 = vmatpush1.xpose.msra.mxu0 0.0
        %4432 = vmatprep.subr.mxu0 0.0
        %4433 = vmatpush1.xpose.msra.mxu0 0.0
        %4434 = vmatprep.subr.mxu0 0.0
        %4435 = vmatpush1.xpose.msra.mxu0 0.0
        %4436 = vmatprep.subr.mxu0 0.0
        %4437 = vmatpush1.xpose.msra.mxu0 0.0
        %4438 = vmatprep.subr.mxu0 0.0
        %4439 = vmatpush1.xpose.msra.mxu0 0.0
        %4440 = vmatprep.subr.mxu0 0.0
        %4441 = vmatpush1.xpose.msra.mxu0 0.0
        %4442 = vmatprep.subr.mxu0 0.0
        %4443 = vmatpush1.xpose.msra.mxu0 0.0
        %4444 = vmatprep.subr.mxu0 0.0
        %4445 = vmatpush1.xpose.msra.mxu0 0.0
        %4446 = vmatprep.subr.mxu0 0.0
        %4447 = vmatpush1.xpose.msra.mxu0 0.0
        %4448 = vmatprep.subr.mxu0 0.0
        %4449 = vmatpush1.xpose.msra.mxu0 0.0
        %4450 = vmatprep.subr.mxu0 0.0
        %4451 = vmatpush1.xpose.msra.mxu0 0.0
        %4452 = vmatprep.subr.mxu0 0.0
        %4453 = vmatpush1.xpose.msra.mxu0 0.0
        %4454 = vmatprep.subr.mxu0 0.0
        %4455 = vmatpush1.xpose.msra.mxu0 0.0
        %4456 = vmatprep.subr.mxu0 0.0
        %4457 = vmatpush1.xpose.msra.mxu0 0.0
        %4458 = vmatprep.subr.mxu0 0.0
        %4459 = vmatpush1.xpose.msra.mxu0 0.0
        %4460 = vmatprep.subr.mxu0 0.0
        %4461 = vmatpush1.xpose.msra.mxu0 0.0
        %4462 = vmatprep.subr.mxu0 0.0
        %4463 = vmatpush1.xpose.msra.mxu0 0.0
        %4464 = vmatprep.subr.mxu0 0.0
        %4465 = vmatpush1.xpose.msra.mxu0 0.0
        %4466 = vmatprep.subr.mxu0 0.0
        %4467 = vmatpush1.xpose.msra.mxu0 0.0
        %4468 = vmatprep.subr.mxu0 0.0
        %4469 = vmatpush1.xpose.msra.mxu0 0.0
        %4470 = vmatprep.subr.mxu0 0.0
        %4471 = vmatpush1.xpose.msra.mxu0 0.0
        %4472 = vmatprep.subr.mxu0 0.0
        %4473 = vmatpush1.xpose.msra.mxu0 0.0
        %4474 = vmatprep.subr.mxu0 0.0
        %4475 = vmatpush1.xpose.msra.mxu0 0.0
        %4476 = vmatprep.subr.mxu0 0.0
        %4477 = vmatpush1.xpose.msra.mxu0 0.0
        %4478 = vmatprep.subr.mxu0 0.0
        %4479 = vmatpush1.xpose.msra.mxu0 0.0
        %4480 = vmatprep.subr.mxu0 0.0
        %4481 = vmatpush1.xpose.msra.mxu0 0.0
        %4482 = vmatprep.subr.mxu0 0.0
        %4483 = vmatpush1.xpose.msra.mxu0 0.0
        %4484 = vmatprep.mubr.f32.mxu0 0.0
        %4485 = vmatmul.mubr.f32.gmra.mrb[0].mxu0 %v4416
        %v4486 = vpop.f32.mrb[0].mxu0
        %v4487 = vadd.f32 0.0, %v4486
        %v4488 = vpop.f32.mrb[0].mxu0
        %4489 = vdwg.mxu0
        %v4490 = vmul.f32 %v4487, 0.35355338
        %v4491 = vsel %vm823, %v4490, -inf
        %4492 = vmax.xlane.f32.xlu0 %v4491
        %v4493 = vpop.xlane.xlu0 %4492
        %v4494 = vsub.f32 %v4490, %v4493
        %v4495 = vmul.f32 %v4494, 1.442695
        %v4496 = vpow.pop %v4495
        %v4497 = vsel %vm823, %v4496, 0.0
        %4498 = vadd.xlane.f32.xlu0 %v4497
        %v4499 = vpop.xlane.xlu0 %4498
        %v4500 = vrcp.pop %v4499
        %v4501 = vmul.f32 %v4496, %v4500
        %v4504 = vsel %vm823, %v4501, 0
        %4506 = vmatprep.subr.mxu0 0.0
        %4507 = vmatpush1.msra.mxu0 %v4415
        %4508 = vmatprep.subr.mxu0 0.0
        %4509 = vmatpush1.msra.mxu0 0.0
        %4510 = vmatprep.subr.mxu0 0.0
        %4511 = vmatpush1.msra.mxu0 0.0
        %4512 = vmatprep.subr.mxu0 0.0
        %4513 = vmatpush1.msra.mxu0 0.0
        %4514 = vmatprep.subr.mxu0 0.0
        %4515 = vmatpush1.msra.mxu0 0.0
        %4516 = vmatprep.subr.mxu0 0.0
        %4517 = vmatpush1.msra.mxu0 0.0
        %4518 = vmatprep.subr.mxu0 0.0
        %4519 = vmatpush1.msra.mxu0 0.0
        %4520 = vmatprep.subr.mxu0 0.0
        %4521 = vmatpush1.msra.mxu0 0.0
        %4522 = vmatprep.subr.mxu0 0.0
        %4523 = vmatpush1.msra.mxu0 0.0
        %4524 = vmatprep.subr.mxu0 0.0
        %4525 = vmatpush1.msra.mxu0 0.0
        %4526 = vmatprep.subr.mxu0 0.0
        %4527 = vmatpush1.msra.mxu0 0.0
        %4528 = vmatprep.subr.mxu0 0.0
        %4529 = vmatpush1.msra.mxu0 0.0
        %4530 = vmatprep.subr.mxu0 0.0
        %4531 = vmatpush1.msra.mxu0 0.0
        %4532 = vmatprep.subr.mxu0 0.0
        %4533 = vmatpush1.msra.mxu0 0.0
        %4534 = vmatprep.subr.mxu0 0.0
        %4535 = vmatpush1.msra.mxu0 0.0
        %4536 = vmatprep.subr.mxu0 0.0
        %4537 = vmatpush1.msra.mxu0 0.0
        %4538 = vmatprep.subr.mxu0 0.0
        %4539 = vmatpush1.msra.mxu0 0.0
        %4540 = vmatprep.subr.mxu0 0.0
        %4541 = vmatpush1.msra.mxu0 0.0
        %4542 = vmatprep.subr.mxu0 0.0
        %4543 = vmatpush1.msra.mxu0 0.0
        %4544 = vmatprep.subr.mxu0 0.0
        %4545 = vmatpush1.msra.mxu0 0.0
        %4546 = vmatprep.subr.mxu0 0.0
        %4547 = vmatpush1.msra.mxu0 0.0
        %4548 = vmatprep.subr.mxu0 0.0
        %4549 = vmatpush1.msra.mxu0 0.0
        %4550 = vmatprep.subr.mxu0 0.0
        %4551 = vmatpush1.msra.mxu0 0.0
        %4552 = vmatprep.subr.mxu0 0.0
        %4553 = vmatpush1.msra.mxu0 0.0
        %4554 = vmatprep.subr.mxu0 0.0
        %4555 = vmatpush1.msra.mxu0 0.0
        %4556 = vmatprep.subr.mxu0 0.0
        %4557 = vmatpush1.msra.mxu0 0.0
        %4558 = vmatprep.subr.mxu0 0.0
        %4559 = vmatpush1.msra.mxu0 0.0
        %4560 = vmatprep.subr.mxu0 0.0
        %4561 = vmatpush1.msra.mxu0 0.0
        %4562 = vmatprep.subr.mxu0 0.0
        %4563 = vmatpush1.msra.mxu0 0.0
        %4564 = vmatprep.subr.mxu0 0.0
        %4565 = vmatpush1.msra.mxu0 0.0
        %4566 = vmatprep.subr.mxu0 0.0
        %4567 = vmatpush1.msra.mxu0 0.0
        %4568 = vmatprep.subr.mxu0 0.0
        %4569 = vmatpush1.msra.mxu0 0.0
        %4570 = vmatprep.mubr.f32.mxu0 0.0
        %4571 = vmatmul.mubr.f32.gmra.mrb[0].mxu0 %v4504
        %v4572 = vpop.f32.mrb[0].mxu0
        %v4573 = vadd.f32 0.0, %v4572
        %v4574 = vpop.f32.mrb[0].mxu0
        %4575 = vdwg.mxu0
        %4577 = vrot.lane.b32.xlu0 %v4245, 8
        %v4578 = vpop.permute.xlu0 %4577
        %4581 = vrot.lane.b32.xlu0 %v4409, 16
        %v4582 = vpop.permute.xlu0 %4581
        %4585 = vrot.lane.b32.xlu0 %v4573, 24
        %v4586 = vpop.permute.xlu0 %4585
        %v4588 = vsel %vm823, %v4081, %v4578
        %v4589 = vsel %vm1490, %v4588, %v4582
        %v4590 = vsel %vm1492, %v4589, %v4586
        %v4592 = vlaneseq
        %v4593 = vshrl.u32 %v4592, 7
        %v4594 = vsub.s32 0, %v4593
        %v4595 = vrot.slane %v3687, %v4594
        %v4598 = vsel %vm594, %v4590, 0
        %4600 = vmatprep.subr.mxu0 0.0
        %4601 = vmatpush1.msra.mxu0 %v3678
        %4602 = vmatprep.subr.mxu0 0.0
        %4603 = vmatpush1.msra.mxu0 %v3679
        %4604 = vmatprep.subr.mxu0 0.0
        %4605 = vmatpush1.msra.mxu0 %v3680
        %4606 = vmatprep.subr.mxu0 0.0
        %4607 = vmatpush1.msra.mxu0 %v3681
        %4608 = vmatprep.subr.mxu0 0.0
        %4609 = vmatpush1.msra.mxu0 0.0
        %4610 = vmatprep.subr.mxu0 0.0
        %4611 = vmatpush1.msra.mxu0 0.0
        %4612 = vmatprep.subr.mxu0 0.0
        %4613 = vmatpush1.msra.mxu0 0.0
        %4614 = vmatprep.subr.mxu0 0.0
        %4615 = vmatpush1.msra.mxu0 0.0
        %4616 = vmatprep.subr.mxu0 0.0
        %4617 = vmatpush1.msra.mxu0 0.0
        %4618 = vmatprep.subr.mxu0 0.0
        %4619 = vmatpush1.msra.mxu0 0.0
        %4620 = vmatprep.subr.mxu0 0.0
        %4621 = vmatpush1.msra.mxu0 0.0
        %4622 = vmatprep.subr.mxu0 0.0
        %4623 = vmatpush1.msra.mxu0 0.0
        %4624 = vmatprep.subr.mxu0 0.0
        %4625 = vmatpush1.msra.mxu0 0.0
        %4626 = vmatprep.subr.mxu0 0.0
        %4627 = vmatpush1.msra.mxu0 0.0
        %4628 = vmatprep.subr.mxu0 0.0
        %4629 = vmatpush1.msra.mxu0 0.0
        %4630 = vmatprep.subr.mxu0 0.0
        %4631 = vmatpush1.msra.mxu0 0.0
        %4632 = vmatprep.subr.mxu0 0.0
        %4633 = vmatpush1.msra.mxu0 0.0
        %4634 = vmatprep.subr.mxu0 0.0
        %4635 = vmatpush1.msra.mxu0 0.0
        %4636 = vmatprep.subr.mxu0 0.0
        %4637 = vmatpush1.msra.mxu0 0.0
        %4638 = vmatprep.subr.mxu0 0.0
        %4639 = vmatpush1.msra.mxu0 0.0
        %4640 = vmatprep.subr.mxu0 0.0
        %4641 = vmatpush1.msra.mxu0 0.0
        %4642 = vmatprep.subr.mxu0 0.0
        %4643 = vmatpush1.msra.mxu0 0.0
        %4644 = vmatprep.subr.mxu0 0.0
        %4645 = vmatpush1.msra.mxu0 0.0
        %4646 = vmatprep.subr.mxu0 0.0
        %4647 = vmatpush1.msra.mxu0 0.0
        %4648 = vmatprep.subr.mxu0 0.0
        %4649 = vmatpush1.msra.mxu0 0.0
        %4650 = vmatprep.subr.mxu0 0.0
        %4651 = vmatpush1.msra.mxu0 0.0
        %4652 = vmatprep.subr.mxu0 0.0
        %4653 = vmatpush1.msra.mxu0 0.0
        %4654 = vmatprep.subr.mxu0 0.0
        %4655 = vmatpush1.msra.mxu0 0.0
        %4656 = vmatprep.subr.mxu0 0.0
        %4657 = vmatpush1.msra.mxu0 0.0
        %4658 = vmatprep.subr.mxu0 0.0
        %4659 = vmatpush1.msra.mxu0 0.0
        %4660 = vmatprep.subr.mxu0 0.0
        %4661 = vmatpush1.msra.mxu0 0.0
        %4662 = vmatprep.subr.mxu0 0.0
        %4663 = vmatpush1.msra.mxu0 0.0
        %4664 = vmatprep.mubr.f32.mxu0 0.0
        %4665 = vmatmul.mubr.f32.gmra.mrb[0].mxu0 %v4598
        %v4666 = vpop.f32.mrb[0].mxu0
        %v4667 = vadd.f32 %v4595, %v4666
        %v4668 = vpop.f32.mrb[0].mxu0
        %4669 = vdwg.mxu0
        %v4670 = vadd.f32 %v4667, %v3666
        %v4671 = vsel %vm594, %v4670, 0.0
        %4672 = vadd.xlane.f32.xlu0 %v4671
        %v4673 = vpop.xlane.xlu0 %4672
        %v4674 = vmul.f32 %v4673, %v1577
        %v4675 = vsub.f32 %v4670, %v4674
        %v4676 = vmul.f32 %v4675, %v4675
        %v4677 = vsel %vm594, %v4676, 0.0
        %4678 = vadd.xlane.f32.xlu0 %v4677
        %v4679 = vpop.xlane.xlu0 %4678
        %v4680 = vmul.f32 %v4679, %v1577
        %v4681 = vadd.f32 %v4680, 1e-05
        %v4682 = vrsqrt.pop %v4681
        %v4683 = vmul.f32 %v4675, %v4682
        %v4685 = vlaneseq
        %v4686 = vshrl.u32 %v4685, 7
        %v4687 = vsub.s32 0, %v4686
        %v4688 = vrot.slane %v3689, %v4687
        %v4690 = vmul.f32 %v4683, %v4688
        %v4692 = vlaneseq
        %v4693 = vshrl.u32 %v4692, 7
        %v4694 = vsub.s32 0, %v4693
        %v4695 = vrot.slane %v3691, %v4694
        %v4697 = vadd.f32 %v4690, %v4695
        %v4698 = vmax.f32 %v4697, 0.0
        %s4699 = scalar_lea.vmem [#allocation10], 128
        %v4700 = vld [vmem:[%s4699] sm:$0xff]
        %v4701 = vld [vmem:[%s4699 + $0x8] sm:$0xff]
        %v4702 = vld [vmem:[%s4699 + $0x10] sm:$0xff]
        %v4703 = vld [vmem:[%s4699 + $0x18] sm:$0xff]
        %s4704 = scalar_lea.vmem [#allocation11], 128
        %v4705 = vld [vmem:[%s4704] sm:$0xff]
        %v4706 = vld [vmem:[%s4704 + $0x8] sm:$0xff]
        %v4707 = vld [vmem:[%s4704 + $0x10] sm:$0xff]
        %v4708 = vld [vmem:[%s4704 + $0x18] sm:$0xff]
        %s4709 = scalar_lea.vmem [#allocation13], 128
        %v4710 = vld [vmem:[%s4709] sm:$0xff]
        %v4711 = vld [vmem:[%s4709 + $0x8] sm:$0xff]
        %v4712 = vld [vmem:[%s4709 + $0x10] sm:$0xff]
        %v4713 = vld [vmem:[%s4709 + $0x18] sm:$0xff]
        %s4714 = scalar_lea.vmem %s6, 4
        %v4715 = vld [vmem:[%s4714] sm:$0x1]
        %s4716 = scalar_lea.vmem %s8, 4
        %v4717 = vld [vmem:[%s4716] sm:$0x1]
        %s4718 = scalar_lea.vmem %s10, 4
        %v4719 = vld [vmem:[%s4718] sm:$0x1]
        %s4720 = scalar_lea.vmem %s11, 4
        %v4721 = vld [vmem:[%s4720] sm:$0x1]
        %s4722 = scalar_lea.vmem %s12, 4
        %v4723 = vld [vmem:[%s4722] sm:$0x1]
        %v4725 = vlaneseq
        %v4726 = vshrl.u32 %v4725, 7
        %v4727 = vsub.s32 0, %v4726
        %v4728 = vrot.slane %v4715, %v4727
        %4730 = vmatprep.subr.mxu0 0.0
        %4731 = vmatpush1.msra.mxu0 %v4700
        %4732 = vmatprep.subr.mxu0 0.0
        %4733 = vmatpush1.msra.mxu0 %v4701
        %4734 = vmatprep.subr.mxu0 0.0
        %4735 = vmatpush1.msra.mxu0 %v4702
        %4736 = vmatprep.subr.mxu0 0.0
        %4737 = vmatpush1.msra.mxu0 %v4703
        %4738 = vmatprep.subr.mxu0 0.0
        %4739 = vmatpush1.msra.mxu0 0.0
        %4740 = vmatprep.subr.mxu0 0.0
        %4741 = vmatpush1.msra.mxu0 0.0
        %4742 = vmatprep.subr.mxu0 0.0
        %4743 = vmatpush1.msra.mxu0 0.0
        %4744 = vmatprep.subr.mxu0 0.0
        %4745 = vmatpush1.msra.mxu0 0.0
        %4746 = vmatprep.subr.mxu0 0.0
        %4747 = vmatpush1.msra.mxu0 0.0
        %4748 = vmatprep.subr.mxu0 0.0
        %4749 = vmatpush1.msra.mxu0 0.0
        %4750 = vmatprep.subr.mxu0 0.0
        %4751 = vmatpush1.msra.mxu0 0.0
        %4752 = vmatprep.subr.mxu0 0.0
        %4753 = vmatpush1.msra.mxu0 0.0
        %4754 = vmatprep.subr.mxu0 0.0
        %4755 = vmatpush1.msra.mxu0 0.0
        %4756 = vmatprep.subr.mxu0 0.0
        %4757 = vmatpush1.msra.mxu0 0.0
        %4758 = vmatprep.subr.mxu0 0.0
        %4759 = vmatpush1.msra.mxu0 0.0
        %4760 = vmatprep.subr.mxu0 0.0
        %4761 = vmatpush1.msra.mxu0 0.0
        %4762 = vmatprep.subr.mxu0 0.0
        %4763 = vmatpush1.msra.mxu0 0.0
        %4764 = vmatprep.subr.mxu0 0.0
        %4765 = vmatpush1.msra.mxu0 0.0
        %4766 = vmatprep.subr.mxu0 0.0
        %4767 = vmatpush1.msra.mxu0 0.0
        %4768 = vmatprep.subr.mxu0 0.0
        %4769 = vmatpush1.msra.mxu0 0.0
        %4770 = vmatprep.subr.mxu0 0.0
        %4771 = vmatpush1.msra.mxu0 0.0
        %4772 = vmatprep.subr.mxu0 0.0
        %4773 = vmatpush1.msra.mxu0 0.0
        %4774 = vmatprep.subr.mxu0 0.0
        %4775 = vmatpush1.msra.mxu0 0.0
        %4776 = vmatprep.subr.mxu0 0.0
        %4777 = vmatpush1.msra.mxu0 0.0
        %4778 = vmatprep.subr.mxu0 0.0
        %4779 = vmatpush1.msra.mxu0 0.0
        %4780 = vmatprep.subr.mxu0 0.0
        %4781 = vmatpush1.msra.mxu0 0.0
        %4782 = vmatprep.subr.mxu0 0.0
        %4783 = vmatpush1.msra.mxu0 0.0
        %4784 = vmatprep.subr.mxu0 0.0
        %4785 = vmatpush1.msra.mxu0 0.0
        %4786 = vmatprep.subr.mxu0 0.0
        %4787 = vmatpush1.msra.mxu0 0.0
        %4788 = vmatprep.subr.mxu0 0.0
        %4789 = vmatpush1.msra.mxu0 0.0
        %4790 = vmatprep.subr.mxu0 0.0
        %4791 = vmatpush1.msra.mxu0 0.0
        %4792 = vmatprep.subr.mxu0 0.0
        %4793 = vmatpush1.msra.mxu0 0.0
        %4794 = vmatprep.mubr.f32.mxu0 0.0
        %4795 = vmatmul.mubr.f32.gmra.mrb[0].mxu0 %v596
        %v4796 = vpop.f32.mrb[0].mxu0
        %v4797 = vadd.f32 %v4728, %v4796
        %v4798 = vpop.f32.mrb[0].mxu0
        %4799 = vdwg.mxu0
        %v4801 = vlaneseq
        %v4802 = vshrl.u32 %v4801, 7
        %v4803 = vsub.s32 0, %v4802
        %v4804 = vrot.slane %v4717, %v4803
        %v4807 = vsel %vm594, %v4698, 0
        %4809 = vmatprep.subr.mxu0 0.0
        %4810 = vmatpush1.msra.mxu0 %v4705
        %4811 = vmatprep.subr.mxu0 0.0
        %4812 = vmatpush1.msra.mxu0 %v4706
        %4813 = vmatprep.subr.mxu0 0.0
        %4814 = vmatpush1.msra.mxu0 %v4707
        %4815 = vmatprep.subr.mxu0 0.0
        %4816 = vmatpush1.msra.mxu0 %v4708
        %4817 = vmatprep.subr.mxu0 0.0
        %4818 = vmatpush1.msra.mxu0 0.0
        %4819 = vmatprep.subr.mxu0 0.0
        %4820 = vmatpush1.msra.mxu0 0.0
        %4821 = vmatprep.subr.mxu0 0.0
        %4822 = vmatpush1.msra.mxu0 0.0
        %4823 = vmatprep.subr.mxu0 0.0
        %4824 = vmatpush1.msra.mxu0 0.0
        %4825 = vmatprep.subr.mxu0 0.0
        %4826 = vmatpush1.msra.mxu0 0.0
        %4827 = vmatprep.subr.mxu0 0.0
        %4828 = vmatpush1.msra.mxu0 0.0
        %4829 = vmatprep.subr.mxu0 0.0
        %4830 = vmatpush1.msra.mxu0 0.0
        %4831 = vmatprep.subr.mxu0 0.0
        %4832 = vmatpush1.msra.mxu0 0.0
        %4833 = vmatprep.subr.mxu0 0.0
        %4834 = vmatpush1.msra.mxu0 0.0
        %4835 = vmatprep.subr.mxu0 0.0
        %4836 = vmatpush1.msra.mxu0 0.0
        %4837 = vmatprep.subr.mxu0 0.0
        %4838 = vmatpush1.msra.mxu0 0.0
        %4839 = vmatprep.subr.mxu0 0.0
        %4840 = vmatpush1.msra.mxu0 0.0
        %4841 = vmatprep.subr.mxu0 0.0
        %4842 = vmatpush1.msra.mxu0 0.0
        %4843 = vmatprep.subr.mxu0 0.0
        %4844 = vmatpush1.msra.mxu0 0.0
        %4845 = vmatprep.subr.mxu0 0.0
        %4846 = vmatpush1.msra.mxu0 0.0
        %4847 = vmatprep.subr.mxu0 0.0
        %4848 = vmatpush1.msra.mxu0 0.0
        %4849 = vmatprep.subr.mxu0 0.0
        %4850 = vmatpush1.msra.mxu0 0.0
        %4851 = vmatprep.subr.mxu0 0.0
        %4852 = vmatpush1.msra.mxu0 0.0
        %4853 = vmatprep.subr.mxu0 0.0
        %4854 = vmatpush1.msra.mxu0 0.0
        %4855 = vmatprep.subr.mxu0 0.0
        %4856 = vmatpush1.msra.mxu0 0.0
        %4857 = vmatprep.subr.mxu0 0.0
        %4858 = vmatpush1.msra.mxu0 0.0
        %4859 = vmatprep.subr.mxu0 0.0
        %4860 = vmatpush1.msra.mxu0 0.0
        %4861 = vmatprep.subr.mxu0 0.0
        %4862 = vmatpush1.msra.mxu0 0.0
        %4863 = vmatprep.subr.mxu0 0.0
        %4864 = vmatpush1.msra.mxu0 0.0
        %4865 = vmatprep.subr.mxu0 0.0
        %4866 = vmatpush1.msra.mxu0 0.0
        %4867 = vmatprep.subr.mxu0 0.0
        %4868 = vmatpush1.msra.mxu0 0.0
        %4869 = vmatprep.subr.mxu0 0.0
        %4870 = vmatpush1.msra.mxu0 0.0
        %4871 = vmatprep.subr.mxu0 0.0
        %4872 = vmatpush1.msra.mxu0 0.0
        %4873 = vmatprep.mubr.f32.mxu0 0.0
        %4874 = vmatmul.mubr.f32.gmra.mrb[0].mxu0 %v4807
        %v4875 = vpop.f32.mrb[0].mxu0
        %v4876 = vadd.f32 %v4804, %v4875
        %v4877 = vpop.f32.mrb[0].mxu0
        %4878 = vdwg.mxu0
        %v4879 = vmul.f32 %v4797, %v565
        %v4881 = vsel %vm594, %v4797, 0
        %4883 = vmatprep.subr.mxu0 0.0
        %4884 = vmatpush1.msra.mxu0 %v567
        %4885 = vmatprep.subr.mxu0 0.0
        %4886 = vmatpush1.msra.mxu0 %v568
        %4887 = vmatprep.subr.mxu0 0.0
        %4888 = vmatpush1.msra.mxu0 %v569
        %4889 = vmatprep.subr.mxu0 0.0
        %4890 = vmatpush1.msra.mxu0 %v570
        %4891 = vmatprep.subr.mxu0 0.0
        %4892 = vmatpush1.msra.mxu0 0.0
        %4893 = vmatprep.subr.mxu0 0.0
        %4894 = vmatpush1.msra.mxu0 0.0
        %4895 = vmatprep.subr.mxu0 0.0
        %4896 = vmatpush1.msra.mxu0 0.0
        %4897 = vmatprep.subr.mxu0 0.0
        %4898 = vmatpush1.msra.mxu0 0.0
        %4899 = vmatprep.subr.mxu0 0.0
        %4900 = vmatpush1.msra.mxu0 0.0
        %4901 = vmatprep.subr.mxu0 0.0
        %4902 = vmatpush1.msra.mxu0 0.0
        %4903 = vmatprep.subr.mxu0 0.0
        %4904 = vmatpush1.msra.mxu0 0.0
        %4905 = vmatprep.subr.mxu0 0.0
        %4906 = vmatpush1.msra.mxu0 0.0
        %4907 = vmatprep.subr.mxu0 0.0
        %4908 = vmatpush1.msra.mxu0 0.0
        %4909 = vmatprep.subr.mxu0 0.0
        %4910 = vmatpush1.msra.mxu0 0.0
        %4911 = vmatprep.subr.mxu0 0.0
        %4912 = vmatpush1.msra.mxu0 0.0
        %4913 = vmatprep.subr.mxu0 0.0
        %4914 = vmatpush1.msra.mxu0 0.0
        %4915 = vmatprep.subr.mxu0 0.0
        %4916 = vmatpush1.msra.mxu0 0.0
        %4917 = vmatprep.subr.mxu0 0.0
        %4918 = vmatpush1.msra.mxu0 0.0
        %4919 = vmatprep.subr.mxu0 0.0
        %4920 = vmatpush1.msra.mxu0 0.0
        %4921 = vmatprep.subr.mxu0 0.0
        %4922 = vmatpush1.msra.mxu0 0.0
        %4923 = vmatprep.subr.mxu0 0.0
        %4924 = vmatpush1.msra.mxu0 0.0
        %4925 = vmatprep.subr.mxu0 0.0
        %4926 = vmatpush1.msra.mxu0 0.0
        %4927 = vmatprep.subr.mxu0 0.0
        %4928 = vmatpush1.msra.mxu0 0.0
        %4929 = vmatprep.subr.mxu0 0.0
        %4930 = vmatpush1.msra.mxu0 0.0
        %4931 = vmatprep.subr.mxu0 0.0
        %4932 = vmatpush1.msra.mxu0 0.0
        %4933 = vmatprep.subr.mxu0 0.0
        %4934 = vmatpush1.msra.mxu0 0.0
        %4935 = vmatprep.subr.mxu0 0.0
        %4936 = vmatpush1.msra.mxu0 0.0
        %4937 = vmatprep.subr.mxu0 0.0
        %4938 = vmatpush1.msra.mxu0 0.0
        %4939 = vmatprep.subr.mxu0 0.0
        %4940 = vmatpush1.msra.mxu0 0.0
        %4941 = vmatprep.subr.mxu0 0.0
        %4942 = vmatpush1.msra.mxu0 0.0
        %4943 = vmatprep.subr.mxu0 0.0
        %4944 = vmatpush1.msra.mxu0 0.0
        %4945 = vmatprep.subr.mxu0 0.0
        %4946 = vmatpush1.msra.mxu0 0.0
        %4947 = vmatprep.mubr.f32.mxu0 0.0
        %4948 = vmatmul.mubr.f32.gmra.mrb[0].mxu0 %v4881
        %v4949 = vpop.f32.mrb[0].mxu0
        %v4950 = vadd.f32 0.0, %v4949
        %v4951 = vpop.f32.mrb[0].mxu0
        %4952 = vdwg.mxu0
        %v4953 = vmul.f32 %v4950, %v566
        %v4954 = vadd.f32 %v4879, %v4953
        %v4956 = vsel %vm823, %v4954, 0
        %v4959 = vsel %vm823, %v4876, 0
        %4961 = vmatprep.subr.mxu0 0.0
        %4962 = vmatpush1.xpose.msra.mxu0 %v4959
        %4963 = vmatprep.subr.mxu0 0.0
        %4964 = vmatpush1.xpose.msra.mxu0 0.0
        %4965 = vmatprep.subr.mxu0 0.0
        %4966 = vmatpush1.xpose.msra.mxu0 0.0
        %4967 = vmatprep.subr.mxu0 0.0
        %4968 = vmatpush1.xpose.msra.mxu0 0.0
        %4969 = vmatprep.subr.mxu0 0.0
        %4970 = vmatpush1.xpose.msra.mxu0 0.0
        %4971 = vmatprep.subr.mxu0 0.0
        %4972 = vmatpush1.xpose.msra.mxu0 0.0
        %4973 = vmatprep.subr.mxu0 0.0
        %4974 = vmatpush1.xpose.msra.mxu0 0.0
        %4975 = vmatprep.subr.mxu0 0.0
        %4976 = vmatpush1.xpose.msra.mxu0 0.0
        %4977 = vmatprep.subr.mxu0 0.0
        %4978 = vmatpush1.xpose.msra.mxu0 0.0
        %4979 = vmatprep.subr.mxu0 0.0
        %4980 = vmatpush1.xpose.msra.mxu0 0.0
        %4981 = vmatprep.subr.mxu0 0.0
        %4982 = vmatpush1.xpose.msra.mxu0 0.0
        %4983 = vmatprep.subr.mxu0 0.0
        %4984 = vmatpush1.xpose.msra.mxu0 0.0
        %4985 = vmatprep.subr.mxu0 0.0
        %4986 = vmatpush1.xpose.msra.mxu0 0.0
        %4987 = vmatprep.subr.mxu0 0.0
        %4988 = vmatpush1.xpose.msra.mxu0 0.0
        %4989 = vmatprep.subr.mxu0 0.0
        %4990 = vmatpush1.xpose.msra.mxu0 0.0
        %4991 = vmatprep.subr.mxu0 0.0
        %4992 = vmatpush1.xpose.msra.mxu0 0.0
        %4993 = vmatprep.subr.mxu0 0.0
        %4994 = vmatpush1.xpose.msra.mxu0 0.0
        %4995 = vmatprep.subr.mxu0 0.0
        %4996 = vmatpush1.xpose.msra.mxu0 0.0
        %4997 = vmatprep.subr.mxu0 0.0
        %4998 = vmatpush1.xpose.msra.mxu0 0.0
        %4999 = vmatprep.subr.mxu0 0.0
        %5000 = vmatpush1.xpose.msra.mxu0 0.0
        %5001 = vmatprep.subr.mxu0 0.0
        %5002 = vmatpush1.xpose.msra.mxu0 0.0
        %5003 = vmatprep.subr.mxu0 0.0
        %5004 = vmatpush1.xpose.msra.mxu0 0.0
        %5005 = vmatprep.subr.mxu0 0.0
        %5006 = vmatpush1.xpose.msra.mxu0 0.0
        %5007 = vmatprep.subr.mxu0 0.0
        %5008 = vmatpush1.xpose.msra.mxu0 0.0
        %5009 = vmatprep.subr.mxu0 0.0
        %5010 = vmatpush1.xpose.msra.mxu0 0.0
        %5011 = vmatprep.subr.mxu0 0.0
        %5012 = vmatpush1.xpose.msra.mxu0 0.0
        %5013 = vmatprep.subr.mxu0 0.0
        %5014 = vmatpush1.xpose.msra.mxu0 0.0
        %5015 = vmatprep.subr.mxu0 0.0
        %5016 = vmatpush1.xpose.msra.mxu0 0.0
        %5017 = vmatprep.subr.mxu0 0.0
        %5018 = vmatpush1.xpose.msra.mxu0 0.0
        %5019 = vmatprep.subr.mxu0 0.0
        %5020 = vmatpush1.xpose.msra.mxu0 0.0
        %5021 = vmatprep.subr.mxu0 0.0
        %5022 = vmatpush1.xpose.msra.mxu0 0.0
        %5023 = vmatprep.subr.mxu0 0.0
        %5024 = vmatpush1.xpose.msra.mxu0 0.0
        %5025 = vmatprep.mubr.f32.mxu0 0.0
        %5026 = vmatmul.mubr.f32.gmra.mrb[0].mxu0 %v4956
        %v5027 = vpop.f32.mrb[0].mxu0
        %v5028 = vadd.f32 0.0, %v5027
        %v5029 = vpop.f32.mrb[0].mxu0
        %5030 = vdwg.mxu0
        %v5031 = vmul.f32 %v5028, 0.35355338
        %v5032 = vsel %vm823, %v5031, -inf
        %5033 = vmax.xlane.f32.xlu0 %v5032
        %v5034 = vpop.xlane.xlu0 %5033
        %v5035 = vsub.f32 %v5031, %v5034
        %v5036 = vmul.f32 %v5035, 1.442695
        %v5037 = vpow.pop %v5036
        %v5038 = vsel %vm823, %v5037, 0.0
        %5039 = vadd.xlane.f32.xlu0 %v5038
        %v5040 = vpop.xlane.xlu0 %5039
        %v5041 = vrcp.pop %v5040
        %v5042 = vmul.f32 %v5037, %v5041
        %v5044 = vsel %vm823, %v5042, 0
        %5046 = vmatprep.subr.mxu0 0.0
        %5047 = vmatpush1.msra.mxu0 %v4876
        %5048 = vmatprep.subr.mxu0 0.0
        %5049 = vmatpush1.msra.mxu0 0.0
        %5050 = vmatprep.subr.mxu0 0.0
        %5051 = vmatpush1.msra.mxu0 0.0
        %5052 = vmatprep.subr.mxu0 0.0
        %5053 = vmatpush1.msra.mxu0 0.0
        %5054 = vmatprep.subr.mxu0 0.0
        %5055 = vmatpush1.msra.mxu0 0.0
        %5056 = vmatprep.subr.mxu0 0.0
        %5057 = vmatpush1.msra.mxu0 0.0
        %5058 = vmatprep.subr.mxu0 0.0
        %5059 = vmatpush1.msra.mxu0 0.0
        %5060 = vmatprep.subr.mxu0 0.0
        %5061 = vmatpush1.msra.mxu0 0.0
        %5062 = vmatprep.subr.mxu0 0.0
        %5063 = vmatpush1.msra.mxu0 0.0
        %5064 = vmatprep.subr.mxu0 0.0
        %5065 = vmatpush1.msra.mxu0 0.0
        %5066 = vmatprep.subr.mxu0 0.0
        %5067 = vmatpush1.msra.mxu0 0.0
        %5068 = vmatprep.subr.mxu0 0.0
        %5069 = vmatpush1.msra.mxu0 0.0
        %5070 = vmatprep.subr.mxu0 0.0
        %5071 = vmatpush1.msra.mxu0 0.0
        %5072 = vmatprep.subr.mxu0 0.0
        %5073 = vmatpush1.msra.mxu0 0.0
        %5074 = vmatprep.subr.mxu0 0.0
        %5075 = vmatpush1.msra.mxu0 0.0
        %5076 = vmatprep.subr.mxu0 0.0
        %5077 = vmatpush1.msra.mxu0 0.0
        %5078 = vmatprep.subr.mxu0 0.0
        %5079 = vmatpush1.msra.mxu0 0.0
        %5080 = vmatprep.subr.mxu0 0.0
        %5081 = vmatpush1.msra.mxu0 0.0
        %5082 = vmatprep.subr.mxu0 0.0
        %5083 = vmatpush1.msra.mxu0 0.0
        %5084 = vmatprep.subr.mxu0 0.0
        %5085 = vmatpush1.msra.mxu0 0.0
        %5086 = vmatprep.subr.mxu0 0.0
        %5087 = vmatpush1.msra.mxu0 0.0
        %5088 = vmatprep.subr.mxu0 0.0
        %5089 = vmatpush1.msra.mxu0 0.0
        %5090 = vmatprep.subr.mxu0 0.0
        %5091 = vmatpush1.msra.mxu0 0.0
        %5092 = vmatprep.subr.mxu0 0.0
        %5093 = vmatpush1.msra.mxu0 0.0
        %5094 = vmatprep.subr.mxu0 0.0
        %5095 = vmatpush1.msra.mxu0 0.0
        %5096 = vmatprep.subr.mxu0 0.0
        %5097 = vmatpush1.msra.mxu0 0.0
        %5098 = vmatprep.subr.mxu0 0.0
        %5099 = vmatpush1.msra.mxu0 0.0
        %5100 = vmatprep.subr.mxu0 0.0
        %5101 = vmatpush1.msra.mxu0 0.0
        %5102 = vmatprep.subr.mxu0 0.0
        %5103 = vmatpush1.msra.mxu0 0.0
        %5104 = vmatprep.subr.mxu0 0.0
        %5105 = vmatpush1.msra.mxu0 0.0
        %5106 = vmatprep.subr.mxu0 0.0
        %5107 = vmatpush1.msra.mxu0 0.0
        %5108 = vmatprep.subr.mxu0 0.0
        %5109 = vmatpush1.msra.mxu0 0.0
        %5110 = vmatprep.mubr.f32.mxu0 0.0
        %5111 = vmatmul.mubr.f32.gmra.mrb[0].mxu0 %v5044
        %v5112 = vpop.f32.mrb[0].mxu0
        %v5113 = vadd.f32 0.0, %v5112
        %v5114 = vpop.f32.mrb[0].mxu0
        %5115 = vdwg.mxu0
        %5116 = vrot.lane.b32.xlu0 %v4954, 120
        %v5117 = vpop.permute.xlu0 %5116
        %5118 = vrot.lane.b32.xlu0 %v4876, 120
        %v5119 = vpop.permute.xlu0 %5118
        %v5120 = vsel %vm823, %v5117, 0
        %v5122 = vsel %vm823, %v5119, 0
        %5124 = vmatprep.subr.mxu0 0.0
        %5125 = vmatpush1.xpose.msra.mxu0 %v5122
        %5126 = vmatprep.subr.mxu0 0.0
        %5127 = vmatpush1.xpose.msra.mxu0 0.0
        %5128 = vmatprep.subr.mxu0 0.0
        %5129 = vmatpush1.xpose.msra.mxu0 0.0
        %5130 = vmatprep.subr.mxu0 0.0
        %5131 = vmatpush1.xpose.msra.mxu0 0.0
        %5132 = vmatprep.subr.mxu0 0.0
        %5133 = vmatpush1.xpose.msra.mxu0 0.0
        %5134 = vmatprep.subr.mxu0 0.0
        %5135 = vmatpush1.xpose.msra.mxu0 0.0
        %5136 = vmatprep.subr.mxu0 0.0
        %5137 = vmatpush1.xpose.msra.mxu0 0.0
        %5138 = vmatprep.subr.mxu0 0.0
        %5139 = vmatpush1.xpose.msra.mxu0 0.0
        %5140 = vmatprep.subr.mxu0 0.0
        %5141 = vmatpush1.xpose.msra.mxu0 0.0
        %5142 = vmatprep.subr.mxu0 0.0
        %5143 = vmatpush1.xpose.msra.mxu0 0.0
        %5144 = vmatprep.subr.mxu0 0.0
        %5145 = vmatpush1.xpose.msra.mxu0 0.0
        %5146 = vmatprep.subr.mxu0 0.0
        %5147 = vmatpush1.xpose.msra.mxu0 0.0
        %5148 = vmatprep.subr.mxu0 0.0
        %5149 = vmatpush1.xpose.msra.mxu0 0.0
        %5150 = vmatprep.subr.mxu0 0.0
        %5151 = vmatpush1.xpose.msra.mxu0 0.0
        %5152 = vmatprep.subr.mxu0 0.0
        %5153 = vmatpush1.xpose.msra.mxu0 0.0
        %5154 = vmatprep.subr.mxu0 0.0
        %5155 = vmatpush1.xpose.msra.mxu0 0.0
        %5156 = vmatprep.subr.mxu0 0.0
        %5157 = vmatpush1.xpose.msra.mxu0 0.0
        %5158 = vmatprep.subr.mxu0 0.0
        %5159 = vmatpush1.xpose.msra.mxu0 0.0
        %5160 = vmatprep.subr.mxu0 0.0
        %5161 = vmatpush1.xpose.msra.mxu0 0.0
        %5162 = vmatprep.subr.mxu0 0.0
        %5163 = vmatpush1.xpose.msra.mxu0 0.0
        %5164 = vmatprep.subr.mxu0 0.0
        %5165 = vmatpush1.xpose.msra.mxu0 0.0
        %5166 = vmatprep.subr.mxu0 0.0
        %5167 = vmatpush1.xpose.msra.mxu0 0.0
        %5168 = vmatprep.subr.mxu0 0.0
        %5169 = vmatpush1.xpose.msra.mxu0 0.0
        %5170 = vmatprep.subr.mxu0 0.0
        %5171 = vmatpush1.xpose.msra.mxu0 0.0
        %5172 = vmatprep.subr.mxu0 0.0
        %5173 = vmatpush1.xpose.msra.mxu0 0.0
        %5174 = vmatprep.subr.mxu0 0.0
        %5175 = vmatpush1.xpose.msra.mxu0 0.0
        %5176 = vmatprep.subr.mxu0 0.0
        %5177 = vmatpush1.xpose.msra.mxu0 0.0
        %5178 = vmatprep.subr.mxu0 0.0
        %5179 = vmatpush1.xpose.msra.mxu0 0.0
        %5180 = vmatprep.subr.mxu0 0.0
        %5181 = vmatpush1.xpose.msra.mxu0 0.0
        %5182 = vmatprep.subr.mxu0 0.0
        %5183 = vmatpush1.xpose.msra.mxu0 0.0
        %5184 = vmatprep.subr.mxu0 0.0
        %5185 = vmatpush1.xpose.msra.mxu0 0.0
        %5186 = vmatprep.subr.mxu0 0.0
        %5187 = vmatpush1.xpose.msra.mxu0 0.0
        %5188 = vmatprep.mubr.f32.mxu0 0.0
        %5189 = vmatmul.mubr.f32.gmra.mrb[0].mxu0 %v5120
        %v5190 = vpop.f32.mrb[0].mxu0
        %v5191 = vadd.f32 0.0, %v5190
        %v5192 = vpop.f32.mrb[0].mxu0
        %5193 = vdwg.mxu0
        %v5194 = vmul.f32 %v5191, 0.35355338
        %v5195 = vsel %vm823, %v5194, -inf
        %5196 = vmax.xlane.f32.xlu0 %v5195
        %v5197 = vpop.xlane.xlu0 %5196
        %v5198 = vsub.f32 %v5194, %v5197
        %v5199 = vmul.f32 %v5198, 1.442695
        %v5200 = vpow.pop %v5199
        %v5201 = vsel %vm823, %v5200, 0.0
        %5202 = vadd.xlane.f32.xlu0 %v5201
        %v5203 = vpop.xlane.xlu0 %5202
        %v5204 = vrcp.pop %v5203
        %v5205 = vmul.f32 %v5200, %v5204
        %v5208 = vsel %vm823, %v5205, 0
        %5210 = vmatprep.subr.mxu0 0.0
        %5211 = vmatpush1.msra.mxu0 %v5119
        %5212 = vmatprep.subr.mxu0 0.0
        %5213 = vmatpush1.msra.mxu0 0.0
        %5214 = vmatprep.subr.mxu0 0.0
        %5215 = vmatpush1.msra.mxu0 0.0
        %5216 = vmatprep.subr.mxu0 0.0
        %5217 = vmatpush1.msra.mxu0 0.0
        %5218 = vmatprep.subr.mxu0 0.0
        %5219 = vmatpush1.msra.mxu0 0.0
        %5220 = vmatprep.subr.mxu0 0.0
        %5221 = vmatpush1.msra.mxu0 0.0
        %5222 = vmatprep.subr.mxu0 0.0
        %5223 = vmatpush1.msra.mxu0 0.0
        %5224 = vmatprep.subr.mxu0 0.0
        %5225 = vmatpush1.msra.mxu0 0.0
        %5226 = vmatprep.subr.mxu0 0.0
        %5227 = vmatpush1.msra.mxu0 0.0
        %5228 = vmatprep.subr.mxu0 0.0
        %5229 = vmatpush1.msra.mxu0 0.0
        %5230 = vmatprep.subr.mxu0 0.0
        %5231 = vmatpush1.msra.mxu0 0.0
        %5232 = vmatprep.subr.mxu0 0.0
        %5233 = vmatpush1.msra.mxu0 0.0
        %5234 = vmatprep.subr.mxu0 0.0
        %5235 = vmatpush1.msra.mxu0 0.0
        %5236 = vmatprep.subr.mxu0 0.0
        %5237 = vmatpush1.msra.mxu0 0.0
        %5238 = vmatprep.subr.mxu0 0.0
        %5239 = vmatpush1.msra.mxu0 0.0
        %5240 = vmatprep.subr.mxu0 0.0
        %5241 = vmatpush1.msra.mxu0 0.0
        %5242 = vmatprep.subr.mxu0 0.0
        %5243 = vmatpush1.msra.mxu0 0.0
        %5244 = vmatprep.subr.mxu0 0.0
        %5245 = vmatpush1.msra.mxu0 0.0
        %5246 = vmatprep.subr.mxu0 0.0
        %5247 = vmatpush1.msra.mxu0 0.0
        %5248 = vmatprep.subr.mxu0 0.0
        %5249 = vmatpush1.msra.mxu0 0.0
        %5250 = vmatprep.subr.mxu0 0.0
        %5251 = vmatpush1.msra.mxu0 0.0
        %5252 = vmatprep.subr.mxu0 0.0
        %5253 = vmatpush1.msra.mxu0 0.0
        %5254 = vmatprep.subr.mxu0 0.0
        %5255 = vmatpush1.msra.mxu0 0.0
        %5256 = vmatprep.subr.mxu0 0.0
        %5257 = vmatpush1.msra.mxu0 0.0
        %5258 = vmatprep.subr.mxu0 0.0
        %5259 = vmatpush1.msra.mxu0 0.0
        %5260 = vmatprep.subr.mxu0 0.0
        %5261 = vmatpush1.msra.mxu0 0.0
        %5262 = vmatprep.subr.mxu0 0.0
        %5263 = vmatpush1.msra.mxu0 0.0
        %5264 = vmatprep.subr.mxu0 0.0
        %5265 = vmatpush1.msra.mxu0 0.0
        %5266 = vmatprep.subr.mxu0 0.0
        %5267 = vmatpush1.msra.mxu0 0.0
        %5268 = vmatprep.subr.mxu0 0.0
        %5269 = vmatpush1.msra.mxu0 0.0
        %5270 = vmatprep.subr.mxu0 0.0
        %5271 = vmatpush1.msra.mxu0 0.0
        %5272 = vmatprep.subr.mxu0 0.0
        %5273 = vmatpush1.msra.mxu0 0.0
        %5274 = vmatprep.mubr.f32.mxu0 0.0
        %5275 = vmatmul.mubr.f32.gmra.mrb[0].mxu0 %v5208
        %v5276 = vpop.f32.mrb[0].mxu0
        %v5277 = vadd.f32 0.0, %v5276
        %v5278 = vpop.f32.mrb[0].mxu0
        %5279 = vdwg.mxu0
        %5280 = vrot.lane.b32.xlu0 %v4954, 112
        %v5281 = vpop.permute.xlu0 %5280
        %5282 = vrot.lane.b32.xlu0 %v4876, 112
        %v5283 = vpop.permute.xlu0 %5282
        %v5284 = vsel %vm823, %v5281, 0
        %v5286 = vsel %vm823, %v5283, 0
        %5288 = vmatprep.subr.mxu0 0.0
        %5289 = vmatpush1.xpose.msra.mxu0 %v5286
        %5290 = vmatprep.subr.mxu0 0.0
        %5291 = vmatpush1.xpose.msra.mxu0 0.0
        %5292 = vmatprep.subr.mxu0 0.0
        %5293 = vmatpush1.xpose.msra.mxu0 0.0
        %5294 = vmatprep.subr.mxu0 0.0
        %5295 = vmatpush1.xpose.msra.mxu0 0.0
        %5296 = vmatprep.subr.mxu0 0.0
        %5297 = vmatpush1.xpose.msra.mxu0 0.0
        %5298 = vmatprep.subr.mxu0 0.0
        %5299 = vmatpush1.xpose.msra.mxu0 0.0
        %5300 = vmatprep.subr.mxu0 0.0
        %5301 = vmatpush1.xpose.msra.mxu0 0.0
        %5302 = vmatprep.subr.mxu0 0.0
        %5303 = vmatpush1.xpose.msra.mxu0 0.0
        %5304 = vmatprep.subr.mxu0 0.0
        %5305 = vmatpush1.xpose.msra.mxu0 0.0
        %5306 = vmatprep.subr.mxu0 0.0
        %5307 = vmatpush1.xpose.msra.mxu0 0.0
        %5308 = vmatprep.subr.mxu0 0.0
        %5309 = vmatpush1.xpose.msra.mxu0 0.0
        %5310 = vmatprep.subr.mxu0 0.0
        %5311 = vmatpush1.xpose.msra.mxu0 0.0
        %5312 = vmatprep.subr.mxu0 0.0
        %5313 = vmatpush1.xpose.msra.mxu0 0.0
        %5314 = vmatprep.subr.mxu0 0.0
        %5315 = vmatpush1.xpose.msra.mxu0 0.0
        %5316 = vmatprep.subr.mxu0 0.0
        %5317 = vmatpush1.xpose.msra.mxu0 0.0
        %5318 = vmatprep.subr.mxu0 0.0
        %5319 = vmatpush1.xpose.msra.mxu0 0.0
        %5320 = vmatprep.subr.mxu0 0.0
        %5321 = vmatpush1.xpose.msra.mxu0 0.0
        %5322 = vmatprep.subr.mxu0 0.0
        %5323 = vmatpush1.xpose.msra.mxu0 0.0
        %5324 = vmatprep.subr.mxu0 0.0
        %5325 = vmatpush1.xpose.msra.mxu0 0.0
        %5326 = vmatprep.subr.mxu0 0.0
        %5327 = vmatpush1.xpose.msra.mxu0 0.0
        %5328 = vmatprep.subr.mxu0 0.0
        %5329 = vmatpush1.xpose.msra.mxu0 0.0
        %5330 = vmatprep.subr.mxu0 0.0
        %5331 = vmatpush1.xpose.msra.mxu0 0.0
        %5332 = vmatprep.subr.mxu0 0.0
        %5333 = vmatpush1.xpose.msra.mxu0 0.0
        %5334 = vmatprep.subr.mxu0 0.0
        %5335 = vmatpush1.xpose.msra.mxu0 0.0
        %5336 = vmatprep.subr.mxu0 0.0
        %5337 = vmatpush1.xpose.msra.mxu0 0.0
        %5338 = vmatprep.subr.mxu0 0.0
        %5339 = vmatpush1.xpose.msra.mxu0 0.0
        %5340 = vmatprep.subr.mxu0 0.0
        %5341 = vmatpush1.xpose.msra.mxu0 0.0
        %5342 = vmatprep.subr.mxu0 0.0
        %5343 = vmatpush1.xpose.msra.mxu0 0.0
        %5344 = vmatprep.subr.mxu0 0.0
        %5345 = vmatpush1.xpose.msra.mxu0 0.0
        %5346 = vmatprep.subr.mxu0 0.0
        %5347 = vmatpush1.xpose.msra.mxu0 0.0
        %5348 = vmatprep.subr.mxu0 0.0
        %5349 = vmatpush1.xpose.msra.mxu0 0.0
        %5350 = vmatprep.subr.mxu0 0.0
        %5351 = vmatpush1.xpose.msra.mxu0 0.0
        %5352 = vmatprep.mubr.f32.mxu0 0.0
        %5353 = vmatmul.mubr.f32.gmra.mrb[0].mxu0 %v5284
        %v5354 = vpop.f32.mrb[0].mxu0
        %v5355 = vadd.f32 0.0, %v5354
        %v5356 = vpop.f32.mrb[0].mxu0
        %5357 = vdwg.mxu0
        %v5358 = vmul.f32 %v5355, 0.35355338
        %v5359 = vsel %vm823, %v5358, -inf
        %5360 = vmax.xlane.f32.xlu0 %v5359
        %v5361 = vpop.xlane.xlu0 %5360
        %v5362 = vsub.f32 %v5358, %v5361
        %v5363 = vmul.f32 %v5362, 1.442695
        %v5364 = vpow.pop %v5363
        %v5365 = vsel %vm823, %v5364, 0.0
        %5366 = vadd.xlane.f32.xlu0 %v5365
        %v5367 = vpop.xlane.xlu0 %5366
        %v5368 = vrcp.pop %v5367
        %v5369 = vmul.f32 %v5364, %v5368
        %v5372 = vsel %vm823, %v5369, 0
        %5374 = vmatprep.subr.mxu0 0.0
        %5375 = vmatpush1.msra.mxu0 %v5283
        %5376 = vmatprep.subr.mxu0 0.0
        %5377 = vmatpush1.msra.mxu0 0.0
        %5378 = vmatprep.subr.mxu0 0.0
        %5379 = vmatpush1.msra.mxu0 0.0
        %5380 = vmatprep.subr.mxu0 0.0
        %5381 = vmatpush1.msra.mxu0 0.0
        %5382 = vmatprep.subr.mxu0 0.0
        %5383 = vmatpush1.msra.mxu0 0.0
        %5384 = vmatprep.subr.mxu0 0.0
        %5385 = vmatpush1.msra.mxu0 0.0
        %5386 = vmatprep.subr.mxu0 0.0
        %5387 = vmatpush1.msra.mxu0 0.0
        %5388 = vmatprep.subr.mxu0 0.0
        %5389 = vmatpush1.msra.mxu0 0.0
        %5390 = vmatprep.subr.mxu0 0.0
        %5391 = vmatpush1.msra.mxu0 0.0
        %5392 = vmatprep.subr.mxu0 0.0
        %5393 = vmatpush1.msra.mxu0 0.0
        %5394 = vmatprep.subr.mxu0 0.0
        %5395 = vmatpush1.msra.mxu0 0.0
        %5396 = vmatprep.subr.mxu0 0.0
        %5397 = vmatpush1.msra.mxu0 0.0
        %5398 = vmatprep.subr.mxu0 0.0
        %5399 = vmatpush1.msra.mxu0 0.0
        %5400 = vmatprep.subr.mxu0 0.0
        %5401 = vmatpush1.msra.mxu0 0.0
        %5402 = vmatprep.subr.mxu0 0.0
        %5403 = vmatpush1.msra.mxu0 0.0
        %5404 = vmatprep.subr.mxu0 0.0
        %5405 = vmatpush1.msra.mxu0 0.0
        %5406 = vmatprep.subr.mxu0 0.0
        %5407 = vmatpush1.msra.mxu0 0.0
        %5408 = vmatprep.subr.mxu0 0.0
        %5409 = vmatpush1.msra.mxu0 0.0
        %5410 = vmatprep.subr.mxu0 0.0
        %5411 = vmatpush1.msra.mxu0 0.0
        %5412 = vmatprep.subr.mxu0 0.0
        %5413 = vmatpush1.msra.mxu0 0.0
        %5414 = vmatprep.subr.mxu0 0.0
        %5415 = vmatpush1.msra.mxu0 0.0
        %5416 = vmatprep.subr.mxu0 0.0
        %5417 = vmatpush1.msra.mxu0 0.0
        %5418 = vmatprep.subr.mxu0 0.0
        %5419 = vmatpush1.msra.mxu0 0.0
        %5420 = vmatprep.subr.mxu0 0.0
        %5421 = vmatpush1.msra.mxu0 0.0
        %5422 = vmatprep.subr.mxu0 0.0
        %5423 = vmatpush1.msra.mxu0 0.0
        %5424 = vmatprep.subr.mxu0 0.0
        %5425 = vmatpush1.msra.mxu0 0.0
        %5426 = vmatprep.subr.mxu0 0.0
        %5427 = vmatpush1.msra.mxu0 0.0
        %5428 = vmatprep.subr.mxu0 0.0
        %5429 = vmatpush1.msra.mxu0 0.0
        %5430 = vmatprep.subr.mxu0 0.0
        %5431 = vmatpush1.msra.mxu0 0.0
        %5432 = vmatprep.subr.mxu0 0.0
        %5433 = vmatpush1.msra.mxu0 0.0
        %5434 = vmatprep.subr.mxu0 0.0
        %5435 = vmatpush1.msra.mxu0 0.0
        %5436 = vmatprep.subr.mxu0 0.0
        %5437 = vmatpush1.msra.mxu0 0.0
        %5438 = vmatprep.mubr.f32.mxu0 0.0
        %5439 = vmatmul.mubr.f32.gmra.mrb[0].mxu0 %v5372
        %v5440 = vpop.f32.mrb[0].mxu0
        %v5441 = vadd.f32 0.0, %v5440
        %v5442 = vpop.f32.mrb[0].mxu0
        %5443 = vdwg.mxu0
        %5444 = vrot.lane.b32.xlu0 %v4954, 104
        %v5445 = vpop.permute.xlu0 %5444
        %5446 = vrot.lane.b32.xlu0 %v4876, 104
        %v5447 = vpop.permute.xlu0 %5446
        %v5448 = vsel %vm823, %v5445, 0
        %v5450 = vsel %vm823, %v5447, 0
        %5452 = vmatprep.subr.mxu0 0.0
        %5453 = vmatpush1.xpose.msra.mxu0 %v5450
        %5454 = vmatprep.subr.mxu0 0.0
        %5455 = vmatpush1.xpose.msra.mxu0 0.0
        %5456 = vmatprep.subr.mxu0 0.0
        %5457 = vmatpush1.xpose.msra.mxu0 0.0
        %5458 = vmatprep.subr.mxu0 0.0
        %5459 = vmatpush1.xpose.msra.mxu0 0.0
        %5460 = vmatprep.subr.mxu0 0.0
        %5461 = vmatpush1.xpose.msra.mxu0 0.0
        %5462 = vmatprep.subr.mxu0 0.0
        %5463 = vmatpush1.xpose.msra.mxu0 0.0
        %5464 = vmatprep.subr.mxu0 0.0
        %5465 = vmatpush1.xpose.msra.mxu0 0.0
        %5466 = vmatprep.subr.mxu0 0.0
        %5467 = vmatpush1.xpose.msra.mxu0 0.0
        %5468 = vmatprep.subr.mxu0 0.0
        %5469 = vmatpush1.xpose.msra.mxu0 0.0
        %5470 = vmatprep.subr.mxu0 0.0
        %5471 = vmatpush1.xpose.msra.mxu0 0.0
        %5472 = vmatprep.subr.mxu0 0.0
        %5473 = vmatpush1.xpose.msra.mxu0 0.0
        %5474 = vmatprep.subr.mxu0 0.0
        %5475 = vmatpush1.xpose.msra.mxu0 0.0
        %5476 = vmatprep.subr.mxu0 0.0
        %5477 = vmatpush1.xpose.msra.mxu0 0.0
        %5478 = vmatprep.subr.mxu0 0.0
        %5479 = vmatpush1.xpose.msra.mxu0 0.0
        %5480 = vmatprep.subr.mxu0 0.0
        %5481 = vmatpush1.xpose.msra.mxu0 0.0
        %5482 = vmatprep.subr.mxu0 0.0
        %5483 = vmatpush1.xpose.msra.mxu0 0.0
        %5484 = vmatprep.subr.mxu0 0.0
        %5485 = vmatpush1.xpose.msra.mxu0 0.0
        %5486 = vmatprep.subr.mxu0 0.0
        %5487 = vmatpush1.xpose.msra.mxu0 0.0
        %5488 = vmatprep.subr.mxu0 0.0
        %5489 = vmatpush1.xpose.msra.mxu0 0.0
        %5490 = vmatprep.subr.mxu0 0.0
        %5491 = vmatpush1.xpose.msra.mxu0 0.0
        %5492 = vmatprep.subr.mxu0 0.0
        %5493 = vmatpush1.xpose.msra.mxu0 0.0
        %5494 = vmatprep.subr.mxu0 0.0
        %5495 = vmatpush1.xpose.msra.mxu0 0.0
        %5496 = vmatprep.subr.mxu0 0.0
        %5497 = vmatpush1.xpose.msra.mxu0 0.0
        %5498 = vmatprep.subr.mxu0 0.0
        %5499 = vmatpush1.xpose.msra.mxu0 0.0
        %5500 = vmatprep.subr.mxu0 0.0
        %5501 = vmatpush1.xpose.msra.mxu0 0.0
        %5502 = vmatprep.subr.mxu0 0.0
        %5503 = vmatpush1.xpose.msra.mxu0 0.0
        %5504 = vmatprep.subr.mxu0 0.0
        %5505 = vmatpush1.xpose.msra.mxu0 0.0
        %5506 = vmatprep.subr.mxu0 0.0
        %5507 = vmatpush1.xpose.msra.mxu0 0.0
        %5508 = vmatprep.subr.mxu0 0.0
        %5509 = vmatpush1.xpose.msra.mxu0 0.0
        %5510 = vmatprep.subr.mxu0 0.0
        %5511 = vmatpush1.xpose.msra.mxu0 0.0
        %5512 = vmatprep.subr.mxu0 0.0
        %5513 = vmatpush1.xpose.msra.mxu0 0.0
        %5514 = vmatprep.subr.mxu0 0.0
        %5515 = vmatpush1.xpose.msra.mxu0 0.0
        %5516 = vmatprep.mubr.f32.mxu0 0.0
        %5517 = vmatmul.mubr.f32.gmra.mrb[0].mxu0 %v5448
        %v5518 = vpop.f32.mrb[0].mxu0
        %v5519 = vadd.f32 0.0, %v5518
        %v5520 = vpop.f32.mrb[0].mxu0
        %5521 = vdwg.mxu0
        %v5522 = vmul.f32 %v5519, 0.35355338
        %v5523 = vsel %vm823, %v5522, -inf
        %5524 = vmax.xlane.f32.xlu0 %v5523
        %v5525 = vpop.xlane.xlu0 %5524
        %v5526 = vsub.f32 %v5522, %v5525
        %v5527 = vmul.f32 %v5526, 1.442695
        %v5528 = vpow.pop %v5527
        %v5529 = vsel %vm823, %v5528, 0.0
        %5530 = vadd.xlane.f32.xlu0 %v5529
        %v5531 = vpop.xlane.xlu0 %5530
        %v5532 = vrcp.pop %v5531
        %v5533 = vmul.f32 %v5528, %v5532
        %v5536 = vsel %vm823, %v5533, 0
        %5538 = vmatprep.subr.mxu0 0.0
        %5539 = vmatpush1.msra.mxu0 %v5447
        %5540 = vmatprep.subr.mxu0 0.0
        %5541 = vmatpush1.msra.mxu0 0.0
        %5542 = vmatprep.subr.mxu0 0.0
        %5543 = vmatpush1.msra.mxu0 0.0
        %5544 = vmatprep.subr.mxu0 0.0
        %5545 = vmatpush1.msra.mxu0 0.0
        %5546 = vmatprep.subr.mxu0 0.0
        %5547 = vmatpush1.msra.mxu0 0.0
        %5548 = vmatprep.subr.mxu0 0.0
        %5549 = vmatpush1.msra.mxu0 0.0
        %5550 = vmatprep.subr.mxu0 0.0
        %5551 = vmatpush1.msra.mxu0 0.0
        %5552 = vmatprep.subr.mxu0 0.0
        %5553 = vmatpush1.msra.mxu0 0.0
        %5554 = vmatprep.subr.mxu0 0.0
        %5555 = vmatpush1.msra.mxu0 0.0
        %5556 = vmatprep.subr.mxu0 0.0
        %5557 = vmatpush1.msra.mxu0 0.0
        %5558 = vmatprep.subr.mxu0 0.0
        %5559 = vmatpush1.msra.mxu0 0.0
        %5560 = vmatprep.subr.mxu0 0.0
        %5561 = vmatpush1.msra.mxu0 0.0
        %5562 = vmatprep.subr.mxu0 0.0
        %5563 = vmatpush1.msra.mxu0 0.0
        %5564 = vmatprep.subr.mxu0 0.0
        %5565 = vmatpush1.msra.mxu0 0.0
        %5566 = vmatprep.subr.mxu0 0.0
        %5567 = vmatpush1.msra.mxu0 0.0
        %5568 = vmatprep.subr.mxu0 0.0
        %5569 = vmatpush1.msra.mxu0 0.0
        %5570 = vmatprep.subr.mxu0 0.0
        %5571 = vmatpush1.msra.mxu0 0.0
        %5572 = vmatprep.subr.mxu0 0.0
        %5573 = vmatpush1.msra.mxu0 0.0
        %5574 = vmatprep.subr.mxu0 0.0
        %5575 = vmatpush1.msra.mxu0 0.0
        %5576 = vmatprep.subr.mxu0 0.0
        %5577 = vmatpush1.msra.mxu0 0.0
        %5578 = vmatprep.subr.mxu0 0.0
        %5579 = vmatpush1.msra.mxu0 0.0
        %5580 = vmatprep.subr.mxu0 0.0
        %5581 = vmatpush1.msra.mxu0 0.0
        %5582 = vmatprep.subr.mxu0 0.0
        %5583 = vmatpush1.msra.mxu0 0.0
        %5584 = vmatprep.subr.mxu0 0.0
        %5585 = vmatpush1.msra.mxu0 0.0
        %5586 = vmatprep.subr.mxu0 0.0
        %5587 = vmatpush1.msra.mxu0 0.0
        %5588 = vmatprep.subr.mxu0 0.0
        %5589 = vmatpush1.msra.mxu0 0.0
        %5590 = vmatprep.subr.mxu0 0.0
        %5591 = vmatpush1.msra.mxu0 0.0
        %5592 = vmatprep.subr.mxu0 0.0
        %5593 = vmatpush1.msra.mxu0 0.0
        %5594 = vmatprep.subr.mxu0 0.0
        %5595 = vmatpush1.msra.mxu0 0.0
        %5596 = vmatprep.subr.mxu0 0.0
        %5597 = vmatpush1.msra.mxu0 0.0
        %5598 = vmatprep.subr.mxu0 0.0
        %5599 = vmatpush1.msra.mxu0 0.0
        %5600 = vmatprep.subr.mxu0 0.0
        %5601 = vmatpush1.msra.mxu0 0.0
        %5602 = vmatprep.mubr.f32.mxu0 0.0
        %5603 = vmatmul.mubr.f32.gmra.mrb[0].mxu0 %v5536
        %v5604 = vpop.f32.mrb[0].mxu0
        %v5605 = vadd.f32 0.0, %v5604
        %v5606 = vpop.f32.mrb[0].mxu0
        %5607 = vdwg.mxu0
        %5609 = vrot.lane.b32.xlu0 %v5277, 8
        %v5610 = vpop.permute.xlu0 %5609
        %5613 = vrot.lane.b32.xlu0 %v5441, 16
        %v5614 = vpop.permute.xlu0 %5613
        %5617 = vrot.lane.b32.xlu0 %v5605, 24
        %v5618 = vpop.permute.xlu0 %5617
        %v5620 = vsel %vm823, %v5113, %v5610
        %v5621 = vsel %vm1490, %v5620, %v5614
        %v5622 = vsel %vm1492, %v5621, %v5618
        %v5624 = vlaneseq
        %v5625 = vshrl.u32 %v5624, 7
        %v5626 = vsub.s32 0, %v5625
        %v5627 = vrot.slane %v4719, %v5626
        %v5630 = vsel %vm594, %v5622, 0
        %5632 = vmatprep.subr.mxu0 0.0
        %5633 = vmatpush1.msra.mxu0 %v4710
        %5634 = vmatprep.subr.mxu0 0.0
        %5635 = vmatpush1.msra.mxu0 %v4711
        %5636 = vmatprep.subr.mxu0 0.0
        %5637 = vmatpush1.msra.mxu0 %v4712
        %5638 = vmatprep.subr.mxu0 0.0
        %5639 = vmatpush1.msra.mxu0 %v4713
        %5640 = vmatprep.subr.mxu0 0.0
        %5641 = vmatpush1.msra.mxu0 0.0
        %5642 = vmatprep.subr.mxu0 0.0
        %5643 = vmatpush1.msra.mxu0 0.0
        %5644 = vmatprep.subr.mxu0 0.0
        %5645 = vmatpush1.msra.mxu0 0.0
        %5646 = vmatprep.subr.mxu0 0.0
        %5647 = vmatpush1.msra.mxu0 0.0
        %5648 = vmatprep.subr.mxu0 0.0
        %5649 = vmatpush1.msra.mxu0 0.0
        %5650 = vmatprep.subr.mxu0 0.0
        %5651 = vmatpush1.msra.mxu0 0.0
        %5652 = vmatprep.subr.mxu0 0.0
        %5653 = vmatpush1.msra.mxu0 0.0
        %5654 = vmatprep.subr.mxu0 0.0
        %5655 = vmatpush1.msra.mxu0 0.0
        %5656 = vmatprep.subr.mxu0 0.0
        %5657 = vmatpush1.msra.mxu0 0.0
        %5658 = vmatprep.subr.mxu0 0.0
        %5659 = vmatpush1.msra.mxu0 0.0
        %5660 = vmatprep.subr.mxu0 0.0
        %5661 = vmatpush1.msra.mxu0 0.0
        %5662 = vmatprep.subr.mxu0 0.0
        %5663 = vmatpush1.msra.mxu0 0.0
        %5664 = vmatprep.subr.mxu0 0.0
        %5665 = vmatpush1.msra.mxu0 0.0
        %5666 = vmatprep.subr.mxu0 0.0
        %5667 = vmatpush1.msra.mxu0 0.0
        %5668 = vmatprep.subr.mxu0 0.0
        %5669 = vmatpush1.msra.mxu0 0.0
        %5670 = vmatprep.subr.mxu0 0.0
        %5671 = vmatpush1.msra.mxu0 0.0
        %5672 = vmatprep.subr.mxu0 0.0
        %5673 = vmatpush1.msra.mxu0 0.0
        %5674 = vmatprep.subr.mxu0 0.0
        %5675 = vmatpush1.msra.mxu0 0.0
        %5676 = vmatprep.subr.mxu0 0.0
        %5677 = vmatpush1.msra.mxu0 0.0
        %5678 = vmatprep.subr.mxu0 0.0
        %5679 = vmatpush1.msra.mxu0 0.0
        %5680 = vmatprep.subr.mxu0 0.0
        %5681 = vmatpush1.msra.mxu0 0.0
        %5682 = vmatprep.subr.mxu0 0.0
        %5683 = vmatpush1.msra.mxu0 0.0
        %5684 = vmatprep.subr.mxu0 0.0
        %5685 = vmatpush1.msra.mxu0 0.0
        %5686 = vmatprep.subr.mxu0 0.0
        %5687 = vmatpush1.msra.mxu0 0.0
        %5688 = vmatprep.subr.mxu0 0.0
        %5689 = vmatpush1.msra.mxu0 0.0
        %5690 = vmatprep.subr.mxu0 0.0
        %5691 = vmatpush1.msra.mxu0 0.0
        %5692 = vmatprep.subr.mxu0 0.0
        %5693 = vmatpush1.msra.mxu0 0.0
        %5694 = vmatprep.subr.mxu0 0.0
        %5695 = vmatpush1.msra.mxu0 0.0
        %5696 = vmatprep.mubr.f32.mxu0 0.0
        %5697 = vmatmul.mubr.f32.gmra.mrb[0].mxu0 %v5630
        %v5698 = vpop.f32.mrb[0].mxu0
        %v5699 = vadd.f32 %v5627, %v5698
        %v5700 = vpop.f32.mrb[0].mxu0
        %5701 = vdwg.mxu0
        %v5702 = vadd.f32 %v5699, %v4698
        %v5703 = vsel %vm594, %v5702, 0.0
        %5704 = vadd.xlane.f32.xlu0 %v5703
        %v5705 = vpop.xlane.xlu0 %5704
        %v5706 = vmul.f32 %v5705, %v1577
        %v5707 = vsub.f32 %v5702, %v5706
        %v5708 = vmul.f32 %v5707, %v5707
        %v5709 = vsel %vm594, %v5708, 0.0
        %5710 = vadd.xlane.f32.xlu0 %v5709
        %v5711 = vpop.xlane.xlu0 %5710
        %v5712 = vmul.f32 %v5711, %v1577
        %v5713 = vadd.f32 %v5712, 1e-05
        %v5714 = vrsqrt.pop %v5713
        %v5715 = vmul.f32 %v5707, %v5714
        %v5717 = vlaneseq
        %v5718 = vshrl.u32 %v5717, 7
        %v5719 = vsub.s32 0, %v5718
        %v5720 = vrot.slane %v4721, %v5719
        %v5722 = vmul.f32 %v5715, %v5720
        %v5724 = vlaneseq
        %v5725 = vshrl.u32 %v5724, 7
        %v5726 = vsub.s32 0, %v5725
        %v5727 = vrot.slane %v4723, %v5726
        %v5729 = vadd.f32 %v5722, %v5727
        %v5730 = vmax.f32 %v5729, 0.0
        %5731 = vst.msk [vmem:[%s562] sm:$0xff] %vm594, %v5730
        %s5732 = sand.u32 %s326, 1
        %s5733 = scalar_lea.sflag [#allocation4], %s5732
        %s5734 = sand.u32 %s326, 1
        %s5735 = smul.addr %s5734, 8
        %s5736 = scalar_lea.vmem [#allocation14], %s5735
        // Predicated region
        $region101: #{tpu_custom_call.1} parent=71 // pred_check
          %p5737 = pneg %p336
        $region102: #{tpu_custom_call.1} parent=71 // pred_check_branch
          %5739 = sbr.rel (%p5737) target = $region104
        $region103: #{tpu_custom_call.1} parent=71 // pred_region
          %s5741 = ssub.s32 128, 128
          %5742 = vsyncadd %s5733, %s5741
          %s5743 = smul.addr %s35, 128
          %s5744 = scalar_lea.hbm %s13, %s5743
          %s5746 = sshll.u32 %s5736, 4
          %s5747 = int_to_ptr.vmem [resolvable:$true] %s5746
          %5749 = dma.vmem_to_hbm [thread:$0]  %s5747, 128, %s5744, %s5733
        $region104: #{tpu_custom_call.1} parent=71 // pred_fallthru
          _
      $region72: #{tpu_custom_call.1} parent=5 // pred_fallthru
        _
      %p5750 = scmp.le.s32.totalorder 2, %s30
      // Predicated region
      $region105: #{tpu_custom_call.1} parent=5 // pred_check
        %p5751 = pneg %p5750
      $region106: #{tpu_custom_call.1} parent=5 // pred_check_branch
        %5753 = sbr.rel (%p5751) target = $region108
      $region107: #{tpu_custom_call.1} parent=5 // pred_region
        %s5754 = ssub.s32 %s30, 2
        // Predicated region
        $region109: #{tpu_custom_call.1} parent=107 // pred_check
          %p5755 = pneg %p342
        $region110: #{tpu_custom_call.1} parent=107 // pred_check_branch
          %5757 = sbr.rel (%p5755) target = $region112
        $region111: #{tpu_custom_call.1} parent=107 // pred_region
          %s5758 = sand.u32 %s327, 1
          %s5759 = scalar_lea.sflag [#allocation4], %s5758
          %s5760 = sand.u32 %s327, 1
          %s5761 = smul.addr %s5760, 8
          %s5762 = scalar_lea.vmem [#allocation14], %s5761
          %5763 = dma.done %s5759, 128
        $region112: #{tpu_custom_call.1} parent=107 // pred_fallthru
          _
      $region108: #{tpu_custom_call.1} parent=5 // pred_fallthru
        _
    $region6: #{tpu_custom_call.1} parent=1 // loop_footer
      %s34 = sadd.s32 1, %s30
    $region7: #{tpu_custom_call.1} parent=1 // loop_footer_branch
      %29 = sbr.rel target = $region3
    $region8: #{tpu_custom_call.1} parent=1 // loop_exit
      _
    %5764 = vsyncpa [#allocation3], 1
    %s5765 = scalar_lea.sflag [#allocation3], 1
    %5766 = vsyncpa %s5765, 1
    %5767 = vsyncpa [#allocation6], 1
    %s5768 = scalar_lea.sflag [#allocation6], 1
    %5769 = vsyncpa %s5768, 1
    %5770 = vsyncpa [#allocation9], 1
    %5771 = vsyncpa [#allocation12], 1
    %5772 = vsyncpa [#allocation4], 1
    %s5773 = scalar_lea.sflag [#allocation4], 1
    %5774 = vsyncpa %s5773, 1

</llo_original>
